<compile_context>
chip_gen: v7x
topology: tpu7x:2x2x1
jax: 0.10.0
libtpu: 0.0.40
codegen_flags: <defaults>
</compile_context>

<pallas_src>
import jax
import jax.numpy as jnp
from jax.experimental import pallas as pl
from jax.experimental.pallas import tpu as pltpu


# ----------------------------- in-kernel helpers -----------------------------
def _layernorm(x, gamma, beta, eps=1e-5):
    mu = jnp.mean(x, axis=-1, keepdims=True)
    xc = x - mu
    var = jnp.mean(xc * xc, axis=-1, keepdims=True)
    return xc * jax.lax.rsqrt(var + eps) * gamma + beta


def _softmax(z):
    m = jnp.max(z, axis=-1, keepdims=True)
    e = jnp.exp(z - m)
    s = jnp.sum(e, axis=-1, keepdims=True)
    return e * pl.reciprocal(s, approx=True)          # divide -> EUP slot


def _erf(x):
    # Abramowitz & Stegun 7.1.26 (|err| < 1.5e-7 ~ f32 eps): exact-GELU parity.
    a1, a2, a3, a4, a5 = (0.254829592, -0.284496736, 1.421413741,
                          -1.453152027, 1.061405429)
    p = 0.3275911
    sgn = jnp.where(x >= 0.0, 1.0, -1.0)
    ax = jnp.abs(x)
    t = 1.0 / (1.0 + p * ax)
    poly = ((((a5 * t + a4) * t + a3) * t + a2) * t + a1) * t
    return sgn * (1.0 - poly * jnp.exp(-ax * ax))


def _gelu_exact(x):
    return 0.5 * x * (1.0 + _erf(x * 0.7071067811865476))


_N_W = 13      # tensors per transformer layer


# ------------------------- fused forward kernel builder ----------------------
def _build_kernel(D, heads, dim_heads, geom):
    depth = len(geom)
    inner = heads * dim_heads
    scale = float(dim_heads) ** -0.5

    def kernel(*refs):
        x_ref = refs[0]
        w_refs = refs[1:1 + depth * _N_W]
        o_ref = refs[1 + depth * _N_W]
        c_ref = refs[2 + depth * _N_W]
        bufs = refs[3 + depth * _N_W:]

        # per-head lane masks, built ONCE (hoisted out of the depth loop)
        lane = jax.lax.broadcasted_iota(jnp.int32, (1, inner), 1)
        head_masks = [
            ((lane >= h * dim_heads) & (lane < (h + 1) * dim_heads)
             ).astype(jnp.float32)
            for h in range(heads)
        ]

        x = None                                   # (N, D) activation value
        for l, g in enumerate(geom):
            H, W, pad = g["H"], g["W"], g["pad"]
            Hp, Wp, Ho, Wo = g["Hp"], g["Wp"], g["Ho"], g["Wo"]
            buf = bufs[l]                          # (Hp, Wp, D) VMEM scratch

            # ---- stage input -> spatial scratch; -inf boundary in-kernel ----
            if pad > 0:
                buf[...] = jnp.full((Hp, Wp, D), -jnp.inf, jnp.float32)
            if l == 0:
                if pad > 0:
                    buf[pad:pad + H, pad:pad + W, :] = x_ref[0]
                else:
                    buf[...] = x_ref[0]
            else:
                # un-flatten (N, D) -> H rows of (W, D); layout-safe row stores
                for i in range(H):
                    buf[pad + i, pad:pad + W, :] = x[i * W:(i + 1) * W, :]

            # ---- MaxPool2d(3, stride=2): 9 strided window loads, 8 maxima ----
            pooled = None
            for m in range(3):
                for n in range(3):
                    win = buf[pl.ds(m, Ho, stride=2),
                              pl.ds(n, Wo, stride=2), :]        # (Ho, Wo, D)
                    pooled = win if pooled is None else jnp.maximum(pooled, win)

            # flatten 'h w d -> (h w) d' by concatenating the Ho row slabs
            x = jnp.concatenate([pooled[i] for i in range(Ho)], axis=0)  # (N,D)

            # ---- Residual(LN(Attention)) + Residual(LN(MLP)) -----------------
            (g1, be1, wq, wk, wv, wout, bout,
             g2, be2, w1, bm1, w2, bm2) = [r[...] for r in
                                           w_refs[l * _N_W:(l + 1) * _N_W]]

            xn = _layernorm(x, g1, be1)
            q = jnp.dot(xn, wq, preferred_element_type=jnp.float32)
            k = jnp.dot(xn, wk, preferred_element_type=jnp.float32)
            v = jnp.dot(xn, wv, preferred_element_type=jnp.float32)

            # per-head attention without lane slicing / concat: zero the other
            # heads' lanes (exact: masked lanes contribute 0.0) and accumulate
            # full-width matmul results into the (N, inner) output.
            att = None
            for h in range(heads):
                mh = head_masks[h]                               # (1, inner)
                dots = jax.lax.dot_general(
                    q * mh, k, (((1,), (1,)), ((), ())),
                    preferred_element_type=jnp.float32) * scale  # (N, N)
                attn = _softmax(dots)
                contrib = jnp.dot(attn, v * mh,
                                  preferred_element_type=jnp.float32)  # (N,inner)
                att = contrib if att is None else att + contrib

            x = x + jnp.dot(att, wout, preferred_element_type=jnp.float32) + bout

            xn2 = _layernorm(x, g2, be2)
            hid = jnp.dot(xn2, w1, preferred_element_type=jnp.float32) + bm1
            hid = _gelu_exact(hid)
            x = x + jnp.dot(hid, w2, preferred_element_type=jnp.float32) + bm2

            # ---- centre feature of this stage ( == x[:, :, Ho//2, Wo//2] ) ---
            ci = (Ho // 2) * Wo + (Wo // 2)
            c_ref[0, l:l + 1, :] = x[ci:ci + 1, :]

        o_ref[0] = x                               # final stage tokens (Nf, D)

    return kernel


# --------------------------- PoolingTransformer wrapper ----------------------
def pooling_schedule(patch_size, depth):
    """Replicates PoolingTransformer.__init__ padding bookkeeping exactly."""
    paddings, cur = [], patch_size
    for _ in range(depth):
        padding = 1
        if ((cur + 1) // 2) % 2 == 1:
            padding = 1
            cur = (cur + 1) // 2
        elif ((cur - 1) // 2) % 2 == 1:
            padding = 0
            cur = (cur - 1) // 2
        # NOTE: like the torch module, `cur` is untouched if neither branch
        # fires; the actual forward geometry always uses real tensor shapes.
        paddings.append(padding)
    return paddings


def pooling_transformer_forward(x_nchw, params, patch_size, heads, dim_heads):
    B, D, H0, W0 = x_nchw.shape
    depth = len(params)
    inner = heads * dim_heads
    paddings = pooling_schedule(patch_size, depth)

    # static per-stage geometry from actual tensor sizes (as the torch forward)
    geom, H, W = [], H0, W0
    for p in paddings:
        Hp, Wp = H + 2 * p, W + 2 * p
        Ho, Wo = (Hp - 3) // 2 + 1, (Wp - 3) // 2 + 1
        geom.append(dict(H=H, W=W, pad=p, Hp=Hp, Wp=Wp, Ho=Ho, Wo=Wo))
        H, W = Ho, Wo
    Hf, Wf = geom[-1]["Ho"], geom[-1]["Wo"]
    Nf = Hf * Wf

    x_nhwc = jnp.transpose(x_nchw, (0, 2, 3, 1)).astype(jnp.float32)  # NCHW->NHWC

    def fixed(shape):
        nd = len(shape)
        return pl.BlockSpec(shape, lambda b, _nd=nd: (0,) * _nd)

    w_inputs, w_specs = [], []
    for p in params:
        wq = p["wqkv"][:, 0 * inner:1 * inner]    # split fused qkv at trace time
        wk = p["wqkv"][:, 1 * inner:2 * inner]
        wv = p["wqkv"][:, 2 * inner:3 * inner]
        lw = [p["g1"], p["be1"], wq, wk, wv, p["wout"], p["bout"],
              p["g2"], p["be2"], p["w1"], p["bm1"], p["w2"], p["bm2"]]
        w_inputs += lw
        w_specs += [fixed(t.shape) for t in lw]

    kernel = _build_kernel(D, heads, dim_heads, geom)

    o_x, o_c = pl.pallas_call(
        kernel,
        out_shape=(jax.ShapeDtypeStruct((B, Nf, D), jnp.float32),
                   jax.ShapeDtypeStruct((B, depth, D), jnp.float32)),
        grid=(B,),
        in_specs=[pl.BlockSpec((1, H0, W0, D), lambda b: (b, 0, 0, 0))] + w_specs,
        out_specs=(pl.BlockSpec((1, Nf, D), lambda b: (b, 0, 0)),
                   pl.BlockSpec((1, depth, D), lambda b: (b, 0, 0))),
        scratch_shapes=[pltpu.VMEM((g["Hp"], g["Wp"], D), jnp.float32)
                        for g in geom],
        compiler_params=pltpu.CompilerParams(
            dimension_semantics=("parallel",)),
    )(x_nhwc, *w_inputs)

    x_out = jnp.transpose(o_x.reshape(B, Hf, Wf, D), (0, 3, 1, 2))    # -> NCHW
    centers = [o_c[:, l, :] for l in range(depth)]
    return x_out, centers


# ----------------------------- parameter init --------------------------------
def init_layer_params(key, dim, heads, dim_heads, mlp_dim):
    inner = heads * dim_heads
    ks = jax.random.split(key, 8)
    s = 0.02
    f32 = jnp.float32
    return dict(
        g1=jnp.ones((1, dim), f32),
        be1=jnp.zeros((1, dim), f32),
        wqkv=s * jax.random.normal(ks[0], (dim, 3 * inner), f32),
        wout=s * jax.random.normal(ks[1], (inner, dim), f32),
        bout=s * jax.random.normal(ks[2], (1, dim), f32),
        g2=jnp.ones((1, dim), f32),
        be2=jnp.zeros((1, dim), f32),
        w1=s * jax.random.normal(ks[3], (dim, mlp_dim), f32),
        bm1=s * jax.random.normal(ks[4], (1, mlp_dim), f32),
        w2=s * jax.random.normal(ks[5], (mlp_dim, dim), f32),
        bm2=s * jax.random.normal(ks[6], (1, dim), f32),
    )


# ----------------- pure-JAX reference (torch semantics), for checking --------
def _reference_forward(x_nchw, params, patch_size, heads, dim_heads):
    paddings = pooling_schedule(patch_size, len(params))
    inner = heads * dim_heads
    x = x_nchw
    centers = []

    def ln(z, g, be):
        mu = z.mean(-1, keepdims=True)
        va = ((z - mu) ** 2).mean(-1, keepdims=True)
        return (z - mu) / jnp.sqrt(va + 1e-5) * g + be

    for pad, p in zip(paddings, params):
        if pad > 0:
            x = jnp.pad(x, ((0, 0), (0, 0), (pad, pad), (pad, pad)),
                        constant_values=-jnp.inf)
        B, D, H, W = x.shape
        Ho, Wo = (H - 3) // 2 + 1, (W - 3) // 2 + 1
        pooled = jnp.full((B, D, Ho, Wo), -jnp.inf, x.dtype)
        for m in range(3):
            for n in range(3):
                pooled = jnp.maximum(
                    pooled, x[:, :, m:m + 2 * Ho:2, n:n + 2 * Wo:2])
        t = jnp.transpose(pooled, (0, 2, 3, 1)).reshape(B, Ho * Wo, D)

        xn = ln(t, p["g1"], p["be1"])
        q, k, v = jnp.split(xn @ p["wqkv"], 3, axis=-1)

        def split_heads(z):
            return z.reshape(B, Ho * Wo, heads, dim_heads).transpose(0, 2, 1, 3)

        qh, kh, vh = split_heads(q), split_heads(k), split_heads(v)
        dots = jnp.einsum('bhid,bhjd->bhij', qh, kh) * (dim_heads ** -0.5)
        attn = jax.nn.softmax(dots, axis=-1)
        o = jnp.einsum('bhij,bhjd->bhid', attn, vh)
        o = o.transpose(0, 2, 1, 3).reshape(B, Ho * Wo, inner)
        t = t + o @ p["wout"] + p["bout"]

        xn2 = ln(t, p["g2"], p["be2"])
        hid = xn2 @ p["w1"] + p["bm1"]
        hid = 0.5 * hid * (1.0 + jax.lax.erf(hid / jnp.sqrt(2.0)))
        t = t + hid @ p["w2"] + p["bm2"]

        centers.append(t[:, (Ho // 2) * Wo + (Wo // 2), :])
        x = jnp.transpose(t.reshape(B, Ho, Wo, D), (0, 3, 1, 2))
    return x, centers


if __name__ == "__main__":
    # PoolingTransformer(ori_patch_size=16, dim=32, depth=2, heads=4,
    #                    dim_heads=8, mlp_dim=64, dropout=0.0)
    B, DIM, PATCH = 2, 32, 16
    DEPTH, HEADS, DIM_HEADS, MLP_DIM = 2, 4, 8, 64

    key = jax.random.PRNGKey(0)
    kx, kp = jax.random.split(key)
    x = jax.random.normal(kx, (B, DIM, PATCH, PATCH), jnp.float32)    # NCHW

    layer_keys = jax.random.split(kp, DEPTH)
    params = [init_layer_params(k, DIM, HEADS, DIM_HEADS, MLP_DIM)
              for k in layer_keys]

    out, centers = pooling_transformer_forward(x, params, PATCH, HEADS, DIM_HEADS)
    out = jax.block_until_ready(out)
    centers = [jax.block_until_ready(c) for c in centers]

    # shape checks: spatial size 16 -> 7 -> 3
    assert out.shape == (B, DIM, 3, 3)
    assert len(centers) == DEPTH and all(c.shape == (B, DIM) for c in centers)

    # numerical check against a pure-JAX replica of the torch module
    ref_out, ref_centers = _reference_forward(x, params, PATCH, HEADS, DIM_HEADS)
    err = float(jnp.max(jnp.abs(out - ref_out)))
    assert err < 5e-3, f"output mismatch: max abs err = {err}"
    for c, rc in zip(centers, ref_centers):
        cerr = float(jnp.max(jnp.abs(c - rc)))
        assert cerr < 5e-3, f"center mismatch: max abs err = {cerr}"

    print("KERNEL_OK")
</pallas_src>

<mosaic_0001>
module attributes {stable_mosaic.version = 11 : i64} {
  func.func @kernel(%arg0: i32, %arg1: memref<1x16x16x32xf32, #tpu.memory_space<vmem>>, %arg2: memref<1x32xf32, #tpu.memory_space<vmem>>, %arg3: memref<1x32xf32, #tpu.memory_space<vmem>>, %arg4: memref<32x32xf32, #tpu.memory_space<vmem>>, %arg5: memref<32x32xf32, #tpu.memory_space<vmem>>, %arg6: memref<32x32xf32, #tpu.memory_space<vmem>>, %arg7: memref<32x32xf32, #tpu.memory_space<vmem>>, %arg8: memref<1x32xf32, #tpu.memory_space<vmem>>, %arg9: memref<1x32xf32, #tpu.memory_space<vmem>>, %arg10: memref<1x32xf32, #tpu.memory_space<vmem>>, %arg11: memref<32x64xf32, #tpu.memory_space<vmem>>, %arg12: memref<1x64xf32, #tpu.memory_space<vmem>>, %arg13: memref<64x32xf32, #tpu.memory_space<vmem>>, %arg14: memref<1x32xf32, #tpu.memory_space<vmem>>, %arg15: memref<1x32xf32, #tpu.memory_space<vmem>>, %arg16: memref<1x32xf32, #tpu.memory_space<vmem>>, %arg17: memref<32x32xf32, #tpu.memory_space<vmem>>, %arg18: memref<32x32xf32, #tpu.memory_space<vmem>>, %arg19: memref<32x32xf32, #tpu.memory_space<vmem>>, %arg20: memref<32x32xf32, #tpu.memory_space<vmem>>, %arg21: memref<1x32xf32, #tpu.memory_space<vmem>>, %arg22: memref<1x32xf32, #tpu.memory_space<vmem>>, %arg23: memref<1x32xf32, #tpu.memory_space<vmem>>, %arg24: memref<32x64xf32, #tpu.memory_space<vmem>>, %arg25: memref<1x64xf32, #tpu.memory_space<vmem>>, %arg26: memref<64x32xf32, #tpu.memory_space<vmem>>, %arg27: memref<1x32xf32, #tpu.memory_space<vmem>>, %arg28: memref<1x9x32xf32, #tpu.memory_space<vmem>>, %arg29: memref<1x2x32xf32, #tpu.memory_space<vmem>>, %arg30: memref<16x16x32xf32, #tpu.memory_space<vmem>>, %arg31: memref<7x7x32xf32, #tpu.memory_space<vmem>>) attributes {dimension_semantics = [#tpu.dimension_semantics<parallel>], iteration_bounds = array<i64: 2>, scalar_prefetch = 0 : i64, scratch_operands = 2 : i64, tpu.core_type = #tpu.core_type<tc>, window_params = [{transform_indices = @transform_0, window_bounds = array<i64: 1, 16, 16, 32>}, {pipeline_mode = #tpu.pipeline_mode<synchronous>, transform_indices = @transform_1, window_bounds = array<i64: 1, 32>}, {pipeline_mode = #tpu.pipeline_mode<synchronous>, transform_indices = @transform_2, window_bounds = array<i64: 1, 32>}, {pipeline_mode = #tpu.pipeline_mode<synchronous>, transform_indices = @transform_3, window_bounds = array<i64: 32, 32>}, {pipeline_mode = #tpu.pipeline_mode<synchronous>, transform_indices = @transform_4, window_bounds = array<i64: 32, 32>}, {pipeline_mode = #tpu.pipeline_mode<synchronous>, transform_indices = @transform_5, window_bounds = array<i64: 32, 32>}, {pipeline_mode = #tpu.pipeline_mode<synchronous>, transform_indices = @transform_6, window_bounds = array<i64: 32, 32>}, {pipeline_mode = #tpu.pipeline_mode<synchronous>, transform_indices = @transform_7, window_bounds = array<i64: 1, 32>}, {pipeline_mode = #tpu.pipeline_mode<synchronous>, transform_indices = @transform_8, window_bounds = array<i64: 1, 32>}, {pipeline_mode = #tpu.pipeline_mode<synchronous>, transform_indices = @transform_9, window_bounds = array<i64: 1, 32>}, {pipeline_mode = #tpu.pipeline_mode<synchronous>, transform_indices = @transform_10, window_bounds = array<i64: 32, 64>}, {pipeline_mode = #tpu.pipeline_mode<synchronous>, transform_indices = @transform_11, window_bounds = array<i64: 1, 64>}, {pipeline_mode = #tpu.pipeline_mode<synchronous>, transform_indices = @transform_12, window_bounds = array<i64: 64, 32>}, {pipeline_mode = #tpu.pipeline_mode<synchronous>, transform_indices = @transform_13, window_bounds = array<i64: 1, 32>}, {pipeline_mode = #tpu.pipeline_mode<synchronous>, transform_indices = @transform_14, window_bounds = array<i64: 1, 32>}, {pipeline_mode = #tpu.pipeline_mode<synchronous>, transform_indices = @transform_15, window_bounds = array<i64: 1, 32>}, {pipeline_mode = #tpu.pipeline_mode<synchronous>, transform_indices = @transform_16, window_bounds = array<i64: 32, 32>}, {pipeline_mode = #tpu.pipeline_mode<synchronous>, transform_indices = @transform_17, window_bounds = array<i64: 32, 32>}, {pipeline_mode = #tpu.pipeline_mode<synchronous>, transform_indices = @transform_18, window_bounds = array<i64: 32, 32>}, {pipeline_mode = #tpu.pipeline_mode<synchronous>, transform_indices = @transform_19, window_bounds = array<i64: 32, 32>}, {pipeline_mode = #tpu.pipeline_mode<synchronous>, transform_indices = @transform_20, window_bounds = array<i64: 1, 32>}, {pipeline_mode = #tpu.pipeline_mode<synchronous>, transform_indices = @transform_21, window_bounds = array<i64: 1, 32>}, {pipeline_mode = #tpu.pipeline_mode<synchronous>, transform_indices = @transform_22, window_bounds = array<i64: 1, 32>}, {pipeline_mode = #tpu.pipeline_mode<synchronous>, transform_indices = @transform_23, window_bounds = array<i64: 32, 64>}, {pipeline_mode = #tpu.pipeline_mode<synchronous>, transform_indices = @transform_24, window_bounds = array<i64: 1, 64>}, {pipeline_mode = #tpu.pipeline_mode<synchronous>, transform_indices = @transform_25, window_bounds = array<i64: 64, 32>}, {pipeline_mode = #tpu.pipeline_mode<synchronous>, transform_indices = @transform_26, window_bounds = array<i64: 1, 32>}, {transform_indices = @transform_27, window_bounds = array<i64: 1, 9, 32>}, {transform_indices = @transform_28, window_bounds = array<i64: 1, 2, 32>}]} {
    %0 = tpu.iota {dimensions = array<i32: 1>} : vector<1x32xi32>
    %c0_i32 = arith.constant 0 : i32
    %1 = vector.broadcast %c0_i32 : i32 to vector<1x32xi32>
    %2 = arith.cmpi sge, %0, %1 : vector<1x32xi32>
    %c8_i32 = arith.constant 8 : i32
    %3 = vector.broadcast %c8_i32 : i32 to vector<1x32xi32>
    %4 = arith.cmpi slt, %0, %3 : vector<1x32xi32>
    %5 = arith.andi %2, %4 : vector<1x32xi1>
    %6 = arith.extui %5 : vector<1x32xi1> to vector<1x32xi32>
    %7 = arith.sitofp %6 : vector<1x32xi32> to vector<1x32xf32>
    %c8_i32_0 = arith.constant 8 : i32
    %8 = vector.broadcast %c8_i32_0 : i32 to vector<1x32xi32>
    %9 = arith.cmpi sge, %0, %8 : vector<1x32xi32>
    %c16_i32 = arith.constant 16 : i32
    %10 = vector.broadcast %c16_i32 : i32 to vector<1x32xi32>
    %11 = arith.cmpi slt, %0, %10 : vector<1x32xi32>
    %12 = arith.andi %9, %11 : vector<1x32xi1>
    %13 = arith.extui %12 : vector<1x32xi1> to vector<1x32xi32>
    %14 = arith.sitofp %13 : vector<1x32xi32> to vector<1x32xf32>
    %c16_i32_1 = arith.constant 16 : i32
    %15 = vector.broadcast %c16_i32_1 : i32 to vector<1x32xi32>
    %16 = arith.cmpi sge, %0, %15 : vector<1x32xi32>
    %c24_i32 = arith.constant 24 : i32
    %17 = vector.broadcast %c24_i32 : i32 to vector<1x32xi32>
    %18 = arith.cmpi slt, %0, %17 : vector<1x32xi32>
    %19 = arith.andi %16, %18 : vector<1x32xi1>
    %20 = arith.extui %19 : vector<1x32xi1> to vector<1x32xi32>
    %21 = arith.sitofp %20 : vector<1x32xi32> to vector<1x32xf32>
    %c24_i32_2 = arith.constant 24 : i32
    %22 = vector.broadcast %c24_i32_2 : i32 to vector<1x32xi32>
    %23 = arith.cmpi sge, %0, %22 : vector<1x32xi32>
    %c32_i32 = arith.constant 32 : i32
    %24 = vector.broadcast %c32_i32 : i32 to vector<1x32xi32>
    %25 = arith.cmpi slt, %0, %24 : vector<1x32xi32>
    %26 = arith.andi %23, %25 : vector<1x32xi1>
    %27 = arith.extui %26 : vector<1x32xi1> to vector<1x32xi32>
    %28 = arith.sitofp %27 : vector<1x32xi32> to vector<1x32xf32>
    %c0 = arith.constant 0 : index
    %c0_3 = arith.constant 0 : index
    %c0_4 = arith.constant 0 : index
    %c0_5 = arith.constant 0 : index
    %29 = vector.load %arg1[%c0, %c0_3, %c0_4, %c0_5] : memref<1x16x16x32xf32, #tpu.memory_space<vmem>>, vector<1x16x16x32xf32>
    %30 = vector.shape_cast %29 : vector<1x16x16x32xf32> to vector<16x16x32xf32>
    %c0_6 = arith.constant 0 : index
    %c0_7 = arith.constant 0 : index
    %c0_8 = arith.constant 0 : index
    %31 = vector.load %arg30[%c0_6, %c0_7, %c0_8] : memref<16x16x32xf32, #tpu.memory_space<vmem>>, vector<16x16x32xf32>
    tpu.vector_store %arg30[%c0_6, %c0_7, %c0_8], %30 {strides = array<i32>} : memref<16x16x32xf32, #tpu.memory_space<vmem>>, vector<16x16x32xf32>,
    %c0_9 = arith.constant 0 : index
    %c0_10 = arith.constant 0 : index
    %c0_11 = arith.constant 0 : index
    %32 = tpu.strided_load %arg30[%c0_9, %c0_10, %c0_11] {strides = array<i32: 2, 2, 1>} : memref<16x16x32xf32, #tpu.memory_space<vmem>>, vector<7x7x32xf32>
    %c0_12 = arith.constant 0 : index
    %c1 = arith.constant 1 : index
    %c0_13 = arith.constant 0 : index
    %33 = tpu.strided_load %arg30[%c0_12, %c1, %c0_13] {strides = array<i32: 2, 2, 1>} : memref<16x16x32xf32, #tpu.memory_space<vmem>>, vector<7x7x32xf32>
    %34 = arith.maximumf %32, %33 : vector<7x7x32xf32>
    %c0_14 = arith.constant 0 : index
    %c2 = arith.constant 2 : index
    %c0_15 = arith.constant 0 : index
    %35 = tpu.strided_load %arg30[%c0_14, %c2, %c0_15] {strides = array<i32: 2, 2, 1>} : memref<16x16x32xf32, #tpu.memory_space<vmem>>, vector<7x7x32xf32>
    %36 = arith.maximumf %34, %35 : vector<7x7x32xf32>
    %c1_16 = arith.constant 1 : index
    %c0_17 = arith.constant 0 : index
    %c0_18 = arith.constant 0 : index
    %37 = tpu.strided_load %arg30[%c1_16, %c0_17, %c0_18] {strides = array<i32: 2, 2, 1>} : memref<16x16x32xf32, #tpu.memory_space<vmem>>, vector<7x7x32xf32>
    %38 = arith.maximumf %36, %37 : vector<7x7x32xf32>
    %c1_19 = arith.constant 1 : index
    %c1_20 = arith.constant 1 : index
    %c0_21 = arith.constant 0 : index
    %39 = tpu.strided_load %arg30[%c1_19, %c1_20, %c0_21] {strides = array<i32: 2, 2, 1>} : memref<16x16x32xf32, #tpu.memory_space<vmem>>, vector<7x7x32xf32>
    %40 = arith.maximumf %38, %39 : vector<7x7x32xf32>
    %c1_22 = arith.constant 1 : index
    %c2_23 = arith.constant 2 : index
    %c0_24 = arith.constant 0 : index
    %41 = tpu.strided_load %arg30[%c1_22, %c2_23, %c0_24] {strides = array<i32: 2, 2, 1>} : memref<16x16x32xf32, #tpu.memory_space<vmem>>, vector<7x7x32xf32>
    %42 = arith.maximumf %40, %41 : vector<7x7x32xf32>
    %c2_25 = arith.constant 2 : index
    %c0_26 = arith.constant 0 : index
    %c0_27 = arith.constant 0 : index
    %43 = tpu.strided_load %arg30[%c2_25, %c0_26, %c0_27] {strides = array<i32: 2, 2, 1>} : memref<16x16x32xf32, #tpu.memory_space<vmem>>, vector<7x7x32xf32>
    %44 = arith.maximumf %42, %43 : vector<7x7x32xf32>
    %c2_28 = arith.constant 2 : index
    %c1_29 = arith.constant 1 : index
    %c0_30 = arith.constant 0 : index
    %45 = tpu.strided_load %arg30[%c2_28, %c1_29, %c0_30] {strides = array<i32: 2, 2, 1>} : memref<16x16x32xf32, #tpu.memory_space<vmem>>, vector<7x7x32xf32>
    %46 = arith.maximumf %44, %45 : vector<7x7x32xf32>
    %c2_31 = arith.constant 2 : index
    %c2_32 = arith.constant 2 : index
    %c0_33 = arith.constant 0 : index
    %47 = tpu.strided_load %arg30[%c2_31, %c2_32, %c0_33] {strides = array<i32: 2, 2, 1>} : memref<16x16x32xf32, #tpu.memory_space<vmem>>, vector<7x7x32xf32>
    %48 = arith.maximumf %46, %47 : vector<7x7x32xf32>
    %49 = vector.extract_strided_slice %48 {offsets = [0, 0, 0], sizes = [1, 7, 32], strides = [1, 1, 1]} : vector<7x7x32xf32> to vector<1x7x32xf32>
    %50 = vector.shape_cast %49 : vector<1x7x32xf32> to vector<7x32xf32>
    %51 = vector.extract_strided_slice %48 {offsets = [1, 0, 0], sizes = [1, 7, 32], strides = [1, 1, 1]} : vector<7x7x32xf32> to vector<1x7x32xf32>
    %52 = vector.shape_cast %51 : vector<1x7x32xf32> to vector<7x32xf32>
    %53 = vector.extract_strided_slice %48 {offsets = [2, 0, 0], sizes = [1, 7, 32], strides = [1, 1, 1]} : vector<7x7x32xf32> to vector<1x7x32xf32>
    %54 = vector.shape_cast %53 : vector<1x7x32xf32> to vector<7x32xf32>
    %55 = vector.extract_strided_slice %48 {offsets = [3, 0, 0], sizes = [1, 7, 32], strides = [1, 1, 1]} : vector<7x7x32xf32> to vector<1x7x32xf32>
    %56 = vector.shape_cast %55 : vector<1x7x32xf32> to vector<7x32xf32>
    %57 = vector.extract_strided_slice %48 {offsets = [4, 0, 0], sizes = [1, 7, 32], strides = [1, 1, 1]} : vector<7x7x32xf32> to vector<1x7x32xf32>
    %58 = vector.shape_cast %57 : vector<1x7x32xf32> to vector<7x32xf32>
    %59 = vector.extract_strided_slice %48 {offsets = [5, 0, 0], sizes = [1, 7, 32], strides = [1, 1, 1]} : vector<7x7x32xf32> to vector<1x7x32xf32>
    %60 = vector.shape_cast %59 : vector<1x7x32xf32> to vector<7x32xf32>
    %61 = vector.extract_strided_slice %48 {offsets = [6, 0, 0], sizes = [1, 7, 32], strides = [1, 1, 1]} : vector<7x7x32xf32> to vector<1x7x32xf32>
    %62 = vector.shape_cast %61 : vector<1x7x32xf32> to vector<7x32xf32>
    %63 = tpu.concatenate %50, %52, %54, %56, %58, %60, %62 in 0 : vector<7x32xf32>, vector<7x32xf32>, vector<7x32xf32>, vector<7x32xf32>, vector<7x32xf32>, vector<7x32xf32>, vector<7x32xf32> -> vector<49x32xf32>
    %c0_34 = arith.constant 0 : index
    %c0_35 = arith.constant 0 : index
    %64 = vector.load %arg2[%c0_34, %c0_35] : memref<1x32xf32, #tpu.memory_space<vmem>>, vector<1x32xf32>
    %c0_36 = arith.constant 0 : index
    %c0_37 = arith.constant 0 : index
    %65 = vector.load %arg3[%c0_36, %c0_37] : memref<1x32xf32, #tpu.memory_space<vmem>>, vector<1x32xf32>
    %c0_38 = arith.constant 0 : index
    %c0_39 = arith.constant 0 : index
    %66 = vector.load %arg4[%c0_38, %c0_39] : memref<32x32xf32, #tpu.memory_space<vmem>>, vector<32x32xf32>
    %c0_40 = arith.constant 0 : index
    %c0_41 = arith.constant 0 : index
    %67 = vector.load %arg5[%c0_40, %c0_41] : memref<32x32xf32, #tpu.memory_space<vmem>>, vector<32x32xf32>
    %c0_42 = arith.constant 0 : index
    %c0_43 = arith.constant 0 : index
    %68 = vector.load %arg6[%c0_42, %c0_43] : memref<32x32xf32, #tpu.memory_space<vmem>>, vector<32x32xf32>
    %c0_44 = arith.constant 0 : index
    %c0_45 = arith.constant 0 : index
    %69 = vector.load %arg7[%c0_44, %c0_45] : memref<32x32xf32, #tpu.memory_space<vmem>>, vector<32x32xf32>
    %c0_46 = arith.constant 0 : index
    %c0_47 = arith.constant 0 : index
    %70 = vector.load %arg8[%c0_46, %c0_47] : memref<1x32xf32, #tpu.memory_space<vmem>>, vector<1x32xf32>
    %c0_48 = arith.constant 0 : index
    %c0_49 = arith.constant 0 : index
    %71 = vector.load %arg9[%c0_48, %c0_49] : memref<1x32xf32, #tpu.memory_space<vmem>>, vector<1x32xf32>
    %c0_50 = arith.constant 0 : index
    %c0_51 = arith.constant 0 : index
    %72 = vector.load %arg10[%c0_50, %c0_51] : memref<1x32xf32, #tpu.memory_space<vmem>>, vector<1x32xf32>
    %c0_52 = arith.constant 0 : index
    %c0_53 = arith.constant 0 : index
    %73 = vector.load %arg11[%c0_52, %c0_53] : memref<32x64xf32, #tpu.memory_space<vmem>>, vector<32x64xf32>
    %c0_54 = arith.constant 0 : index
    %c0_55 = arith.constant 0 : index
    %74 = vector.load %arg12[%c0_54, %c0_55] : memref<1x64xf32, #tpu.memory_space<vmem>>, vector<1x64xf32>
    %c0_56 = arith.constant 0 : index
    %c0_57 = arith.constant 0 : index
    %75 = vector.load %arg13[%c0_56, %c0_57] : memref<64x32xf32, #tpu.memory_space<vmem>>, vector<64x32xf32>
    %c0_58 = arith.constant 0 : index
    %c0_59 = arith.constant 0 : index
    %76 = vector.load %arg14[%c0_58, %c0_59] : memref<1x32xf32, #tpu.memory_space<vmem>>, vector<1x32xf32>
    %cst = arith.constant dense<0.000000e+00> : vector<49xf32>
    %77 = vector.multi_reduction <add>, %63, %cst [1] : vector<49x32xf32> to vector<49xf32>
    %78 = vector.shape_cast %77 : vector<49xf32> to vector<49x1xf32>
    %cst_60 = arith.constant 3.200000e+01 : f32
    %79 = vector.broadcast %cst_60 : f32 to vector<49x1xf32>
    %80 = arith.divf %78, %79 : vector<49x1xf32>
    %81 = vector.broadcast %80 : vector<49x1xf32> to vector<49x32xf32>
    %82 = arith.subf %63, %81 : vector<49x32xf32>
    %83 = arith.mulf %82, %82 : vector<49x32xf32>
    %cst_61 = arith.constant dense<0.000000e+00> : vector<49xf32>
    %84 = vector.multi_reduction <add>, %83, %cst_61 [1] : vector<49x32xf32> to vector<49xf32>
    %85 = vector.shape_cast %84 : vector<49xf32> to vector<49x1xf32>
    %cst_62 = arith.constant 3.200000e+01 : f32
    %86 = vector.broadcast %cst_62 : f32 to vector<49x1xf32>
    %87 = arith.divf %85, %86 : vector<49x1xf32>
    %cst_63 = arith.constant 9.99999974E-6 : f32
    %88 = vector.broadcast %cst_63 : f32 to vector<49x1xf32>
    %89 = arith.addf %87, %88 : vector<49x1xf32>
    %90 = math.rsqrt %89 : vector<49x1xf32>
    %91 = vector.broadcast %90 : vector<49x1xf32> to vector<49x32xf32>
    %92 = arith.mulf %82, %91 : vector<49x32xf32>
    %93 = vector.broadcast %64 : vector<1x32xf32> to vector<49x32xf32>
    %94 = arith.mulf %92, %93 : vector<49x32xf32>
    %95 = vector.broadcast %65 : vector<1x32xf32> to vector<49x32xf32>
    %96 = arith.addf %94, %95 : vector<49x32xf32>
    %cst_64 = arith.constant dense<0.000000e+00> : vector<49x32xf32>
    %97 = tpu.matmul %96, %66, %cst_64 {dimension_numbers = #tpu.dot_dimension_numbers<[1], [0], [0], [1], [0, 0, 1, 1], [], []>} : vector<49x32xf32>, vector<32x32xf32>, vector<49x32xf32> -> vector<49x32xf32>
    %cst_65 = arith.constant dense<0.000000e+00> : vector<49x32xf32>
    %98 = tpu.matmul %96, %67, %cst_65 {dimension_numbers = #tpu.dot_dimension_numbers<[1], [0], [0], [1], [0, 0, 1, 1], [], []>} : vector<49x32xf32>, vector<32x32xf32>, vector<49x32xf32> -> vector<49x32xf32>
    %cst_66 = arith.constant dense<0.000000e+00> : vector<49x32xf32>
    %99 = tpu.matmul %96, %68, %cst_66 {dimension_numbers = #tpu.dot_dimension_numbers<[1], [0], [0], [1], [0, 0, 1, 1], [], []>} : vector<49x32xf32>, vector<32x32xf32>, vector<49x32xf32> -> vector<49x32xf32>
    %100 = vector.broadcast %7 : vector<1x32xf32> to vector<49x32xf32>
    %101 = arith.mulf %97, %100 : vector<49x32xf32>
    %cst_67 = arith.constant dense<0.000000e+00> : vector<49x49xf32>
    %102 = tpu.matmul %101, %98, %cst_67 {dimension_numbers = #tpu.dot_dimension_numbers<[1], [1], [0], [0], [0, 0, 1, 0], [], []>} : vector<49x32xf32>, vector<49x32xf32>, vector<49x49xf32> -> vector<49x49xf32>
    %cst_68 = arith.constant 0.353553385 : f32
    %103 = vector.broadcast %cst_68 : f32 to vector<49x49xf32>
    %104 = arith.mulf %102, %103 : vector<49x49xf32>
    %cst_69 = arith.constant dense<0xFF800000> : vector<49xf32>
    %105 = vector.multi_reduction <maximumf>, %104, %cst_69 [1] : vector<49x49xf32> to vector<49xf32>
    %106 = vector.shape_cast %105 : vector<49xf32> to vector<49x1xf32>
    %107 = vector.broadcast %106 : vector<49x1xf32> to vector<49x49xf32>
    %108 = arith.subf %104, %107 : vector<49x49xf32>
    %109 = math.exp %108 : vector<49x49xf32>
    %cst_70 = arith.constant dense<0.000000e+00> : vector<49xf32>
    %110 = vector.multi_reduction <add>, %109, %cst_70 [1] : vector<49x49xf32> to vector<49xf32>
    %111 = vector.shape_cast %110 : vector<49xf32> to vector<49x1xf32>
    %112 = tpu.reciprocal %111 {approx = true} : vector<49x1xf32> -> vector<49x1xf32>
    %113 = vector.broadcast %112 : vector<49x1xf32> to vector<49x49xf32>
    %114 = arith.mulf %109, %113 : vector<49x49xf32>
    %115 = vector.broadcast %7 : vector<1x32xf32> to vector<49x32xf32>
    %116 = arith.mulf %99, %115 : vector<49x32xf32>
    %cst_71 = arith.constant dense<0.000000e+00> : vector<49x32xf32>
    %117 = tpu.matmul %114, %116, %cst_71 {dimension_numbers = #tpu.dot_dimension_numbers<[1], [0], [0], [1], [0, 0, 1, 1], [], []>} : vector<49x49xf32>, vector<49x32xf32>, vector<49x32xf32> -> vector<49x32xf32>
    %118 = vector.broadcast %14 : vector<1x32xf32> to vector<49x32xf32>
    %119 = arith.mulf %97, %118 : vector<49x32xf32>
    %cst_72 = arith.constant dense<0.000000e+00> : vector<49x49xf32>
    %120 = tpu.matmul %119, %98, %cst_72 {dimension_numbers = #tpu.dot_dimension_numbers<[1], [1], [0], [0], [0, 0, 1, 0], [], []>} : vector<49x32xf32>, vector<49x32xf32>, vector<49x49xf32> -> vector<49x49xf32>
    %cst_73 = arith.constant 0.353553385 : f32
    %121 = vector.broadcast %cst_73 : f32 to vector<49x49xf32>
    %122 = arith.mulf %120, %121 : vector<49x49xf32>
    %cst_74 = arith.constant dense<0xFF800000> : vector<49xf32>
    %123 = vector.multi_reduction <maximumf>, %122, %cst_74 [1] : vector<49x49xf32> to vector<49xf32>
    %124 = vector.shape_cast %123 : vector<49xf32> to vector<49x1xf32>
    %125 = vector.broadcast %124 : vector<49x1xf32> to vector<49x49xf32>
    %126 = arith.subf %122, %125 : vector<49x49xf32>
    %127 = math.exp %126 : vector<49x49xf32>
    %cst_75 = arith.constant dense<0.000000e+00> : vector<49xf32>
    %128 = vector.multi_reduction <add>, %127, %cst_75 [1] : vector<49x49xf32> to vector<49xf32>
    %129 = vector.shape_cast %128 : vector<49xf32> to vector<49x1xf32>
    %130 = tpu.reciprocal %129 {approx = true} : vector<49x1xf32> -> vector<49x1xf32>
    %131 = vector.broadcast %130 : vector<49x1xf32> to vector<49x49xf32>
    %132 = arith.mulf %127, %131 : vector<49x49xf32>
    %133 = vector.broadcast %14 : vector<1x32xf32> to vector<49x32xf32>
    %134 = arith.mulf %99, %133 : vector<49x32xf32>
    %cst_76 = arith.constant dense<0.000000e+00> : vector<49x32xf32>
    %135 = tpu.matmul %132, %134, %cst_76 {dimension_numbers = #tpu.dot_dimension_numbers<[1], [0], [0], [1], [0, 0, 1, 1], [], []>} : vector<49x49xf32>, vector<49x32xf32>, vector<49x32xf32> -> vector<49x32xf32>
    %136 = arith.addf %117, %135 : vector<49x32xf32>
    %137 = vector.broadcast %21 : vector<1x32xf32> to vector<49x32xf32>
    %138 = arith.mulf %97, %137 : vector<49x32xf32>
    %cst_77 = arith.constant dense<0.000000e+00> : vector<49x49xf32>
    %139 = tpu.matmul %138, %98, %cst_77 {dimension_numbers = #tpu.dot_dimension_numbers<[1], [1], [0], [0], [0, 0, 1, 0], [], []>} : vector<49x32xf32>, vector<49x32xf32>, vector<49x49xf32> -> vector<49x49xf32>
    %cst_78 = arith.constant 0.353553385 : f32
    %140 = vector.broadcast %cst_78 : f32 to vector<49x49xf32>
    %141 = arith.mulf %139, %140 : vector<49x49xf32>
    %cst_79 = arith.constant dense<0xFF800000> : vector<49xf32>
    %142 = vector.multi_reduction <maximumf>, %141, %cst_79 [1] : vector<49x49xf32> to vector<49xf32>
    %143 = vector.shape_cast %142 : vector<49xf32> to vector<49x1xf32>
    %144 = vector.broadcast %143 : vector<49x1xf32> to vector<49x49xf32>
    %145 = arith.subf %141, %144 : vector<49x49xf32>
    %146 = math.exp %145 : vector<49x49xf32>
    %cst_80 = arith.constant dense<0.000000e+00> : vector<49xf32>
    %147 = vector.multi_reduction <add>, %146, %cst_80 [1] : vector<49x49xf32> to vector<49xf32>
    %148 = vector.shape_cast %147 : vector<49xf32> to vector<49x1xf32>
    %149 = tpu.reciprocal %148 {approx = true} : vector<49x1xf32> -> vector<49x1xf32>
    %150 = vector.broadcast %149 : vector<49x1xf32> to vector<49x49xf32>
    %151 = arith.mulf %146, %150 : vector<49x49xf32>
    %152 = vector.broadcast %21 : vector<1x32xf32> to vector<49x32xf32>
    %153 = arith.mulf %99, %152 : vector<49x32xf32>
    %cst_81 = arith.constant dense<0.000000e+00> : vector<49x32xf32>
    %154 = tpu.matmul %151, %153, %cst_81 {dimension_numbers = #tpu.dot_dimension_numbers<[1], [0], [0], [1], [0, 0, 1, 1], [], []>} : vector<49x49xf32>, vector<49x32xf32>, vector<49x32xf32> -> vector<49x32xf32>
    %155 = arith.addf %136, %154 : vector<49x32xf32>
    %156 = vector.broadcast %28 : vector<1x32xf32> to vector<49x32xf32>
    %157 = arith.mulf %97, %156 : vector<49x32xf32>
    %cst_82 = arith.constant dense<0.000000e+00> : vector<49x49xf32>
    %158 = tpu.matmul %157, %98, %cst_82 {dimension_numbers = #tpu.dot_dimension_numbers<[1], [1], [0], [0], [0, 0, 1, 0], [], []>} : vector<49x32xf32>, vector<49x32xf32>, vector<49x49xf32> -> vector<49x49xf32>
    %cst_83 = arith.constant 0.353553385 : f32
    %159 = vector.broadcast %cst_83 : f32 to vector<49x49xf32>
    %160 = arith.mulf %158, %159 : vector<49x49xf32>
    %cst_84 = arith.constant dense<0xFF800000> : vector<49xf32>
    %161 = vector.multi_reduction <maximumf>, %160, %cst_84 [1] : vector<49x49xf32> to vector<49xf32>
    %162 = vector.shape_cast %161 : vector<49xf32> to vector<49x1xf32>
    %163 = vector.broadcast %162 : vector<49x1xf32> to vector<49x49xf32>
    %164 = arith.subf %160, %163 : vector<49x49xf32>
    %165 = math.exp %164 : vector<49x49xf32>
    %cst_85 = arith.constant dense<0.000000e+00> : vector<49xf32>
    %166 = vector.multi_reduction <add>, %165, %cst_85 [1] : vector<49x49xf32> to vector<49xf32>
    %167 = vector.shape_cast %166 : vector<49xf32> to vector<49x1xf32>
    %168 = tpu.reciprocal %167 {approx = true} : vector<49x1xf32> -> vector<49x1xf32>
    %169 = vector.broadcast %168 : vector<49x1xf32> to vector<49x49xf32>
    %170 = arith.mulf %165, %169 : vector<49x49xf32>
    %171 = vector.broadcast %28 : vector<1x32xf32> to vector<49x32xf32>
    %172 = arith.mulf %99, %171 : vector<49x32xf32>
    %cst_86 = arith.constant dense<0.000000e+00> : vector<49x32xf32>
    %173 = tpu.matmul %170, %172, %cst_86 {dimension_numbers = #tpu.dot_dimension_numbers<[1], [0], [0], [1], [0, 0, 1, 1], [], []>} : vector<49x49xf32>, vector<49x32xf32>, vector<49x32xf32> -> vector<49x32xf32>
    %174 = arith.addf %155, %173 : vector<49x32xf32>
    %cst_87 = arith.constant dense<0.000000e+00> : vector<49x32xf32>
    %175 = tpu.matmul %174, %69, %cst_87 {dimension_numbers = #tpu.dot_dimension_numbers<[1], [0], [0], [1], [0, 0, 1, 1], [], []>} : vector<49x32xf32>, vector<32x32xf32>, vector<49x32xf32> -> vector<49x32xf32>
    %176 = arith.addf %63, %175 : vector<49x32xf32>
    %177 = vector.broadcast %70 : vector<1x32xf32> to vector<49x32xf32>
    %178 = arith.addf %176, %177 : vector<49x32xf32>
    %cst_88 = arith.constant dense<0.000000e+00> : vector<49xf32>
    %179 = vector.multi_reduction <add>, %178, %cst_88 [1] : vector<49x32xf32> to vector<49xf32>
    %180 = vector.shape_cast %179 : vector<49xf32> to vector<49x1xf32>
    %cst_89 = arith.constant 3.200000e+01 : f32
    %181 = vector.broadcast %cst_89 : f32 to vector<49x1xf32>
    %182 = arith.divf %180, %181 : vector<49x1xf32>
    %183 = vector.broadcast %182 : vector<49x1xf32> to vector<49x32xf32>
    %184 = arith.subf %178, %183 : vector<49x32xf32>
    %185 = arith.mulf %184, %184 : vector<49x32xf32>
    %cst_90 = arith.constant dense<0.000000e+00> : vector<49xf32>
    %186 = vector.multi_reduction <add>, %185, %cst_90 [1] : vector<49x32xf32> to vector<49xf32>
    %187 = vector.shape_cast %186 : vector<49xf32> to vector<49x1xf32>
    %cst_91 = arith.constant 3.200000e+01 : f32
    %188 = vector.broadcast %cst_91 : f32 to vector<49x1xf32>
    %189 = arith.divf %187, %188 : vector<49x1xf32>
    %cst_92 = arith.constant 9.99999974E-6 : f32
    %190 = vector.broadcast %cst_92 : f32 to vector<49x1xf32>
    %191 = arith.addf %189, %190 : vector<49x1xf32>
    %192 = math.rsqrt %191 : vector<49x1xf32>
    %193 = vector.broadcast %192 : vector<49x1xf32> to vector<49x32xf32>
    %194 = arith.mulf %184, %193 : vector<49x32xf32>
    %195 = vector.broadcast %71 : vector<1x32xf32> to vector<49x32xf32>
    %196 = arith.mulf %194, %195 : vector<49x32xf32>
    %197 = vector.broadcast %72 : vector<1x32xf32> to vector<49x32xf32>
    %198 = arith.addf %196, %197 : vector<49x32xf32>
    %cst_93 = arith.constant dense<0.000000e+00> : vector<49x64xf32>
    %199 = tpu.matmul %198, %73, %cst_93 {dimension_numbers = #tpu.dot_dimension_numbers<[1], [0], [0], [1], [0, 0, 1, 1], [], []>} : vector<49x32xf32>, vector<32x64xf32>, vector<49x64xf32> -> vector<49x64xf32>
    %200 = vector.broadcast %74 : vector<1x64xf32> to vector<49x64xf32>
    %201 = arith.addf %199, %200 : vector<49x64xf32>
    %cst_94 = arith.constant 5.000000e-01 : f32
    %202 = vector.broadcast %cst_94 : f32 to vector<49x64xf32>
    %203 = arith.mulf %202, %201 : vector<49x64xf32>
    %cst_95 = arith.constant 0.707106769 : f32
    %204 = vector.broadcast %cst_95 : f32 to vector<49x64xf32>
    %205 = arith.mulf %201, %204 : vector<49x64xf32>
    %cst_96 = arith.constant 0.000000e+00 : f32
    %206 = vector.broadcast %cst_96 : f32 to vector<49x64xf32>
    %207 = arith.cmpf oge, %205, %206 : vector<49x64xf32>
    %cst_97 = arith.constant 1.000000e+00 : f32
    %cst_98 = arith.constant -1.000000e+00 : f32
    %208 = vector.broadcast %cst_97 : f32 to vector<49x64xf32>
    %209 = vector.broadcast %cst_98 : f32 to vector<49x64xf32>
    %210 = arith.select %207, %208, %209 : vector<49x64xi1>, vector<49x64xf32>
    %211 = math.absf %205 : vector<49x64xf32>
    %cst_99 = arith.constant 0.327591091 : f32
    %212 = vector.broadcast %cst_99 : f32 to vector<49x64xf32>
    %213 = arith.mulf %212, %211 : vector<49x64xf32>
    %cst_100 = arith.constant 1.000000e+00 : f32
    %214 = vector.broadcast %cst_100 : f32 to vector<49x64xf32>
    %215 = arith.addf %214, %213 : vector<49x64xf32>
    %cst_101 = arith.constant 1.000000e+00 : f32
    %216 = vector.broadcast %cst_101 : f32 to vector<49x64xf32>
    %217 = arith.divf %216, %215 : vector<49x64xf32>
    %cst_102 = arith.constant 1.06140542 : f32
    %218 = vector.broadcast %cst_102 : f32 to vector<49x64xf32>
    %219 = arith.mulf %218, %217 : vector<49x64xf32>
    %cst_103 = arith.constant -1.45315206 : f32
    %220 = vector.broadcast %cst_103 : f32 to vector<49x64xf32>
    %221 = arith.addf %219, %220 : vector<49x64xf32>
    %222 = arith.mulf %221, %217 : vector<49x64xf32>
    %cst_104 = arith.constant 1.42141378 : f32
    %223 = vector.broadcast %cst_104 : f32 to vector<49x64xf32>
    %224 = arith.addf %222, %223 : vector<49x64xf32>
    %225 = arith.mulf %224, %217 : vector<49x64xf32>
    %cst_105 = arith.constant -0.284496725 : f32
    %226 = vector.broadcast %cst_105 : f32 to vector<49x64xf32>
    %227 = arith.addf %225, %226 : vector<49x64xf32>
    %228 = arith.mulf %227, %217 : vector<49x64xf32>
    %cst_106 = arith.constant 0.254829586 : f32
    %229 = vector.broadcast %cst_106 : f32 to vector<49x64xf32>
    %230 = arith.addf %228, %229 : vector<49x64xf32>
    %231 = arith.mulf %230, %217 : vector<49x64xf32>
    %cst_107 = arith.constant 0.000000e+00 : f32
    %232 = vector.broadcast %cst_107 : f32 to vector<49x64xf32>
    %233 = arith.subf %232, %211 : vector<49x64xf32>
    %234 = arith.mulf %233, %211 : vector<49x64xf32>
    %235 = math.exp %234 : vector<49x64xf32>
    %236 = arith.mulf %231, %235 : vector<49x64xf32>
    %cst_108 = arith.constant 1.000000e+00 : f32
    %237 = vector.broadcast %cst_108 : f32 to vector<49x64xf32>
    %238 = arith.subf %237, %236 : vector<49x64xf32>
    %239 = arith.mulf %210, %238 : vector<49x64xf32>
    %cst_109 = arith.constant 1.000000e+00 : f32
    %240 = vector.broadcast %cst_109 : f32 to vector<49x64xf32>
    %241 = arith.addf %240, %239 : vector<49x64xf32>
    %242 = arith.mulf %203, %241 : vector<49x64xf32>
    %cst_110 = arith.constant dense<0.000000e+00> : vector<49x32xf32>
    %243 = tpu.matmul %242, %75, %cst_110 {dimension_numbers = #tpu.dot_dimension_numbers<[1], [0], [0], [1], [0, 0, 1, 1], [], []>} : vector<49x64xf32>, vector<64x32xf32>, vector<49x32xf32> -> vector<49x32xf32>
    %244 = arith.addf %178, %243 : vector<49x32xf32>
    %245 = vector.broadcast %76 : vector<1x32xf32> to vector<49x32xf32>
    %246 = arith.addf %244, %245 : vector<49x32xf32>
    %247 = vector.extract_strided_slice %246 {offsets = [24, 0], sizes = [1, 32], strides = [1, 1]} : vector<49x32xf32> to vector<1x32xf32>
    %c0_111 = arith.constant 0 : index
    %c0_112 = arith.constant 0 : index
    %c0_113 = arith.constant 0 : index
    %248 = vector.load %arg29[%c0_111, %c0_112, %c0_113] : memref<1x2x32xf32, #tpu.memory_space<vmem>>, vector<1x1x32xf32>
    %249 = vector.shape_cast %248 : vector<1x1x32xf32> to vector<1x32xf32>
    %250 = vector.shape_cast %247 : vector<1x32xf32> to vector<1x1x32xf32>
    tpu.vector_store %arg29[%c0_111, %c0_112, %c0_113], %250 {strides = array<i32>} : memref<1x2x32xf32, #tpu.memory_space<vmem>>, vector<1x1x32xf32>,
    %251 = vector.extract_strided_slice %246 {offsets = [0, 0], sizes = [7, 32], strides = [1, 1]} : vector<49x32xf32> to vector<7x32xf32>
    %c0_114 = arith.constant 0 : index
    %c0_115 = arith.constant 0 : index
    %c0_116 = arith.constant 0 : index
    %252 = vector.load %arg31[%c0_114, %c0_115, %c0_116] : memref<7x7x32xf32, #tpu.memory_space<vmem>>, vector<1x7x32xf32>
    %253 = vector.shape_cast %252 : vector<1x7x32xf32> to vector<7x32xf32>
    %254 = vector.shape_cast %251 : vector<7x32xf32> to vector<1x7x32xf32>
    tpu.vector_store %arg31[%c0_114, %c0_115, %c0_116], %254 {strides = array<i32>} : memref<7x7x32xf32, #tpu.memory_space<vmem>>, vector<1x7x32xf32>,
    %255 = vector.extract_strided_slice %246 {offsets = [7, 0], sizes = [7, 32], strides = [1, 1]} : vector<49x32xf32> to vector<7x32xf32>
    %c1_117 = arith.constant 1 : index
    %c0_118 = arith.constant 0 : index
    %c0_119 = arith.constant 0 : index
    %256 = vector.load %arg31[%c1_117, %c0_118, %c0_119] : memref<7x7x32xf32, #tpu.memory_space<vmem>>, vector<1x7x32xf32>
    %257 = vector.shape_cast %256 : vector<1x7x32xf32> to vector<7x32xf32>
    %258 = vector.shape_cast %255 : vector<7x32xf32> to vector<1x7x32xf32>
    tpu.vector_store %arg31[%c1_117, %c0_118, %c0_119], %258 {strides = array<i32>} : memref<7x7x32xf32, #tpu.memory_space<vmem>>, vector<1x7x32xf32>,
    %259 = vector.extract_strided_slice %246 {offsets = [14, 0], sizes = [7, 32], strides = [1, 1]} : vector<49x32xf32> to vector<7x32xf32>
    %c2_120 = arith.constant 2 : index
    %c0_121 = arith.constant 0 : index
    %c0_122 = arith.constant 0 : index
    %260 = vector.load %arg31[%c2_120, %c0_121, %c0_122] : memref<7x7x32xf32, #tpu.memory_space<vmem>>, vector<1x7x32xf32>
    %261 = vector.shape_cast %260 : vector<1x7x32xf32> to vector<7x32xf32>
    %262 = vector.shape_cast %259 : vector<7x32xf32> to vector<1x7x32xf32>
    tpu.vector_store %arg31[%c2_120, %c0_121, %c0_122], %262 {strides = array<i32>} : memref<7x7x32xf32, #tpu.memory_space<vmem>>, vector<1x7x32xf32>,
    %263 = vector.extract_strided_slice %246 {offsets = [21, 0], sizes = [7, 32], strides = [1, 1]} : vector<49x32xf32> to vector<7x32xf32>
    %c3 = arith.constant 3 : index
    %c0_123 = arith.constant 0 : index
    %c0_124 = arith.constant 0 : index
    %264 = vector.load %arg31[%c3, %c0_123, %c0_124] : memref<7x7x32xf32, #tpu.memory_space<vmem>>, vector<1x7x32xf32>
    %265 = vector.shape_cast %264 : vector<1x7x32xf32> to vector<7x32xf32>
    %266 = vector.shape_cast %263 : vector<7x32xf32> to vector<1x7x32xf32>
    tpu.vector_store %arg31[%c3, %c0_123, %c0_124], %266 {strides = array<i32>} : memref<7x7x32xf32, #tpu.memory_space<vmem>>, vector<1x7x32xf32>,
    %267 = vector.extract_strided_slice %246 {offsets = [28, 0], sizes = [7, 32], strides = [1, 1]} : vector<49x32xf32> to vector<7x32xf32>
    %c4 = arith.constant 4 : index
    %c0_125 = arith.constant 0 : index
    %c0_126 = arith.constant 0 : index
    %268 = vector.load %arg31[%c4, %c0_125, %c0_126] : memref<7x7x32xf32, #tpu.memory_space<vmem>>, vector<1x7x32xf32>
    %269 = vector.shape_cast %268 : vector<1x7x32xf32> to vector<7x32xf32>
    %270 = vector.shape_cast %267 : vector<7x32xf32> to vector<1x7x32xf32>
    tpu.vector_store %arg31[%c4, %c0_125, %c0_126], %270 {strides = array<i32>} : memref<7x7x32xf32, #tpu.memory_space<vmem>>, vector<1x7x32xf32>,
    %271 = vector.extract_strided_slice %246 {offsets = [35, 0], sizes = [7, 32], strides = [1, 1]} : vector<49x32xf32> to vector<7x32xf32>
    %c5 = arith.constant 5 : index
    %c0_127 = arith.constant 0 : index
    %c0_128 = arith.constant 0 : index
    %272 = vector.load %arg31[%c5, %c0_127, %c0_128] : memref<7x7x32xf32, #tpu.memory_space<vmem>>, vector<1x7x32xf32>
    %273 = vector.shape_cast %272 : vector<1x7x32xf32> to vector<7x32xf32>
    %274 = vector.shape_cast %271 : vector<7x32xf32> to vector<1x7x32xf32>
    tpu.vector_store %arg31[%c5, %c0_127, %c0_128], %274 {strides = array<i32>} : memref<7x7x32xf32, #tpu.memory_space<vmem>>, vector<1x7x32xf32>,
    %275 = vector.extract_strided_slice %246 {offsets = [42, 0], sizes = [7, 32], strides = [1, 1]} : vector<49x32xf32> to vector<7x32xf32>
    %c6 = arith.constant 6 : index
    %c0_129 = arith.constant 0 : index
    %c0_130 = arith.constant 0 : index
    %276 = vector.load %arg31[%c6, %c0_129, %c0_130] : memref<7x7x32xf32, #tpu.memory_space<vmem>>, vector<1x7x32xf32>
    %277 = vector.shape_cast %276 : vector<1x7x32xf32> to vector<7x32xf32>
    %278 = vector.shape_cast %275 : vector<7x32xf32> to vector<1x7x32xf32>
    tpu.vector_store %arg31[%c6, %c0_129, %c0_130], %278 {strides = array<i32>} : memref<7x7x32xf32, #tpu.memory_space<vmem>>, vector<1x7x32xf32>,
    %c0_131 = arith.constant 0 : index
    %c0_132 = arith.constant 0 : index
    %c0_133 = arith.constant 0 : index
    %279 = tpu.strided_load %arg31[%c0_131, %c0_132, %c0_133] {strides = array<i32: 2, 2, 1>} : memref<7x7x32xf32, #tpu.memory_space<vmem>>, vector<3x3x32xf32>
    %c0_134 = arith.constant 0 : index
    %c1_135 = arith.constant 1 : index
    %c0_136 = arith.constant 0 : index
    %280 = tpu.strided_load %arg31[%c0_134, %c1_135, %c0_136] {strides = array<i32: 2, 2, 1>} : memref<7x7x32xf32, #tpu.memory_space<vmem>>, vector<3x3x32xf32>
    %281 = arith.maximumf %279, %280 : vector<3x3x32xf32>
    %c0_137 = arith.constant 0 : index
    %c2_138 = arith.constant 2 : index
    %c0_139 = arith.constant 0 : index
    %282 = tpu.strided_load %arg31[%c0_137, %c2_138, %c0_139] {strides = array<i32: 2, 2, 1>} : memref<7x7x32xf32, #tpu.memory_space<vmem>>, vector<3x3x32xf32>
    %283 = arith.maximumf %281, %282 : vector<3x3x32xf32>
    %c1_140 = arith.constant 1 : index
    %c0_141 = arith.constant 0 : index
    %c0_142 = arith.constant 0 : index
    %284 = tpu.strided_load %arg31[%c1_140, %c0_141, %c0_142] {strides = array<i32: 2, 2, 1>} : memref<7x7x32xf32, #tpu.memory_space<vmem>>, vector<3x3x32xf32>
    %285 = arith.maximumf %283, %284 : vector<3x3x32xf32>
    %c1_143 = arith.constant 1 : index
    %c1_144 = arith.constant 1 : index
    %c0_145 = arith.constant 0 : index
    %286 = tpu.strided_load %arg31[%c1_143, %c1_144, %c0_145] {strides = array<i32: 2, 2, 1>} : memref<7x7x32xf32, #tpu.memory_space<vmem>>, vector<3x3x32xf32>
    %287 = arith.maximumf %285, %286 : vector<3x3x32xf32>
    %c1_146 = arith.constant 1 : index
    %c2_147 = arith.constant 2 : index
    %c0_148 = arith.constant 0 : index
    %288 = tpu.strided_load %arg31[%c1_146, %c2_147, %c0_148] {strides = array<i32: 2, 2, 1>} : memref<7x7x32xf32, #tpu.memory_space<vmem>>, vector<3x3x32xf32>
    %289 = arith.maximumf %287, %288 : vector<3x3x32xf32>
    %c2_149 = arith.constant 2 : index
    %c0_150 = arith.constant 0 : index
    %c0_151 = arith.constant 0 : index
    %290 = tpu.strided_load %arg31[%c2_149, %c0_150, %c0_151] {strides = array<i32: 2, 2, 1>} : memref<7x7x32xf32, #tpu.memory_space<vmem>>, vector<3x3x32xf32>
    %291 = arith.maximumf %289, %290 : vector<3x3x32xf32>
    %c2_152 = arith.constant 2 : index
    %c1_153 = arith.constant 1 : index
    %c0_154 = arith.constant 0 : index
    %292 = tpu.strided_load %arg31[%c2_152, %c1_153, %c0_154] {strides = array<i32: 2, 2, 1>} : memref<7x7x32xf32, #tpu.memory_space<vmem>>, vector<3x3x32xf32>
    %293 = arith.maximumf %291, %292 : vector<3x3x32xf32>
    %c2_155 = arith.constant 2 : index
    %c2_156 = arith.constant 2 : index
    %c0_157 = arith.constant 0 : index
    %294 = tpu.strided_load %arg31[%c2_155, %c2_156, %c0_157] {strides = array<i32: 2, 2, 1>} : memref<7x7x32xf32, #tpu.memory_space<vmem>>, vector<3x3x32xf32>
    %295 = arith.maximumf %293, %294 : vector<3x3x32xf32>
    %296 = vector.extract_strided_slice %295 {offsets = [0, 0, 0], sizes = [1, 3, 32], strides = [1, 1, 1]} : vector<3x3x32xf32> to vector<1x3x32xf32>
    %297 = vector.shape_cast %296 : vector<1x3x32xf32> to vector<3x32xf32>
    %298 = vector.extract_strided_slice %295 {offsets = [1, 0, 0], sizes = [1, 3, 32], strides = [1, 1, 1]} : vector<3x3x32xf32> to vector<1x3x32xf32>
    %299 = vector.shape_cast %298 : vector<1x3x32xf32> to vector<3x32xf32>
    %300 = vector.extract_strided_slice %295 {offsets = [2, 0, 0], sizes = [1, 3, 32], strides = [1, 1, 1]} : vector<3x3x32xf32> to vector<1x3x32xf32>
    %301 = vector.shape_cast %300 : vector<1x3x32xf32> to vector<3x32xf32>
    %302 = tpu.concatenate %297, %299, %301 in 0 : vector<3x32xf32>, vector<3x32xf32>, vector<3x32xf32> -> vector<9x32xf32>
    %c0_158 = arith.constant 0 : index
    %c0_159 = arith.constant 0 : index
    %303 = vector.load %arg15[%c0_158, %c0_159] : memref<1x32xf32, #tpu.memory_space<vmem>>, vector<1x32xf32>
    %c0_160 = arith.constant 0 : index
    %c0_161 = arith.constant 0 : index
    %304 = vector.load %arg16[%c0_160, %c0_161] : memref<1x32xf32, #tpu.memory_space<vmem>>, vector<1x32xf32>
    %c0_162 = arith.constant 0 : index
    %c0_163 = arith.constant 0 : index
    %305 = vector.load %arg17[%c0_162, %c0_163] : memref<32x32xf32, #tpu.memory_space<vmem>>, vector<32x32xf32>
    %c0_164 = arith.constant 0 : index
    %c0_165 = arith.constant 0 : index
    %306 = vector.load %arg18[%c0_164, %c0_165] : memref<32x32xf32, #tpu.memory_space<vmem>>, vector<32x32xf32>
    %c0_166 = arith.constant 0 : index
    %c0_167 = arith.constant 0 : index
    %307 = vector.load %arg19[%c0_166, %c0_167] : memref<32x32xf32, #tpu.memory_space<vmem>>, vector<32x32xf32>
    %c0_168 = arith.constant 0 : index
    %c0_169 = arith.constant 0 : index
    %308 = vector.load %arg20[%c0_168, %c0_169] : memref<32x32xf32, #tpu.memory_space<vmem>>, vector<32x32xf32>
    %c0_170 = arith.constant 0 : index
    %c0_171 = arith.constant 0 : index
    %309 = vector.load %arg21[%c0_170, %c0_171] : memref<1x32xf32, #tpu.memory_space<vmem>>, vector<1x32xf32>
    %c0_172 = arith.constant 0 : index
    %c0_173 = arith.constant 0 : index
    %310 = vector.load %arg22[%c0_172, %c0_173] : memref<1x32xf32, #tpu.memory_space<vmem>>, vector<1x32xf32>
    %c0_174 = arith.constant 0 : index
    %c0_175 = arith.constant 0 : index
    %311 = vector.load %arg23[%c0_174, %c0_175] : memref<1x32xf32, #tpu.memory_space<vmem>>, vector<1x32xf32>
    %c0_176 = arith.constant 0 : index
    %c0_177 = arith.constant 0 : index
    %312 = vector.load %arg24[%c0_176, %c0_177] : memref<32x64xf32, #tpu.memory_space<vmem>>, vector<32x64xf32>
    %c0_178 = arith.constant 0 : index
    %c0_179 = arith.constant 0 : index
    %313 = vector.load %arg25[%c0_178, %c0_179] : memref<1x64xf32, #tpu.memory_space<vmem>>, vector<1x64xf32>
    %c0_180 = arith.constant 0 : index
    %c0_181 = arith.constant 0 : index
    %314 = vector.load %arg26[%c0_180, %c0_181] : memref<64x32xf32, #tpu.memory_space<vmem>>, vector<64x32xf32>
    %c0_182 = arith.constant 0 : index
    %c0_183 = arith.constant 0 : index
    %315 = vector.load %arg27[%c0_182, %c0_183] : memref<1x32xf32, #tpu.memory_space<vmem>>, vector<1x32xf32>
    %cst_184 = arith.constant dense<0.000000e+00> : vector<9xf32>
    %316 = vector.multi_reduction <add>, %302, %cst_184 [1] : vector<9x32xf32> to vector<9xf32>
    %317 = vector.shape_cast %316 : vector<9xf32> to vector<9x1xf32>
    %cst_185 = arith.constant 3.200000e+01 : f32
    %318 = vector.broadcast %cst_185 : f32 to vector<9x1xf32>
    %319 = arith.divf %317, %318 : vector<9x1xf32>
    %320 = vector.broadcast %319 : vector<9x1xf32> to vector<9x32xf32>
    %321 = arith.subf %302, %320 : vector<9x32xf32>
    %322 = arith.mulf %321, %321 : vector<9x32xf32>
    %cst_186 = arith.constant dense<0.000000e+00> : vector<9xf32>
    %323 = vector.multi_reduction <add>, %322, %cst_186 [1] : vector<9x32xf32> to vector<9xf32>
    %324 = vector.shape_cast %323 : vector<9xf32> to vector<9x1xf32>
    %cst_187 = arith.constant 3.200000e+01 : f32
    %325 = vector.broadcast %cst_187 : f32 to vector<9x1xf32>
    %326 = arith.divf %324, %325 : vector<9x1xf32>
    %cst_188 = arith.constant 9.99999974E-6 : f32
    %327 = vector.broadcast %cst_188 : f32 to vector<9x1xf32>
    %328 = arith.addf %326, %327 : vector<9x1xf32>
    %329 = math.rsqrt %328 : vector<9x1xf32>
    %330 = vector.broadcast %329 : vector<9x1xf32> to vector<9x32xf32>
    %331 = arith.mulf %321, %330 : vector<9x32xf32>
    %332 = vector.broadcast %303 : vector<1x32xf32> to vector<9x32xf32>
    %333 = arith.mulf %331, %332 : vector<9x32xf32>
    %334 = vector.broadcast %304 : vector<1x32xf32> to vector<9x32xf32>
    %335 = arith.addf %333, %334 : vector<9x32xf32>
    %cst_189 = arith.constant dense<0.000000e+00> : vector<9x32xf32>
    %336 = tpu.matmul %335, %305, %cst_189 {dimension_numbers = #tpu.dot_dimension_numbers<[1], [0], [0], [1], [0, 0, 1, 1], [], []>} : vector<9x32xf32>, vector<32x32xf32>, vector<9x32xf32> -> vector<9x32xf32>
    %cst_190 = arith.constant dense<0.000000e+00> : vector<9x32xf32>
    %337 = tpu.matmul %335, %306, %cst_190 {dimension_numbers = #tpu.dot_dimension_numbers<[1], [0], [0], [1], [0, 0, 1, 1], [], []>} : vector<9x32xf32>, vector<32x32xf32>, vector<9x32xf32> -> vector<9x32xf32>
    %cst_191 = arith.constant dense<0.000000e+00> : vector<9x32xf32>
    %338 = tpu.matmul %335, %307, %cst_191 {dimension_numbers = #tpu.dot_dimension_numbers<[1], [0], [0], [1], [0, 0, 1, 1], [], []>} : vector<9x32xf32>, vector<32x32xf32>, vector<9x32xf32> -> vector<9x32xf32>
    %339 = vector.broadcast %7 : vector<1x32xf32> to vector<9x32xf32>
    %340 = arith.mulf %336, %339 : vector<9x32xf32>
    %cst_192 = arith.constant dense<0.000000e+00> : vector<9x9xf32>
    %341 = tpu.matmul %340, %337, %cst_192 {dimension_numbers = #tpu.dot_dimension_numbers<[1], [1], [0], [0], [0, 0, 1, 0], [], []>} : vector<9x32xf32>, vector<9x32xf32>, vector<9x9xf32> -> vector<9x9xf32>
    %cst_193 = arith.constant 0.353553385 : f32
    %342 = vector.broadcast %cst_193 : f32 to vector<9x9xf32>
    %343 = arith.mulf %341, %342 : vector<9x9xf32>
    %cst_194 = arith.constant dense<0xFF800000> : vector<9xf32>
    %344 = vector.multi_reduction <maximumf>, %343, %cst_194 [1] : vector<9x9xf32> to vector<9xf32>
    %345 = vector.shape_cast %344 : vector<9xf32> to vector<9x1xf32>
    %346 = vector.broadcast %345 : vector<9x1xf32> to vector<9x9xf32>
    %347 = arith.subf %343, %346 : vector<9x9xf32>
    %348 = math.exp %347 : vector<9x9xf32>
    %cst_195 = arith.constant dense<0.000000e+00> : vector<9xf32>
    %349 = vector.multi_reduction <add>, %348, %cst_195 [1] : vector<9x9xf32> to vector<9xf32>
    %350 = vector.shape_cast %349 : vector<9xf32> to vector<9x1xf32>
    %351 = tpu.reciprocal %350 {approx = true} : vector<9x1xf32> -> vector<9x1xf32>
    %352 = vector.broadcast %351 : vector<9x1xf32> to vector<9x9xf32>
    %353 = arith.mulf %348, %352 : vector<9x9xf32>
    %354 = vector.broadcast %7 : vector<1x32xf32> to vector<9x32xf32>
    %355 = arith.mulf %338, %354 : vector<9x32xf32>
    %cst_196 = arith.constant dense<0.000000e+00> : vector<9x32xf32>
    %356 = tpu.matmul %353, %355, %cst_196 {dimension_numbers = #tpu.dot_dimension_numbers<[1], [0], [0], [1], [0, 0, 1, 1], [], []>} : vector<9x9xf32>, vector<9x32xf32>, vector<9x32xf32> -> vector<9x32xf32>
    %357 = vector.broadcast %14 : vector<1x32xf32> to vector<9x32xf32>
    %358 = arith.mulf %336, %357 : vector<9x32xf32>
    %cst_197 = arith.constant dense<0.000000e+00> : vector<9x9xf32>
    %359 = tpu.matmul %358, %337, %cst_197 {dimension_numbers = #tpu.dot_dimension_numbers<[1], [1], [0], [0], [0, 0, 1, 0], [], []>} : vector<9x32xf32>, vector<9x32xf32>, vector<9x9xf32> -> vector<9x9xf32>
    %cst_198 = arith.constant 0.353553385 : f32
    %360 = vector.broadcast %cst_198 : f32 to vector<9x9xf32>
    %361 = arith.mulf %359, %360 : vector<9x9xf32>
    %cst_199 = arith.constant dense<0xFF800000> : vector<9xf32>
    %362 = vector.multi_reduction <maximumf>, %361, %cst_199 [1] : vector<9x9xf32> to vector<9xf32>
    %363 = vector.shape_cast %362 : vector<9xf32> to vector<9x1xf32>
    %364 = vector.broadcast %363 : vector<9x1xf32> to vector<9x9xf32>
    %365 = arith.subf %361, %364 : vector<9x9xf32>
    %366 = math.exp %365 : vector<9x9xf32>
    %cst_200 = arith.constant dense<0.000000e+00> : vector<9xf32>
    %367 = vector.multi_reduction <add>, %366, %cst_200 [1] : vector<9x9xf32> to vector<9xf32>
    %368 = vector.shape_cast %367 : vector<9xf32> to vector<9x1xf32>
    %369 = tpu.reciprocal %368 {approx = true} : vector<9x1xf32> -> vector<9x1xf32>
    %370 = vector.broadcast %369 : vector<9x1xf32> to vector<9x9xf32>
    %371 = arith.mulf %366, %370 : vector<9x9xf32>
    %372 = vector.broadcast %14 : vector<1x32xf32> to vector<9x32xf32>
    %373 = arith.mulf %338, %372 : vector<9x32xf32>
    %cst_201 = arith.constant dense<0.000000e+00> : vector<9x32xf32>
    %374 = tpu.matmul %371, %373, %cst_201 {dimension_numbers = #tpu.dot_dimension_numbers<[1], [0], [0], [1], [0, 0, 1, 1], [], []>} : vector<9x9xf32>, vector<9x32xf32>, vector<9x32xf32> -> vector<9x32xf32>
    %375 = arith.addf %356, %374 : vector<9x32xf32>
    %376 = vector.broadcast %21 : vector<1x32xf32> to vector<9x32xf32>
    %377 = arith.mulf %336, %376 : vector<9x32xf32>
    %cst_202 = arith.constant dense<0.000000e+00> : vector<9x9xf32>
    %378 = tpu.matmul %377, %337, %cst_202 {dimension_numbers = #tpu.dot_dimension_numbers<[1], [1], [0], [0], [0, 0, 1, 0], [], []>} : vector<9x32xf32>, vector<9x32xf32>, vector<9x9xf32> -> vector<9x9xf32>
    %cst_203 = arith.constant 0.353553385 : f32
    %379 = vector.broadcast %cst_203 : f32 to vector<9x9xf32>
    %380 = arith.mulf %378, %379 : vector<9x9xf32>
    %cst_204 = arith.constant dense<0xFF800000> : vector<9xf32>
    %381 = vector.multi_reduction <maximumf>, %380, %cst_204 [1] : vector<9x9xf32> to vector<9xf32>
    %382 = vector.shape_cast %381 : vector<9xf32> to vector<9x1xf32>
    %383 = vector.broadcast %382 : vector<9x1xf32> to vector<9x9xf32>
    %384 = arith.subf %380, %383 : vector<9x9xf32>
    %385 = math.exp %384 : vector<9x9xf32>
    %cst_205 = arith.constant dense<0.000000e+00> : vector<9xf32>
    %386 = vector.multi_reduction <add>, %385, %cst_205 [1] : vector<9x9xf32> to vector<9xf32>
    %387 = vector.shape_cast %386 : vector<9xf32> to vector<9x1xf32>
    %388 = tpu.reciprocal %387 {approx = true} : vector<9x1xf32> -> vector<9x1xf32>
    %389 = vector.broadcast %388 : vector<9x1xf32> to vector<9x9xf32>
    %390 = arith.mulf %385, %389 : vector<9x9xf32>
    %391 = vector.broadcast %21 : vector<1x32xf32> to vector<9x32xf32>
    %392 = arith.mulf %338, %391 : vector<9x32xf32>
    %cst_206 = arith.constant dense<0.000000e+00> : vector<9x32xf32>
    %393 = tpu.matmul %390, %392, %cst_206 {dimension_numbers = #tpu.dot_dimension_numbers<[1], [0], [0], [1], [0, 0, 1, 1], [], []>} : vector<9x9xf32>, vector<9x32xf32>, vector<9x32xf32> -> vector<9x32xf32>
    %394 = arith.addf %375, %393 : vector<9x32xf32>
    %395 = vector.broadcast %28 : vector<1x32xf32> to vector<9x32xf32>
    %396 = arith.mulf %336, %395 : vector<9x32xf32>
    %cst_207 = arith.constant dense<0.000000e+00> : vector<9x9xf32>
    %397 = tpu.matmul %396, %337, %cst_207 {dimension_numbers = #tpu.dot_dimension_numbers<[1], [1], [0], [0], [0, 0, 1, 0], [], []>} : vector<9x32xf32>, vector<9x32xf32>, vector<9x9xf32> -> vector<9x9xf32>
    %cst_208 = arith.constant 0.353553385 : f32
    %398 = vector.broadcast %cst_208 : f32 to vector<9x9xf32>
    %399 = arith.mulf %397, %398 : vector<9x9xf32>
    %cst_209 = arith.constant dense<0xFF800000> : vector<9xf32>
    %400 = vector.multi_reduction <maximumf>, %399, %cst_209 [1] : vector<9x9xf32> to vector<9xf32>
    %401 = vector.shape_cast %400 : vector<9xf32> to vector<9x1xf32>
    %402 = vector.broadcast %401 : vector<9x1xf32> to vector<9x9xf32>
    %403 = arith.subf %399, %402 : vector<9x9xf32>
    %404 = math.exp %403 : vector<9x9xf32>
    %cst_210 = arith.constant dense<0.000000e+00> : vector<9xf32>
    %405 = vector.multi_reduction <add>, %404, %cst_210 [1] : vector<9x9xf32> to vector<9xf32>
    %406 = vector.shape_cast %405 : vector<9xf32> to vector<9x1xf32>
    %407 = tpu.reciprocal %406 {approx = true} : vector<9x1xf32> -> vector<9x1xf32>
    %408 = vector.broadcast %407 : vector<9x1xf32> to vector<9x9xf32>
    %409 = arith.mulf %404, %408 : vector<9x9xf32>
    %410 = vector.broadcast %28 : vector<1x32xf32> to vector<9x32xf32>
    %411 = arith.mulf %338, %410 : vector<9x32xf32>
    %cst_211 = arith.constant dense<0.000000e+00> : vector<9x32xf32>
    %412 = tpu.matmul %409, %411, %cst_211 {dimension_numbers = #tpu.dot_dimension_numbers<[1], [0], [0], [1], [0, 0, 1, 1], [], []>} : vector<9x9xf32>, vector<9x32xf32>, vector<9x32xf32> -> vector<9x32xf32>
    %413 = arith.addf %394, %412 : vector<9x32xf32>
    %cst_212 = arith.constant dense<0.000000e+00> : vector<9x32xf32>
    %414 = tpu.matmul %413, %308, %cst_212 {dimension_numbers = #tpu.dot_dimension_numbers<[1], [0], [0], [1], [0, 0, 1, 1], [], []>} : vector<9x32xf32>, vector<32x32xf32>, vector<9x32xf32> -> vector<9x32xf32>
    %415 = arith.addf %302, %414 : vector<9x32xf32>
    %416 = vector.broadcast %309 : vector<1x32xf32> to vector<9x32xf32>
    %417 = arith.addf %415, %416 : vector<9x32xf32>
    %cst_213 = arith.constant dense<0.000000e+00> : vector<9xf32>
    %418 = vector.multi_reduction <add>, %417, %cst_213 [1] : vector<9x32xf32> to vector<9xf32>
    %419 = vector.shape_cast %418 : vector<9xf32> to vector<9x1xf32>
    %cst_214 = arith.constant 3.200000e+01 : f32
    %420 = vector.broadcast %cst_214 : f32 to vector<9x1xf32>
    %421 = arith.divf %419, %420 : vector<9x1xf32>
    %422 = vector.broadcast %421 : vector<9x1xf32> to vector<9x32xf32>
    %423 = arith.subf %417, %422 : vector<9x32xf32>
    %424 = arith.mulf %423, %423 : vector<9x32xf32>
    %cst_215 = arith.constant dense<0.000000e+00> : vector<9xf32>
    %425 = vector.multi_reduction <add>, %424, %cst_215 [1] : vector<9x32xf32> to vector<9xf32>
    %426 = vector.shape_cast %425 : vector<9xf32> to vector<9x1xf32>
    %cst_216 = arith.constant 3.200000e+01 : f32
    %427 = vector.broadcast %cst_216 : f32 to vector<9x1xf32>
    %428 = arith.divf %426, %427 : vector<9x1xf32>
    %cst_217 = arith.constant 9.99999974E-6 : f32
    %429 = vector.broadcast %cst_217 : f32 to vector<9x1xf32>
    %430 = arith.addf %428, %429 : vector<9x1xf32>
    %431 = math.rsqrt %430 : vector<9x1xf32>
    %432 = vector.broadcast %431 : vector<9x1xf32> to vector<9x32xf32>
    %433 = arith.mulf %423, %432 : vector<9x32xf32>
    %434 = vector.broadcast %310 : vector<1x32xf32> to vector<9x32xf32>
    %435 = arith.mulf %433, %434 : vector<9x32xf32>
    %436 = vector.broadcast %311 : vector<1x32xf32> to vector<9x32xf32>
    %437 = arith.addf %435, %436 : vector<9x32xf32>
    %cst_218 = arith.constant dense<0.000000e+00> : vector<9x64xf32>
    %438 = tpu.matmul %437, %312, %cst_218 {dimension_numbers = #tpu.dot_dimension_numbers<[1], [0], [0], [1], [0, 0, 1, 1], [], []>} : vector<9x32xf32>, vector<32x64xf32>, vector<9x64xf32> -> vector<9x64xf32>
    %439 = vector.broadcast %313 : vector<1x64xf32> to vector<9x64xf32>
    %440 = arith.addf %438, %439 : vector<9x64xf32>
    %cst_219 = arith.constant 5.000000e-01 : f32
    %441 = vector.broadcast %cst_219 : f32 to vector<9x64xf32>
    %442 = arith.mulf %441, %440 : vector<9x64xf32>
    %cst_220 = arith.constant 0.707106769 : f32
    %443 = vector.broadcast %cst_220 : f32 to vector<9x64xf32>
    %444 = arith.mulf %440, %443 : vector<9x64xf32>
    %cst_221 = arith.constant 0.000000e+00 : f32
    %445 = vector.broadcast %cst_221 : f32 to vector<9x64xf32>
    %446 = arith.cmpf oge, %444, %445 : vector<9x64xf32>
    %cst_222 = arith.constant 1.000000e+00 : f32
    %cst_223 = arith.constant -1.000000e+00 : f32
    %447 = vector.broadcast %cst_222 : f32 to vector<9x64xf32>
    %448 = vector.broadcast %cst_223 : f32 to vector<9x64xf32>
    %449 = arith.select %446, %447, %448 : vector<9x64xi1>, vector<9x64xf32>
    %450 = math.absf %444 : vector<9x64xf32>
    %cst_224 = arith.constant 0.327591091 : f32
    %451 = vector.broadcast %cst_224 : f32 to vector<9x64xf32>
    %452 = arith.mulf %451, %450 : vector<9x64xf32>
    %cst_225 = arith.constant 1.000000e+00 : f32
    %453 = vector.broadcast %cst_225 : f32 to vector<9x64xf32>
    %454 = arith.addf %453, %452 : vector<9x64xf32>
    %cst_226 = arith.constant 1.000000e+00 : f32
    %455 = vector.broadcast %cst_226 : f32 to vector<9x64xf32>
    %456 = arith.divf %455, %454 : vector<9x64xf32>
    %cst_227 = arith.constant 1.06140542 : f32
    %457 = vector.broadcast %cst_227 : f32 to vector<9x64xf32>
    %458 = arith.mulf %457, %456 : vector<9x64xf32>
    %cst_228 = arith.constant -1.45315206 : f32
    %459 = vector.broadcast %cst_228 : f32 to vector<9x64xf32>
    %460 = arith.addf %458, %459 : vector<9x64xf32>
    %461 = arith.mulf %460, %456 : vector<9x64xf32>
    %cst_229 = arith.constant 1.42141378 : f32
    %462 = vector.broadcast %cst_229 : f32 to vector<9x64xf32>
    %463 = arith.addf %461, %462 : vector<9x64xf32>
    %464 = arith.mulf %463, %456 : vector<9x64xf32>
    %cst_230 = arith.constant -0.284496725 : f32
    %465 = vector.broadcast %cst_230 : f32 to vector<9x64xf32>
    %466 = arith.addf %464, %465 : vector<9x64xf32>
    %467 = arith.mulf %466, %456 : vector<9x64xf32>
    %cst_231 = arith.constant 0.254829586 : f32
    %468 = vector.broadcast %cst_231 : f32 to vector<9x64xf32>
    %469 = arith.addf %467, %468 : vector<9x64xf32>
    %470 = arith.mulf %469, %456 : vector<9x64xf32>
    %cst_232 = arith.constant 0.000000e+00 : f32
    %471 = vector.broadcast %cst_232 : f32 to vector<9x64xf32>
    %472 = arith.subf %471, %450 : vector<9x64xf32>
    %473 = arith.mulf %472, %450 : vector<9x64xf32>
    %474 = math.exp %473 : vector<9x64xf32>
    %475 = arith.mulf %470, %474 : vector<9x64xf32>
    %cst_233 = arith.constant 1.000000e+00 : f32
    %476 = vector.broadcast %cst_233 : f32 to vector<9x64xf32>
    %477 = arith.subf %476, %475 : vector<9x64xf32>
    %478 = arith.mulf %449, %477 : vector<9x64xf32>
    %cst_234 = arith.constant 1.000000e+00 : f32
    %479 = vector.broadcast %cst_234 : f32 to vector<9x64xf32>
    %480 = arith.addf %479, %478 : vector<9x64xf32>
    %481 = arith.mulf %442, %480 : vector<9x64xf32>
    %cst_235 = arith.constant dense<0.000000e+00> : vector<9x32xf32>
    %482 = tpu.matmul %481, %314, %cst_235 {dimension_numbers = #tpu.dot_dimension_numbers<[1], [0], [0], [1], [0, 0, 1, 1], [], []>} : vector<9x64xf32>, vector<64x32xf32>, vector<9x32xf32> -> vector<9x32xf32>
    %483 = arith.addf %417, %482 : vector<9x32xf32>
    %484 = vector.broadcast %315 : vector<1x32xf32> to vector<9x32xf32>
    %485 = arith.addf %483, %484 : vector<9x32xf32>
    %486 = vector.extract_strided_slice %485 {offsets = [4, 0], sizes = [1, 32], strides = [1, 1]} : vector<9x32xf32> to vector<1x32xf32>
    %c0_236 = arith.constant 0 : index
    %c1_237 = arith.constant 1 : index
    %c0_238 = arith.constant 0 : index
    %487 = vector.load %arg29[%c0_236, %c1_237, %c0_238] : memref<1x2x32xf32, #tpu.memory_space<vmem>>, vector<1x1x32xf32>
    %488 = vector.shape_cast %487 : vector<1x1x32xf32> to vector<1x32xf32>
    %489 = vector.shape_cast %486 : vector<1x32xf32> to vector<1x1x32xf32>
    tpu.vector_store %arg29[%c0_236, %c1_237, %c0_238], %489 {strides = array<i32>} : memref<1x2x32xf32, #tpu.memory_space<vmem>>, vector<1x1x32xf32>,
    %c0_239 = arith.constant 0 : index
    %c0_240 = arith.constant 0 : index
    %c0_241 = arith.constant 0 : index
    %490 = vector.load %arg28[%c0_239, %c0_240, %c0_241] : memref<1x9x32xf32, #tpu.memory_space<vmem>>, vector<1x9x32xf32>
    %491 = vector.shape_cast %490 : vector<1x9x32xf32> to vector<9x32xf32>
    %492 = vector.shape_cast %485 : vector<9x32xf32> to vector<1x9x32xf32>
    tpu.vector_store %arg28[%c0_239, %c0_240, %c0_241], %492 {strides = array<i32>} : memref<1x9x32xf32, #tpu.memory_space<vmem>>, vector<1x9x32xf32>,
    return
  }
  func.func @transform_0(%arg0: i32) -> (i32, i32, i32, i32) {
    %c0_i32 = arith.constant 0 : i32
    %c0_i32_0 = arith.constant 0 : i32
    %c0_i32_1 = arith.constant 0 : i32
    %c0_i32_2 = arith.constant 0 : i32
    return %arg0, %c0_i32, %c0_i32_0, %c0_i32_1 : i32, i32, i32, i32
  }
  func.func @transform_1(%arg0: i32) -> (i32, i32) {
    %c0_i32 = arith.constant 0 : i32
    %c0_i32_0 = arith.constant 0 : i32
    %c0_i32_1 = arith.constant 0 : i32
    return %c0_i32, %c0_i32_0 : i32, i32
  }
  func.func @transform_2(%arg0: i32) -> (i32, i32) {
    %c0_i32 = arith.constant 0 : i32
    %c0_i32_0 = arith.constant 0 : i32
    %c0_i32_1 = arith.constant 0 : i32
    return %c0_i32, %c0_i32_0 : i32, i32
  }
  func.func @transform_3(%arg0: i32) -> (i32, i32) {
    %c0_i32 = arith.constant 0 : i32
    %c0_i32_0 = arith.constant 0 : i32
    %c0_i32_1 = arith.constant 0 : i32
    return %c0_i32, %c0_i32_0 : i32, i32
  }
  func.func @transform_4(%arg0: i32) -> (i32, i32) {
    %c0_i32 = arith.constant 0 : i32
    %c0_i32_0 = arith.constant 0 : i32
    %c0_i32_1 = arith.constant 0 : i32
    return %c0_i32, %c0_i32_0 : i32, i32
  }
  func.func @transform_5(%arg0: i32) -> (i32, i32) {
    %c0_i32 = arith.constant 0 : i32
    %c0_i32_0 = arith.constant 0 : i32
    %c0_i32_1 = arith.constant 0 : i32
    return %c0_i32, %c0_i32_0 : i32, i32
  }
  func.func @transform_6(%arg0: i32) -> (i32, i32) {
    %c0_i32 = arith.constant 0 : i32
    %c0_i32_0 = arith.constant 0 : i32
    %c0_i32_1 = arith.constant 0 : i32
    return %c0_i32, %c0_i32_0 : i32, i32
  }
  func.func @transform_7(%arg0: i32) -> (i32, i32) {
    %c0_i32 = arith.constant 0 : i32
    %c0_i32_0 = arith.constant 0 : i32
    %c0_i32_1 = arith.constant 0 : i32
    return %c0_i32, %c0_i32_0 : i32, i32
  }
  func.func @transform_8(%arg0: i32) -> (i32, i32) {
    %c0_i32 = arith.constant 0 : i32
    %c0_i32_0 = arith.constant 0 : i32
    %c0_i32_1 = arith.constant 0 : i32
    return %c0_i32, %c0_i32_0 : i32, i32
  }
  func.func @transform_9(%arg0: i32) -> (i32, i32) {
    %c0_i32 = arith.constant 0 : i32
    %c0_i32_0 = arith.constant 0 : i32
    %c0_i32_1 = arith.constant 0 : i32
    return %c0_i32, %c0_i32_0 : i32, i32
  }
  func.func @transform_10(%arg0: i32) -> (i32, i32) {
    %c0_i32 = arith.constant 0 : i32
    %c0_i32_0 = arith.constant 0 : i32
    %c0_i32_1 = arith.constant 0 : i32
    return %c0_i32, %c0_i32_0 : i32, i32
  }
  func.func @transform_11(%arg0: i32) -> (i32, i32) {
    %c0_i32 = arith.constant 0 : i32
    %c0_i32_0 = arith.constant 0 : i32
    %c0_i32_1 = arith.constant 0 : i32
    return %c0_i32, %c0_i32_0 : i32, i32
  }
  func.func @transform_12(%arg0: i32) -> (i32, i32) {
    %c0_i32 = arith.constant 0 : i32
    %c0_i32_0 = arith.constant 0 : i32
    %c0_i32_1 = arith.constant 0 : i32
    return %c0_i32, %c0_i32_0 : i32, i32
  }
  func.func @transform_13(%arg0: i32) -> (i32, i32) {
    %c0_i32 = arith.constant 0 : i32
    %c0_i32_0 = arith.constant 0 : i32
    %c0_i32_1 = arith.constant 0 : i32
    return %c0_i32, %c0_i32_0 : i32, i32
  }
  func.func @transform_14(%arg0: i32) -> (i32, i32) {
    %c0_i32 = arith.constant 0 : i32
    %c0_i32_0 = arith.constant 0 : i32
    %c0_i32_1 = arith.constant 0 : i32
    return %c0_i32, %c0_i32_0 : i32, i32
  }
  func.func @transform_15(%arg0: i32) -> (i32, i32) {
    %c0_i32 = arith.constant 0 : i32
    %c0_i32_0 = arith.constant 0 : i32
    %c0_i32_1 = arith.constant 0 : i32
    return %c0_i32, %c0_i32_0 : i32, i32
  }
  func.func @transform_16(%arg0: i32) -> (i32, i32) {
    %c0_i32 = arith.constant 0 : i32
    %c0_i32_0 = arith.constant 0 : i32
    %c0_i32_1 = arith.constant 0 : i32
    return %c0_i32, %c0_i32_0 : i32, i32
  }
  func.func @transform_17(%arg0: i32) -> (i32, i32) {
    %c0_i32 = arith.constant 0 : i32
    %c0_i32_0 = arith.constant 0 : i32
    %c0_i32_1 = arith.constant 0 : i32
    return %c0_i32, %c0_i32_0 : i32, i32
  }
  func.func @transform_18(%arg0: i32) -> (i32, i32) {
    %c0_i32 = arith.constant 0 : i32
    %c0_i32_0 = arith.constant 0 : i32
    %c0_i32_1 = arith.constant 0 : i32
    return %c0_i32, %c0_i32_0 : i32, i32
  }
  func.func @transform_19(%arg0: i32) -> (i32, i32) {
    %c0_i32 = arith.constant 0 : i32
    %c0_i32_0 = arith.constant 0 : i32
    %c0_i32_1 = arith.constant 0 : i32
    return %c0_i32, %c0_i32_0 : i32, i32
  }
  func.func @transform_20(%arg0: i32) -> (i32, i32) {
    %c0_i32 = arith.constant 0 : i32
    %c0_i32_0 = arith.constant 0 : i32
    %c0_i32_1 = arith.constant 0 : i32
    return %c0_i32, %c0_i32_0 : i32, i32
  }
  func.func @transform_21(%arg0: i32) -> (i32, i32) {
    %c0_i32 = arith.constant 0 : i32
    %c0_i32_0 = arith.constant 0 : i32
    %c0_i32_1 = arith.constant 0 : i32
    return %c0_i32, %c0_i32_0 : i32, i32
  }
  func.func @transform_22(%arg0: i32) -> (i32, i32) {
    %c0_i32 = arith.constant 0 : i32
    %c0_i32_0 = arith.constant 0 : i32
    %c0_i32_1 = arith.constant 0 : i32
    return %c0_i32, %c0_i32_0 : i32, i32
  }
  func.func @transform_23(%arg0: i32) -> (i32, i32) {
    %c0_i32 = arith.constant 0 : i32
    %c0_i32_0 = arith.constant 0 : i32
    %c0_i32_1 = arith.constant 0 : i32
    return %c0_i32, %c0_i32_0 : i32, i32
  }
  func.func @transform_24(%arg0: i32) -> (i32, i32) {
    %c0_i32 = arith.constant 0 : i32
    %c0_i32_0 = arith.constant 0 : i32
    %c0_i32_1 = arith.constant 0 : i32
    return %c0_i32, %c0_i32_0 : i32, i32
  }
  func.func @transform_25(%arg0: i32) -> (i32, i32) {
    %c0_i32 = arith.constant 0 : i32
    %c0_i32_0 = arith.constant 0 : i32
    %c0_i32_1 = arith.constant 0 : i32
    return %c0_i32, %c0_i32_0 : i32, i32
  }
  func.func @transform_26(%arg0: i32) -> (i32, i32) {
    %c0_i32 = arith.constant 0 : i32
    %c0_i32_0 = arith.constant 0 : i32
    %c0_i32_1 = arith.constant 0 : i32
    return %c0_i32, %c0_i32_0 : i32, i32
  }
  func.func @transform_27(%arg0: i32) -> (i32, i32, i32) {
    %c0_i32 = arith.constant 0 : i32
    %c0_i32_0 = arith.constant 0 : i32
    %c0_i32_1 = arith.constant 0 : i32
    return %arg0, %c0_i32, %c0_i32_0 : i32, i32, i32
  }
  func.func @transform_28(%arg0: i32) -> (i32, i32, i32) {
    %c0_i32 = arith.constant 0 : i32
    %c0_i32_0 = arith.constant 0 : i32
    %c0_i32_1 = arith.constant 0 : i32
    return %arg0, %c0_i32, %c0_i32_0 : i32, i32, i32
  }
}

</mosaic_0001>

<llo_original>
// kernel: tpu_custom_call.1
$region0: #{tpu_custom_call.1}
  #allocation0 [shape = 'u32[]', space=smem, size = 0x4, offset = 0x4, fixed_abs, tag = 'smem constant byte address 0x4 - core index']
  #allocation1 [shape = 'u32[144,128]{1,0:T(1,128)}', space=vmem, size = 0x12000, scoped, tag = 'internal scratch']
  #allocation2 [shape = 'f32[16,16,32]{2,1,0:T(8,128)}', space=vmem, size = 0x20000, scoped, tag = 'scratch operand']
  #allocation3 [shape = 'f32[7,7,32]{2,1,0:T(8,128)}', space=vmem, size = 0x7000, scoped, tag = 'scratch operand']
  %s0 = inlined_call_operand.hbm [shape: f32[2,16,16,32], index: 0, kind: input, shape index: {}]
  %s1 = inlined_call_operand.hbm [shape: f32[1,32], index: 1, kind: input, shape index: {}]
  %s2 = inlined_call_operand.hbm [shape: f32[1,32], index: 2, kind: input, shape index: {}]
  %s3 = inlined_call_operand.vmem [shape: f32[32,32], index: 3, kind: input, shape index: {}]
  %s4 = inlined_call_operand.vmem [shape: f32[32,32], index: 4, kind: input, shape index: {}]
  %s5 = inlined_call_operand.vmem [shape: f32[32,32], index: 5, kind: input, shape index: {}]
  %s6 = inlined_call_operand.vmem [shape: f32[32,32], index: 6, kind: input, shape index: {}]
  %s7 = inlined_call_operand.hbm [shape: f32[1,32], index: 7, kind: input, shape index: {}]
  %s8 = inlined_call_operand.hbm [shape: f32[1,32], index: 8, kind: input, shape index: {}]
  %s9 = inlined_call_operand.hbm [shape: f32[1,32], index: 9, kind: input, shape index: {}]
  %s10 = inlined_call_operand.vmem [shape: f32[32,64], index: 10, kind: input, shape index: {}]
  %s11 = inlined_call_operand.hbm [shape: f32[1,64], index: 11, kind: input, shape index: {}]
  %s12 = inlined_call_operand.vmem [shape: f32[64,32], index: 12, kind: input, shape index: {}]
  %s13 = inlined_call_operand.hbm [shape: f32[1,32], index: 13, kind: input, shape index: {}]
  %s14 = inlined_call_operand.hbm [shape: f32[1,32], index: 14, kind: input, shape index: {}]
  %s15 = inlined_call_operand.hbm [shape: f32[1,32], index: 15, kind: input, shape index: {}]
  %s16 = inlined_call_operand.hbm [shape: f32[32,32], index: 16, kind: input, shape index: {}]
  %s17 = inlined_call_operand.vmem [shape: f32[32,32], index: 17, kind: input, shape index: {}]
  %s18 = inlined_call_operand.hbm [shape: f32[32,32], index: 18, kind: input, shape index: {}]
  %s19 = inlined_call_operand.hbm [shape: f32[32,32], index: 19, kind: input, shape index: {}]
  %s20 = inlined_call_operand.vmem [shape: f32[1,32], index: 20, kind: input, shape index: {}]
  %s21 = inlined_call_operand.vmem [shape: f32[1,32], index: 21, kind: input, shape index: {}]
  %s22 = inlined_call_operand.vmem [shape: f32[1,32], index: 22, kind: input, shape index: {}]
  %s23 = inlined_call_operand.hbm [shape: f32[32,64], index: 23, kind: input, shape index: {}]
  %s24 = inlined_call_operand.vmem [shape: f32[1,64], index: 24, kind: input, shape index: {}]
  %s25 = inlined_call_operand.vmem [shape: f32[64,32], index: 25, kind: input, shape index: {}]
  %s26 = inlined_call_operand.vmem [shape: f32[1,32], index: 26, kind: input, shape index: {}]
  %s27 = inlined_call_operand.vmem [shape: f32[2,9,32], index: 27, kind: output, shape index: {0}]
  %s28 = inlined_call_operand.hbm [shape: f32[2,2,32], index: 28, kind: output, shape index: {1}]
  %29 = xla_tuple %s27, %s28
  %s30 = sld [smem:[#allocation0]]
  $region205: #{tpu_custom_call.1} parent=0
    _
  %s32 = ssub.s32 1, %s30
  %s33 = scalar_select 0, %s32, %s30
  $region1: #{tpu_custom_call.1} parent=0
    #allocation4 [shape = 'u8[262144]{0}', space=vmem, size = 0x40000, scoped, tag = 'input window, operand 0']
    #allocation5 [shape = 's32[2]{0}', space=sflag, size = 0x8, scoped, tag = 'scoped memory for tpu_custom_call.1']
    #allocation6 [shape = 's32[2]{0}', space=sflag, size = 0x8, scoped, tag = 'scoped memory for tpu_custom_call.1']
    #allocation7 [shape = 'u8[512]{0}', space=vmem, size = 0x400, scoped, tag = 'input window, operand 1, single buffered']
    #allocation8 [shape = 's32[1]{0}', space=sflag, size = 0x4, scoped, tag = 'scoped memory for tpu_custom_call.1']
    #allocation9 [shape = 'u8[512]{0}', space=vmem, size = 0x400, scoped, tag = 'input window, operand 2, single buffered']
    #allocation10 [shape = 'u8[512]{0}', space=vmem, size = 0x400, scoped, tag = 'input window, operand 7, single buffered']
    #allocation11 [shape = 's32[1]{0}', space=sflag, size = 0x4, scoped, tag = 'scoped memory for tpu_custom_call.1']
    #allocation12 [shape = 'u8[512]{0}', space=vmem, size = 0x400, scoped, tag = 'input window, operand 8, single buffered']
    #allocation13 [shape = 'u8[512]{0}', space=vmem, size = 0x400, scoped, tag = 'input window, operand 9, single buffered']
    #allocation14 [shape = 's32[1]{0}', space=sflag, size = 0x4, scoped, tag = 'scoped memory for tpu_custom_call.1']
    #allocation15 [shape = 'u8[512]{0}', space=vmem, size = 0x400, scoped, tag = 'input window, operand 11, single buffered']
    #allocation16 [shape = 'u8[512]{0}', space=vmem, size = 0x400, scoped, tag = 'input window, operand 13, single buffered']
    #allocation17 [shape = 's32[1]{0}', space=sflag, size = 0x4, scoped, tag = 'scoped memory for tpu_custom_call.1']
    #allocation18 [shape = 'u8[512]{0}', space=vmem, size = 0x400, scoped, tag = 'input window, operand 14, single buffered']
    #allocation19 [shape = 'u8[512]{0}', space=vmem, size = 0x400, scoped, tag = 'input window, operand 15, single buffered']
    #allocation20 [shape = 's32[1]{0}', space=sflag, size = 0x4, scoped, tag = 'scoped memory for tpu_custom_call.1']
    #allocation21 [shape = 'u8[16384]{0}', space=vmem, size = 0x4000, scoped, tag = 'input window, operand 16, single buffered']
    #allocation22 [shape = 'u8[16384]{0}', space=vmem, size = 0x4000, scoped, tag = 'input window, operand 18, single buffered']
    #allocation23 [shape = 's32[1]{0}', space=sflag, size = 0x4, scoped, tag = 'scoped memory for tpu_custom_call.1']
    #allocation24 [shape = 'u8[16384]{0}', space=vmem, size = 0x4000, scoped, tag = 'input window, operand 19, single buffered']
    #allocation25 [shape = 'u8[16384]{0}', space=vmem, size = 0x4000, scoped, tag = 'input window, operand 23, single buffered']
    #allocation26 [shape = 's32[1]{0}', space=sflag, size = 0x4, scoped, tag = 'scoped memory for tpu_custom_call.1']
    #allocation27 [shape = 'u8[2048]{0}', space=vmem, size = 0x800, scoped, tag = 'output window, operand 1']
    %34 = vsyncpa [#allocation5], 0
    %s35 = scalar_lea.sflag [#allocation5], 1
    %36 = vsyncpa %s35, 0
    %37 = vsyncpa [#allocation8], 0
    %38 = vsyncpa [#allocation11], 0
    %39 = vsyncpa [#allocation14], 0
    %40 = vsyncpa [#allocation17], 0
    %41 = vsyncpa [#allocation20], 0
    %42 = vsyncpa [#allocation23], 0
    %43 = vsyncpa [#allocation26], 0
    %44 = vsyncpa [#allocation6], 0
    %s45 = scalar_lea.sflag [#allocation6], 1
    %46 = vsyncpa %s45, 0
    loop: start=0, step=1, limit=4
    $region2: #{tpu_custom_call.1} parent=1 // loop_pre_header
      _
    $region3: #{tpu_custom_call.1} parent=1 // loop_header
      %s48 = sphi 0, %s52
      %p49 = scmp.ge.s32.totalorder %s48, 4
      %s58 = sphi 0, %s60
      %s61 = sphi 0, %s58
      %s62 = sphi 0, %s61
      %s78 = sphi 0, %s62
      %s82 = sphi 0, %s82
      %s84 = sphi 0, %s82
      %s85 = sphi 0, %s84
      %s99 = sphi 0, %s85
      %s103 = sphi 0, %s103
      %s105 = sphi 0, %s103
      %s106 = sphi 0, %s105
      %s120 = sphi 0, %s106
      %s124 = sphi 0, %s124
      %s126 = sphi 0, %s124
      %s127 = sphi 0, %s126
      %s141 = sphi 0, %s127
      %s145 = sphi 0, %s145
      %s147 = sphi 0, %s145
      %s148 = sphi 0, %s147
      %s162 = sphi 0, %s148
      %s166 = sphi 0, %s166
      %s168 = sphi 0, %s166
      %s169 = sphi 0, %s168
      %s183 = sphi 0, %s169
      %s187 = sphi 0, %s187
      %s189 = sphi 0, %s187
      %s190 = sphi 0, %s189
      %s204 = sphi 0, %s190
      %s208 = sphi 0, %s208
      %s210 = sphi 0, %s208
      %s211 = sphi 0, %s210
      %s225 = sphi 0, %s211
      %s229 = sphi 0, %s229
      %s231 = sphi 0, %s229
      %s232 = sphi 0, %s231
      %s246 = sphi 0, %s232
      %s250 = sphi 0, %s250
      %s252 = sphi 0, %s250
      %s253 = sphi 0, %s252
      %s267 = sphi 0, %s253
      %s271 = sphi 0, %s271
      %s273 = sphi 0, %s271
      %s274 = sphi 0, %s273
      %s288 = sphi 0, %s274
      %s292 = sphi 0, %s292
      %s294 = sphi 0, %s292
      %s295 = sphi 0, %s294
      %s309 = sphi 0, %s295
      %s313 = sphi 0, %s313
      %s315 = sphi 0, %s313
      %s316 = sphi 0, %s315
      %s330 = sphi 0, %s316
      %s334 = sphi 0, %s334
      %s336 = sphi 0, %s334
      %s337 = sphi 0, %s336
      %s351 = sphi 0, %s337
      %s355 = sphi 0, %s355
      %s357 = sphi 0, %s355
      %s358 = sphi 0, %s357
      %s372 = sphi 0, %s358
      %s376 = sphi 0, %s376
      %s378 = sphi 0, %s376
      %s379 = sphi 0, %s378
      %s393 = sphi 0, %s379
      %s397 = sphi 0, %s397
      %s399 = sphi 0, %s397
      %s400 = sphi 0, %s399
      %s414 = sphi 0, %s400
      %s418 = sphi 0, %s418
      %s420 = sphi 0, %s418
      %s421 = sphi 0, %s420
      %s435 = sphi 0, %s421
      %s439 = sphi 0, %s439
      %s441 = sphi 0, %s439
      %s442 = sphi 0, %s441
      %s456 = sphi 0, %s442
      %s460 = sphi 0, %s460
      %s462 = sphi 0, %s460
      %s463 = sphi 0, %s462
      %s477 = sphi 0, %s463
      %s481 = sphi 0, %s481
      %s483 = sphi 0, %s481
      %s484 = sphi 0, %s483
      %s498 = sphi 0, %s484
      %s502 = sphi 0, %s502
      %s504 = sphi 0, %s502
      %s505 = sphi 0, %s504
      %s519 = sphi 0, %s505
      %s523 = sphi 0, %s523
      %s525 = sphi 0, %s523
      %s526 = sphi 0, %s525
      %s540 = sphi 0, %s526
      %s544 = sphi 0, %s544
      %s546 = sphi 0, %s544
      %s547 = sphi 0, %s546
      %s561 = sphi 0, %s547
      %s565 = sphi 0, %s565
      %s567 = sphi 0, %s565
      %s568 = sphi 0, %s567
      %s582 = sphi 0, %s568
      %s586 = sphi 0, %s586
      %s588 = sphi 0, %s586
      %s589 = sphi 0, %s588
      %s603 = sphi 0, %s589
      %s607 = sphi 0, %s607
      %s609 = sphi 0, %s607
      %s610 = sphi 0, %s609
      %s624 = sphi 0, %s610
      %s630 = sphi 0, %s632
      %s633 = sphi 0, %s630
      %s634 = sphi 0, %s633
      %s650 = sphi 0, %s634
      %s656 = sphi 0, %s658
      %s659 = sphi 0, %s656
      %s660 = sphi 0, %s659
      %s676 = sphi 0, %s660
    $region4: #{tpu_custom_call.1} parent=1 // loop_header_branch
      %51 = sbr.rel (%p49) target = $region8
    $region5: #{tpu_custom_call.1} parent=1 // loop_body
      %s53 = ssub.s32 %s48, 1
      %s54 = ssub.s32 %s48, 2
      %s55 = sadd.s32 %s48, 1
      %s56 = ssub.s32 %s48, %s55
      %p57 = scmp.eq.s32.totalorder %s56, 0
      %s59 = sadd.s32 %s58, 1
      %s60 = scalar_select %p57, %s58, %s59
      %p63 = pneg %p57
      %p64 = scmp.eq.s32.totalorder %s48, 1
      %p65 = por %p63, %p64
      %p66 = scmp.ne.s32.totalorder %s58, %s61
      %p67 = scmp.eq.s32.totalorder %s48, 0
      %p68 = por %p66, %p67
      %p69 = scmp.ne.s32.totalorder %s58, %s61
      %p70 = scmp.eq.s32.totalorder %s53, 1
      %p71 = por %p69, %p70
      %p72 = scmp.ne.s32.totalorder %s61, %s62
      %p73 = scmp.eq.s32.totalorder %s53, 0
      %p74 = por %p72, %p73
      %p75 = scmp.ne.s32.totalorder %s61, %s62
      %p76 = scmp.eq.s32.totalorder %s54, 1
      %p77 = por %p75, %p76
      %p79 = scmp.ne.s32.totalorder %s62, %s78
      %p80 = scmp.eq.s32.totalorder %s54, 0
      %p81 = por %p79, %p80
      %s83 = sadd.s32 %s82, 1
      %p86 = scmp.eq.s32.totalorder %s48, 1
      %p87 = scmp.ne.s32.totalorder %s82, %s84
      %p88 = scmp.eq.s32.totalorder %s48, 0
      %p89 = por %p87, %p88
      %p90 = scmp.ne.s32.totalorder %s82, %s84
      %p91 = scmp.eq.s32.totalorder %s53, 1
      %p92 = por %p90, %p91
      %p93 = scmp.ne.s32.totalorder %s84, %s85
      %p94 = scmp.eq.s32.totalorder %s53, 0
      %p95 = por %p93, %p94
      %p96 = scmp.ne.s32.totalorder %s84, %s85
      %p97 = scmp.eq.s32.totalorder %s54, 1
      %p98 = por %p96, %p97
      %p100 = scmp.ne.s32.totalorder %s85, %s99
      %p101 = scmp.eq.s32.totalorder %s54, 0
      %p102 = por %p100, %p101
      %s104 = sadd.s32 %s103, 1
      %p107 = scmp.eq.s32.totalorder %s48, 1
      %p108 = scmp.ne.s32.totalorder %s103, %s105
      %p109 = scmp.eq.s32.totalorder %s48, 0
      %p110 = por %p108, %p109
      %p111 = scmp.ne.s32.totalorder %s103, %s105
      %p112 = scmp.eq.s32.totalorder %s53, 1
      %p113 = por %p111, %p112
      %p114 = scmp.ne.s32.totalorder %s105, %s106
      %p115 = scmp.eq.s32.totalorder %s53, 0
      %p116 = por %p114, %p115
      %p117 = scmp.ne.s32.totalorder %s105, %s106
      %p118 = scmp.eq.s32.totalorder %s54, 1
      %p119 = por %p117, %p118
      %p121 = scmp.ne.s32.totalorder %s106, %s120
      %p122 = scmp.eq.s32.totalorder %s54, 0
      %p123 = por %p121, %p122
      %s125 = sadd.s32 %s124, 1
      %p128 = scmp.eq.s32.totalorder %s48, 1
      %p129 = scmp.ne.s32.totalorder %s124, %s126
      %p130 = scmp.eq.s32.totalorder %s48, 0
      %p131 = por %p129, %p130
      %p132 = scmp.ne.s32.totalorder %s124, %s126
      %p133 = scmp.eq.s32.totalorder %s53, 1
      %p134 = por %p132, %p133
      %p135 = scmp.ne.s32.totalorder %s126, %s127
      %p136 = scmp.eq.s32.totalorder %s53, 0
      %p137 = por %p135, %p136
      %p138 = scmp.ne.s32.totalorder %s126, %s127
      %p139 = scmp.eq.s32.totalorder %s54, 1
      %p140 = por %p138, %p139
      %p142 = scmp.ne.s32.totalorder %s127, %s141
      %p143 = scmp.eq.s32.totalorder %s54, 0
      %p144 = por %p142, %p143
      %s146 = sadd.s32 %s145, 1
      %p149 = scmp.eq.s32.totalorder %s48, 1
      %p150 = scmp.ne.s32.totalorder %s145, %s147
      %p151 = scmp.eq.s32.totalorder %s48, 0
      %p152 = por %p150, %p151
      %p153 = scmp.ne.s32.totalorder %s145, %s147
      %p154 = scmp.eq.s32.totalorder %s53, 1
      %p155 = por %p153, %p154
      %p156 = scmp.ne.s32.totalorder %s147, %s148
      %p157 = scmp.eq.s32.totalorder %s53, 0
      %p158 = por %p156, %p157
      %p159 = scmp.ne.s32.totalorder %s147, %s148
      %p160 = scmp.eq.s32.totalorder %s54, 1
      %p161 = por %p159, %p160
      %p163 = scmp.ne.s32.totalorder %s148, %s162
      %p164 = scmp.eq.s32.totalorder %s54, 0
      %p165 = por %p163, %p164
      %s167 = sadd.s32 %s166, 1
      %p170 = scmp.eq.s32.totalorder %s48, 1
      %p171 = scmp.ne.s32.totalorder %s166, %s168
      %p172 = scmp.eq.s32.totalorder %s48, 0
      %p173 = por %p171, %p172
      %p174 = scmp.ne.s32.totalorder %s166, %s168
      %p175 = scmp.eq.s32.totalorder %s53, 1
      %p176 = por %p174, %p175
      %p177 = scmp.ne.s32.totalorder %s168, %s169
      %p178 = scmp.eq.s32.totalorder %s53, 0
      %p179 = por %p177, %p178
      %p180 = scmp.ne.s32.totalorder %s168, %s169
      %p181 = scmp.eq.s32.totalorder %s54, 1
      %p182 = por %p180, %p181
      %p184 = scmp.ne.s32.totalorder %s169, %s183
      %p185 = scmp.eq.s32.totalorder %s54, 0
      %p186 = por %p184, %p185
      %s188 = sadd.s32 %s187, 1
      %p191 = scmp.eq.s32.totalorder %s48, 1
      %p192 = scmp.ne.s32.totalorder %s187, %s189
      %p193 = scmp.eq.s32.totalorder %s48, 0
      %p194 = por %p192, %p193
      %p195 = scmp.ne.s32.totalorder %s187, %s189
      %p196 = scmp.eq.s32.totalorder %s53, 1
      %p197 = por %p195, %p196
      %p198 = scmp.ne.s32.totalorder %s189, %s190
      %p199 = scmp.eq.s32.totalorder %s53, 0
      %p200 = por %p198, %p199
      %p201 = scmp.ne.s32.totalorder %s189, %s190
      %p202 = scmp.eq.s32.totalorder %s54, 1
      %p203 = por %p201, %p202
      %p205 = scmp.ne.s32.totalorder %s190, %s204
      %p206 = scmp.eq.s32.totalorder %s54, 0
      %p207 = por %p205, %p206
      %s209 = sadd.s32 %s208, 1
      %p212 = scmp.eq.s32.totalorder %s48, 1
      %p213 = scmp.ne.s32.totalorder %s208, %s210
      %p214 = scmp.eq.s32.totalorder %s48, 0
      %p215 = por %p213, %p214
      %p216 = scmp.ne.s32.totalorder %s208, %s210
      %p217 = scmp.eq.s32.totalorder %s53, 1
      %p218 = por %p216, %p217
      %p219 = scmp.ne.s32.totalorder %s210, %s211
      %p220 = scmp.eq.s32.totalorder %s53, 0
      %p221 = por %p219, %p220
      %p222 = scmp.ne.s32.totalorder %s210, %s211
      %p223 = scmp.eq.s32.totalorder %s54, 1
      %p224 = por %p222, %p223
      %p226 = scmp.ne.s32.totalorder %s211, %s225
      %p227 = scmp.eq.s32.totalorder %s54, 0
      %p228 = por %p226, %p227
      %s230 = sadd.s32 %s229, 1
      %p233 = scmp.eq.s32.totalorder %s48, 1
      %p234 = scmp.ne.s32.totalorder %s229, %s231
      %p235 = scmp.eq.s32.totalorder %s48, 0
      %p236 = por %p234, %p235
      %p237 = scmp.ne.s32.totalorder %s229, %s231
      %p238 = scmp.eq.s32.totalorder %s53, 1
      %p239 = por %p237, %p238
      %p240 = scmp.ne.s32.totalorder %s231, %s232
      %p241 = scmp.eq.s32.totalorder %s53, 0
      %p242 = por %p240, %p241
      %p243 = scmp.ne.s32.totalorder %s231, %s232
      %p244 = scmp.eq.s32.totalorder %s54, 1
      %p245 = por %p243, %p244
      %p247 = scmp.ne.s32.totalorder %s232, %s246
      %p248 = scmp.eq.s32.totalorder %s54, 0
      %p249 = por %p247, %p248
      %s251 = sadd.s32 %s250, 1
      %p254 = scmp.eq.s32.totalorder %s48, 1
      %p255 = scmp.ne.s32.totalorder %s250, %s252
      %p256 = scmp.eq.s32.totalorder %s48, 0
      %p257 = por %p255, %p256
      %p258 = scmp.ne.s32.totalorder %s250, %s252
      %p259 = scmp.eq.s32.totalorder %s53, 1
      %p260 = por %p258, %p259
      %p261 = scmp.ne.s32.totalorder %s252, %s253
      %p262 = scmp.eq.s32.totalorder %s53, 0
      %p263 = por %p261, %p262
      %p264 = scmp.ne.s32.totalorder %s252, %s253
      %p265 = scmp.eq.s32.totalorder %s54, 1
      %p266 = por %p264, %p265
      %p268 = scmp.ne.s32.totalorder %s253, %s267
      %p269 = scmp.eq.s32.totalorder %s54, 0
      %p270 = por %p268, %p269
      %s272 = sadd.s32 %s271, 1
      %p275 = scmp.eq.s32.totalorder %s48, 1
      %p276 = scmp.ne.s32.totalorder %s271, %s273
      %p277 = scmp.eq.s32.totalorder %s48, 0
      %p278 = por %p276, %p277
      %p279 = scmp.ne.s32.totalorder %s271, %s273
      %p280 = scmp.eq.s32.totalorder %s53, 1
      %p281 = por %p279, %p280
      %p282 = scmp.ne.s32.totalorder %s273, %s274
      %p283 = scmp.eq.s32.totalorder %s53, 0
      %p284 = por %p282, %p283
      %p285 = scmp.ne.s32.totalorder %s273, %s274
      %p286 = scmp.eq.s32.totalorder %s54, 1
      %p287 = por %p285, %p286
      %p289 = scmp.ne.s32.totalorder %s274, %s288
      %p290 = scmp.eq.s32.totalorder %s54, 0
      %p291 = por %p289, %p290
      %s293 = sadd.s32 %s292, 1
      %p296 = scmp.eq.s32.totalorder %s48, 1
      %p297 = scmp.ne.s32.totalorder %s292, %s294
      %p298 = scmp.eq.s32.totalorder %s48, 0
      %p299 = por %p297, %p298
      %p300 = scmp.ne.s32.totalorder %s292, %s294
      %p301 = scmp.eq.s32.totalorder %s53, 1
      %p302 = por %p300, %p301
      %p303 = scmp.ne.s32.totalorder %s294, %s295
      %p304 = scmp.eq.s32.totalorder %s53, 0
      %p305 = por %p303, %p304
      %p306 = scmp.ne.s32.totalorder %s294, %s295
      %p307 = scmp.eq.s32.totalorder %s54, 1
      %p308 = por %p306, %p307
      %p310 = scmp.ne.s32.totalorder %s295, %s309
      %p311 = scmp.eq.s32.totalorder %s54, 0
      %p312 = por %p310, %p311
      %s314 = sadd.s32 %s313, 1
      %p317 = scmp.eq.s32.totalorder %s48, 1
      %p318 = scmp.ne.s32.totalorder %s313, %s315
      %p319 = scmp.eq.s32.totalorder %s48, 0
      %p320 = por %p318, %p319
      %p321 = scmp.ne.s32.totalorder %s313, %s315
      %p322 = scmp.eq.s32.totalorder %s53, 1
      %p323 = por %p321, %p322
      %p324 = scmp.ne.s32.totalorder %s315, %s316
      %p325 = scmp.eq.s32.totalorder %s53, 0
      %p326 = por %p324, %p325
      %p327 = scmp.ne.s32.totalorder %s315, %s316
      %p328 = scmp.eq.s32.totalorder %s54, 1
      %p329 = por %p327, %p328
      %p331 = scmp.ne.s32.totalorder %s316, %s330
      %p332 = scmp.eq.s32.totalorder %s54, 0
      %p333 = por %p331, %p332
      %s335 = sadd.s32 %s334, 1
      %p338 = scmp.eq.s32.totalorder %s48, 1
      %p339 = scmp.ne.s32.totalorder %s334, %s336
      %p340 = scmp.eq.s32.totalorder %s48, 0
      %p341 = por %p339, %p340
      %p342 = scmp.ne.s32.totalorder %s334, %s336
      %p343 = scmp.eq.s32.totalorder %s53, 1
      %p344 = por %p342, %p343
      %p345 = scmp.ne.s32.totalorder %s336, %s337
      %p346 = scmp.eq.s32.totalorder %s53, 0
      %p347 = por %p345, %p346
      %p348 = scmp.ne.s32.totalorder %s336, %s337
      %p349 = scmp.eq.s32.totalorder %s54, 1
      %p350 = por %p348, %p349
      %p352 = scmp.ne.s32.totalorder %s337, %s351
      %p353 = scmp.eq.s32.totalorder %s54, 0
      %p354 = por %p352, %p353
      %s356 = sadd.s32 %s355, 1
      %p359 = scmp.eq.s32.totalorder %s48, 1
      %p360 = scmp.ne.s32.totalorder %s355, %s357
      %p361 = scmp.eq.s32.totalorder %s48, 0
      %p362 = por %p360, %p361
      %p363 = scmp.ne.s32.totalorder %s355, %s357
      %p364 = scmp.eq.s32.totalorder %s53, 1
      %p365 = por %p363, %p364
      %p366 = scmp.ne.s32.totalorder %s357, %s358
      %p367 = scmp.eq.s32.totalorder %s53, 0
      %p368 = por %p366, %p367
      %p369 = scmp.ne.s32.totalorder %s357, %s358
      %p370 = scmp.eq.s32.totalorder %s54, 1
      %p371 = por %p369, %p370
      %p373 = scmp.ne.s32.totalorder %s358, %s372
      %p374 = scmp.eq.s32.totalorder %s54, 0
      %p375 = por %p373, %p374
      %s377 = sadd.s32 %s376, 1
      %p380 = scmp.eq.s32.totalorder %s48, 1
      %p381 = scmp.ne.s32.totalorder %s376, %s378
      %p382 = scmp.eq.s32.totalorder %s48, 0
      %p383 = por %p381, %p382
      %p384 = scmp.ne.s32.totalorder %s376, %s378
      %p385 = scmp.eq.s32.totalorder %s53, 1
      %p386 = por %p384, %p385
      %p387 = scmp.ne.s32.totalorder %s378, %s379
      %p388 = scmp.eq.s32.totalorder %s53, 0
      %p389 = por %p387, %p388
      %p390 = scmp.ne.s32.totalorder %s378, %s379
      %p391 = scmp.eq.s32.totalorder %s54, 1
      %p392 = por %p390, %p391
      %p394 = scmp.ne.s32.totalorder %s379, %s393
      %p395 = scmp.eq.s32.totalorder %s54, 0
      %p396 = por %p394, %p395
      %s398 = sadd.s32 %s397, 1
      %p401 = scmp.eq.s32.totalorder %s48, 1
      %p402 = scmp.ne.s32.totalorder %s397, %s399
      %p403 = scmp.eq.s32.totalorder %s48, 0
      %p404 = por %p402, %p403
      %p405 = scmp.ne.s32.totalorder %s397, %s399
      %p406 = scmp.eq.s32.totalorder %s53, 1
      %p407 = por %p405, %p406
      %p408 = scmp.ne.s32.totalorder %s399, %s400
      %p409 = scmp.eq.s32.totalorder %s53, 0
      %p410 = por %p408, %p409
      %p411 = scmp.ne.s32.totalorder %s399, %s400
      %p412 = scmp.eq.s32.totalorder %s54, 1
      %p413 = por %p411, %p412
      %p415 = scmp.ne.s32.totalorder %s400, %s414
      %p416 = scmp.eq.s32.totalorder %s54, 0
      %p417 = por %p415, %p416
      %s419 = sadd.s32 %s418, 1
      %p422 = scmp.eq.s32.totalorder %s48, 1
      %p423 = scmp.ne.s32.totalorder %s418, %s420
      %p424 = scmp.eq.s32.totalorder %s48, 0
      %p425 = por %p423, %p424
      %p426 = scmp.ne.s32.totalorder %s418, %s420
      %p427 = scmp.eq.s32.totalorder %s53, 1
      %p428 = por %p426, %p427
      %p429 = scmp.ne.s32.totalorder %s420, %s421
      %p430 = scmp.eq.s32.totalorder %s53, 0
      %p431 = por %p429, %p430
      %p432 = scmp.ne.s32.totalorder %s420, %s421
      %p433 = scmp.eq.s32.totalorder %s54, 1
      %p434 = por %p432, %p433
      %p436 = scmp.ne.s32.totalorder %s421, %s435
      %p437 = scmp.eq.s32.totalorder %s54, 0
      %p438 = por %p436, %p437
      %s440 = sadd.s32 %s439, 1
      %p443 = scmp.eq.s32.totalorder %s48, 1
      %p444 = scmp.ne.s32.totalorder %s439, %s441
      %p445 = scmp.eq.s32.totalorder %s48, 0
      %p446 = por %p444, %p445
      %p447 = scmp.ne.s32.totalorder %s439, %s441
      %p448 = scmp.eq.s32.totalorder %s53, 1
      %p449 = por %p447, %p448
      %p450 = scmp.ne.s32.totalorder %s441, %s442
      %p451 = scmp.eq.s32.totalorder %s53, 0
      %p452 = por %p450, %p451
      %p453 = scmp.ne.s32.totalorder %s441, %s442
      %p454 = scmp.eq.s32.totalorder %s54, 1
      %p455 = por %p453, %p454
      %p457 = scmp.ne.s32.totalorder %s442, %s456
      %p458 = scmp.eq.s32.totalorder %s54, 0
      %p459 = por %p457, %p458
      %s461 = sadd.s32 %s460, 1
      %p464 = scmp.eq.s32.totalorder %s48, 1
      %p465 = scmp.ne.s32.totalorder %s460, %s462
      %p466 = scmp.eq.s32.totalorder %s48, 0
      %p467 = por %p465, %p466
      %p468 = scmp.ne.s32.totalorder %s460, %s462
      %p469 = scmp.eq.s32.totalorder %s53, 1
      %p470 = por %p468, %p469
      %p471 = scmp.ne.s32.totalorder %s462, %s463
      %p472 = scmp.eq.s32.totalorder %s53, 0
      %p473 = por %p471, %p472
      %p474 = scmp.ne.s32.totalorder %s462, %s463
      %p475 = scmp.eq.s32.totalorder %s54, 1
      %p476 = por %p474, %p475
      %p478 = scmp.ne.s32.totalorder %s463, %s477
      %p479 = scmp.eq.s32.totalorder %s54, 0
      %p480 = por %p478, %p479
      %s482 = sadd.s32 %s481, 1
      %p485 = scmp.eq.s32.totalorder %s48, 1
      %p486 = scmp.ne.s32.totalorder %s481, %s483
      %p487 = scmp.eq.s32.totalorder %s48, 0
      %p488 = por %p486, %p487
      %p489 = scmp.ne.s32.totalorder %s481, %s483
      %p490 = scmp.eq.s32.totalorder %s53, 1
      %p491 = por %p489, %p490
      %p492 = scmp.ne.s32.totalorder %s483, %s484
      %p493 = scmp.eq.s32.totalorder %s53, 0
      %p494 = por %p492, %p493
      %p495 = scmp.ne.s32.totalorder %s483, %s484
      %p496 = scmp.eq.s32.totalorder %s54, 1
      %p497 = por %p495, %p496
      %p499 = scmp.ne.s32.totalorder %s484, %s498
      %p500 = scmp.eq.s32.totalorder %s54, 0
      %p501 = por %p499, %p500
      %s503 = sadd.s32 %s502, 1
      %p506 = scmp.eq.s32.totalorder %s48, 1
      %p507 = scmp.ne.s32.totalorder %s502, %s504
      %p508 = scmp.eq.s32.totalorder %s48, 0
      %p509 = por %p507, %p508
      %p510 = scmp.ne.s32.totalorder %s502, %s504
      %p511 = scmp.eq.s32.totalorder %s53, 1
      %p512 = por %p510, %p511
      %p513 = scmp.ne.s32.totalorder %s504, %s505
      %p514 = scmp.eq.s32.totalorder %s53, 0
      %p515 = por %p513, %p514
      %p516 = scmp.ne.s32.totalorder %s504, %s505
      %p517 = scmp.eq.s32.totalorder %s54, 1
      %p518 = por %p516, %p517
      %p520 = scmp.ne.s32.totalorder %s505, %s519
      %p521 = scmp.eq.s32.totalorder %s54, 0
      %p522 = por %p520, %p521
      %s524 = sadd.s32 %s523, 1
      %p527 = scmp.eq.s32.totalorder %s48, 1
      %p528 = scmp.ne.s32.totalorder %s523, %s525
      %p529 = scmp.eq.s32.totalorder %s48, 0
      %p530 = por %p528, %p529
      %p531 = scmp.ne.s32.totalorder %s523, %s525
      %p532 = scmp.eq.s32.totalorder %s53, 1
      %p533 = por %p531, %p532
      %p534 = scmp.ne.s32.totalorder %s525, %s526
      %p535 = scmp.eq.s32.totalorder %s53, 0
      %p536 = por %p534, %p535
      %p537 = scmp.ne.s32.totalorder %s525, %s526
      %p538 = scmp.eq.s32.totalorder %s54, 1
      %p539 = por %p537, %p538
      %p541 = scmp.ne.s32.totalorder %s526, %s540
      %p542 = scmp.eq.s32.totalorder %s54, 0
      %p543 = por %p541, %p542
      %s545 = sadd.s32 %s544, 1
      %p548 = scmp.eq.s32.totalorder %s48, 1
      %p549 = scmp.ne.s32.totalorder %s544, %s546
      %p550 = scmp.eq.s32.totalorder %s48, 0
      %p551 = por %p549, %p550
      %p552 = scmp.ne.s32.totalorder %s544, %s546
      %p553 = scmp.eq.s32.totalorder %s53, 1
      %p554 = por %p552, %p553
      %p555 = scmp.ne.s32.totalorder %s546, %s547
      %p556 = scmp.eq.s32.totalorder %s53, 0
      %p557 = por %p555, %p556
      %p558 = scmp.ne.s32.totalorder %s546, %s547
      %p559 = scmp.eq.s32.totalorder %s54, 1
      %p560 = por %p558, %p559
      %p562 = scmp.ne.s32.totalorder %s547, %s561
      %p563 = scmp.eq.s32.totalorder %s54, 0
      %p564 = por %p562, %p563
      %s566 = sadd.s32 %s565, 1
      %p569 = scmp.eq.s32.totalorder %s48, 1
      %p570 = scmp.ne.s32.totalorder %s565, %s567
      %p571 = scmp.eq.s32.totalorder %s48, 0
      %p572 = por %p570, %p571
      %p573 = scmp.ne.s32.totalorder %s565, %s567
      %p574 = scmp.eq.s32.totalorder %s53, 1
      %p575 = por %p573, %p574
      %p576 = scmp.ne.s32.totalorder %s567, %s568
      %p577 = scmp.eq.s32.totalorder %s53, 0
      %p578 = por %p576, %p577
      %p579 = scmp.ne.s32.totalorder %s567, %s568
      %p580 = scmp.eq.s32.totalorder %s54, 1
      %p581 = por %p579, %p580
      %p583 = scmp.ne.s32.totalorder %s568, %s582
      %p584 = scmp.eq.s32.totalorder %s54, 0
      %p585 = por %p583, %p584
      %s587 = sadd.s32 %s586, 1
      %p590 = scmp.eq.s32.totalorder %s48, 1
      %p591 = scmp.ne.s32.totalorder %s586, %s588
      %p592 = scmp.eq.s32.totalorder %s48, 0
      %p593 = por %p591, %p592
      %p594 = scmp.ne.s32.totalorder %s586, %s588
      %p595 = scmp.eq.s32.totalorder %s53, 1
      %p596 = por %p594, %p595
      %p597 = scmp.ne.s32.totalorder %s588, %s589
      %p598 = scmp.eq.s32.totalorder %s53, 0
      %p599 = por %p597, %p598
      %p600 = scmp.ne.s32.totalorder %s588, %s589
      %p601 = scmp.eq.s32.totalorder %s54, 1
      %p602 = por %p600, %p601
      %p604 = scmp.ne.s32.totalorder %s589, %s603
      %p605 = scmp.eq.s32.totalorder %s54, 0
      %p606 = por %p604, %p605
      %s608 = sadd.s32 %s607, 1
      %p611 = scmp.eq.s32.totalorder %s48, 1
      %p612 = scmp.ne.s32.totalorder %s607, %s609
      %p613 = scmp.eq.s32.totalorder %s48, 0
      %p614 = por %p612, %p613
      %p615 = scmp.ne.s32.totalorder %s607, %s609
      %p616 = scmp.eq.s32.totalorder %s53, 1
      %p617 = por %p615, %p616
      %p618 = scmp.ne.s32.totalorder %s609, %s610
      %p619 = scmp.eq.s32.totalorder %s53, 0
      %p620 = por %p618, %p619
      %p621 = scmp.ne.s32.totalorder %s609, %s610
      %p622 = scmp.eq.s32.totalorder %s54, 1
      %p623 = por %p621, %p622
      %p625 = scmp.ne.s32.totalorder %s610, %s624
      %p626 = scmp.eq.s32.totalorder %s54, 0
      %p627 = por %p625, %p626
      %s628 = ssub.s32 %s48, %s55
      %p629 = scmp.eq.s32.totalorder %s628, 0
      %s631 = sadd.s32 %s630, 1
      %s632 = scalar_select %p629, %s630, %s631
      %p635 = pneg %p629
      %p636 = scmp.eq.s32.totalorder %s48, 1
      %p637 = por %p635, %p636
      %p638 = scmp.ne.s32.totalorder %s630, %s633
      %p639 = scmp.eq.s32.totalorder %s48, 0
      %p640 = por %p638, %p639
      %p641 = scmp.ne.s32.totalorder %s630, %s633
      %p642 = scmp.eq.s32.totalorder %s53, 1
      %p643 = por %p641, %p642
      %p644 = scmp.ne.s32.totalorder %s633, %s634
      %p645 = scmp.eq.s32.totalorder %s53, 0
      %p646 = por %p644, %p645
      %p647 = scmp.ne.s32.totalorder %s633, %s634
      %p648 = scmp.eq.s32.totalorder %s54, 1
      %p649 = por %p647, %p648
      %p651 = scmp.ne.s32.totalorder %s634, %s650
      %p652 = scmp.eq.s32.totalorder %s54, 0
      %p653 = por %p651, %p652
      %s654 = ssub.s32 %s48, %s55
      %p655 = scmp.eq.s32.totalorder %s654, 0
      %s657 = sadd.s32 %s656, 1
      %s658 = scalar_select %p655, %s656, %s657
      %p661 = pneg %p655
      %p662 = scmp.eq.s32.totalorder %s48, 1
      %p663 = por %p661, %p662
      %p664 = scmp.ne.s32.totalorder %s656, %s659
      %p665 = scmp.eq.s32.totalorder %s48, 0
      %p666 = por %p664, %p665
      %p667 = scmp.ne.s32.totalorder %s656, %s659
      %p668 = scmp.eq.s32.totalorder %s53, 1
      %p669 = por %p667, %p668
      %p670 = scmp.ne.s32.totalorder %s659, %s660
      %p671 = scmp.eq.s32.totalorder %s53, 0
      %p672 = por %p670, %p671
      %p673 = scmp.ne.s32.totalorder %s659, %s660
      %p674 = scmp.eq.s32.totalorder %s54, 1
      %p675 = por %p673, %p674
      %p677 = scmp.ne.s32.totalorder %s660, %s676
      %p678 = scmp.eq.s32.totalorder %s54, 0
      %p679 = por %p677, %p678
      %p680 = scmp.le.s32.totalorder 1, %s48
      %p681 = scmp.lt.s32.totalorder %s48, 3
      %p682 = pnand %p680, %p681
      %p683 = pneg %p682
      // Predicated region
      $region9: #{tpu_custom_call.1} parent=5 // pred_check
        _
      $region10: #{tpu_custom_call.1} parent=5 // pred_check_branch
        %685 = sbr.rel (%p682) target = $region12
      $region11: #{tpu_custom_call.1} parent=5 // pred_region
        %s686 = ssub.s32 %s48, 1
        // Predicated region
        $region13: #{tpu_custom_call.1} parent=11 // pred_check
          %p687 = pneg %p95
        $region14: #{tpu_custom_call.1} parent=11 // pred_check_branch
          %689 = sbr.rel (%p687) target = $region16
        $region15: #{tpu_custom_call.1} parent=11 // pred_region
          %s691 = ssub.s32 16, 16
          %692 = vsyncadd [#allocation8], %s691
          %s694 = sshll.u32 [#allocation7], 4
          %s695 = int_to_ptr.vmem [resolvable:$true] %s694
          %697 = dma.hbm_to_vmem [thread:$0]  %s1, 16, %s695, [#allocation8]
        $region16: #{tpu_custom_call.1} parent=11 // pred_fallthru
          _
        // Predicated region
        $region17: #{tpu_custom_call.1} parent=11 // pred_check
          %p698 = pneg %p116
        $region18: #{tpu_custom_call.1} parent=11 // pred_check_branch
          %700 = sbr.rel (%p698) target = $region20
        $region19: #{tpu_custom_call.1} parent=11 // pred_region
          %s702 = ssub.s32 16, 16
          %703 = vsyncadd [#allocation8], %s702
          %s705 = sshll.u32 [#allocation9], 4
          %s706 = int_to_ptr.vmem [resolvable:$true] %s705
          %708 = dma.hbm_to_vmem [thread:$0]  %s2, 16, %s706, [#allocation8]
        $region20: #{tpu_custom_call.1} parent=11 // pred_fallthru
          _
        // Predicated region
        $region21: #{tpu_custom_call.1} parent=11 // pred_check
          %p709 = pneg %p137
        $region22: #{tpu_custom_call.1} parent=11 // pred_check_branch
          %711 = sbr.rel (%p709) target = $region24
        $region23: #{tpu_custom_call.1} parent=11 // pred_region
          _
        $region24: #{tpu_custom_call.1} parent=11 // pred_fallthru
          _
        // Predicated region
        $region25: #{tpu_custom_call.1} parent=11 // pred_check
          %p712 = pneg %p158
        $region26: #{tpu_custom_call.1} parent=11 // pred_check_branch
          %714 = sbr.rel (%p712) target = $region28
        $region27: #{tpu_custom_call.1} parent=11 // pred_region
          _
        $region28: #{tpu_custom_call.1} parent=11 // pred_fallthru
          _
        // Predicated region
        $region29: #{tpu_custom_call.1} parent=11 // pred_check
          %p715 = pneg %p179
        $region30: #{tpu_custom_call.1} parent=11 // pred_check_branch
          %717 = sbr.rel (%p715) target = $region32
        $region31: #{tpu_custom_call.1} parent=11 // pred_region
          _
        $region32: #{tpu_custom_call.1} parent=11 // pred_fallthru
          _
        // Predicated region
        $region33: #{tpu_custom_call.1} parent=11 // pred_check
          %p718 = pneg %p200
        $region34: #{tpu_custom_call.1} parent=11 // pred_check_branch
          %720 = sbr.rel (%p718) target = $region36
        $region35: #{tpu_custom_call.1} parent=11 // pred_region
          _
        $region36: #{tpu_custom_call.1} parent=11 // pred_fallthru
          _
        // Predicated region
        $region37: #{tpu_custom_call.1} parent=11 // pred_check
          %p721 = pneg %p221
        $region38: #{tpu_custom_call.1} parent=11 // pred_check_branch
          %723 = sbr.rel (%p721) target = $region40
        $region39: #{tpu_custom_call.1} parent=11 // pred_region
          %s725 = ssub.s32 16, 16
          %726 = vsyncadd [#allocation11], %s725
          %s728 = sshll.u32 [#allocation10], 4
          %s729 = int_to_ptr.vmem [resolvable:$true] %s728
          %731 = dma.hbm_to_vmem [thread:$0]  %s7, 16, %s729, [#allocation11]
        $region40: #{tpu_custom_call.1} parent=11 // pred_fallthru
          _
        // Predicated region
        $region41: #{tpu_custom_call.1} parent=11 // pred_check
          %p732 = pneg %p242
        $region42: #{tpu_custom_call.1} parent=11 // pred_check_branch
          %734 = sbr.rel (%p732) target = $region44
        $region43: #{tpu_custom_call.1} parent=11 // pred_region
          %s736 = ssub.s32 16, 16
          %737 = vsyncadd [#allocation11], %s736
          %s739 = sshll.u32 [#allocation12], 4
          %s740 = int_to_ptr.vmem [resolvable:$true] %s739
          %742 = dma.hbm_to_vmem [thread:$0]  %s8, 16, %s740, [#allocation11]
        $region44: #{tpu_custom_call.1} parent=11 // pred_fallthru
          _
        // Predicated region
        $region45: #{tpu_custom_call.1} parent=11 // pred_check
          %p743 = pneg %p263
        $region46: #{tpu_custom_call.1} parent=11 // pred_check_branch
          %745 = sbr.rel (%p743) target = $region48
        $region47: #{tpu_custom_call.1} parent=11 // pred_region
          %s747 = ssub.s32 16, 16
          %748 = vsyncadd [#allocation14], %s747
          %s750 = sshll.u32 [#allocation13], 4
          %s751 = int_to_ptr.vmem [resolvable:$true] %s750
          %753 = dma.hbm_to_vmem [thread:$0]  %s9, 16, %s751, [#allocation14]
        $region48: #{tpu_custom_call.1} parent=11 // pred_fallthru
          _
        // Predicated region
        $region49: #{tpu_custom_call.1} parent=11 // pred_check
          %p754 = pneg %p284
        $region50: #{tpu_custom_call.1} parent=11 // pred_check_branch
          %756 = sbr.rel (%p754) target = $region52
        $region51: #{tpu_custom_call.1} parent=11 // pred_region
          _
        $region52: #{tpu_custom_call.1} parent=11 // pred_fallthru
          _
        // Predicated region
        $region53: #{tpu_custom_call.1} parent=11 // pred_check
          %p757 = pneg %p305
        $region54: #{tpu_custom_call.1} parent=11 // pred_check_branch
          %759 = sbr.rel (%p757) target = $region56
        $region55: #{tpu_custom_call.1} parent=11 // pred_region
          %s761 = ssub.s32 16, 16
          %762 = vsyncadd [#allocation14], %s761
          %s764 = sshll.u32 [#allocation15], 4
          %s765 = int_to_ptr.vmem [resolvable:$true] %s764
          %767 = dma.hbm_to_vmem [thread:$0]  %s11, 16, %s765, [#allocation14]
        $region56: #{tpu_custom_call.1} parent=11 // pred_fallthru
          _
        // Predicated region
        $region57: #{tpu_custom_call.1} parent=11 // pred_check
          %p768 = pneg %p326
        $region58: #{tpu_custom_call.1} parent=11 // pred_check_branch
          %770 = sbr.rel (%p768) target = $region60
        $region59: #{tpu_custom_call.1} parent=11 // pred_region
          _
        $region60: #{tpu_custom_call.1} parent=11 // pred_fallthru
          _
        // Predicated region
        $region61: #{tpu_custom_call.1} parent=11 // pred_check
          %p771 = pneg %p347
        $region62: #{tpu_custom_call.1} parent=11 // pred_check_branch
          %773 = sbr.rel (%p771) target = $region64
        $region63: #{tpu_custom_call.1} parent=11 // pred_region
          %s775 = ssub.s32 16, 16
          %776 = vsyncadd [#allocation17], %s775
          %s778 = sshll.u32 [#allocation16], 4
          %s779 = int_to_ptr.vmem [resolvable:$true] %s778
          %781 = dma.hbm_to_vmem [thread:$0]  %s13, 16, %s779, [#allocation17]
        $region64: #{tpu_custom_call.1} parent=11 // pred_fallthru
          _
        // Predicated region
        $region65: #{tpu_custom_call.1} parent=11 // pred_check
          %p782 = pneg %p368
        $region66: #{tpu_custom_call.1} parent=11 // pred_check_branch
          %784 = sbr.rel (%p782) target = $region68
        $region67: #{tpu_custom_call.1} parent=11 // pred_region
          %s786 = ssub.s32 16, 16
          %787 = vsyncadd [#allocation17], %s786
          %s789 = sshll.u32 [#allocation18], 4
          %s790 = int_to_ptr.vmem [resolvable:$true] %s789
          %792 = dma.hbm_to_vmem [thread:$0]  %s14, 16, %s790, [#allocation17]
        $region68: #{tpu_custom_call.1} parent=11 // pred_fallthru
          _
        // Predicated region
        $region69: #{tpu_custom_call.1} parent=11 // pred_check
          %p793 = pneg %p389
        $region70: #{tpu_custom_call.1} parent=11 // pred_check_branch
          %795 = sbr.rel (%p793) target = $region72
        $region71: #{tpu_custom_call.1} parent=11 // pred_region
          %s797 = ssub.s32 16, 16
          %798 = vsyncadd [#allocation20], %s797
          %s800 = sshll.u32 [#allocation19], 4
          %s801 = int_to_ptr.vmem [resolvable:$true] %s800
          %803 = dma.hbm_to_vmem [thread:$0]  %s15, 16, %s801, [#allocation20]
        $region72: #{tpu_custom_call.1} parent=11 // pred_fallthru
          _
        // Predicated region
        $region73: #{tpu_custom_call.1} parent=11 // pred_check
          %p804 = pneg %p410
        $region74: #{tpu_custom_call.1} parent=11 // pred_check_branch
          %806 = sbr.rel (%p804) target = $region76
        $region75: #{tpu_custom_call.1} parent=11 // pred_region
          %s808 = ssub.s32 512, 512
          %809 = vsyncadd [#allocation20], %s808
          %s810 = sshll.u32 [#allocation21], 4
          %s811 = int_to_ptr.vmem [resolvable:$true] %s810
          %816 = dma.hbm_to_vmem [thread:$0]  %s16, 512, %s811, [#allocation20], 128, 128, 8
        $region76: #{tpu_custom_call.1} parent=11 // pred_fallthru
          _
        // Predicated region
        $region77: #{tpu_custom_call.1} parent=11 // pred_check
          %p817 = pneg %p431
        $region78: #{tpu_custom_call.1} parent=11 // pred_check_branch
          %819 = sbr.rel (%p817) target = $region80
        $region79: #{tpu_custom_call.1} parent=11 // pred_region
          _
        $region80: #{tpu_custom_call.1} parent=11 // pred_fallthru
          _
        // Predicated region
        $region81: #{tpu_custom_call.1} parent=11 // pred_check
          %p820 = pneg %p452
        $region82: #{tpu_custom_call.1} parent=11 // pred_check_branch
          %822 = sbr.rel (%p820) target = $region84
        $region83: #{tpu_custom_call.1} parent=11 // pred_region
          %s824 = ssub.s32 512, 512
          %825 = vsyncadd [#allocation23], %s824
          %s826 = sshll.u32 [#allocation22], 4
          %s827 = int_to_ptr.vmem [resolvable:$true] %s826
          %832 = dma.hbm_to_vmem [thread:$0]  %s18, 512, %s827, [#allocation23], 128, 128, 8
        $region84: #{tpu_custom_call.1} parent=11 // pred_fallthru
          _
        // Predicated region
        $region85: #{tpu_custom_call.1} parent=11 // pred_check
          %p833 = pneg %p473
        $region86: #{tpu_custom_call.1} parent=11 // pred_check_branch
          %835 = sbr.rel (%p833) target = $region88
        $region87: #{tpu_custom_call.1} parent=11 // pred_region
          %s837 = ssub.s32 512, 512
          %838 = vsyncadd [#allocation23], %s837
          %s839 = sshll.u32 [#allocation24], 4
          %s840 = int_to_ptr.vmem [resolvable:$true] %s839
          %845 = dma.hbm_to_vmem [thread:$0]  %s19, 512, %s840, [#allocation23], 128, 128, 8
        $region88: #{tpu_custom_call.1} parent=11 // pred_fallthru
          _
        // Predicated region
        $region89: #{tpu_custom_call.1} parent=11 // pred_check
          %p846 = pneg %p494
        $region90: #{tpu_custom_call.1} parent=11 // pred_check_branch
          %848 = sbr.rel (%p846) target = $region92
        $region91: #{tpu_custom_call.1} parent=11 // pred_region
          _
        $region92: #{tpu_custom_call.1} parent=11 // pred_fallthru
          _
        // Predicated region
        $region93: #{tpu_custom_call.1} parent=11 // pred_check
          %p849 = pneg %p515
        $region94: #{tpu_custom_call.1} parent=11 // pred_check_branch
          %851 = sbr.rel (%p849) target = $region96
        $region95: #{tpu_custom_call.1} parent=11 // pred_region
          _
        $region96: #{tpu_custom_call.1} parent=11 // pred_fallthru
          _
        // Predicated region
        $region97: #{tpu_custom_call.1} parent=11 // pred_check
          %p852 = pneg %p536
        $region98: #{tpu_custom_call.1} parent=11 // pred_check_branch
          %854 = sbr.rel (%p852) target = $region100
        $region99: #{tpu_custom_call.1} parent=11 // pred_region
          _
        $region100: #{tpu_custom_call.1} parent=11 // pred_fallthru
          _
        // Predicated region
        $region101: #{tpu_custom_call.1} parent=11 // pred_check
          %p855 = pneg %p557
        $region102: #{tpu_custom_call.1} parent=11 // pred_check_branch
          %857 = sbr.rel (%p855) target = $region104
        $region103: #{tpu_custom_call.1} parent=11 // pred_region
          %s859 = ssub.s32 512, 512
          %860 = vsyncadd [#allocation26], %s859
          %s861 = sshll.u32 [#allocation25], 4
          %s862 = int_to_ptr.vmem [resolvable:$true] %s861
          %867 = dma.hbm_to_vmem [thread:$0]  %s23, 512, %s862, [#allocation26], 128, 128, 8
        $region104: #{tpu_custom_call.1} parent=11 // pred_fallthru
          _
        // Predicated region
        $region105: #{tpu_custom_call.1} parent=11 // pred_check
          %p868 = pneg %p578
        $region106: #{tpu_custom_call.1} parent=11 // pred_check_branch
          %870 = sbr.rel (%p868) target = $region108
        $region107: #{tpu_custom_call.1} parent=11 // pred_region
          _
        $region108: #{tpu_custom_call.1} parent=11 // pred_fallthru
          _
        // Predicated region
        $region109: #{tpu_custom_call.1} parent=11 // pred_check
          %p871 = pneg %p599
        $region110: #{tpu_custom_call.1} parent=11 // pred_check_branch
          %873 = sbr.rel (%p871) target = $region112
        $region111: #{tpu_custom_call.1} parent=11 // pred_region
          _
        $region112: #{tpu_custom_call.1} parent=11 // pred_fallthru
          _
        // Predicated region
        $region113: #{tpu_custom_call.1} parent=11 // pred_check
          %p874 = pneg %p620
        $region114: #{tpu_custom_call.1} parent=11 // pred_check_branch
          %876 = sbr.rel (%p874) target = $region116
        $region115: #{tpu_custom_call.1} parent=11 // pred_region
          _
        $region116: #{tpu_custom_call.1} parent=11 // pred_fallthru
          _
      $region12: #{tpu_custom_call.1} parent=5 // pred_fallthru
        _
      %p877 = scmp.lt.s32.totalorder %s48, 2
      // Predicated region
      $region117: #{tpu_custom_call.1} parent=5 // pred_check
        %p878 = pneg %p877
      $region118: #{tpu_custom_call.1} parent=5 // pred_check_branch
        %880 = sbr.rel (%p878) target = $region120
      $region119: #{tpu_custom_call.1} parent=5 // pred_region
        // Predicated region
        $region121: #{tpu_custom_call.1} parent=119 // pred_check
          %p881 = pneg %p68
        $region122: #{tpu_custom_call.1} parent=119 // pred_check_branch
          %883 = sbr.rel (%p881) target = $region124
        $region123: #{tpu_custom_call.1} parent=119 // pred_region
          %s884 = sand.u32 %s58, 1
          %s885 = scalar_lea.sflag [#allocation5], %s884
          %s886 = sand.u32 %s58, 1
          %s887 = smul.addr %s886, 256
          %s888 = scalar_lea.vmem [#allocation4], %s887
          %s890 = ssub.s32 4096, 4096
          %891 = vsyncadd %s885, %s890
          %s892 = smul.addr %s48, 32
          %s893 = smul.addr %s892, 128
          %s894 = scalar_lea.hbm %s0, %s893
          %s895 = sshll.u32 %s888, 4
          %s896 = int_to_ptr.vmem [resolvable:$true] %s895
          %901 = dma.hbm_to_vmem [thread:$0]  %s894, 4096, %s896, %s885, 128, 128, 8
        $region124: #{tpu_custom_call.1} parent=119 // pred_fallthru
          _
      $region120: #{tpu_custom_call.1} parent=5 // pred_fallthru
        _
      %p902 = scmp.le.s32.totalorder 1, %s48
      %p903 = scmp.lt.s32.totalorder %s48, 3
      %p904 = pnand %p902, %p903
      %p905 = pneg %p904
      // Predicated region
      $region125: #{tpu_custom_call.1} parent=5 // pred_check
        _
      $region126: #{tpu_custom_call.1} parent=5 // pred_check_branch
        %907 = sbr.rel (%p904) target = $region128
      $region127: #{tpu_custom_call.1} parent=5 // pred_region
        %s908 = ssub.s32 %s48, 1
        %s909 = sand.u32 %s61, 1
        %s910 = scalar_lea.sflag [#allocation5], %s909
        %s911 = sand.u32 %s61, 1
        %s912 = smul.addr %s911, 256
        %s913 = scalar_lea.vmem [#allocation4], %s912
        // Predicated region
        $region129: #{tpu_custom_call.1} parent=127 // pred_check
          %p914 = pneg %p74
        $region130: #{tpu_custom_call.1} parent=127 // pred_check_branch
          %916 = sbr.rel (%p914) target = $region132
        $region131: #{tpu_custom_call.1} parent=127 // pred_region
          %917 = dma.done %s910, 4096
        $region132: #{tpu_custom_call.1} parent=127 // pred_fallthru
          _
        // Predicated region
        $region133: #{tpu_custom_call.1} parent=127 // pred_check
          %p918 = pneg %p95
        $region134: #{tpu_custom_call.1} parent=127 // pred_check_branch
          %920 = sbr.rel (%p918) target = $region136
        $region135: #{tpu_custom_call.1} parent=127 // pred_region
          %921 = dma.done [#allocation8], 16
        $region136: #{tpu_custom_call.1} parent=127 // pred_fallthru
          _
        // Predicated region
        $region137: #{tpu_custom_call.1} parent=127 // pred_check
          %p922 = pneg %p116
        $region138: #{tpu_custom_call.1} parent=127 // pred_check_branch
          %924 = sbr.rel (%p922) target = $region140
        $region139: #{tpu_custom_call.1} parent=127 // pred_region
          %925 = dma.done [#allocation8], 16
        $region140: #{tpu_custom_call.1} parent=127 // pred_fallthru
          _
        // Predicated region
        $region141: #{tpu_custom_call.1} parent=127 // pred_check
          %p926 = pneg %p221
        $region142: #{tpu_custom_call.1} parent=127 // pred_check_branch
          %928 = sbr.rel (%p926) target = $region144
        $region143: #{tpu_custom_call.1} parent=127 // pred_region
          %929 = dma.done [#allocation11], 16
        $region144: #{tpu_custom_call.1} parent=127 // pred_fallthru
          _
        // Predicated region
        $region145: #{tpu_custom_call.1} parent=127 // pred_check
          %p930 = pneg %p242
        $region146: #{tpu_custom_call.1} parent=127 // pred_check_branch
          %932 = sbr.rel (%p930) target = $region148
        $region147: #{tpu_custom_call.1} parent=127 // pred_region
          %933 = dma.done [#allocation11], 16
        $region148: #{tpu_custom_call.1} parent=127 // pred_fallthru
          _
        // Predicated region
        $region149: #{tpu_custom_call.1} parent=127 // pred_check
          %p934 = pneg %p263
        $region150: #{tpu_custom_call.1} parent=127 // pred_check_branch
          %936 = sbr.rel (%p934) target = $region152
        $region151: #{tpu_custom_call.1} parent=127 // pred_region
          %937 = dma.done [#allocation14], 16
        $region152: #{tpu_custom_call.1} parent=127 // pred_fallthru
          _
        // Predicated region
        $region153: #{tpu_custom_call.1} parent=127 // pred_check
          %p938 = pneg %p305
        $region154: #{tpu_custom_call.1} parent=127 // pred_check_branch
          %940 = sbr.rel (%p938) target = $region156
        $region155: #{tpu_custom_call.1} parent=127 // pred_region
          %941 = dma.done [#allocation14], 16
        $region156: #{tpu_custom_call.1} parent=127 // pred_fallthru
          _
        // Predicated region
        $region157: #{tpu_custom_call.1} parent=127 // pred_check
          %p942 = pneg %p347
        $region158: #{tpu_custom_call.1} parent=127 // pred_check_branch
          %944 = sbr.rel (%p942) target = $region160
        $region159: #{tpu_custom_call.1} parent=127 // pred_region
          %945 = dma.done [#allocation17], 16
        $region160: #{tpu_custom_call.1} parent=127 // pred_fallthru
          _
        // Predicated region
        $region161: #{tpu_custom_call.1} parent=127 // pred_check
          %p946 = pneg %p368
        $region162: #{tpu_custom_call.1} parent=127 // pred_check_branch
          %948 = sbr.rel (%p946) target = $region164
        $region163: #{tpu_custom_call.1} parent=127 // pred_region
          %949 = dma.done [#allocation17], 16
        $region164: #{tpu_custom_call.1} parent=127 // pred_fallthru
          _
        // Predicated region
        $region165: #{tpu_custom_call.1} parent=127 // pred_check
          %p950 = pneg %p389
        $region166: #{tpu_custom_call.1} parent=127 // pred_check_branch
          %952 = sbr.rel (%p950) target = $region168
        $region167: #{tpu_custom_call.1} parent=127 // pred_region
          %953 = dma.done [#allocation20], 16
        $region168: #{tpu_custom_call.1} parent=127 // pred_fallthru
          _
        // Predicated region
        $region169: #{tpu_custom_call.1} parent=127 // pred_check
          %p954 = pneg %p410
        $region170: #{tpu_custom_call.1} parent=127 // pred_check_branch
          %956 = sbr.rel (%p954) target = $region172
        $region171: #{tpu_custom_call.1} parent=127 // pred_region
          %957 = dma.done [#allocation20], 512
        $region172: #{tpu_custom_call.1} parent=127 // pred_fallthru
          _
        // Predicated region
        $region173: #{tpu_custom_call.1} parent=127 // pred_check
          %p958 = pneg %p452
        $region174: #{tpu_custom_call.1} parent=127 // pred_check_branch
          %960 = sbr.rel (%p958) target = $region176
        $region175: #{tpu_custom_call.1} parent=127 // pred_region
          %961 = dma.done [#allocation23], 512
        $region176: #{tpu_custom_call.1} parent=127 // pred_fallthru
          _
        // Predicated region
        $region177: #{tpu_custom_call.1} parent=127 // pred_check
          %p962 = pneg %p473
        $region178: #{tpu_custom_call.1} parent=127 // pred_check_branch
          %964 = sbr.rel (%p962) target = $region180
        $region179: #{tpu_custom_call.1} parent=127 // pred_region
          %965 = dma.done [#allocation23], 512
        $region180: #{tpu_custom_call.1} parent=127 // pred_fallthru
          _
        // Predicated region
        $region181: #{tpu_custom_call.1} parent=127 // pred_check
          %p966 = pneg %p557
        $region182: #{tpu_custom_call.1} parent=127 // pred_check_branch
          %968 = sbr.rel (%p966) target = $region184
        $region183: #{tpu_custom_call.1} parent=127 // pred_region
          %969 = dma.done [#allocation26], 512
        $region184: #{tpu_custom_call.1} parent=127 // pred_fallthru
          _
        %s970 = sand.u32 %s61, 1
        %s971 = scalar_lea.sflag [#allocation5], %s970
        %s972 = sand.u32 %s61, 1
        %s973 = smul.addr %s972, 256
        %s974 = scalar_lea.vmem [#allocation4], %s973
        %p975 = pneg %p74
        %p976 = pneg %p71
        %p977 = pneg %p95
        %p978 = pneg %p92
        %p979 = pneg %p116
        %p980 = pneg %p113
        %p981 = pneg %p137
        %p982 = pneg %p134
        %p983 = pneg %p158
        %p984 = pneg %p155
        %p985 = pneg %p179
        %p986 = pneg %p176
        %p987 = pneg %p200
        %p988 = pneg %p197
        %p989 = pneg %p221
        %p990 = pneg %p218
        %p991 = pneg %p242
        %p992 = pneg %p239
        %p993 = pneg %p263
        %p994 = pneg %p260
        %p995 = pneg %p284
        %p996 = pneg %p281
        %p997 = pneg %p305
        %p998 = pneg %p302
        %p999 = pneg %p326
        %p1000 = pneg %p323
        %p1001 = pneg %p347
        %p1002 = pneg %p344
        %p1003 = pneg %p368
        %p1004 = pneg %p365
        %p1005 = pneg %p389
        %p1006 = pneg %p386
        %p1007 = pneg %p410
        %p1008 = pneg %p407
        %p1009 = pneg %p431
        %p1010 = pneg %p428
        %p1011 = pneg %p452
        %p1012 = pneg %p449
        %p1013 = pneg %p473
        %p1014 = pneg %p470
        %p1015 = pneg %p494
        %p1016 = pneg %p491
        %p1017 = pneg %p515
        %p1018 = pneg %p512
        %p1019 = pneg %p536
        %p1020 = pneg %p533
        %p1021 = pneg %p557
        %p1022 = pneg %p554
        %p1023 = pneg %p578
        %p1024 = pneg %p575
        %p1025 = pneg %p599
        %p1026 = pneg %p596
        %p1027 = pneg %p620
        %p1028 = pneg %p617
        %p1029 = pneg %p646
        %p1030 = pneg %p643
        %p1031 = scmp.lt.s32.totalorder %s53, 1
        %s1032 = scalar_select %p1031, %s53, 1
        %s1033 = smul.addr %s1032, 2
        %s1034 = smul.addr %s1033, 8
        %s1035 = scalar_lea.vmem %s27, %s1034
        %p1036 = pneg %p672
        %p1037 = pneg %p669
        %s1038 = sand.u32 %s659, 1
        %s1039 = scalar_lea.sflag [#allocation6], %s1038
        %s1040 = sand.u32 %s659, 1
        %s1041 = smul.addr %s1040, 2
        %s1042 = scalar_lea.vmem [#allocation27], %s1041
        %p1043 = scmp.lt.s32.totalorder %s53, 1
        %s1044 = scalar_select %p1043, %s53, 1
        %s1045 = smul.addr %s1044, 2
        %s1046 = smul.addr %s1045, 8
        %s1047 = scalar_lea.vmem %s27, %s1046
        %v1048 = vlaneseq
        %v1049 = vand.u32 %v1048, 127
        %vm1050 = vcmp.ge.s32.totalorder %v1049, 0
        %vm1051 = vcmp.lt.s32.totalorder %v1049, 8
        %vm1052 = vmand %vm1050, %vm1051
        %v1053 = vsel %vm1052, 1, 0
        %v1054 = vcvt.s32.f32 %v1053
        %vm1055 = vcmp.ge.s32.totalorder %v1049, 8
        %vm1056 = vcmp.lt.s32.totalorder %v1049, 16
        %vm1057 = vmand %vm1055, %vm1056
        %v1058 = vsel %vm1057, 1, 0
        %v1059 = vcvt.s32.f32 %v1058
        %vm1060 = vcmp.ge.s32.totalorder %v1049, 16
        %vm1061 = vcmp.lt.s32.totalorder %v1049, 24
        %vm1062 = vmand %vm1060, %vm1061
        %v1063 = vsel %vm1062, 1, 0
        %v1064 = vcvt.s32.f32 %v1063
        %vm1065 = vcmp.ge.s32.totalorder %v1049, 24
        %vm1066 = vcmp.lt.s32.totalorder %v1049, 32
        %vm1067 = vmand %vm1065, %vm1066
        %v1068 = vsel %vm1067, 1, 0
        %v1069 = vcvt.s32.f32 %v1068
        %v1070 = vld [vmem:[%s913] sm:$0xff]
        %v1071 = vld [vmem:[%s913 + $0x8] sm:$0xff]
        %v1072 = vld [vmem:[%s913 + $0x10] sm:$0xff]
        %v1073 = vld [vmem:[%s913 + $0x18] sm:$0xff]
        %v1074 = vld [vmem:[%s913 + $0x20] sm:$0xff]
        %v1075 = vld [vmem:[%s913 + $0x28] sm:$0xff]
        %v1076 = vld [vmem:[%s913 + $0x30] sm:$0xff]
        %v1077 = vld [vmem:[%s913 + $0x38] sm:$0xff]
        %v1078 = vld [vmem:[%s913 + $0x40] sm:$0xff]
        %v1079 = vld [vmem:[%s913 + $0x48] sm:$0xff]
        %v1080 = vld [vmem:[%s913 + $0x50] sm:$0xff]
        %v1081 = vld [vmem:[%s913 + $0x58] sm:$0xff]
        %v1082 = vld [vmem:[%s913 + $0x60] sm:$0xff]
        %v1083 = vld [vmem:[%s913 + $0x68] sm:$0xff]
        %v1084 = vld [vmem:[%s913 + $0x70] sm:$0xff]
        %v1085 = vld [vmem:[%s913 + $0x78] sm:$0xff]
        %v1086 = vld [vmem:[%s913 + $0x80] sm:$0xff]
        %v1087 = vld [vmem:[%s913 + $0x88] sm:$0xff]
        %v1088 = vld [vmem:[%s913 + $0x90] sm:$0xff]
        %v1089 = vld [vmem:[%s913 + $0x98] sm:$0xff]
        %v1090 = vld [vmem:[%s913 + $0xa0] sm:$0xff]
        %v1091 = vld [vmem:[%s913 + $0xa8] sm:$0xff]
        %v1092 = vld [vmem:[%s913 + $0xb0] sm:$0xff]
        %v1093 = vld [vmem:[%s913 + $0xb8] sm:$0xff]
        %v1094 = vld [vmem:[%s913 + $0xc0] sm:$0xff]
        %v1095 = vld [vmem:[%s913 + $0xc8] sm:$0xff]
        %v1096 = vld [vmem:[%s913 + $0xd0] sm:$0xff]
        %v1097 = vld [vmem:[%s913 + $0xd8] sm:$0xff]
        %v1098 = vld [vmem:[%s913 + $0xe0] sm:$0xff]
        %v1099 = vld [vmem:[%s913 + $0xe8] sm:$0xff]
        %v1100 = vld [vmem:[%s913 + $0xf0] sm:$0xff]
        %v1101 = vld [vmem:[%s913 + $0xf8] sm:$0xff]
        %vm1102 = vcmask 261120
        %1103 = vst.msk [vmem:[#allocation2] sm:$0xff] %vm1102, %v1070
        %1104 = vst.msk [vmem:[#allocation2 + $0x8] sm:$0xff] %vm1102, %v1071
        %1105 = vst.msk [vmem:[#allocation2 + $0x10] sm:$0xff] %vm1102, %v1072
        %1106 = vst.msk [vmem:[#allocation2 + $0x18] sm:$0xff] %vm1102, %v1073
        %1107 = vst.msk [vmem:[#allocation2 + $0x20] sm:$0xff] %vm1102, %v1074
        %1108 = vst.msk [vmem:[#allocation2 + $0x28] sm:$0xff] %vm1102, %v1075
        %1109 = vst.msk [vmem:[#allocation2 + $0x30] sm:$0xff] %vm1102, %v1076
        %1110 = vst.msk [vmem:[#allocation2 + $0x38] sm:$0xff] %vm1102, %v1077
        %1111 = vst.msk [vmem:[#allocation2 + $0x40] sm:$0xff] %vm1102, %v1078
        %1112 = vst.msk [vmem:[#allocation2 + $0x48] sm:$0xff] %vm1102, %v1079
        %1113 = vst.msk [vmem:[#allocation2 + $0x50] sm:$0xff] %vm1102, %v1080
        %1114 = vst.msk [vmem:[#allocation2 + $0x58] sm:$0xff] %vm1102, %v1081
        %1115 = vst.msk [vmem:[#allocation2 + $0x60] sm:$0xff] %vm1102, %v1082
        %1116 = vst.msk [vmem:[#allocation2 + $0x68] sm:$0xff] %vm1102, %v1083
        %1117 = vst.msk [vmem:[#allocation2 + $0x70] sm:$0xff] %vm1102, %v1084
        %1118 = vst.msk [vmem:[#allocation2 + $0x78] sm:$0xff] %vm1102, %v1085
        %1119 = vst.msk [vmem:[#allocation2 + $0x80] sm:$0xff] %vm1102, %v1086
        %1120 = vst.msk [vmem:[#allocation2 + $0x88] sm:$0xff] %vm1102, %v1087
        %1121 = vst.msk [vmem:[#allocation2 + $0x90] sm:$0xff] %vm1102, %v1088
        %1122 = vst.msk [vmem:[#allocation2 + $0x98] sm:$0xff] %vm1102, %v1089
        %1123 = vst.msk [vmem:[#allocation2 + $0xa0] sm:$0xff] %vm1102, %v1090
        %1124 = vst.msk [vmem:[#allocation2 + $0xa8] sm:$0xff] %vm1102, %v1091
        %1125 = vst.msk [vmem:[#allocation2 + $0xb0] sm:$0xff] %vm1102, %v1092
        %1126 = vst.msk [vmem:[#allocation2 + $0xb8] sm:$0xff] %vm1102, %v1093
        %1127 = vst.msk [vmem:[#allocation2 + $0xc0] sm:$0xff] %vm1102, %v1094
        %1128 = vst.msk [vmem:[#allocation2 + $0xc8] sm:$0xff] %vm1102, %v1095
        %1129 = vst.msk [vmem:[#allocation2 + $0xd0] sm:$0xff] %vm1102, %v1096
        %1130 = vst.msk [vmem:[#allocation2 + $0xd8] sm:$0xff] %vm1102, %v1097
        %1131 = vst.msk [vmem:[#allocation2 + $0xe0] sm:$0xff] %vm1102, %v1098
        %1132 = vst.msk [vmem:[#allocation2 + $0xe8] sm:$0xff] %vm1102, %v1099
        %1133 = vst.msk [vmem:[#allocation2 + $0xf0] sm:$0xff] %vm1102, %v1100
        %1134 = vst.msk [vmem:[#allocation2 + $0xf8] sm:$0xff] %vm1102, %v1101
        %v1135 = vld [vmem:[#allocation2] ss:$2 sm:$0x7f]
        %s1136 = scalar_lea.vmem [#allocation2], 32
        %v1137 = vld [vmem:[%s1136] ss:$2 sm:$0x7f]
        %s1138 = scalar_lea.vmem [#allocation2], 64
        %v1139 = vld [vmem:[%s1138] ss:$2 sm:$0x7f]
        %s1140 = scalar_lea.vmem [#allocation2], 96
        %v1141 = vld [vmem:[%s1140] ss:$2 sm:$0x7f]
        %s1142 = scalar_lea.vmem [#allocation2], 128
        %v1143 = vld [vmem:[%s1142] ss:$2 sm:$0x7f]
        %s1144 = scalar_lea.vmem [#allocation2], 160
        %v1145 = vld [vmem:[%s1144] ss:$2 sm:$0x7f]
        %s1146 = scalar_lea.vmem [#allocation2], 192
        %v1147 = vld [vmem:[%s1146] ss:$2 sm:$0x7f]
        %s1148 = scalar_lea.vmem [#allocation2], 1
        %v1149 = vld [vmem:[%s1148] ss:$2 sm:$0x7f]
        %s1150 = scalar_lea.vmem [#allocation2], 33
        %v1151 = vld [vmem:[%s1150] ss:$2 sm:$0x7f]
        %s1152 = scalar_lea.vmem [#allocation2], 65
        %v1153 = vld [vmem:[%s1152] ss:$2 sm:$0x7f]
        %s1154 = scalar_lea.vmem [#allocation2], 97
        %v1155 = vld [vmem:[%s1154] ss:$2 sm:$0x7f]
        %s1156 = scalar_lea.vmem [#allocation2], 129
        %v1157 = vld [vmem:[%s1156] ss:$2 sm:$0x7f]
        %s1158 = scalar_lea.vmem [#allocation2], 161
        %v1159 = vld [vmem:[%s1158] ss:$2 sm:$0x7f]
        %s1160 = scalar_lea.vmem [#allocation2], 193
        %v1161 = vld [vmem:[%s1160] ss:$2 sm:$0x7f]
        %v1162 = vmax.f32 %v1135, %v1149
        %v1163 = vmax.f32 %v1137, %v1151
        %v1164 = vmax.f32 %v1139, %v1153
        %v1165 = vmax.f32 %v1141, %v1155
        %v1166 = vmax.f32 %v1143, %v1157
        %v1167 = vmax.f32 %v1145, %v1159
        %v1168 = vmax.f32 %v1147, %v1161
        %s1169 = scalar_lea.vmem [#allocation2], 2
        %v1170 = vld [vmem:[%s1169] ss:$2 sm:$0x7f]
        %s1171 = scalar_lea.vmem [#allocation2], 34
        %v1172 = vld [vmem:[%s1171] ss:$2 sm:$0x7f]
        %s1173 = scalar_lea.vmem [#allocation2], 66
        %v1174 = vld [vmem:[%s1173] ss:$2 sm:$0x7f]
        %s1175 = scalar_lea.vmem [#allocation2], 98
        %v1176 = vld [vmem:[%s1175] ss:$2 sm:$0x7f]
        %s1177 = scalar_lea.vmem [#allocation2], 130
        %v1178 = vld [vmem:[%s1177] ss:$2 sm:$0x7f]
        %s1179 = scalar_lea.vmem [#allocation2], 162
        %v1180 = vld [vmem:[%s1179] ss:$2 sm:$0x7f]
        %s1181 = scalar_lea.vmem [#allocation2], 194
        %v1182 = vld [vmem:[%s1181] ss:$2 sm:$0x7f]
        %v1183 = vmax.f32 %v1162, %v1170
        %v1184 = vmax.f32 %v1163, %v1172
        %v1185 = vmax.f32 %v1164, %v1174
        %v1186 = vmax.f32 %v1165, %v1176
        %v1187 = vmax.f32 %v1166, %v1178
        %v1188 = vmax.f32 %v1167, %v1180
        %v1189 = vmax.f32 %v1168, %v1182
        %s1190 = scalar_lea.vmem [#allocation2], 16
        %v1191 = vld [vmem:[%s1190] ss:$2 sm:$0x7f]
        %s1192 = scalar_lea.vmem %s1190, 32 [#allocation2]
        %v1193 = vld [vmem:[%s1192] ss:$2 sm:$0x7f]
        %s1194 = scalar_lea.vmem %s1190, 64 [#allocation2]
        %v1195 = vld [vmem:[%s1194] ss:$2 sm:$0x7f]
        %s1196 = scalar_lea.vmem %s1190, 96 [#allocation2]
        %v1197 = vld [vmem:[%s1196] ss:$2 sm:$0x7f]
        %s1198 = scalar_lea.vmem %s1190, 128 [#allocation2]
        %v1199 = vld [vmem:[%s1198] ss:$2 sm:$0x7f]
        %s1200 = scalar_lea.vmem %s1190, 160 [#allocation2]
        %v1201 = vld [vmem:[%s1200] ss:$2 sm:$0x7f]
        %s1202 = scalar_lea.vmem %s1190, 192 [#allocation2]
        %v1203 = vld [vmem:[%s1202] ss:$2 sm:$0x7f]
        %v1204 = vmax.f32 %v1183, %v1191
        %v1205 = vmax.f32 %v1184, %v1193
        %v1206 = vmax.f32 %v1185, %v1195
        %v1207 = vmax.f32 %v1186, %v1197
        %v1208 = vmax.f32 %v1187, %v1199
        %v1209 = vmax.f32 %v1188, %v1201
        %v1210 = vmax.f32 %v1189, %v1203
        %s1211 = scalar_lea.vmem %s1190, 1 [#allocation2]
        %v1212 = vld [vmem:[%s1211] ss:$2 sm:$0x7f]
        %s1213 = scalar_lea.vmem %s1190, 33 [#allocation2]
        %v1214 = vld [vmem:[%s1213] ss:$2 sm:$0x7f]
        %s1215 = scalar_lea.vmem %s1190, 65 [#allocation2]
        %v1216 = vld [vmem:[%s1215] ss:$2 sm:$0x7f]
        %s1217 = scalar_lea.vmem %s1190, 97 [#allocation2]
        %v1218 = vld [vmem:[%s1217] ss:$2 sm:$0x7f]
        %s1219 = scalar_lea.vmem %s1190, 129 [#allocation2]
        %v1220 = vld [vmem:[%s1219] ss:$2 sm:$0x7f]
        %s1221 = scalar_lea.vmem %s1190, 161 [#allocation2]
        %v1222 = vld [vmem:[%s1221] ss:$2 sm:$0x7f]
        %s1223 = scalar_lea.vmem %s1190, 193 [#allocation2]
        %v1224 = vld [vmem:[%s1223] ss:$2 sm:$0x7f]
        %v1225 = vmax.f32 %v1204, %v1212
        %v1226 = vmax.f32 %v1205, %v1214
        %v1227 = vmax.f32 %v1206, %v1216
        %v1228 = vmax.f32 %v1207, %v1218
        %v1229 = vmax.f32 %v1208, %v1220
        %v1230 = vmax.f32 %v1209, %v1222
        %v1231 = vmax.f32 %v1210, %v1224
        %s1232 = scalar_lea.vmem %s1190, 2 [#allocation2]
        %v1233 = vld [vmem:[%s1232] ss:$2 sm:$0x7f]
        %s1234 = scalar_lea.vmem %s1190, 34 [#allocation2]
        %v1235 = vld [vmem:[%s1234] ss:$2 sm:$0x7f]
        %s1236 = scalar_lea.vmem %s1190, 66 [#allocation2]
        %v1237 = vld [vmem:[%s1236] ss:$2 sm:$0x7f]
        %s1238 = scalar_lea.vmem %s1190, 98 [#allocation2]
        %v1239 = vld [vmem:[%s1238] ss:$2 sm:$0x7f]
        %s1240 = scalar_lea.vmem %s1190, 130 [#allocation2]
        %v1241 = vld [vmem:[%s1240] ss:$2 sm:$0x7f]
        %s1242 = scalar_lea.vmem %s1190, 162 [#allocation2]
        %v1243 = vld [vmem:[%s1242] ss:$2 sm:$0x7f]
        %s1244 = scalar_lea.vmem %s1190, 194 [#allocation2]
        %v1245 = vld [vmem:[%s1244] ss:$2 sm:$0x7f]
        %v1246 = vmax.f32 %v1225, %v1233
        %v1247 = vmax.f32 %v1226, %v1235
        %v1248 = vmax.f32 %v1227, %v1237
        %v1249 = vmax.f32 %v1228, %v1239
        %v1250 = vmax.f32 %v1229, %v1241
        %v1251 = vmax.f32 %v1230, %v1243
        %v1252 = vmax.f32 %v1231, %v1245
        %s1253 = scalar_lea.vmem [#allocation2], 32
        %v1254 = vld [vmem:[%s1253] ss:$2 sm:$0x7f]
        %s1255 = scalar_lea.vmem %s1253, 32 [#allocation2]
        %v1256 = vld [vmem:[%s1255] ss:$2 sm:$0x7f]
        %s1257 = scalar_lea.vmem %s1253, 64 [#allocation2]
        %v1258 = vld [vmem:[%s1257] ss:$2 sm:$0x7f]
        %s1259 = scalar_lea.vmem %s1253, 96 [#allocation2]
        %v1260 = vld [vmem:[%s1259] ss:$2 sm:$0x7f]
        %s1261 = scalar_lea.vmem %s1253, 128 [#allocation2]
        %v1262 = vld [vmem:[%s1261] ss:$2 sm:$0x7f]
        %s1263 = scalar_lea.vmem %s1253, 160 [#allocation2]
        %v1264 = vld [vmem:[%s1263] ss:$2 sm:$0x7f]
        %s1265 = scalar_lea.vmem %s1253, 192 [#allocation2]
        %v1266 = vld [vmem:[%s1265] ss:$2 sm:$0x7f]
        %v1267 = vmax.f32 %v1246, %v1254
        %v1268 = vmax.f32 %v1247, %v1256
        %v1269 = vmax.f32 %v1248, %v1258
        %v1270 = vmax.f32 %v1249, %v1260
        %v1271 = vmax.f32 %v1250, %v1262
        %v1272 = vmax.f32 %v1251, %v1264
        %v1273 = vmax.f32 %v1252, %v1266
        %s1274 = scalar_lea.vmem %s1253, 1 [#allocation2]
        %v1275 = vld [vmem:[%s1274] ss:$2 sm:$0x7f]
        %s1276 = scalar_lea.vmem %s1253, 33 [#allocation2]
        %v1277 = vld [vmem:[%s1276] ss:$2 sm:$0x7f]
        %s1278 = scalar_lea.vmem %s1253, 65 [#allocation2]
        %v1279 = vld [vmem:[%s1278] ss:$2 sm:$0x7f]
        %s1280 = scalar_lea.vmem %s1253, 97 [#allocation2]
        %v1281 = vld [vmem:[%s1280] ss:$2 sm:$0x7f]
        %s1282 = scalar_lea.vmem %s1253, 129 [#allocation2]
        %v1283 = vld [vmem:[%s1282] ss:$2 sm:$0x7f]
        %s1284 = scalar_lea.vmem %s1253, 161 [#allocation2]
        %v1285 = vld [vmem:[%s1284] ss:$2 sm:$0x7f]
        %s1286 = scalar_lea.vmem %s1253, 193 [#allocation2]
        %v1287 = vld [vmem:[%s1286] ss:$2 sm:$0x7f]
        %v1288 = vmax.f32 %v1267, %v1275
        %v1289 = vmax.f32 %v1268, %v1277
        %v1290 = vmax.f32 %v1269, %v1279
        %v1291 = vmax.f32 %v1270, %v1281
        %v1292 = vmax.f32 %v1271, %v1283
        %v1293 = vmax.f32 %v1272, %v1285
        %v1294 = vmax.f32 %v1273, %v1287
        %s1295 = scalar_lea.vmem %s1253, 2 [#allocation2]
        %v1296 = vld [vmem:[%s1295] ss:$2 sm:$0x7f]
        %s1297 = scalar_lea.vmem %s1253, 34 [#allocation2]
        %v1298 = vld [vmem:[%s1297] ss:$2 sm:$0x7f]
        %s1299 = scalar_lea.vmem %s1253, 66 [#allocation2]
        %v1300 = vld [vmem:[%s1299] ss:$2 sm:$0x7f]
        %s1301 = scalar_lea.vmem %s1253, 98 [#allocation2]
        %v1302 = vld [vmem:[%s1301] ss:$2 sm:$0x7f]
        %s1303 = scalar_lea.vmem %s1253, 130 [#allocation2]
        %v1304 = vld [vmem:[%s1303] ss:$2 sm:$0x7f]
        %s1305 = scalar_lea.vmem %s1253, 162 [#allocation2]
        %v1306 = vld [vmem:[%s1305] ss:$2 sm:$0x7f]
        %s1307 = scalar_lea.vmem %s1253, 194 [#allocation2]
        %v1308 = vld [vmem:[%s1307] ss:$2 sm:$0x7f]
        %v1309 = vmax.f32 %v1288, %v1296
        %v1310 = vmax.f32 %v1289, %v1298
        %v1311 = vmax.f32 %v1290, %v1300
        %v1312 = vmax.f32 %v1291, %v1302
        %v1313 = vmax.f32 %v1292, %v1304
        %v1314 = vmax.f32 %v1293, %v1306
        %v1315 = vmax.f32 %v1294, %v1308
        %v1317 = vrot.slane %v1310, 1
        %v1320 = vrot.slane %v1311, 2
        %v1323 = vrot.slane %v1312, 3
        %v1326 = vrot.slane %v1313, 4
        %v1329 = vrot.slane %v1314, 5
        %v1332 = vrot.slane %v1315, 6
        %vm1334 = vcmask 1046528
        %v1335 = vsel %vm1334, %v1309, %v1317
        %vm1336 = vcmask 1045504
        %v1337 = vsel %vm1336, %v1317, %v1320
        %vm1338 = vcmask 1044480
        %v1339 = vsel %vm1338, %v1320, %v1323
        %vm1340 = vcmask 1043456
        %v1341 = vsel %vm1340, %v1323, %v1326
        %vm1342 = vcmask 1042432
        %v1343 = vsel %vm1342, %v1326, %v1329
        %vm1344 = vcmask 1041408
        %v1345 = vsel %vm1344, %v1329, %v1332
        %v1346 = vld [vmem:[#allocation7] sm:$0x1]
        %v1347 = vld [vmem:[#allocation9] sm:$0x1]
        %v1348 = vld [vmem:[%s3] sm:$0xff]
        %v1349 = vld [vmem:[%s3 + $0x8] sm:$0xff]
        %v1350 = vld [vmem:[%s3 + $0x10] sm:$0xff]
        %v1351 = vld [vmem:[%s3 + $0x18] sm:$0xff]
        %v1352 = vld [vmem:[%s4] sm:$0xff]
        %v1353 = vld [vmem:[%s4 + $0x8] sm:$0xff]
        %v1354 = vld [vmem:[%s4 + $0x10] sm:$0xff]
        %v1355 = vld [vmem:[%s4 + $0x18] sm:$0xff]
        %v1356 = vld [vmem:[%s5] sm:$0xff]
        %v1357 = vld [vmem:[%s5 + $0x8] sm:$0xff]
        %v1358 = vld [vmem:[%s5 + $0x10] sm:$0xff]
        %v1359 = vld [vmem:[%s5 + $0x18] sm:$0xff]
        %v1360 = vld [vmem:[%s6] sm:$0xff]
        %v1361 = vld [vmem:[%s6 + $0x8] sm:$0xff]
        %v1362 = vld [vmem:[%s6 + $0x10] sm:$0xff]
        %v1363 = vld [vmem:[%s6 + $0x18] sm:$0xff]
        %v1364 = vld [vmem:[#allocation10] sm:$0x1]
        %v1365 = vld [vmem:[#allocation12] sm:$0x1]
        %v1366 = vld [vmem:[#allocation13] sm:$0x1]
        %v1367 = vld [vmem:[%s10] sm:$0xff]
        %v1368 = vld [vmem:[%s10 + $0x8] sm:$0xff]
        %v1369 = vld [vmem:[%s10 + $0x10] sm:$0xff]
        %v1370 = vld [vmem:[%s10 + $0x18] sm:$0xff]
        %v1371 = vld [vmem:[#allocation15] sm:$0x1]
        %v1372 = vld [vmem:[%s12] sm:$0xff]
        %v1373 = vld [vmem:[%s12 + $0x8] sm:$0xff]
        %v1374 = vld [vmem:[%s12 + $0x10] sm:$0xff]
        %v1375 = vld [vmem:[%s12 + $0x18] sm:$0xff]
        %v1376 = vld [vmem:[%s12 + $0x20] sm:$0xff]
        %v1377 = vld [vmem:[%s12 + $0x28] sm:$0xff]
        %v1378 = vld [vmem:[%s12 + $0x30] sm:$0xff]
        %v1379 = vld [vmem:[%s12 + $0x38] sm:$0xff]
        %v1380 = vld [vmem:[#allocation16] sm:$0x1]
        %v1381 = vsel %vm1102, %v1335, 0.0
        %1382 = vadd.xlane.f32.xlu0 %v1381
        %v1383 = vpop.xlane.xlu0 %1382
        %v1384 = vsel %vm1102, %v1337, 0.0
        %1385 = vadd.xlane.f32.xlu0 %v1384
        %v1386 = vpop.xlane.xlu0 %1385
        %v1387 = vsel %vm1102, %v1339, 0.0
        %1388 = vadd.xlane.f32.xlu0 %v1387
        %v1389 = vpop.xlane.xlu0 %1388
        %v1390 = vsel %vm1102, %v1341, 0.0
        %1391 = vadd.xlane.f32.xlu0 %v1390
        %v1392 = vpop.xlane.xlu0 %1391
        %v1393 = vsel %vm1102, %v1343, 0.0
        %1394 = vadd.xlane.f32.xlu0 %v1393
        %v1395 = vpop.xlane.xlu0 %1394
        %v1396 = vsel %vm1102, %v1345, 0.0
        %1397 = vadd.xlane.f32.xlu0 %v1396
        %v1398 = vpop.xlane.xlu0 %1397
        %vm1399 = vcmask 253952
        %v1400 = vsel %vm1399, %v1332, 0.0
        %1401 = vadd.xlane.f32.xlu0 %v1400
        %v1402 = vpop.xlane.xlu0 %1401
        %v1403 = vrcp.pop 32.0
        %v1404 = vmul.f32 %v1383, %v1403
        %v1405 = vmul.f32 %v1386, %v1403
        %v1406 = vmul.f32 %v1389, %v1403
        %v1407 = vmul.f32 %v1392, %v1403
        %v1408 = vmul.f32 %v1395, %v1403
        %v1409 = vmul.f32 %v1398, %v1403
        %v1410 = vmul.f32 %v1402, %v1403
        %v1411 = vsub.f32 %v1335, %v1404
        %v1412 = vsub.f32 %v1337, %v1405
        %v1413 = vsub.f32 %v1339, %v1406
        %v1414 = vsub.f32 %v1341, %v1407
        %v1415 = vsub.f32 %v1343, %v1408
        %v1416 = vsub.f32 %v1345, %v1409
        %v1417 = vsub.f32 %v1332, %v1410
        %v1418 = vmul.f32 %v1411, %v1411
        %v1419 = vmul.f32 %v1412, %v1412
        %v1420 = vmul.f32 %v1413, %v1413
        %v1421 = vmul.f32 %v1414, %v1414
        %v1422 = vmul.f32 %v1415, %v1415
        %v1423 = vmul.f32 %v1416, %v1416
        %v1424 = vmul.f32 %v1417, %v1417
        %v1425 = vsel %vm1102, %v1418, 0.0
        %1426 = vadd.xlane.f32.xlu0 %v1425
        %v1427 = vpop.xlane.xlu0 %1426
        %v1428 = vsel %vm1102, %v1419, 0.0
        %1429 = vadd.xlane.f32.xlu0 %v1428
        %v1430 = vpop.xlane.xlu0 %1429
        %v1431 = vsel %vm1102, %v1420, 0.0
        %1432 = vadd.xlane.f32.xlu0 %v1431
        %v1433 = vpop.xlane.xlu0 %1432
        %v1434 = vsel %vm1102, %v1421, 0.0
        %1435 = vadd.xlane.f32.xlu0 %v1434
        %v1436 = vpop.xlane.xlu0 %1435
        %v1437 = vsel %vm1102, %v1422, 0.0
        %1438 = vadd.xlane.f32.xlu0 %v1437
        %v1439 = vpop.xlane.xlu0 %1438
        %v1440 = vsel %vm1102, %v1423, 0.0
        %1441 = vadd.xlane.f32.xlu0 %v1440
        %v1442 = vpop.xlane.xlu0 %1441
        %v1443 = vsel %vm1399, %v1424, 0.0
        %1444 = vadd.xlane.f32.xlu0 %v1443
        %v1445 = vpop.xlane.xlu0 %1444
        %v1446 = vmul.f32 %v1427, %v1403
        %v1447 = vmul.f32 %v1430, %v1403
        %v1448 = vmul.f32 %v1433, %v1403
        %v1449 = vmul.f32 %v1436, %v1403
        %v1450 = vmul.f32 %v1439, %v1403
        %v1451 = vmul.f32 %v1442, %v1403
        %v1452 = vmul.f32 %v1445, %v1403
        %v1453 = vadd.f32 %v1446, 1e-05
        %v1454 = vadd.f32 %v1447, 1e-05
        %v1455 = vadd.f32 %v1448, 1e-05
        %v1456 = vadd.f32 %v1449, 1e-05
        %v1457 = vadd.f32 %v1450, 1e-05
        %v1458 = vadd.f32 %v1451, 1e-05
        %v1459 = vadd.f32 %v1452, 1e-05
        %v1460 = vrsqrt.pop %v1453
        %v1461 = vrsqrt.pop %v1454
        %v1462 = vrsqrt.pop %v1455
        %v1463 = vrsqrt.pop %v1456
        %v1464 = vrsqrt.pop %v1457
        %v1465 = vrsqrt.pop %v1458
        %v1466 = vrsqrt.pop %v1459
        %v1467 = vmul.f32 %v1411, %v1460
        %v1468 = vmul.f32 %v1412, %v1461
        %v1469 = vmul.f32 %v1413, %v1462
        %v1470 = vmul.f32 %v1414, %v1463
        %v1471 = vmul.f32 %v1415, %v1464
        %v1472 = vmul.f32 %v1416, %v1465
        %v1473 = vmul.f32 %v1417, %v1466
        %v1475 = vlaneseq
        %v1476 = vshrl.u32 %v1475, 7
        %v1477 = vsub.s32 0, %v1476
        %v1478 = vrot.slane %v1346, %v1477
        %v1480 = vmul.f32 %v1467, %v1478
        %v1481 = vmul.f32 %v1468, %v1478
        %v1482 = vmul.f32 %v1469, %v1478
        %v1483 = vmul.f32 %v1470, %v1478
        %v1484 = vmul.f32 %v1471, %v1478
        %v1485 = vmul.f32 %v1472, %v1478
        %v1486 = vmul.f32 %v1473, %v1478
        %v1488 = vlaneseq
        %v1489 = vshrl.u32 %v1488, 7
        %v1490 = vsub.s32 0, %v1489
        %v1491 = vrot.slane %v1347, %v1490
        %v1493 = vadd.f32 %v1480, %v1491
        %v1494 = vadd.f32 %v1481, %v1491
        %v1495 = vadd.f32 %v1482, %v1491
        %v1496 = vadd.f32 %v1483, %v1491
        %v1497 = vadd.f32 %v1484, %v1491
        %v1498 = vadd.f32 %v1485, %v1491
        %v1499 = vadd.f32 %v1486, %v1491
        %v1501 = vsel %vm1102, %v1493, 0
        %v1504 = vsel %vm1102, %v1494, 0
        %v1507 = vsel %vm1102, %v1495, 0
        %v1510 = vsel %vm1102, %v1496, 0
        %v1513 = vsel %vm1102, %v1497, 0
        %v1516 = vsel %vm1102, %v1498, 0
        %v1519 = vsel %vm1102, %v1499, 0
        %1521 = vmatprep.subr.mxu0 0.0
        %1522 = vmatpush1.msra.mxu0 %v1348
        %1523 = vmatprep.subr.mxu0 0.0
        %1524 = vmatpush1.msra.mxu0 %v1349
        %1525 = vmatprep.subr.mxu0 0.0
        %1526 = vmatpush1.msra.mxu0 %v1350
        %1527 = vmatprep.subr.mxu0 0.0
        %1528 = vmatpush1.msra.mxu0 %v1351
        %1529 = vmatprep.subr.mxu0 0.0
        %1530 = vmatpush1.msra.mxu0 0.0
        %1531 = vmatprep.subr.mxu0 0.0
        %1532 = vmatpush1.msra.mxu0 0.0
        %1533 = vmatprep.subr.mxu0 0.0
        %1534 = vmatpush1.msra.mxu0 0.0
        %1535 = vmatprep.subr.mxu0 0.0
        %1536 = vmatpush1.msra.mxu0 0.0
        %1537 = vmatprep.subr.mxu0 0.0
        %1538 = vmatpush1.msra.mxu0 0.0
        %1539 = vmatprep.subr.mxu0 0.0
        %1540 = vmatpush1.msra.mxu0 0.0
        %1541 = vmatprep.subr.mxu0 0.0
        %1542 = vmatpush1.msra.mxu0 0.0
        %1543 = vmatprep.subr.mxu0 0.0
        %1544 = vmatpush1.msra.mxu0 0.0
        %1545 = vmatprep.subr.mxu0 0.0
        %1546 = vmatpush1.msra.mxu0 0.0
        %1547 = vmatprep.subr.mxu0 0.0
        %1548 = vmatpush1.msra.mxu0 0.0
        %1549 = vmatprep.subr.mxu0 0.0
        %1550 = vmatpush1.msra.mxu0 0.0
        %1551 = vmatprep.subr.mxu0 0.0
        %1552 = vmatpush1.msra.mxu0 0.0
        %1553 = vmatprep.subr.mxu0 0.0
        %1554 = vmatpush1.msra.mxu0 0.0
        %1555 = vmatprep.subr.mxu0 0.0
        %1556 = vmatpush1.msra.mxu0 0.0
        %1557 = vmatprep.subr.mxu0 0.0
        %1558 = vmatpush1.msra.mxu0 0.0
        %1559 = vmatprep.subr.mxu0 0.0
        %1560 = vmatpush1.msra.mxu0 0.0
        %1561 = vmatprep.subr.mxu0 0.0
        %1562 = vmatpush1.msra.mxu0 0.0
        %1563 = vmatprep.subr.mxu0 0.0
        %1564 = vmatpush1.msra.mxu0 0.0
        %1565 = vmatprep.subr.mxu0 0.0
        %1566 = vmatpush1.msra.mxu0 0.0
        %1567 = vmatprep.subr.mxu0 0.0
        %1568 = vmatpush1.msra.mxu0 0.0
        %1569 = vmatprep.subr.mxu0 0.0
        %1570 = vmatpush1.msra.mxu0 0.0
        %1571 = vmatprep.subr.mxu0 0.0
        %1572 = vmatpush1.msra.mxu0 0.0
        %1573 = vmatprep.subr.mxu0 0.0
        %1574 = vmatpush1.msra.mxu0 0.0
        %1575 = vmatprep.subr.mxu0 0.0
        %1576 = vmatpush1.msra.mxu0 0.0
        %1577 = vmatprep.subr.mxu0 0.0
        %1578 = vmatpush1.msra.mxu0 0.0
        %1579 = vmatprep.subr.mxu0 0.0
        %1580 = vmatpush1.msra.mxu0 0.0
        %1581 = vmatprep.subr.mxu0 0.0
        %1582 = vmatpush1.msra.mxu0 0.0
        %1583 = vmatprep.subr.mxu0 0.0
        %1584 = vmatpush1.msra.mxu0 0.0
        %1585 = vmatprep.mubr.f32.mxu0 0.0
        %1586 = vmatmul.mubr.f32.gmra.mrb[0].mxu0 %v1501
        %v1587 = vpop.f32.mrb[0].mxu0
        %v1588 = vadd.f32 0.0, %v1587
        %v1589 = vpop.f32.mrb[0].mxu0
        %1590 = vmatprep.mubr.f32.mxu0 0.0
        %1591 = vmatmul.mubr.f32.gmra.mrb[0].mxu0 %v1504
        %v1592 = vpop.f32.mrb[0].mxu0
        %v1593 = vadd.f32 0.0, %v1592
        %v1594 = vpop.f32.mrb[0].mxu0
        %1595 = vmatprep.mubr.f32.mxu0 0.0
        %1596 = vmatmul.mubr.f32.gmra.mrb[0].mxu0 %v1507
        %v1597 = vpop.f32.mrb[0].mxu0
        %v1598 = vadd.f32 0.0, %v1597
        %v1599 = vpop.f32.mrb[0].mxu0
        %1600 = vmatprep.mubr.f32.mxu0 0.0
        %1601 = vmatmul.mubr.f32.gmra.mrb[0].mxu0 %v1510
        %v1602 = vpop.f32.mrb[0].mxu0
        %v1603 = vadd.f32 0.0, %v1602
        %v1604 = vpop.f32.mrb[0].mxu0
        %1605 = vmatprep.mubr.f32.mxu0 0.0
        %1606 = vmatmul.mubr.f32.gmra.mrb[0].mxu0 %v1513
        %v1607 = vpop.f32.mrb[0].mxu0
        %v1608 = vadd.f32 0.0, %v1607
        %v1609 = vpop.f32.mrb[0].mxu0
        %1610 = vmatprep.mubr.f32.mxu0 0.0
        %1611 = vmatmul.mubr.f32.gmra.mrb[0].mxu0 %v1516
        %v1612 = vpop.f32.mrb[0].mxu0
        %v1613 = vadd.f32 0.0, %v1612
        %v1614 = vpop.f32.mrb[0].mxu0
        %1615 = vmatprep.mubr.f32.mxu0 0.0
        %1616 = vmatmul.mubr.f32.gmra.mrb[0].mxu0 %v1519
        %v1617 = vpop.f32.mrb[0].mxu0
        %v1618 = vadd.f32 0.0, %v1617
        %v1619 = vpop.f32.mrb[0].mxu0
        %1620 = vdwg.mxu0
        %1621 = vmatprep.subr.mxu0 0.0
        %1622 = vmatpush1.msra.mxu0 %v1352
        %1623 = vmatprep.subr.mxu0 0.0
        %1624 = vmatpush1.msra.mxu0 %v1353
        %1625 = vmatprep.subr.mxu0 0.0
        %1626 = vmatpush1.msra.mxu0 %v1354
        %1627 = vmatprep.subr.mxu0 0.0
        %1628 = vmatpush1.msra.mxu0 %v1355
        %1629 = vmatprep.subr.mxu0 0.0
        %1630 = vmatpush1.msra.mxu0 0.0
        %1631 = vmatprep.subr.mxu0 0.0
        %1632 = vmatpush1.msra.mxu0 0.0
        %1633 = vmatprep.subr.mxu0 0.0
        %1634 = vmatpush1.msra.mxu0 0.0
        %1635 = vmatprep.subr.mxu0 0.0
        %1636 = vmatpush1.msra.mxu0 0.0
        %1637 = vmatprep.subr.mxu0 0.0
        %1638 = vmatpush1.msra.mxu0 0.0
        %1639 = vmatprep.subr.mxu0 0.0
        %1640 = vmatpush1.msra.mxu0 0.0
        %1641 = vmatprep.subr.mxu0 0.0
        %1642 = vmatpush1.msra.mxu0 0.0
        %1643 = vmatprep.subr.mxu0 0.0
        %1644 = vmatpush1.msra.mxu0 0.0
        %1645 = vmatprep.subr.mxu0 0.0
        %1646 = vmatpush1.msra.mxu0 0.0
        %1647 = vmatprep.subr.mxu0 0.0
        %1648 = vmatpush1.msra.mxu0 0.0
        %1649 = vmatprep.subr.mxu0 0.0
        %1650 = vmatpush1.msra.mxu0 0.0
        %1651 = vmatprep.subr.mxu0 0.0
        %1652 = vmatpush1.msra.mxu0 0.0
        %1653 = vmatprep.subr.mxu0 0.0
        %1654 = vmatpush1.msra.mxu0 0.0
        %1655 = vmatprep.subr.mxu0 0.0
        %1656 = vmatpush1.msra.mxu0 0.0
        %1657 = vmatprep.subr.mxu0 0.0
        %1658 = vmatpush1.msra.mxu0 0.0
        %1659 = vmatprep.subr.mxu0 0.0
        %1660 = vmatpush1.msra.mxu0 0.0
        %1661 = vmatprep.subr.mxu0 0.0
        %1662 = vmatpush1.msra.mxu0 0.0
        %1663 = vmatprep.subr.mxu0 0.0
        %1664 = vmatpush1.msra.mxu0 0.0
        %1665 = vmatprep.subr.mxu0 0.0
        %1666 = vmatpush1.msra.mxu0 0.0
        %1667 = vmatprep.subr.mxu0 0.0
        %1668 = vmatpush1.msra.mxu0 0.0
        %1669 = vmatprep.subr.mxu0 0.0
        %1670 = vmatpush1.msra.mxu0 0.0
        %1671 = vmatprep.subr.mxu0 0.0
        %1672 = vmatpush1.msra.mxu0 0.0
        %1673 = vmatprep.subr.mxu0 0.0
        %1674 = vmatpush1.msra.mxu0 0.0
        %1675 = vmatprep.subr.mxu0 0.0
        %1676 = vmatpush1.msra.mxu0 0.0
        %1677 = vmatprep.subr.mxu0 0.0
        %1678 = vmatpush1.msra.mxu0 0.0
        %1679 = vmatprep.subr.mxu0 0.0
        %1680 = vmatpush1.msra.mxu0 0.0
        %1681 = vmatprep.subr.mxu0 0.0
        %1682 = vmatpush1.msra.mxu0 0.0
        %1683 = vmatprep.subr.mxu0 0.0
        %1684 = vmatpush1.msra.mxu0 0.0
        %1685 = vmatprep.mubr.f32.mxu0 0.0
        %1686 = vmatmul.mubr.f32.gmra.mrb[0].mxu0 %v1501
        %v1687 = vpop.f32.mrb[0].mxu0
        %v1688 = vadd.f32 0.0, %v1687
        %v1689 = vpop.f32.mrb[0].mxu0
        %1690 = vmatprep.mubr.f32.mxu0 0.0
        %1691 = vmatmul.mubr.f32.gmra.mrb[0].mxu0 %v1504
        %v1692 = vpop.f32.mrb[0].mxu0
        %v1693 = vadd.f32 0.0, %v1692
        %v1694 = vpop.f32.mrb[0].mxu0
        %1695 = vmatprep.mubr.f32.mxu0 0.0
        %1696 = vmatmul.mubr.f32.gmra.mrb[0].mxu0 %v1507
        %v1697 = vpop.f32.mrb[0].mxu0
        %v1698 = vadd.f32 0.0, %v1697
        %v1699 = vpop.f32.mrb[0].mxu0
        %1700 = vmatprep.mubr.f32.mxu0 0.0
        %1701 = vmatmul.mubr.f32.gmra.mrb[0].mxu0 %v1510
        %v1702 = vpop.f32.mrb[0].mxu0
        %v1703 = vadd.f32 0.0, %v1702
        %v1704 = vpop.f32.mrb[0].mxu0
        %1705 = vmatprep.mubr.f32.mxu0 0.0
        %1706 = vmatmul.mubr.f32.gmra.mrb[0].mxu0 %v1513
        %v1707 = vpop.f32.mrb[0].mxu0
        %v1708 = vadd.f32 0.0, %v1707
        %v1709 = vpop.f32.mrb[0].mxu0
        %1710 = vmatprep.mubr.f32.mxu0 0.0
        %1711 = vmatmul.mubr.f32.gmra.mrb[0].mxu0 %v1516
        %v1712 = vpop.f32.mrb[0].mxu0
        %v1713 = vadd.f32 0.0, %v1712
        %v1714 = vpop.f32.mrb[0].mxu0
        %1715 = vmatprep.mubr.f32.mxu0 0.0
        %1716 = vmatmul.mubr.f32.gmra.mrb[0].mxu0 %v1519
        %v1717 = vpop.f32.mrb[0].mxu0
        %v1718 = vadd.f32 0.0, %v1717
        %v1719 = vpop.f32.mrb[0].mxu0
        %1720 = vdwg.mxu0
        %1721 = vmatprep.subr.mxu0 0.0
        %1722 = vmatpush1.msra.mxu0 %v1356
        %1723 = vmatprep.subr.mxu0 0.0
        %1724 = vmatpush1.msra.mxu0 %v1357
        %1725 = vmatprep.subr.mxu0 0.0
        %1726 = vmatpush1.msra.mxu0 %v1358
        %1727 = vmatprep.subr.mxu0 0.0
        %1728 = vmatpush1.msra.mxu0 %v1359
        %1729 = vmatprep.subr.mxu0 0.0
        %1730 = vmatpush1.msra.mxu0 0.0
        %1731 = vmatprep.subr.mxu0 0.0
        %1732 = vmatpush1.msra.mxu0 0.0
        %1733 = vmatprep.subr.mxu0 0.0
        %1734 = vmatpush1.msra.mxu0 0.0
        %1735 = vmatprep.subr.mxu0 0.0
        %1736 = vmatpush1.msra.mxu0 0.0
        %1737 = vmatprep.subr.mxu0 0.0
        %1738 = vmatpush1.msra.mxu0 0.0
        %1739 = vmatprep.subr.mxu0 0.0
        %1740 = vmatpush1.msra.mxu0 0.0
        %1741 = vmatprep.subr.mxu0 0.0
        %1742 = vmatpush1.msra.mxu0 0.0
        %1743 = vmatprep.subr.mxu0 0.0
        %1744 = vmatpush1.msra.mxu0 0.0
        %1745 = vmatprep.subr.mxu0 0.0
        %1746 = vmatpush1.msra.mxu0 0.0
        %1747 = vmatprep.subr.mxu0 0.0
        %1748 = vmatpush1.msra.mxu0 0.0
        %1749 = vmatprep.subr.mxu0 0.0
        %1750 = vmatpush1.msra.mxu0 0.0
        %1751 = vmatprep.subr.mxu0 0.0
        %1752 = vmatpush1.msra.mxu0 0.0
        %1753 = vmatprep.subr.mxu0 0.0
        %1754 = vmatpush1.msra.mxu0 0.0
        %1755 = vmatprep.subr.mxu0 0.0
        %1756 = vmatpush1.msra.mxu0 0.0
        %1757 = vmatprep.subr.mxu0 0.0
        %1758 = vmatpush1.msra.mxu0 0.0
        %1759 = vmatprep.subr.mxu0 0.0
        %1760 = vmatpush1.msra.mxu0 0.0
        %1761 = vmatprep.subr.mxu0 0.0
        %1762 = vmatpush1.msra.mxu0 0.0
        %1763 = vmatprep.subr.mxu0 0.0
        %1764 = vmatpush1.msra.mxu0 0.0
        %1765 = vmatprep.subr.mxu0 0.0
        %1766 = vmatpush1.msra.mxu0 0.0
        %1767 = vmatprep.subr.mxu0 0.0
        %1768 = vmatpush1.msra.mxu0 0.0
        %1769 = vmatprep.subr.mxu0 0.0
        %1770 = vmatpush1.msra.mxu0 0.0
        %1771 = vmatprep.subr.mxu0 0.0
        %1772 = vmatpush1.msra.mxu0 0.0
        %1773 = vmatprep.subr.mxu0 0.0
        %1774 = vmatpush1.msra.mxu0 0.0
        %1775 = vmatprep.subr.mxu0 0.0
        %1776 = vmatpush1.msra.mxu0 0.0
        %1777 = vmatprep.subr.mxu0 0.0
        %1778 = vmatpush1.msra.mxu0 0.0
        %1779 = vmatprep.subr.mxu0 0.0
        %1780 = vmatpush1.msra.mxu0 0.0
        %1781 = vmatprep.subr.mxu0 0.0
        %1782 = vmatpush1.msra.mxu0 0.0
        %1783 = vmatprep.subr.mxu0 0.0
        %1784 = vmatpush1.msra.mxu0 0.0
        %1785 = vmatprep.mubr.f32.mxu0 0.0
        %1786 = vmatmul.mubr.f32.gmra.mrb[0].mxu0 %v1501
        %v1787 = vpop.f32.mrb[0].mxu0
        %v1788 = vadd.f32 0.0, %v1787
        %v1789 = vpop.f32.mrb[0].mxu0
        %1790 = vmatprep.mubr.f32.mxu0 0.0
        %1791 = vmatmul.mubr.f32.gmra.mrb[0].mxu0 %v1504
        %v1792 = vpop.f32.mrb[0].mxu0
        %v1793 = vadd.f32 0.0, %v1792
        %v1794 = vpop.f32.mrb[0].mxu0
        %1795 = vmatprep.mubr.f32.mxu0 0.0
        %1796 = vmatmul.mubr.f32.gmra.mrb[0].mxu0 %v1507
        %v1797 = vpop.f32.mrb[0].mxu0
        %v1798 = vadd.f32 0.0, %v1797
        %v1799 = vpop.f32.mrb[0].mxu0
        %1800 = vmatprep.mubr.f32.mxu0 0.0
        %1801 = vmatmul.mubr.f32.gmra.mrb[0].mxu0 %v1510
        %v1802 = vpop.f32.mrb[0].mxu0
        %v1803 = vadd.f32 0.0, %v1802
        %v1804 = vpop.f32.mrb[0].mxu0
        %1805 = vmatprep.mubr.f32.mxu0 0.0
        %1806 = vmatmul.mubr.f32.gmra.mrb[0].mxu0 %v1513
        %v1807 = vpop.f32.mrb[0].mxu0
        %v1808 = vadd.f32 0.0, %v1807
        %v1809 = vpop.f32.mrb[0].mxu0
        %1810 = vmatprep.mubr.f32.mxu0 0.0
        %1811 = vmatmul.mubr.f32.gmra.mrb[0].mxu0 %v1516
        %v1812 = vpop.f32.mrb[0].mxu0
        %v1813 = vadd.f32 0.0, %v1812
        %v1814 = vpop.f32.mrb[0].mxu0
        %1815 = vmatprep.mubr.f32.mxu0 0.0
        %1816 = vmatmul.mubr.f32.gmra.mrb[0].mxu0 %v1519
        %v1817 = vpop.f32.mrb[0].mxu0
        %v1818 = vadd.f32 0.0, %v1817
        %v1819 = vpop.f32.mrb[0].mxu0
        %1820 = vdwg.mxu0
        %v1821 = vmul.f32 %v1588, %v1054
        %v1822 = vmul.f32 %v1593, %v1054
        %v1823 = vmul.f32 %v1598, %v1054
        %v1824 = vmul.f32 %v1603, %v1054
        %v1825 = vmul.f32 %v1608, %v1054
        %v1826 = vmul.f32 %v1613, %v1054
        %v1827 = vmul.f32 %v1618, %v1054
        %v1829 = vsel %vm1102, %v1821, 0
        %v1832 = vsel %vm1102, %v1822, 0
        %v1835 = vsel %vm1102, %v1823, 0
        %v1838 = vsel %vm1102, %v1824, 0
        %v1841 = vsel %vm1102, %v1825, 0
        %v1844 = vsel %vm1102, %v1826, 0
        %v1847 = vsel %vm1102, %v1827, 0
        %v1850 = vsel %vm1102, %v1688, 0
        %v1853 = vsel %vm1102, %v1693, 0
        %v1856 = vsel %vm1102, %v1698, 0
        %v1859 = vsel %vm1102, %v1703, 0
        %v1862 = vsel %vm1102, %v1708, 0
        %v1865 = vsel %vm1102, %v1713, 0
        %v1868 = vsel %vm1102, %v1718, 0
        %1870 = vmatprep.subr.mxu0 0.0
        %1871 = vmatpush1.xpose.msra.mxu0 %v1850
        %1872 = vmatprep.subr.mxu0 0.0
        %1873 = vmatpush1.xpose.msra.mxu0 %v1853
        %1874 = vmatprep.subr.mxu0 0.0
        %1875 = vmatpush1.xpose.msra.mxu0 %v1856
        %1876 = vmatprep.subr.mxu0 0.0
        %1877 = vmatpush1.xpose.msra.mxu0 %v1859
        %1878 = vmatprep.subr.mxu0 0.0
        %1879 = vmatpush1.xpose.msra.mxu0 %v1862
        %1880 = vmatprep.subr.mxu0 0.0
        %1881 = vmatpush1.xpose.msra.mxu0 %v1865
        %1882 = vmatprep.subr.mxu0 0.0
        %1883 = vmatpush1.xpose.msra.mxu0 %v1868
        %1884 = vmatprep.subr.mxu0 0.0
        %1885 = vmatpush1.xpose.msra.mxu0 0.0
        %1886 = vmatprep.subr.mxu0 0.0
        %1887 = vmatpush1.xpose.msra.mxu0 0.0
        %1888 = vmatprep.subr.mxu0 0.0
        %1889 = vmatpush1.xpose.msra.mxu0 0.0
        %1890 = vmatprep.subr.mxu0 0.0
        %1891 = vmatpush1.xpose.msra.mxu0 0.0
        %1892 = vmatprep.subr.mxu0 0.0
        %1893 = vmatpush1.xpose.msra.mxu0 0.0
        %1894 = vmatprep.subr.mxu0 0.0
        %1895 = vmatpush1.xpose.msra.mxu0 0.0
        %1896 = vmatprep.subr.mxu0 0.0
        %1897 = vmatpush1.xpose.msra.mxu0 0.0
        %1898 = vmatprep.subr.mxu0 0.0
        %1899 = vmatpush1.xpose.msra.mxu0 0.0
        %1900 = vmatprep.subr.mxu0 0.0
        %1901 = vmatpush1.xpose.msra.mxu0 0.0
        %1902 = vmatprep.subr.mxu0 0.0
        %1903 = vmatpush1.xpose.msra.mxu0 0.0
        %1904 = vmatprep.subr.mxu0 0.0
        %1905 = vmatpush1.xpose.msra.mxu0 0.0
        %1906 = vmatprep.subr.mxu0 0.0
        %1907 = vmatpush1.xpose.msra.mxu0 0.0
        %1908 = vmatprep.subr.mxu0 0.0
        %1909 = vmatpush1.xpose.msra.mxu0 0.0
        %1910 = vmatprep.subr.mxu0 0.0
        %1911 = vmatpush1.xpose.msra.mxu0 0.0
        %1912 = vmatprep.subr.mxu0 0.0
        %1913 = vmatpush1.xpose.msra.mxu0 0.0
        %1914 = vmatprep.subr.mxu0 0.0
        %1915 = vmatpush1.xpose.msra.mxu0 0.0
        %1916 = vmatprep.subr.mxu0 0.0
        %1917 = vmatpush1.xpose.msra.mxu0 0.0
        %1918 = vmatprep.subr.mxu0 0.0
        %1919 = vmatpush1.xpose.msra.mxu0 0.0
        %1920 = vmatprep.subr.mxu0 0.0
        %1921 = vmatpush1.xpose.msra.mxu0 0.0
        %1922 = vmatprep.subr.mxu0 0.0
        %1923 = vmatpush1.xpose.msra.mxu0 0.0
        %1924 = vmatprep.subr.mxu0 0.0
        %1925 = vmatpush1.xpose.msra.mxu0 0.0
        %1926 = vmatprep.subr.mxu0 0.0
        %1927 = vmatpush1.xpose.msra.mxu0 0.0
        %1928 = vmatprep.subr.mxu0 0.0
        %1929 = vmatpush1.xpose.msra.mxu0 0.0
        %1930 = vmatprep.subr.mxu0 0.0
        %1931 = vmatpush1.xpose.msra.mxu0 0.0
        %1932 = vmatprep.subr.mxu0 0.0
        %1933 = vmatpush1.xpose.msra.mxu0 0.0
        %1934 = vmatprep.mubr.f32.mxu0 0.0
        %1935 = vmatmul.mubr.f32.gmra.mrb[0].mxu0 %v1829
        %v1936 = vpop.f32.mrb[0].mxu0
        %v1937 = vadd.f32 0.0, %v1936
        %v1938 = vpop.f32.mrb[0].mxu0
        %1939 = vmatprep.mubr.f32.mxu0 0.0
        %1940 = vmatmul.mubr.f32.gmra.mrb[0].mxu0 %v1832
        %v1941 = vpop.f32.mrb[0].mxu0
        %v1942 = vadd.f32 0.0, %v1941
        %v1943 = vpop.f32.mrb[0].mxu0
        %1944 = vmatprep.mubr.f32.mxu0 0.0
        %1945 = vmatmul.mubr.f32.gmra.mrb[0].mxu0 %v1835
        %v1946 = vpop.f32.mrb[0].mxu0
        %v1947 = vadd.f32 0.0, %v1946
        %v1948 = vpop.f32.mrb[0].mxu0
        %1949 = vmatprep.mubr.f32.mxu0 0.0
        %1950 = vmatmul.mubr.f32.gmra.mrb[0].mxu0 %v1838
        %v1951 = vpop.f32.mrb[0].mxu0
        %v1952 = vadd.f32 0.0, %v1951
        %v1953 = vpop.f32.mrb[0].mxu0
        %1954 = vmatprep.mubr.f32.mxu0 0.0
        %1955 = vmatmul.mubr.f32.gmra.mrb[0].mxu0 %v1841
        %v1956 = vpop.f32.mrb[0].mxu0
        %v1957 = vadd.f32 0.0, %v1956
        %v1958 = vpop.f32.mrb[0].mxu0
        %1959 = vmatprep.mubr.f32.mxu0 0.0
        %1960 = vmatmul.mubr.f32.gmra.mrb[0].mxu0 %v1844
        %v1961 = vpop.f32.mrb[0].mxu0
        %v1962 = vadd.f32 0.0, %v1961
        %v1963 = vpop.f32.mrb[0].mxu0
        %1964 = vmatprep.mubr.f32.mxu0 0.0
        %1965 = vmatmul.mubr.f32.gmra.mrb[0].mxu0 %v1847
        %v1966 = vpop.f32.mrb[0].mxu0
        %v1967 = vadd.f32 0.0, %v1966
        %v1968 = vpop.f32.mrb[0].mxu0
        %1969 = vdwg.mxu0
        %v1970 = vmul.f32 %v1937, 0.35355338
        %v1971 = vmul.f32 %v1942, 0.35355338
        %v1972 = vmul.f32 %v1947, 0.35355338
        %v1973 = vmul.f32 %v1952, 0.35355338
        %v1974 = vmul.f32 %v1957, 0.35355338
        %v1975 = vmul.f32 %v1962, 0.35355338
        %v1976 = vmul.f32 %v1967, 0.35355338
        %vm1977 = vcmask 400384
        %v1978 = vsel %vm1977, %v1970, -inf
        %1979 = vmax.xlane.f32.xlu0 %v1978
        %v1980 = vpop.xlane.xlu0 %1979
        %v1981 = vsel %vm1977, %v1971, -inf
        %1982 = vmax.xlane.f32.xlu0 %v1981
        %v1983 = vpop.xlane.xlu0 %1982
        %v1984 = vsel %vm1977, %v1972, -inf
        %1985 = vmax.xlane.f32.xlu0 %v1984
        %v1986 = vpop.xlane.xlu0 %1985
        %v1987 = vsel %vm1977, %v1973, -inf
        %1988 = vmax.xlane.f32.xlu0 %v1987
        %v1989 = vpop.xlane.xlu0 %1988
        %v1990 = vsel %vm1977, %v1974, -inf
        %1991 = vmax.xlane.f32.xlu0 %v1990
        %v1992 = vpop.xlane.xlu0 %1991
        %v1993 = vsel %vm1977, %v1975, -inf
        %1994 = vmax.xlane.f32.xlu0 %v1993
        %v1995 = vpop.xlane.xlu0 %1994
        %vm1996 = vcmask 393216
        %v1997 = vsel %vm1996, %v1976, -inf
        %1998 = vmax.xlane.f32.xlu0 %v1997
        %v1999 = vpop.xlane.xlu0 %1998
        %v2000 = vsub.f32 %v1970, %v1980
        %v2001 = vsub.f32 %v1971, %v1983
        %v2002 = vsub.f32 %v1972, %v1986
        %v2003 = vsub.f32 %v1973, %v1989
        %v2004 = vsub.f32 %v1974, %v1992
        %v2005 = vsub.f32 %v1975, %v1995
        %v2006 = vsub.f32 %v1976, %v1999
        %v2007 = vmul.f32 %v2000, 1.442695
        %v2008 = vpow.pop %v2007
        %v2009 = vmul.f32 %v2001, 1.442695
        %v2010 = vpow.pop %v2009
        %v2011 = vmul.f32 %v2002, 1.442695
        %v2012 = vpow.pop %v2011
        %v2013 = vmul.f32 %v2003, 1.442695
        %v2014 = vpow.pop %v2013
        %v2015 = vmul.f32 %v2004, 1.442695
        %v2016 = vpow.pop %v2015
        %v2017 = vmul.f32 %v2005, 1.442695
        %v2018 = vpow.pop %v2017
        %v2019 = vmul.f32 %v2006, 1.442695
        %v2020 = vpow.pop %v2019
        %v2021 = vsel %vm1977, %v2008, 0.0
        %2022 = vadd.xlane.f32.xlu0 %v2021
        %v2023 = vpop.xlane.xlu0 %2022
        %v2024 = vsel %vm1977, %v2010, 0.0
        %2025 = vadd.xlane.f32.xlu0 %v2024
        %v2026 = vpop.xlane.xlu0 %2025
        %v2027 = vsel %vm1977, %v2012, 0.0
        %2028 = vadd.xlane.f32.xlu0 %v2027
        %v2029 = vpop.xlane.xlu0 %2028
        %v2030 = vsel %vm1977, %v2014, 0.0
        %2031 = vadd.xlane.f32.xlu0 %v2030
        %v2032 = vpop.xlane.xlu0 %2031
        %v2033 = vsel %vm1977, %v2016, 0.0
        %2034 = vadd.xlane.f32.xlu0 %v2033
        %v2035 = vpop.xlane.xlu0 %2034
        %v2036 = vsel %vm1977, %v2018, 0.0
        %2037 = vadd.xlane.f32.xlu0 %v2036
        %v2038 = vpop.xlane.xlu0 %2037
        %v2039 = vsel %vm1996, %v2020, 0.0
        %2040 = vadd.xlane.f32.xlu0 %v2039
        %v2041 = vpop.xlane.xlu0 %2040
        %v2042 = vrcp.pop %v2023
        %v2043 = vrcp.pop %v2026
        %v2044 = vrcp.pop %v2029
        %v2045 = vrcp.pop %v2032
        %v2046 = vrcp.pop %v2035
        %v2047 = vrcp.pop %v2038
        %v2048 = vrcp.pop %v2041
        %v2049 = vmul.f32 %v2008, %v2042
        %v2050 = vmul.f32 %v2010, %v2043
        %v2051 = vmul.f32 %v2012, %v2044
        %v2052 = vmul.f32 %v2014, %v2045
        %v2053 = vmul.f32 %v2016, %v2046
        %v2054 = vmul.f32 %v2018, %v2047
        %v2055 = vmul.f32 %v2020, %v2048
        %v2056 = vmul.f32 %v1788, %v1054
        %v2057 = vmul.f32 %v1793, %v1054
        %v2058 = vmul.f32 %v1798, %v1054
        %v2059 = vmul.f32 %v1803, %v1054
        %v2060 = vmul.f32 %v1808, %v1054
        %v2061 = vmul.f32 %v1813, %v1054
        %v2062 = vmul.f32 %v1818, %v1054
        %v2063 = vmul.f32 %v1588, %v1059
        %v2064 = vmul.f32 %v1593, %v1059
        %v2065 = vmul.f32 %v1598, %v1059
        %v2066 = vmul.f32 %v1603, %v1059
        %v2067 = vmul.f32 %v1608, %v1059
        %v2068 = vmul.f32 %v1613, %v1059
        %v2069 = vmul.f32 %v1618, %v1059
        %v2071 = vsel %vm1102, %v2063, 0
        %v2074 = vsel %vm1102, %v2064, 0
        %v2077 = vsel %vm1102, %v2065, 0
        %v2080 = vsel %vm1102, %v2066, 0
        %v2083 = vsel %vm1102, %v2067, 0
        %v2086 = vsel %vm1102, %v2068, 0
        %v2089 = vsel %vm1102, %v2069, 0
        %2091 = vmatprep.subr.mxu0 0.0
        %2092 = vmatpush1.xpose.msra.mxu0 %v1850
        %2093 = vmatprep.subr.mxu0 0.0
        %2094 = vmatpush1.xpose.msra.mxu0 %v1853
        %2095 = vmatprep.subr.mxu0 0.0
        %2096 = vmatpush1.xpose.msra.mxu0 %v1856
        %2097 = vmatprep.subr.mxu0 0.0
        %2098 = vmatpush1.xpose.msra.mxu0 %v1859
        %2099 = vmatprep.subr.mxu0 0.0
        %2100 = vmatpush1.xpose.msra.mxu0 %v1862
        %2101 = vmatprep.subr.mxu0 0.0
        %2102 = vmatpush1.xpose.msra.mxu0 %v1865
        %2103 = vmatprep.subr.mxu0 0.0
        %2104 = vmatpush1.xpose.msra.mxu0 %v1868
        %2105 = vmatprep.subr.mxu0 0.0
        %2106 = vmatpush1.xpose.msra.mxu0 0.0
        %2107 = vmatprep.subr.mxu0 0.0
        %2108 = vmatpush1.xpose.msra.mxu0 0.0
        %2109 = vmatprep.subr.mxu0 0.0
        %2110 = vmatpush1.xpose.msra.mxu0 0.0
        %2111 = vmatprep.subr.mxu0 0.0
        %2112 = vmatpush1.xpose.msra.mxu0 0.0
        %2113 = vmatprep.subr.mxu0 0.0
        %2114 = vmatpush1.xpose.msra.mxu0 0.0
        %2115 = vmatprep.subr.mxu0 0.0
        %2116 = vmatpush1.xpose.msra.mxu0 0.0
        %2117 = vmatprep.subr.mxu0 0.0
        %2118 = vmatpush1.xpose.msra.mxu0 0.0
        %2119 = vmatprep.subr.mxu0 0.0
        %2120 = vmatpush1.xpose.msra.mxu0 0.0
        %2121 = vmatprep.subr.mxu0 0.0
        %2122 = vmatpush1.xpose.msra.mxu0 0.0
        %2123 = vmatprep.subr.mxu0 0.0
        %2124 = vmatpush1.xpose.msra.mxu0 0.0
        %2125 = vmatprep.subr.mxu0 0.0
        %2126 = vmatpush1.xpose.msra.mxu0 0.0
        %2127 = vmatprep.subr.mxu0 0.0
        %2128 = vmatpush1.xpose.msra.mxu0 0.0
        %2129 = vmatprep.subr.mxu0 0.0
        %2130 = vmatpush1.xpose.msra.mxu0 0.0
        %2131 = vmatprep.subr.mxu0 0.0
        %2132 = vmatpush1.xpose.msra.mxu0 0.0
        %2133 = vmatprep.subr.mxu0 0.0
        %2134 = vmatpush1.xpose.msra.mxu0 0.0
        %2135 = vmatprep.subr.mxu0 0.0
        %2136 = vmatpush1.xpose.msra.mxu0 0.0
        %2137 = vmatprep.subr.mxu0 0.0
        %2138 = vmatpush1.xpose.msra.mxu0 0.0
        %2139 = vmatprep.subr.mxu0 0.0
        %2140 = vmatpush1.xpose.msra.mxu0 0.0
        %2141 = vmatprep.subr.mxu0 0.0
        %2142 = vmatpush1.xpose.msra.mxu0 0.0
        %2143 = vmatprep.subr.mxu0 0.0
        %2144 = vmatpush1.xpose.msra.mxu0 0.0
        %2145 = vmatprep.subr.mxu0 0.0
        %2146 = vmatpush1.xpose.msra.mxu0 0.0
        %2147 = vmatprep.subr.mxu0 0.0
        %2148 = vmatpush1.xpose.msra.mxu0 0.0
        %2149 = vmatprep.subr.mxu0 0.0
        %2150 = vmatpush1.xpose.msra.mxu0 0.0
        %2151 = vmatprep.subr.mxu0 0.0
        %2152 = vmatpush1.xpose.msra.mxu0 0.0
        %2153 = vmatprep.subr.mxu0 0.0
        %2154 = vmatpush1.xpose.msra.mxu0 0.0
        %2155 = vmatprep.mubr.f32.mxu0 0.0
        %2156 = vmatmul.mubr.f32.gmra.mrb[0].mxu0 %v2071
        %v2157 = vpop.f32.mrb[0].mxu0
        %v2158 = vadd.f32 0.0, %v2157
        %v2159 = vpop.f32.mrb[0].mxu0
        %2160 = vmatprep.mubr.f32.mxu0 0.0
        %2161 = vmatmul.mubr.f32.gmra.mrb[0].mxu0 %v2074
        %v2162 = vpop.f32.mrb[0].mxu0
        %v2163 = vadd.f32 0.0, %v2162
        %v2164 = vpop.f32.mrb[0].mxu0
        %2165 = vmatprep.mubr.f32.mxu0 0.0
        %2166 = vmatmul.mubr.f32.gmra.mrb[0].mxu0 %v2077
        %v2167 = vpop.f32.mrb[0].mxu0
        %v2168 = vadd.f32 0.0, %v2167
        %v2169 = vpop.f32.mrb[0].mxu0
        %2170 = vmatprep.mubr.f32.mxu0 0.0
        %2171 = vmatmul.mubr.f32.gmra.mrb[0].mxu0 %v2080
        %v2172 = vpop.f32.mrb[0].mxu0
        %v2173 = vadd.f32 0.0, %v2172
        %v2174 = vpop.f32.mrb[0].mxu0
        %2175 = vmatprep.mubr.f32.mxu0 0.0
        %2176 = vmatmul.mubr.f32.gmra.mrb[0].mxu0 %v2083
        %v2177 = vpop.f32.mrb[0].mxu0
        %v2178 = vadd.f32 0.0, %v2177
        %v2179 = vpop.f32.mrb[0].mxu0
        %2180 = vmatprep.mubr.f32.mxu0 0.0
        %2181 = vmatmul.mubr.f32.gmra.mrb[0].mxu0 %v2086
        %v2182 = vpop.f32.mrb[0].mxu0
        %v2183 = vadd.f32 0.0, %v2182
        %v2184 = vpop.f32.mrb[0].mxu0
        %2185 = vmatprep.mubr.f32.mxu0 0.0
        %2186 = vmatmul.mubr.f32.gmra.mrb[0].mxu0 %v2089
        %v2187 = vpop.f32.mrb[0].mxu0
        %v2188 = vadd.f32 0.0, %v2187
        %v2189 = vpop.f32.mrb[0].mxu0
        %2190 = vdwg.mxu0
        %v2191 = vmul.f32 %v2158, 0.35355338
        %v2192 = vmul.f32 %v2163, 0.35355338
        %v2193 = vmul.f32 %v2168, 0.35355338
        %v2194 = vmul.f32 %v2173, 0.35355338
        %v2195 = vmul.f32 %v2178, 0.35355338
        %v2196 = vmul.f32 %v2183, 0.35355338
        %v2197 = vmul.f32 %v2188, 0.35355338
        %v2198 = vsel %vm1977, %v2191, -inf
        %2199 = vmax.xlane.f32.xlu0 %v2198
        %v2200 = vpop.xlane.xlu0 %2199
        %v2201 = vsel %vm1977, %v2192, -inf
        %2202 = vmax.xlane.f32.xlu0 %v2201
        %v2203 = vpop.xlane.xlu0 %2202
        %v2204 = vsel %vm1977, %v2193, -inf
        %2205 = vmax.xlane.f32.xlu0 %v2204
        %v2206 = vpop.xlane.xlu0 %2205
        %v2207 = vsel %vm1977, %v2194, -inf
        %2208 = vmax.xlane.f32.xlu0 %v2207
        %v2209 = vpop.xlane.xlu0 %2208
        %v2210 = vsel %vm1977, %v2195, -inf
        %2211 = vmax.xlane.f32.xlu0 %v2210
        %v2212 = vpop.xlane.xlu0 %2211
        %v2213 = vsel %vm1977, %v2196, -inf
        %2214 = vmax.xlane.f32.xlu0 %v2213
        %v2215 = vpop.xlane.xlu0 %2214
        %v2216 = vsel %vm1996, %v2197, -inf
        %2217 = vmax.xlane.f32.xlu0 %v2216
        %v2218 = vpop.xlane.xlu0 %2217
        %v2219 = vsub.f32 %v2191, %v2200
        %v2220 = vsub.f32 %v2192, %v2203
        %v2221 = vsub.f32 %v2193, %v2206
        %v2222 = vsub.f32 %v2194, %v2209
        %v2223 = vsub.f32 %v2195, %v2212
        %v2224 = vsub.f32 %v2196, %v2215
        %v2225 = vsub.f32 %v2197, %v2218
        %v2226 = vmul.f32 %v2219, 1.442695
        %v2227 = vpow.pop %v2226
        %v2228 = vmul.f32 %v2220, 1.442695
        %v2229 = vpow.pop %v2228
        %v2230 = vmul.f32 %v2221, 1.442695
        %v2231 = vpow.pop %v2230
        %v2232 = vmul.f32 %v2222, 1.442695
        %v2233 = vpow.pop %v2232
        %v2234 = vmul.f32 %v2223, 1.442695
        %v2235 = vpow.pop %v2234
        %v2236 = vmul.f32 %v2224, 1.442695
        %v2237 = vpow.pop %v2236
        %v2238 = vmul.f32 %v2225, 1.442695
        %v2239 = vpow.pop %v2238
        %v2240 = vsel %vm1977, %v2227, 0.0
        %2241 = vadd.xlane.f32.xlu0 %v2240
        %v2242 = vpop.xlane.xlu0 %2241
        %v2243 = vsel %vm1977, %v2229, 0.0
        %2244 = vadd.xlane.f32.xlu0 %v2243
        %v2245 = vpop.xlane.xlu0 %2244
        %v2246 = vsel %vm1977, %v2231, 0.0
        %2247 = vadd.xlane.f32.xlu0 %v2246
        %v2248 = vpop.xlane.xlu0 %2247
        %v2249 = vsel %vm1977, %v2233, 0.0
        %2250 = vadd.xlane.f32.xlu0 %v2249
        %v2251 = vpop.xlane.xlu0 %2250
        %v2252 = vsel %vm1977, %v2235, 0.0
        %2253 = vadd.xlane.f32.xlu0 %v2252
        %v2254 = vpop.xlane.xlu0 %2253
        %v2255 = vsel %vm1977, %v2237, 0.0
        %2256 = vadd.xlane.f32.xlu0 %v2255
        %v2257 = vpop.xlane.xlu0 %2256
        %v2258 = vsel %vm1996, %v2239, 0.0
        %2259 = vadd.xlane.f32.xlu0 %v2258
        %v2260 = vpop.xlane.xlu0 %2259
        %v2261 = vrcp.pop %v2242
        %v2262 = vrcp.pop %v2245
        %v2263 = vrcp.pop %v2248
        %v2264 = vrcp.pop %v2251
        %v2265 = vrcp.pop %v2254
        %v2266 = vrcp.pop %v2257
        %v2267 = vrcp.pop %v2260
        %v2268 = vmul.f32 %v2227, %v2261
        %v2269 = vmul.f32 %v2229, %v2262
        %v2270 = vmul.f32 %v2231, %v2263
        %v2271 = vmul.f32 %v2233, %v2264
        %v2272 = vmul.f32 %v2235, %v2265
        %v2273 = vmul.f32 %v2237, %v2266
        %v2274 = vmul.f32 %v2239, %v2267
        %v2275 = vmul.f32 %v1788, %v1059
        %v2276 = vmul.f32 %v1793, %v1059
        %v2277 = vmul.f32 %v1798, %v1059
        %v2278 = vmul.f32 %v1803, %v1059
        %v2279 = vmul.f32 %v1808, %v1059
        %v2280 = vmul.f32 %v1813, %v1059
        %v2281 = vmul.f32 %v1818, %v1059
        %v2283 = vsel %vm1977, %v2268, 0
        %v2286 = vsel %vm1977, %v2269, 0
        %v2289 = vsel %vm1977, %v2270, 0
        %v2292 = vsel %vm1977, %v2271, 0
        %v2295 = vsel %vm1977, %v2272, 0
        %v2298 = vsel %vm1977, %v2273, 0
        %v2301 = vsel %vm1977, %v2274, 0
        %vm2303 = vcmask 1040384
        %v2305 = vsel %vm2303, %v2281, 0
        %2307 = vmatprep.subr.mxu0 0.0
        %2308 = vmatpush1.msra.mxu0 %v2275
        %2309 = vmatprep.subr.mxu0 0.0
        %2310 = vmatpush1.msra.mxu0 %v2276
        %2311 = vmatprep.subr.mxu0 0.0
        %2312 = vmatpush1.msra.mxu0 %v2277
        %2313 = vmatprep.subr.mxu0 0.0
        %2314 = vmatpush1.msra.mxu0 %v2278
        %2315 = vmatprep.subr.mxu0 0.0
        %2316 = vmatpush1.msra.mxu0 %v2279
        %2317 = vmatprep.subr.mxu0 0.0
        %2318 = vmatpush1.msra.mxu0 %v2280
        %2319 = vmatprep.subr.mxu0 0.0
        %2320 = vmatpush1.msra.mxu0 %v2305
        %2321 = vmatprep.subr.mxu0 0.0
        %2322 = vmatpush1.msra.mxu0 0.0
        %2323 = vmatprep.subr.mxu0 0.0
        %2324 = vmatpush1.msra.mxu0 0.0
        %2325 = vmatprep.subr.mxu0 0.0
        %2326 = vmatpush1.msra.mxu0 0.0
        %2327 = vmatprep.subr.mxu0 0.0
        %2328 = vmatpush1.msra.mxu0 0.0
        %2329 = vmatprep.subr.mxu0 0.0
        %2330 = vmatpush1.msra.mxu0 0.0
        %2331 = vmatprep.subr.mxu0 0.0
        %2332 = vmatpush1.msra.mxu0 0.0
        %2333 = vmatprep.subr.mxu0 0.0
        %2334 = vmatpush1.msra.mxu0 0.0
        %2335 = vmatprep.subr.mxu0 0.0
        %2336 = vmatpush1.msra.mxu0 0.0
        %2337 = vmatprep.subr.mxu0 0.0
        %2338 = vmatpush1.msra.mxu0 0.0
        %2339 = vmatprep.subr.mxu0 0.0
        %2340 = vmatpush1.msra.mxu0 0.0
        %2341 = vmatprep.subr.mxu0 0.0
        %2342 = vmatpush1.msra.mxu0 0.0
        %2343 = vmatprep.subr.mxu0 0.0
        %2344 = vmatpush1.msra.mxu0 0.0
        %2345 = vmatprep.subr.mxu0 0.0
        %2346 = vmatpush1.msra.mxu0 0.0
        %2347 = vmatprep.subr.mxu0 0.0
        %2348 = vmatpush1.msra.mxu0 0.0
        %2349 = vmatprep.subr.mxu0 0.0
        %2350 = vmatpush1.msra.mxu0 0.0
        %2351 = vmatprep.subr.mxu0 0.0
        %2352 = vmatpush1.msra.mxu0 0.0
        %2353 = vmatprep.subr.mxu0 0.0
        %2354 = vmatpush1.msra.mxu0 0.0
        %2355 = vmatprep.subr.mxu0 0.0
        %2356 = vmatpush1.msra.mxu0 0.0
        %2357 = vmatprep.subr.mxu0 0.0
        %2358 = vmatpush1.msra.mxu0 0.0
        %2359 = vmatprep.subr.mxu0 0.0
        %2360 = vmatpush1.msra.mxu0 0.0
        %2361 = vmatprep.subr.mxu0 0.0
        %2362 = vmatpush1.msra.mxu0 0.0
        %2363 = vmatprep.subr.mxu0 0.0
        %2364 = vmatpush1.msra.mxu0 0.0
        %2365 = vmatprep.subr.mxu0 0.0
        %2366 = vmatpush1.msra.mxu0 0.0
        %2367 = vmatprep.subr.mxu0 0.0
        %2368 = vmatpush1.msra.mxu0 0.0
        %2369 = vmatprep.subr.mxu0 0.0
        %2370 = vmatpush1.msra.mxu0 0.0
        %2371 = vmatprep.mubr.f32.mxu0 0.0
        %2372 = vmatmul.mubr.f32.gmra.mrb[0].mxu0 %v2283
        %v2373 = vpop.f32.mrb[0].mxu0
        %v2374 = vadd.f32 0.0, %v2373
        %v2375 = vpop.f32.mrb[0].mxu0
        %2376 = vmatprep.mubr.f32.mxu0 0.0
        %2377 = vmatmul.mubr.f32.gmra.mrb[0].mxu0 %v2286
        %v2378 = vpop.f32.mrb[0].mxu0
        %v2379 = vadd.f32 0.0, %v2378
        %v2380 = vpop.f32.mrb[0].mxu0
        %2381 = vmatprep.mubr.f32.mxu0 0.0
        %2382 = vmatmul.mubr.f32.gmra.mrb[0].mxu0 %v2289
        %v2383 = vpop.f32.mrb[0].mxu0
        %v2384 = vadd.f32 0.0, %v2383
        %v2385 = vpop.f32.mrb[0].mxu0
        %2386 = vmatprep.mubr.f32.mxu0 0.0
        %2387 = vmatmul.mubr.f32.gmra.mrb[0].mxu0 %v2292
        %v2388 = vpop.f32.mrb[0].mxu0
        %v2389 = vadd.f32 0.0, %v2388
        %v2390 = vpop.f32.mrb[0].mxu0
        %2391 = vmatprep.mubr.f32.mxu0 0.0
        %2392 = vmatmul.mubr.f32.gmra.mrb[0].mxu0 %v2295
        %v2393 = vpop.f32.mrb[0].mxu0
        %v2394 = vadd.f32 0.0, %v2393
        %v2395 = vpop.f32.mrb[0].mxu0
        %2396 = vmatprep.mubr.f32.mxu0 0.0
        %2397 = vmatmul.mubr.f32.gmra.mrb[0].mxu0 %v2298
        %v2398 = vpop.f32.mrb[0].mxu0
        %v2399 = vadd.f32 0.0, %v2398
        %v2400 = vpop.f32.mrb[0].mxu0
        %2401 = vmatprep.mubr.f32.mxu0 0.0
        %2402 = vmatmul.mubr.f32.gmra.mrb[0].mxu0 %v2301
        %v2403 = vpop.f32.mrb[0].mxu0
        %v2404 = vadd.f32 0.0, %v2403
        %v2405 = vpop.f32.mrb[0].mxu0
        %2406 = vdwg.mxu0
        %v2408 = vsel %vm1977, %v2049, 0
        %v2411 = vsel %vm1977, %v2050, 0
        %v2414 = vsel %vm1977, %v2051, 0
        %v2417 = vsel %vm1977, %v2052, 0
        %v2420 = vsel %vm1977, %v2053, 0
        %v2423 = vsel %vm1977, %v2054, 0
        %v2426 = vsel %vm1977, %v2055, 0
        %v2429 = vsel %vm2303, %v2062, 0
        %2431 = vmatprep.subr.mxu0 0.0
        %2432 = vmatpush1.msra.mxu0 %v2056
        %2433 = vmatprep.subr.mxu0 0.0
        %2434 = vmatpush1.msra.mxu0 %v2057
        %2435 = vmatprep.subr.mxu0 0.0
        %2436 = vmatpush1.msra.mxu0 %v2058
        %2437 = vmatprep.subr.mxu0 0.0
        %2438 = vmatpush1.msra.mxu0 %v2059
        %2439 = vmatprep.subr.mxu0 0.0
        %2440 = vmatpush1.msra.mxu0 %v2060
        %2441 = vmatprep.subr.mxu0 0.0
        %2442 = vmatpush1.msra.mxu0 %v2061
        %2443 = vmatprep.subr.mxu0 0.0
        %2444 = vmatpush1.msra.mxu0 %v2429
        %2445 = vmatprep.subr.mxu0 0.0
        %2446 = vmatpush1.msra.mxu0 0.0
        %2447 = vmatprep.subr.mxu0 0.0
        %2448 = vmatpush1.msra.mxu0 0.0
        %2449 = vmatprep.subr.mxu0 0.0
        %2450 = vmatpush1.msra.mxu0 0.0
        %2451 = vmatprep.subr.mxu0 0.0
        %2452 = vmatpush1.msra.mxu0 0.0
        %2453 = vmatprep.subr.mxu0 0.0
        %2454 = vmatpush1.msra.mxu0 0.0
        %2455 = vmatprep.subr.mxu0 0.0
        %2456 = vmatpush1.msra.mxu0 0.0
        %2457 = vmatprep.subr.mxu0 0.0
        %2458 = vmatpush1.msra.mxu0 0.0
        %2459 = vmatprep.subr.mxu0 0.0
        %2460 = vmatpush1.msra.mxu0 0.0
        %2461 = vmatprep.subr.mxu0 0.0
        %2462 = vmatpush1.msra.mxu0 0.0
        %2463 = vmatprep.subr.mxu0 0.0
        %2464 = vmatpush1.msra.mxu0 0.0
        %2465 = vmatprep.subr.mxu0 0.0
        %2466 = vmatpush1.msra.mxu0 0.0
        %2467 = vmatprep.subr.mxu0 0.0
        %2468 = vmatpush1.msra.mxu0 0.0
        %2469 = vmatprep.subr.mxu0 0.0
        %2470 = vmatpush1.msra.mxu0 0.0
        %2471 = vmatprep.subr.mxu0 0.0
        %2472 = vmatpush1.msra.mxu0 0.0
        %2473 = vmatprep.subr.mxu0 0.0
        %2474 = vmatpush1.msra.mxu0 0.0
        %2475 = vmatprep.subr.mxu0 0.0
        %2476 = vmatpush1.msra.mxu0 0.0
        %2477 = vmatprep.subr.mxu0 0.0
        %2478 = vmatpush1.msra.mxu0 0.0
        %2479 = vmatprep.subr.mxu0 0.0
        %2480 = vmatpush1.msra.mxu0 0.0
        %2481 = vmatprep.subr.mxu0 0.0
        %2482 = vmatpush1.msra.mxu0 0.0
        %2483 = vmatprep.subr.mxu0 0.0
        %2484 = vmatpush1.msra.mxu0 0.0
        %2485 = vmatprep.subr.mxu0 0.0
        %2486 = vmatpush1.msra.mxu0 0.0
        %2487 = vmatprep.subr.mxu0 0.0
        %2488 = vmatpush1.msra.mxu0 0.0
        %2489 = vmatprep.subr.mxu0 0.0
        %2490 = vmatpush1.msra.mxu0 0.0
        %2491 = vmatprep.subr.mxu0 0.0
        %2492 = vmatpush1.msra.mxu0 0.0
        %2493 = vmatprep.subr.mxu0 0.0
        %2494 = vmatpush1.msra.mxu0 0.0
        %2495 = vmatprep.mubr.f32.mxu0 0.0
        %2496 = vmatmul.mubr.f32.gmra.mrb[0].mxu0 %v2408
        %v2497 = vpop.f32.mrb[0].mxu0
        %v2498 = vadd.f32 %v2374, %v2497
        %v2499 = vpop.f32.mrb[0].mxu0
        %2500 = vmatprep.mubr.f32.mxu0 0.0
        %2501 = vmatmul.mubr.f32.gmra.mrb[0].mxu0 %v2411
        %v2502 = vpop.f32.mrb[0].mxu0
        %v2503 = vadd.f32 %v2379, %v2502
        %v2504 = vpop.f32.mrb[0].mxu0
        %2505 = vmatprep.mubr.f32.mxu0 0.0
        %2506 = vmatmul.mubr.f32.gmra.mrb[0].mxu0 %v2414
        %v2507 = vpop.f32.mrb[0].mxu0
        %v2508 = vadd.f32 %v2384, %v2507
        %v2509 = vpop.f32.mrb[0].mxu0
        %2510 = vmatprep.mubr.f32.mxu0 0.0
        %2511 = vmatmul.mubr.f32.gmra.mrb[0].mxu0 %v2417
        %v2512 = vpop.f32.mrb[0].mxu0
        %v2513 = vadd.f32 %v2389, %v2512
        %v2514 = vpop.f32.mrb[0].mxu0
        %2515 = vmatprep.mubr.f32.mxu0 0.0
        %2516 = vmatmul.mubr.f32.gmra.mrb[0].mxu0 %v2420
        %v2517 = vpop.f32.mrb[0].mxu0
        %v2518 = vadd.f32 %v2394, %v2517
        %v2519 = vpop.f32.mrb[0].mxu0
        %2520 = vmatprep.mubr.f32.mxu0 0.0
        %2521 = vmatmul.mubr.f32.gmra.mrb[0].mxu0 %v2423
        %v2522 = vpop.f32.mrb[0].mxu0
        %v2523 = vadd.f32 %v2399, %v2522
        %v2524 = vpop.f32.mrb[0].mxu0
        %2525 = vmatprep.mubr.f32.mxu0 0.0
        %2526 = vmatmul.mubr.f32.gmra.mrb[0].mxu0 %v2426
        %v2527 = vpop.f32.mrb[0].mxu0
        %v2528 = vadd.f32 %v2404, %v2527
        %v2529 = vpop.f32.mrb[0].mxu0
        %2530 = vdwg.mxu0
        %v2531 = vmul.f32 %v1588, %v1064
        %v2532 = vmul.f32 %v1593, %v1064
        %v2533 = vmul.f32 %v1598, %v1064
        %v2534 = vmul.f32 %v1603, %v1064
        %v2535 = vmul.f32 %v1608, %v1064
        %v2536 = vmul.f32 %v1613, %v1064
        %v2537 = vmul.f32 %v1618, %v1064
        %v2539 = vsel %vm1102, %v2531, 0
        %v2542 = vsel %vm1102, %v2532, 0
        %v2545 = vsel %vm1102, %v2533, 0
        %v2548 = vsel %vm1102, %v2534, 0
        %v2551 = vsel %vm1102, %v2535, 0
        %v2554 = vsel %vm1102, %v2536, 0
        %v2557 = vsel %vm1102, %v2537, 0
        %2559 = vmatprep.subr.mxu0 0.0
        %2560 = vmatpush1.xpose.msra.mxu0 %v1850
        %2561 = vmatprep.subr.mxu0 0.0
        %2562 = vmatpush1.xpose.msra.mxu0 %v1853
        %2563 = vmatprep.subr.mxu0 0.0
        %2564 = vmatpush1.xpose.msra.mxu0 %v1856
        %2565 = vmatprep.subr.mxu0 0.0
        %2566 = vmatpush1.xpose.msra.mxu0 %v1859
        %2567 = vmatprep.subr.mxu0 0.0
        %2568 = vmatpush1.xpose.msra.mxu0 %v1862
        %2569 = vmatprep.subr.mxu0 0.0
        %2570 = vmatpush1.xpose.msra.mxu0 %v1865
        %2571 = vmatprep.subr.mxu0 0.0
        %2572 = vmatpush1.xpose.msra.mxu0 %v1868
        %2573 = vmatprep.subr.mxu0 0.0
        %2574 = vmatpush1.xpose.msra.mxu0 0.0
        %2575 = vmatprep.subr.mxu0 0.0
        %2576 = vmatpush1.xpose.msra.mxu0 0.0
        %2577 = vmatprep.subr.mxu0 0.0
        %2578 = vmatpush1.xpose.msra.mxu0 0.0
        %2579 = vmatprep.subr.mxu0 0.0
        %2580 = vmatpush1.xpose.msra.mxu0 0.0
        %2581 = vmatprep.subr.mxu0 0.0
        %2582 = vmatpush1.xpose.msra.mxu0 0.0
        %2583 = vmatprep.subr.mxu0 0.0
        %2584 = vmatpush1.xpose.msra.mxu0 0.0
        %2585 = vmatprep.subr.mxu0 0.0
        %2586 = vmatpush1.xpose.msra.mxu0 0.0
        %2587 = vmatprep.subr.mxu0 0.0
        %2588 = vmatpush1.xpose.msra.mxu0 0.0
        %2589 = vmatprep.subr.mxu0 0.0
        %2590 = vmatpush1.xpose.msra.mxu0 0.0
        %2591 = vmatprep.subr.mxu0 0.0
        %2592 = vmatpush1.xpose.msra.mxu0 0.0
        %2593 = vmatprep.subr.mxu0 0.0
        %2594 = vmatpush1.xpose.msra.mxu0 0.0
        %2595 = vmatprep.subr.mxu0 0.0
        %2596 = vmatpush1.xpose.msra.mxu0 0.0
        %2597 = vmatprep.subr.mxu0 0.0
        %2598 = vmatpush1.xpose.msra.mxu0 0.0
        %2599 = vmatprep.subr.mxu0 0.0
        %2600 = vmatpush1.xpose.msra.mxu0 0.0
        %2601 = vmatprep.subr.mxu0 0.0
        %2602 = vmatpush1.xpose.msra.mxu0 0.0
        %2603 = vmatprep.subr.mxu0 0.0
        %2604 = vmatpush1.xpose.msra.mxu0 0.0
        %2605 = vmatprep.subr.mxu0 0.0
        %2606 = vmatpush1.xpose.msra.mxu0 0.0
        %2607 = vmatprep.subr.mxu0 0.0
        %2608 = vmatpush1.xpose.msra.mxu0 0.0
        %2609 = vmatprep.subr.mxu0 0.0
        %2610 = vmatpush1.xpose.msra.mxu0 0.0
        %2611 = vmatprep.subr.mxu0 0.0
        %2612 = vmatpush1.xpose.msra.mxu0 0.0
        %2613 = vmatprep.subr.mxu0 0.0
        %2614 = vmatpush1.xpose.msra.mxu0 0.0
        %2615 = vmatprep.subr.mxu0 0.0
        %2616 = vmatpush1.xpose.msra.mxu0 0.0
        %2617 = vmatprep.subr.mxu0 0.0
        %2618 = vmatpush1.xpose.msra.mxu0 0.0
        %2619 = vmatprep.subr.mxu0 0.0
        %2620 = vmatpush1.xpose.msra.mxu0 0.0
        %2621 = vmatprep.subr.mxu0 0.0
        %2622 = vmatpush1.xpose.msra.mxu0 0.0
        %2623 = vmatprep.mubr.f32.mxu0 0.0
        %2624 = vmatmul.mubr.f32.gmra.mrb[0].mxu0 %v2539
        %v2625 = vpop.f32.mrb[0].mxu0
        %v2626 = vadd.f32 0.0, %v2625
        %v2627 = vpop.f32.mrb[0].mxu0
        %2628 = vmatprep.mubr.f32.mxu0 0.0
        %2629 = vmatmul.mubr.f32.gmra.mrb[0].mxu0 %v2542
        %v2630 = vpop.f32.mrb[0].mxu0
        %v2631 = vadd.f32 0.0, %v2630
        %v2632 = vpop.f32.mrb[0].mxu0
        %2633 = vmatprep.mubr.f32.mxu0 0.0
        %2634 = vmatmul.mubr.f32.gmra.mrb[0].mxu0 %v2545
        %v2635 = vpop.f32.mrb[0].mxu0
        %v2636 = vadd.f32 0.0, %v2635
        %v2637 = vpop.f32.mrb[0].mxu0
        %2638 = vmatprep.mubr.f32.mxu0 0.0
        %2639 = vmatmul.mubr.f32.gmra.mrb[0].mxu0 %v2548
        %v2640 = vpop.f32.mrb[0].mxu0
        %v2641 = vadd.f32 0.0, %v2640
        %v2642 = vpop.f32.mrb[0].mxu0
        %2643 = vmatprep.mubr.f32.mxu0 0.0
        %2644 = vmatmul.mubr.f32.gmra.mrb[0].mxu0 %v2551
        %v2645 = vpop.f32.mrb[0].mxu0
        %v2646 = vadd.f32 0.0, %v2645
        %v2647 = vpop.f32.mrb[0].mxu0
        %2648 = vmatprep.mubr.f32.mxu0 0.0
        %2649 = vmatmul.mubr.f32.gmra.mrb[0].mxu0 %v2554
        %v2650 = vpop.f32.mrb[0].mxu0
        %v2651 = vadd.f32 0.0, %v2650
        %v2652 = vpop.f32.mrb[0].mxu0
        %2653 = vmatprep.mubr.f32.mxu0 0.0
        %2654 = vmatmul.mubr.f32.gmra.mrb[0].mxu0 %v2557
        %v2655 = vpop.f32.mrb[0].mxu0
        %v2656 = vadd.f32 0.0, %v2655
        %v2657 = vpop.f32.mrb[0].mxu0
        %2658 = vdwg.mxu0
        %v2659 = vmul.f32 %v2626, 0.35355338
        %v2660 = vmul.f32 %v2631, 0.35355338
        %v2661 = vmul.f32 %v2636, 0.35355338
        %v2662 = vmul.f32 %v2641, 0.35355338
        %v2663 = vmul.f32 %v2646, 0.35355338
        %v2664 = vmul.f32 %v2651, 0.35355338
        %v2665 = vmul.f32 %v2656, 0.35355338
        %v2666 = vsel %vm1977, %v2659, -inf
        %2667 = vmax.xlane.f32.xlu0 %v2666
        %v2668 = vpop.xlane.xlu0 %2667
        %v2669 = vsel %vm1977, %v2660, -inf
        %2670 = vmax.xlane.f32.xlu0 %v2669
        %v2671 = vpop.xlane.xlu0 %2670
        %v2672 = vsel %vm1977, %v2661, -inf
        %2673 = vmax.xlane.f32.xlu0 %v2672
        %v2674 = vpop.xlane.xlu0 %2673
        %v2675 = vsel %vm1977, %v2662, -inf
        %2676 = vmax.xlane.f32.xlu0 %v2675
        %v2677 = vpop.xlane.xlu0 %2676
        %v2678 = vsel %vm1977, %v2663, -inf
        %2679 = vmax.xlane.f32.xlu0 %v2678
        %v2680 = vpop.xlane.xlu0 %2679
        %v2681 = vsel %vm1977, %v2664, -inf
        %2682 = vmax.xlane.f32.xlu0 %v2681
        %v2683 = vpop.xlane.xlu0 %2682
        %v2684 = vsel %vm1996, %v2665, -inf
        %2685 = vmax.xlane.f32.xlu0 %v2684
        %v2686 = vpop.xlane.xlu0 %2685
        %v2687 = vsub.f32 %v2659, %v2668
        %v2688 = vsub.f32 %v2660, %v2671
        %v2689 = vsub.f32 %v2661, %v2674
        %v2690 = vsub.f32 %v2662, %v2677
        %v2691 = vsub.f32 %v2663, %v2680
        %v2692 = vsub.f32 %v2664, %v2683
        %v2693 = vsub.f32 %v2665, %v2686
        %v2694 = vmul.f32 %v2687, 1.442695
        %v2695 = vpow.pop %v2694
        %v2696 = vmul.f32 %v2688, 1.442695
        %v2697 = vpow.pop %v2696
        %v2698 = vmul.f32 %v2689, 1.442695
        %v2699 = vpow.pop %v2698
        %v2700 = vmul.f32 %v2690, 1.442695
        %v2701 = vpow.pop %v2700
        %v2702 = vmul.f32 %v2691, 1.442695
        %v2703 = vpow.pop %v2702
        %v2704 = vmul.f32 %v2692, 1.442695
        %v2705 = vpow.pop %v2704
        %v2706 = vmul.f32 %v2693, 1.442695
        %v2707 = vpow.pop %v2706
        %v2708 = vsel %vm1977, %v2695, 0.0
        %2709 = vadd.xlane.f32.xlu0 %v2708
        %v2710 = vpop.xlane.xlu0 %2709
        %v2711 = vsel %vm1977, %v2697, 0.0
        %2712 = vadd.xlane.f32.xlu0 %v2711
        %v2713 = vpop.xlane.xlu0 %2712
        %v2714 = vsel %vm1977, %v2699, 0.0
        %2715 = vadd.xlane.f32.xlu0 %v2714
        %v2716 = vpop.xlane.xlu0 %2715
        %v2717 = vsel %vm1977, %v2701, 0.0
        %2718 = vadd.xlane.f32.xlu0 %v2717
        %v2719 = vpop.xlane.xlu0 %2718
        %v2720 = vsel %vm1977, %v2703, 0.0
        %2721 = vadd.xlane.f32.xlu0 %v2720
        %v2722 = vpop.xlane.xlu0 %2721
        %v2723 = vsel %vm1977, %v2705, 0.0
        %2724 = vadd.xlane.f32.xlu0 %v2723
        %v2725 = vpop.xlane.xlu0 %2724
        %v2726 = vsel %vm1996, %v2707, 0.0
        %2727 = vadd.xlane.f32.xlu0 %v2726
        %v2728 = vpop.xlane.xlu0 %2727
        %v2729 = vrcp.pop %v2710
        %v2730 = vrcp.pop %v2713
        %v2731 = vrcp.pop %v2716
        %v2732 = vrcp.pop %v2719
        %v2733 = vrcp.pop %v2722
        %v2734 = vrcp.pop %v2725
        %v2735 = vrcp.pop %v2728
        %v2736 = vmul.f32 %v2695, %v2729
        %v2737 = vmul.f32 %v2697, %v2730
        %v2738 = vmul.f32 %v2699, %v2731
        %v2739 = vmul.f32 %v2701, %v2732
        %v2740 = vmul.f32 %v2703, %v2733
        %v2741 = vmul.f32 %v2705, %v2734
        %v2742 = vmul.f32 %v2707, %v2735
        %v2743 = vmul.f32 %v1788, %v1064
        %v2744 = vmul.f32 %v1793, %v1064
        %v2745 = vmul.f32 %v1798, %v1064
        %v2746 = vmul.f32 %v1803, %v1064
        %v2747 = vmul.f32 %v1808, %v1064
        %v2748 = vmul.f32 %v1813, %v1064
        %v2749 = vmul.f32 %v1818, %v1064
        %v2751 = vsel %vm1977, %v2736, 0
        %v2754 = vsel %vm1977, %v2737, 0
        %v2757 = vsel %vm1977, %v2738, 0
        %v2760 = vsel %vm1977, %v2739, 0
        %v2763 = vsel %vm1977, %v2740, 0
        %v2766 = vsel %vm1977, %v2741, 0
        %v2769 = vsel %vm1977, %v2742, 0
        %v2772 = vsel %vm2303, %v2749, 0
        %2774 = vmatprep.subr.mxu0 0.0
        %2775 = vmatpush1.msra.mxu0 %v2743
        %2776 = vmatprep.subr.mxu0 0.0
        %2777 = vmatpush1.msra.mxu0 %v2744
        %2778 = vmatprep.subr.mxu0 0.0
        %2779 = vmatpush1.msra.mxu0 %v2745
        %2780 = vmatprep.subr.mxu0 0.0
        %2781 = vmatpush1.msra.mxu0 %v2746
        %2782 = vmatprep.subr.mxu0 0.0
        %2783 = vmatpush1.msra.mxu0 %v2747
        %2784 = vmatprep.subr.mxu0 0.0
        %2785 = vmatpush1.msra.mxu0 %v2748
        %2786 = vmatprep.subr.mxu0 0.0
        %2787 = vmatpush1.msra.mxu0 %v2772
        %2788 = vmatprep.subr.mxu0 0.0
        %2789 = vmatpush1.msra.mxu0 0.0
        %2790 = vmatprep.subr.mxu0 0.0
        %2791 = vmatpush1.msra.mxu0 0.0
        %2792 = vmatprep.subr.mxu0 0.0
        %2793 = vmatpush1.msra.mxu0 0.0
        %2794 = vmatprep.subr.mxu0 0.0
        %2795 = vmatpush1.msra.mxu0 0.0
        %2796 = vmatprep.subr.mxu0 0.0
        %2797 = vmatpush1.msra.mxu0 0.0
        %2798 = vmatprep.subr.mxu0 0.0
        %2799 = vmatpush1.msra.mxu0 0.0
        %2800 = vmatprep.subr.mxu0 0.0
        %2801 = vmatpush1.msra.mxu0 0.0
        %2802 = vmatprep.subr.mxu0 0.0
        %2803 = vmatpush1.msra.mxu0 0.0
        %2804 = vmatprep.subr.mxu0 0.0
        %2805 = vmatpush1.msra.mxu0 0.0
        %2806 = vmatprep.subr.mxu0 0.0
        %2807 = vmatpush1.msra.mxu0 0.0
        %2808 = vmatprep.subr.mxu0 0.0
        %2809 = vmatpush1.msra.mxu0 0.0
        %2810 = vmatprep.subr.mxu0 0.0
        %2811 = vmatpush1.msra.mxu0 0.0
        %2812 = vmatprep.subr.mxu0 0.0
        %2813 = vmatpush1.msra.mxu0 0.0
        %2814 = vmatprep.subr.mxu0 0.0
        %2815 = vmatpush1.msra.mxu0 0.0
        %2816 = vmatprep.subr.mxu0 0.0
        %2817 = vmatpush1.msra.mxu0 0.0
        %2818 = vmatprep.subr.mxu0 0.0
        %2819 = vmatpush1.msra.mxu0 0.0
        %2820 = vmatprep.subr.mxu0 0.0
        %2821 = vmatpush1.msra.mxu0 0.0
        %2822 = vmatprep.subr.mxu0 0.0
        %2823 = vmatpush1.msra.mxu0 0.0
        %2824 = vmatprep.subr.mxu0 0.0
        %2825 = vmatpush1.msra.mxu0 0.0
        %2826 = vmatprep.subr.mxu0 0.0
        %2827 = vmatpush1.msra.mxu0 0.0
        %2828 = vmatprep.subr.mxu0 0.0
        %2829 = vmatpush1.msra.mxu0 0.0
        %2830 = vmatprep.subr.mxu0 0.0
        %2831 = vmatpush1.msra.mxu0 0.0
        %2832 = vmatprep.subr.mxu0 0.0
        %2833 = vmatpush1.msra.mxu0 0.0
        %2834 = vmatprep.subr.mxu0 0.0
        %2835 = vmatpush1.msra.mxu0 0.0
        %2836 = vmatprep.subr.mxu0 0.0
        %2837 = vmatpush1.msra.mxu0 0.0
        %2838 = vmatprep.mubr.f32.mxu0 0.0
        %2839 = vmatmul.mubr.f32.gmra.mrb[0].mxu0 %v2751
        %v2840 = vpop.f32.mrb[0].mxu0
        %v2841 = vadd.f32 0.0, %v2840
        %v2842 = vpop.f32.mrb[0].mxu0
        %2843 = vmatprep.mubr.f32.mxu0 0.0
        %2844 = vmatmul.mubr.f32.gmra.mrb[0].mxu0 %v2754
        %v2845 = vpop.f32.mrb[0].mxu0
        %v2846 = vadd.f32 0.0, %v2845
        %v2847 = vpop.f32.mrb[0].mxu0
        %2848 = vmatprep.mubr.f32.mxu0 0.0
        %2849 = vmatmul.mubr.f32.gmra.mrb[0].mxu0 %v2757
        %v2850 = vpop.f32.mrb[0].mxu0
        %v2851 = vadd.f32 0.0, %v2850
        %v2852 = vpop.f32.mrb[0].mxu0
        %2853 = vmatprep.mubr.f32.mxu0 0.0
        %2854 = vmatmul.mubr.f32.gmra.mrb[0].mxu0 %v2760
        %v2855 = vpop.f32.mrb[0].mxu0
        %v2856 = vadd.f32 0.0, %v2855
        %v2857 = vpop.f32.mrb[0].mxu0
        %2858 = vmatprep.mubr.f32.mxu0 0.0
        %2859 = vmatmul.mubr.f32.gmra.mrb[0].mxu0 %v2763
        %v2860 = vpop.f32.mrb[0].mxu0
        %v2861 = vadd.f32 0.0, %v2860
        %v2862 = vpop.f32.mrb[0].mxu0
        %2863 = vmatprep.mubr.f32.mxu0 0.0
        %2864 = vmatmul.mubr.f32.gmra.mrb[0].mxu0 %v2766
        %v2865 = vpop.f32.mrb[0].mxu0
        %v2866 = vadd.f32 0.0, %v2865
        %v2867 = vpop.f32.mrb[0].mxu0
        %2868 = vmatprep.mubr.f32.mxu0 0.0
        %2869 = vmatmul.mubr.f32.gmra.mrb[0].mxu0 %v2769
        %v2870 = vpop.f32.mrb[0].mxu0
        %v2871 = vadd.f32 0.0, %v2870
        %v2872 = vpop.f32.mrb[0].mxu0
        %2873 = vdwg.mxu0
        %v2874 = vadd.f32 %v2498, %v2841
        %v2875 = vadd.f32 %v2503, %v2846
        %v2876 = vadd.f32 %v2508, %v2851
        %v2877 = vadd.f32 %v2513, %v2856
        %v2878 = vadd.f32 %v2518, %v2861
        %v2879 = vadd.f32 %v2523, %v2866
        %v2880 = vadd.f32 %v2528, %v2871
        %v2881 = vmul.f32 %v1588, %v1069
        %v2882 = vmul.f32 %v1593, %v1069
        %v2883 = vmul.f32 %v1598, %v1069
        %v2884 = vmul.f32 %v1603, %v1069
        %v2885 = vmul.f32 %v1608, %v1069
        %v2886 = vmul.f32 %v1613, %v1069
        %v2887 = vmul.f32 %v1618, %v1069
        %v2889 = vsel %vm1102, %v2881, 0
        %v2892 = vsel %vm1102, %v2882, 0
        %v2895 = vsel %vm1102, %v2883, 0
        %v2898 = vsel %vm1102, %v2884, 0
        %v2901 = vsel %vm1102, %v2885, 0
        %v2904 = vsel %vm1102, %v2886, 0
        %v2907 = vsel %vm1102, %v2887, 0
        %2909 = vmatprep.subr.mxu0 0.0
        %2910 = vmatpush1.xpose.msra.mxu0 %v1850
        %2911 = vmatprep.subr.mxu0 0.0
        %2912 = vmatpush1.xpose.msra.mxu0 %v1853
        %2913 = vmatprep.subr.mxu0 0.0
        %2914 = vmatpush1.xpose.msra.mxu0 %v1856
        %2915 = vmatprep.subr.mxu0 0.0
        %2916 = vmatpush1.xpose.msra.mxu0 %v1859
        %2917 = vmatprep.subr.mxu0 0.0
        %2918 = vmatpush1.xpose.msra.mxu0 %v1862
        %2919 = vmatprep.subr.mxu0 0.0
        %2920 = vmatpush1.xpose.msra.mxu0 %v1865
        %2921 = vmatprep.subr.mxu0 0.0
        %2922 = vmatpush1.xpose.msra.mxu0 %v1868
        %2923 = vmatprep.subr.mxu0 0.0
        %2924 = vmatpush1.xpose.msra.mxu0 0.0
        %2925 = vmatprep.subr.mxu0 0.0
        %2926 = vmatpush1.xpose.msra.mxu0 0.0
        %2927 = vmatprep.subr.mxu0 0.0
        %2928 = vmatpush1.xpose.msra.mxu0 0.0
        %2929 = vmatprep.subr.mxu0 0.0
        %2930 = vmatpush1.xpose.msra.mxu0 0.0
        %2931 = vmatprep.subr.mxu0 0.0
        %2932 = vmatpush1.xpose.msra.mxu0 0.0
        %2933 = vmatprep.subr.mxu0 0.0
        %2934 = vmatpush1.xpose.msra.mxu0 0.0
        %2935 = vmatprep.subr.mxu0 0.0
        %2936 = vmatpush1.xpose.msra.mxu0 0.0
        %2937 = vmatprep.subr.mxu0 0.0
        %2938 = vmatpush1.xpose.msra.mxu0 0.0
        %2939 = vmatprep.subr.mxu0 0.0
        %2940 = vmatpush1.xpose.msra.mxu0 0.0
        %2941 = vmatprep.subr.mxu0 0.0
        %2942 = vmatpush1.xpose.msra.mxu0 0.0
        %2943 = vmatprep.subr.mxu0 0.0
        %2944 = vmatpush1.xpose.msra.mxu0 0.0
        %2945 = vmatprep.subr.mxu0 0.0
        %2946 = vmatpush1.xpose.msra.mxu0 0.0
        %2947 = vmatprep.subr.mxu0 0.0
        %2948 = vmatpush1.xpose.msra.mxu0 0.0
        %2949 = vmatprep.subr.mxu0 0.0
        %2950 = vmatpush1.xpose.msra.mxu0 0.0
        %2951 = vmatprep.subr.mxu0 0.0
        %2952 = vmatpush1.xpose.msra.mxu0 0.0
        %2953 = vmatprep.subr.mxu0 0.0
        %2954 = vmatpush1.xpose.msra.mxu0 0.0
        %2955 = vmatprep.subr.mxu0 0.0
        %2956 = vmatpush1.xpose.msra.mxu0 0.0
        %2957 = vmatprep.subr.mxu0 0.0
        %2958 = vmatpush1.xpose.msra.mxu0 0.0
        %2959 = vmatprep.subr.mxu0 0.0
        %2960 = vmatpush1.xpose.msra.mxu0 0.0
        %2961 = vmatprep.subr.mxu0 0.0
        %2962 = vmatpush1.xpose.msra.mxu0 0.0
        %2963 = vmatprep.subr.mxu0 0.0
        %2964 = vmatpush1.xpose.msra.mxu0 0.0
        %2965 = vmatprep.subr.mxu0 0.0
        %2966 = vmatpush1.xpose.msra.mxu0 0.0
        %2967 = vmatprep.subr.mxu0 0.0
        %2968 = vmatpush1.xpose.msra.mxu0 0.0
        %2969 = vmatprep.subr.mxu0 0.0
        %2970 = vmatpush1.xpose.msra.mxu0 0.0
        %2971 = vmatprep.subr.mxu0 0.0
        %2972 = vmatpush1.xpose.msra.mxu0 0.0
        %2973 = vmatprep.mubr.f32.mxu0 0.0
        %2974 = vmatmul.mubr.f32.gmra.mrb[0].mxu0 %v2889
        %v2975 = vpop.f32.mrb[0].mxu0
        %v2976 = vadd.f32 0.0, %v2975
        %v2977 = vpop.f32.mrb[0].mxu0
        %2978 = vmatprep.mubr.f32.mxu0 0.0
        %2979 = vmatmul.mubr.f32.gmra.mrb[0].mxu0 %v2892
        %v2980 = vpop.f32.mrb[0].mxu0
        %v2981 = vadd.f32 0.0, %v2980
        %v2982 = vpop.f32.mrb[0].mxu0
        %2983 = vmatprep.mubr.f32.mxu0 0.0
        %2984 = vmatmul.mubr.f32.gmra.mrb[0].mxu0 %v2895
        %v2985 = vpop.f32.mrb[0].mxu0
        %v2986 = vadd.f32 0.0, %v2985
        %v2987 = vpop.f32.mrb[0].mxu0
        %2988 = vmatprep.mubr.f32.mxu0 0.0
        %2989 = vmatmul.mubr.f32.gmra.mrb[0].mxu0 %v2898
        %v2990 = vpop.f32.mrb[0].mxu0
        %v2991 = vadd.f32 0.0, %v2990
        %v2992 = vpop.f32.mrb[0].mxu0
        %2993 = vmatprep.mubr.f32.mxu0 0.0
        %2994 = vmatmul.mubr.f32.gmra.mrb[0].mxu0 %v2901
        %v2995 = vpop.f32.mrb[0].mxu0
        %v2996 = vadd.f32 0.0, %v2995
        %v2997 = vpop.f32.mrb[0].mxu0
        %2998 = vmatprep.mubr.f32.mxu0 0.0
        %2999 = vmatmul.mubr.f32.gmra.mrb[0].mxu0 %v2904
        %v3000 = vpop.f32.mrb[0].mxu0
        %v3001 = vadd.f32 0.0, %v3000
        %v3002 = vpop.f32.mrb[0].mxu0
        %3003 = vmatprep.mubr.f32.mxu0 0.0
        %3004 = vmatmul.mubr.f32.gmra.mrb[0].mxu0 %v2907
        %v3005 = vpop.f32.mrb[0].mxu0
        %v3006 = vadd.f32 0.0, %v3005
        %v3007 = vpop.f32.mrb[0].mxu0
        %3008 = vdwg.mxu0
        %v3009 = vmul.f32 %v2976, 0.35355338
        %v3010 = vmul.f32 %v2981, 0.35355338
        %v3011 = vmul.f32 %v2986, 0.35355338
        %v3012 = vmul.f32 %v2991, 0.35355338
        %v3013 = vmul.f32 %v2996, 0.35355338
        %v3014 = vmul.f32 %v3001, 0.35355338
        %v3015 = vmul.f32 %v3006, 0.35355338
        %v3016 = vsel %vm1977, %v3009, -inf
        %3017 = vmax.xlane.f32.xlu0 %v3016
        %v3018 = vpop.xlane.xlu0 %3017
        %v3019 = vsel %vm1977, %v3010, -inf
        %3020 = vmax.xlane.f32.xlu0 %v3019
        %v3021 = vpop.xlane.xlu0 %3020
        %v3022 = vsel %vm1977, %v3011, -inf
        %3023 = vmax.xlane.f32.xlu0 %v3022
        %v3024 = vpop.xlane.xlu0 %3023
        %v3025 = vsel %vm1977, %v3012, -inf
        %3026 = vmax.xlane.f32.xlu0 %v3025
        %v3027 = vpop.xlane.xlu0 %3026
        %v3028 = vsel %vm1977, %v3013, -inf
        %3029 = vmax.xlane.f32.xlu0 %v3028
        %v3030 = vpop.xlane.xlu0 %3029
        %v3031 = vsel %vm1977, %v3014, -inf
        %3032 = vmax.xlane.f32.xlu0 %v3031
        %v3033 = vpop.xlane.xlu0 %3032
        %v3034 = vsel %vm1996, %v3015, -inf
        %3035 = vmax.xlane.f32.xlu0 %v3034
        %v3036 = vpop.xlane.xlu0 %3035
        %v3037 = vsub.f32 %v3009, %v3018
        %v3038 = vsub.f32 %v3010, %v3021
        %v3039 = vsub.f32 %v3011, %v3024
        %v3040 = vsub.f32 %v3012, %v3027
        %v3041 = vsub.f32 %v3013, %v3030
        %v3042 = vsub.f32 %v3014, %v3033
        %v3043 = vsub.f32 %v3015, %v3036
        %v3044 = vmul.f32 %v3037, 1.442695
        %v3045 = vpow.pop %v3044
        %v3046 = vmul.f32 %v3038, 1.442695
        %v3047 = vpow.pop %v3046
        %v3048 = vmul.f32 %v3039, 1.442695
        %v3049 = vpow.pop %v3048
        %v3050 = vmul.f32 %v3040, 1.442695
        %v3051 = vpow.pop %v3050
        %v3052 = vmul.f32 %v3041, 1.442695
        %v3053 = vpow.pop %v3052
        %v3054 = vmul.f32 %v3042, 1.442695
        %v3055 = vpow.pop %v3054
        %v3056 = vmul.f32 %v3043, 1.442695
        %v3057 = vpow.pop %v3056
        %v3058 = vsel %vm1977, %v3045, 0.0
        %3059 = vadd.xlane.f32.xlu0 %v3058
        %v3060 = vpop.xlane.xlu0 %3059
        %v3061 = vsel %vm1977, %v3047, 0.0
        %3062 = vadd.xlane.f32.xlu0 %v3061
        %v3063 = vpop.xlane.xlu0 %3062
        %v3064 = vsel %vm1977, %v3049, 0.0
        %3065 = vadd.xlane.f32.xlu0 %v3064
        %v3066 = vpop.xlane.xlu0 %3065
        %v3067 = vsel %vm1977, %v3051, 0.0
        %3068 = vadd.xlane.f32.xlu0 %v3067
        %v3069 = vpop.xlane.xlu0 %3068
        %v3070 = vsel %vm1977, %v3053, 0.0
        %3071 = vadd.xlane.f32.xlu0 %v3070
        %v3072 = vpop.xlane.xlu0 %3071
        %v3073 = vsel %vm1977, %v3055, 0.0
        %3074 = vadd.xlane.f32.xlu0 %v3073
        %v3075 = vpop.xlane.xlu0 %3074
        %v3076 = vsel %vm1996, %v3057, 0.0
        %3077 = vadd.xlane.f32.xlu0 %v3076
        %v3078 = vpop.xlane.xlu0 %3077
        %v3079 = vrcp.pop %v3060
        %v3080 = vrcp.pop %v3063
        %v3081 = vrcp.pop %v3066
        %v3082 = vrcp.pop %v3069
        %v3083 = vrcp.pop %v3072
        %v3084 = vrcp.pop %v3075
        %v3085 = vrcp.pop %v3078
        %v3086 = vmul.f32 %v3045, %v3079
        %v3087 = vmul.f32 %v3047, %v3080
        %v3088 = vmul.f32 %v3049, %v3081
        %v3089 = vmul.f32 %v3051, %v3082
        %v3090 = vmul.f32 %v3053, %v3083
        %v3091 = vmul.f32 %v3055, %v3084
        %v3092 = vmul.f32 %v3057, %v3085
        %v3093 = vmul.f32 %v1788, %v1069
        %v3094 = vmul.f32 %v1793, %v1069
        %v3095 = vmul.f32 %v1798, %v1069
        %v3096 = vmul.f32 %v1803, %v1069
        %v3097 = vmul.f32 %v1808, %v1069
        %v3098 = vmul.f32 %v1813, %v1069
        %v3099 = vmul.f32 %v1818, %v1069
        %v3101 = vsel %vm1977, %v3086, 0
        %v3104 = vsel %vm1977, %v3087, 0
        %v3107 = vsel %vm1977, %v3088, 0
        %v3110 = vsel %vm1977, %v3089, 0
        %v3113 = vsel %vm1977, %v3090, 0
        %v3116 = vsel %vm1977, %v3091, 0
        %v3119 = vsel %vm1977, %v3092, 0
        %v3122 = vsel %vm2303, %v3099, 0
        %3124 = vmatprep.subr.mxu0 0.0
        %3125 = vmatpush1.msra.mxu0 %v3093
        %3126 = vmatprep.subr.mxu0 0.0
        %3127 = vmatpush1.msra.mxu0 %v3094
        %3128 = vmatprep.subr.mxu0 0.0
        %3129 = vmatpush1.msra.mxu0 %v3095
        %3130 = vmatprep.subr.mxu0 0.0
        %3131 = vmatpush1.msra.mxu0 %v3096
        %3132 = vmatprep.subr.mxu0 0.0
        %3133 = vmatpush1.msra.mxu0 %v3097
        %3134 = vmatprep.subr.mxu0 0.0
        %3135 = vmatpush1.msra.mxu0 %v3098
        %3136 = vmatprep.subr.mxu0 0.0
        %3137 = vmatpush1.msra.mxu0 %v3122
        %3138 = vmatprep.subr.mxu0 0.0
        %3139 = vmatpush1.msra.mxu0 0.0
        %3140 = vmatprep.subr.mxu0 0.0
        %3141 = vmatpush1.msra.mxu0 0.0
        %3142 = vmatprep.subr.mxu0 0.0
        %3143 = vmatpush1.msra.mxu0 0.0
        %3144 = vmatprep.subr.mxu0 0.0
        %3145 = vmatpush1.msra.mxu0 0.0
        %3146 = vmatprep.subr.mxu0 0.0
        %3147 = vmatpush1.msra.mxu0 0.0
        %3148 = vmatprep.subr.mxu0 0.0
        %3149 = vmatpush1.msra.mxu0 0.0
        %3150 = vmatprep.subr.mxu0 0.0
        %3151 = vmatpush1.msra.mxu0 0.0
        %3152 = vmatprep.subr.mxu0 0.0
        %3153 = vmatpush1.msra.mxu0 0.0
        %3154 = vmatprep.subr.mxu0 0.0
        %3155 = vmatpush1.msra.mxu0 0.0
        %3156 = vmatprep.subr.mxu0 0.0
        %3157 = vmatpush1.msra.mxu0 0.0
        %3158 = vmatprep.subr.mxu0 0.0
        %3159 = vmatpush1.msra.mxu0 0.0
        %3160 = vmatprep.subr.mxu0 0.0
        %3161 = vmatpush1.msra.mxu0 0.0
        %3162 = vmatprep.subr.mxu0 0.0
        %3163 = vmatpush1.msra.mxu0 0.0
        %3164 = vmatprep.subr.mxu0 0.0
        %3165 = vmatpush1.msra.mxu0 0.0
        %3166 = vmatprep.subr.mxu0 0.0
        %3167 = vmatpush1.msra.mxu0 0.0
        %3168 = vmatprep.subr.mxu0 0.0
        %3169 = vmatpush1.msra.mxu0 0.0
        %3170 = vmatprep.subr.mxu0 0.0
        %3171 = vmatpush1.msra.mxu0 0.0
        %3172 = vmatprep.subr.mxu0 0.0
        %3173 = vmatpush1.msra.mxu0 0.0
        %3174 = vmatprep.subr.mxu0 0.0
        %3175 = vmatpush1.msra.mxu0 0.0
        %3176 = vmatprep.subr.mxu0 0.0
        %3177 = vmatpush1.msra.mxu0 0.0
        %3178 = vmatprep.subr.mxu0 0.0
        %3179 = vmatpush1.msra.mxu0 0.0
        %3180 = vmatprep.subr.mxu0 0.0
        %3181 = vmatpush1.msra.mxu0 0.0
        %3182 = vmatprep.subr.mxu0 0.0
        %3183 = vmatpush1.msra.mxu0 0.0
        %3184 = vmatprep.subr.mxu0 0.0
        %3185 = vmatpush1.msra.mxu0 0.0
        %3186 = vmatprep.subr.mxu0 0.0
        %3187 = vmatpush1.msra.mxu0 0.0
        %3188 = vmatprep.mubr.f32.mxu0 0.0
        %3189 = vmatmul.mubr.f32.gmra.mrb[0].mxu0 %v3101
        %v3190 = vpop.f32.mrb[0].mxu0
        %v3191 = vadd.f32 0.0, %v3190
        %v3192 = vpop.f32.mrb[0].mxu0
        %3193 = vmatprep.mubr.f32.mxu0 0.0
        %3194 = vmatmul.mubr.f32.gmra.mrb[0].mxu0 %v3104
        %v3195 = vpop.f32.mrb[0].mxu0
        %v3196 = vadd.f32 0.0, %v3195
        %v3197 = vpop.f32.mrb[0].mxu0
        %3198 = vmatprep.mubr.f32.mxu0 0.0
        %3199 = vmatmul.mubr.f32.gmra.mrb[0].mxu0 %v3107
        %v3200 = vpop.f32.mrb[0].mxu0
        %v3201 = vadd.f32 0.0, %v3200
        %v3202 = vpop.f32.mrb[0].mxu0
        %3203 = vmatprep.mubr.f32.mxu0 0.0
        %3204 = vmatmul.mubr.f32.gmra.mrb[0].mxu0 %v3110
        %v3205 = vpop.f32.mrb[0].mxu0
        %v3206 = vadd.f32 0.0, %v3205
        %v3207 = vpop.f32.mrb[0].mxu0
        %3208 = vmatprep.mubr.f32.mxu0 0.0
        %3209 = vmatmul.mubr.f32.gmra.mrb[0].mxu0 %v3113
        %v3210 = vpop.f32.mrb[0].mxu0
        %v3211 = vadd.f32 0.0, %v3210
        %v3212 = vpop.f32.mrb[0].mxu0
        %3213 = vmatprep.mubr.f32.mxu0 0.0
        %3214 = vmatmul.mubr.f32.gmra.mrb[0].mxu0 %v3116
        %v3215 = vpop.f32.mrb[0].mxu0
        %v3216 = vadd.f32 0.0, %v3215
        %v3217 = vpop.f32.mrb[0].mxu0
        %3218 = vmatprep.mubr.f32.mxu0 0.0
        %3219 = vmatmul.mubr.f32.gmra.mrb[0].mxu0 %v3119
        %v3220 = vpop.f32.mrb[0].mxu0
        %v3221 = vadd.f32 0.0, %v3220
        %v3222 = vpop.f32.mrb[0].mxu0
        %3223 = vdwg.mxu0
        %v3224 = vadd.f32 %v2874, %v3191
        %v3225 = vadd.f32 %v2875, %v3196
        %v3226 = vadd.f32 %v2876, %v3201
        %v3227 = vadd.f32 %v2877, %v3206
        %v3228 = vadd.f32 %v2878, %v3211
        %v3229 = vadd.f32 %v2879, %v3216
        %v3230 = vadd.f32 %v2880, %v3221
        %v3232 = vsel %vm1102, %v3224, 0
        %v3235 = vsel %vm1102, %v3225, 0
        %v3238 = vsel %vm1102, %v3226, 0
        %v3241 = vsel %vm1102, %v3227, 0
        %v3244 = vsel %vm1102, %v3228, 0
        %v3247 = vsel %vm1102, %v3229, 0
        %v3250 = vsel %vm1102, %v3230, 0
        %3252 = vmatprep.subr.mxu0 0.0
        %3253 = vmatpush1.msra.mxu0 %v1360
        %3254 = vmatprep.subr.mxu0 0.0
        %3255 = vmatpush1.msra.mxu0 %v1361
        %3256 = vmatprep.subr.mxu0 0.0
        %3257 = vmatpush1.msra.mxu0 %v1362
        %3258 = vmatprep.subr.mxu0 0.0
        %3259 = vmatpush1.msra.mxu0 %v1363
        %3260 = vmatprep.subr.mxu0 0.0
        %3261 = vmatpush1.msra.mxu0 0.0
        %3262 = vmatprep.subr.mxu0 0.0
        %3263 = vmatpush1.msra.mxu0 0.0
        %3264 = vmatprep.subr.mxu0 0.0
        %3265 = vmatpush1.msra.mxu0 0.0
        %3266 = vmatprep.subr.mxu0 0.0
        %3267 = vmatpush1.msra.mxu0 0.0
        %3268 = vmatprep.subr.mxu0 0.0
        %3269 = vmatpush1.msra.mxu0 0.0
        %3270 = vmatprep.subr.mxu0 0.0
        %3271 = vmatpush1.msra.mxu0 0.0
        %3272 = vmatprep.subr.mxu0 0.0
        %3273 = vmatpush1.msra.mxu0 0.0
        %3274 = vmatprep.subr.mxu0 0.0
        %3275 = vmatpush1.msra.mxu0 0.0
        %3276 = vmatprep.subr.mxu0 0.0
        %3277 = vmatpush1.msra.mxu0 0.0
        %3278 = vmatprep.subr.mxu0 0.0
        %3279 = vmatpush1.msra.mxu0 0.0
        %3280 = vmatprep.subr.mxu0 0.0
        %3281 = vmatpush1.msra.mxu0 0.0
        %3282 = vmatprep.subr.mxu0 0.0
        %3283 = vmatpush1.msra.mxu0 0.0
        %3284 = vmatprep.subr.mxu0 0.0
        %3285 = vmatpush1.msra.mxu0 0.0
        %3286 = vmatprep.subr.mxu0 0.0
        %3287 = vmatpush1.msra.mxu0 0.0
        %3288 = vmatprep.subr.mxu0 0.0
        %3289 = vmatpush1.msra.mxu0 0.0
        %3290 = vmatprep.subr.mxu0 0.0
        %3291 = vmatpush1.msra.mxu0 0.0
        %3292 = vmatprep.subr.mxu0 0.0
        %3293 = vmatpush1.msra.mxu0 0.0
        %3294 = vmatprep.subr.mxu0 0.0
        %3295 = vmatpush1.msra.mxu0 0.0
        %3296 = vmatprep.subr.mxu0 0.0
        %3297 = vmatpush1.msra.mxu0 0.0
        %3298 = vmatprep.subr.mxu0 0.0
        %3299 = vmatpush1.msra.mxu0 0.0
        %3300 = vmatprep.subr.mxu0 0.0
        %3301 = vmatpush1.msra.mxu0 0.0
        %3302 = vmatprep.subr.mxu0 0.0
        %3303 = vmatpush1.msra.mxu0 0.0
        %3304 = vmatprep.subr.mxu0 0.0
        %3305 = vmatpush1.msra.mxu0 0.0
        %3306 = vmatprep.subr.mxu0 0.0
        %3307 = vmatpush1.msra.mxu0 0.0
        %3308 = vmatprep.subr.mxu0 0.0
        %3309 = vmatpush1.msra.mxu0 0.0
        %3310 = vmatprep.subr.mxu0 0.0
        %3311 = vmatpush1.msra.mxu0 0.0
        %3312 = vmatprep.subr.mxu0 0.0
        %3313 = vmatpush1.msra.mxu0 0.0
        %3314 = vmatprep.subr.mxu0 0.0
        %3315 = vmatpush1.msra.mxu0 0.0
        %3316 = vmatprep.mubr.f32.mxu0 0.0
        %3317 = vmatmul.mubr.f32.gmra.mrb[0].mxu0 %v3232
        %v3318 = vpop.f32.mrb[0].mxu0
        %v3319 = vadd.f32 0.0, %v3318
        %v3320 = vpop.f32.mrb[0].mxu0
        %3321 = vmatprep.mubr.f32.mxu0 0.0
        %3322 = vmatmul.mubr.f32.gmra.mrb[0].mxu0 %v3235
        %v3323 = vpop.f32.mrb[0].mxu0
        %v3324 = vadd.f32 0.0, %v3323
        %v3325 = vpop.f32.mrb[0].mxu0
        %3326 = vmatprep.mubr.f32.mxu0 0.0
        %3327 = vmatmul.mubr.f32.gmra.mrb[0].mxu0 %v3238
        %v3328 = vpop.f32.mrb[0].mxu0
        %v3329 = vadd.f32 0.0, %v3328
        %v3330 = vpop.f32.mrb[0].mxu0
        %3331 = vmatprep.mubr.f32.mxu0 0.0
        %3332 = vmatmul.mubr.f32.gmra.mrb[0].mxu0 %v3241
        %v3333 = vpop.f32.mrb[0].mxu0
        %v3334 = vadd.f32 0.0, %v3333
        %v3335 = vpop.f32.mrb[0].mxu0
        %3336 = vmatprep.mubr.f32.mxu0 0.0
        %3337 = vmatmul.mubr.f32.gmra.mrb[0].mxu0 %v3244
        %v3338 = vpop.f32.mrb[0].mxu0
        %v3339 = vadd.f32 0.0, %v3338
        %v3340 = vpop.f32.mrb[0].mxu0
        %3341 = vmatprep.mubr.f32.mxu0 0.0
        %3342 = vmatmul.mubr.f32.gmra.mrb[0].mxu0 %v3247
        %v3343 = vpop.f32.mrb[0].mxu0
        %v3344 = vadd.f32 0.0, %v3343
        %v3345 = vpop.f32.mrb[0].mxu0
        %3346 = vmatprep.mubr.f32.mxu0 0.0
        %3347 = vmatmul.mubr.f32.gmra.mrb[0].mxu0 %v3250
        %v3348 = vpop.f32.mrb[0].mxu0
        %v3349 = vadd.f32 0.0, %v3348
        %v3350 = vpop.f32.mrb[0].mxu0
        %3351 = vdwg.mxu0
        %v3352 = vadd.f32 %v1335, %v3319
        %v3353 = vadd.f32 %v1337, %v3324
        %v3354 = vadd.f32 %v1339, %v3329
        %v3355 = vadd.f32 %v1341, %v3334
        %v3356 = vadd.f32 %v1343, %v3339
        %v3357 = vadd.f32 %v1345, %v3344
        %v3358 = vadd.f32 %v1332, %v3349
        %v3360 = vlaneseq
        %v3361 = vshrl.u32 %v3360, 7
        %v3362 = vsub.s32 0, %v3361
        %v3363 = vrot.slane %v1364, %v3362
        %v3365 = vadd.f32 %v3352, %v3363
        %v3366 = vadd.f32 %v3353, %v3363
        %v3367 = vadd.f32 %v3354, %v3363
        %v3368 = vadd.f32 %v3355, %v3363
        %v3369 = vadd.f32 %v3356, %v3363
        %v3370 = vadd.f32 %v3357, %v3363
        %v3371 = vadd.f32 %v3358, %v3363
        %v3372 = vsel %vm1102, %v3365, 0.0
        %3373 = vadd.xlane.f32.xlu0 %v3372
        %v3374 = vpop.xlane.xlu0 %3373
        %v3375 = vsel %vm1102, %v3366, 0.0
        %3376 = vadd.xlane.f32.xlu0 %v3375
        %v3377 = vpop.xlane.xlu0 %3376
        %v3378 = vsel %vm1102, %v3367, 0.0
        %3379 = vadd.xlane.f32.xlu0 %v3378
        %v3380 = vpop.xlane.xlu0 %3379
        %v3381 = vsel %vm1102, %v3368, 0.0
        %3382 = vadd.xlane.f32.xlu0 %v3381
        %v3383 = vpop.xlane.xlu0 %3382
        %v3384 = vsel %vm1102, %v3369, 0.0
        %3385 = vadd.xlane.f32.xlu0 %v3384
        %v3386 = vpop.xlane.xlu0 %3385
        %v3387 = vsel %vm1102, %v3370, 0.0
        %3388 = vadd.xlane.f32.xlu0 %v3387
        %v3389 = vpop.xlane.xlu0 %3388
        %v3390 = vsel %vm1399, %v3371, 0.0
        %3391 = vadd.xlane.f32.xlu0 %v3390
        %v3392 = vpop.xlane.xlu0 %3391
        %v3393 = vmul.f32 %v3374, %v1403
        %v3394 = vmul.f32 %v3377, %v1403
        %v3395 = vmul.f32 %v3380, %v1403
        %v3396 = vmul.f32 %v3383, %v1403
        %v3397 = vmul.f32 %v3386, %v1403
        %v3398 = vmul.f32 %v3389, %v1403
        %v3399 = vmul.f32 %v3392, %v1403
        %v3400 = vsub.f32 %v3365, %v3393
        %v3401 = vsub.f32 %v3366, %v3394
        %v3402 = vsub.f32 %v3367, %v3395
        %v3403 = vsub.f32 %v3368, %v3396
        %v3404 = vsub.f32 %v3369, %v3397
        %v3405 = vsub.f32 %v3370, %v3398
        %v3406 = vsub.f32 %v3371, %v3399
        %v3407 = vmul.f32 %v3400, %v3400
        %v3408 = vmul.f32 %v3401, %v3401
        %v3409 = vmul.f32 %v3402, %v3402
        %v3410 = vmul.f32 %v3403, %v3403
        %v3411 = vmul.f32 %v3404, %v3404
        %v3412 = vmul.f32 %v3405, %v3405
        %v3413 = vmul.f32 %v3406, %v3406
        %v3414 = vsel %vm1102, %v3407, 0.0
        %3415 = vadd.xlane.f32.xlu0 %v3414
        %v3416 = vpop.xlane.xlu0 %3415
        %v3417 = vsel %vm1102, %v3408, 0.0
        %3418 = vadd.xlane.f32.xlu0 %v3417
        %v3419 = vpop.xlane.xlu0 %3418
        %v3420 = vsel %vm1102, %v3409, 0.0
        %3421 = vadd.xlane.f32.xlu0 %v3420
        %v3422 = vpop.xlane.xlu0 %3421
        %v3423 = vsel %vm1102, %v3410, 0.0
        %3424 = vadd.xlane.f32.xlu0 %v3423
        %v3425 = vpop.xlane.xlu0 %3424
        %v3426 = vsel %vm1102, %v3411, 0.0
        %3427 = vadd.xlane.f32.xlu0 %v3426
        %v3428 = vpop.xlane.xlu0 %3427
        %v3429 = vsel %vm1102, %v3412, 0.0
        %3430 = vadd.xlane.f32.xlu0 %v3429
        %v3431 = vpop.xlane.xlu0 %3430
        %v3432 = vsel %vm1399, %v3413, 0.0
        %3433 = vadd.xlane.f32.xlu0 %v3432
        %v3434 = vpop.xlane.xlu0 %3433
        %v3435 = vmul.f32 %v3416, %v1403
        %v3436 = vmul.f32 %v3419, %v1403
        %v3437 = vmul.f32 %v3422, %v1403
        %v3438 = vmul.f32 %v3425, %v1403
        %v3439 = vmul.f32 %v3428, %v1403
        %v3440 = vmul.f32 %v3431, %v1403
        %v3441 = vmul.f32 %v3434, %v1403
        %v3442 = vadd.f32 %v3435, 1e-05
        %v3443 = vadd.f32 %v3436, 1e-05
        %v3444 = vadd.f32 %v3437, 1e-05
        %v3445 = vadd.f32 %v3438, 1e-05
        %v3446 = vadd.f32 %v3439, 1e-05
        %v3447 = vadd.f32 %v3440, 1e-05
        %v3448 = vadd.f32 %v3441, 1e-05
        %v3449 = vrsqrt.pop %v3442
        %v3450 = vrsqrt.pop %v3443
        %v3451 = vrsqrt.pop %v3444
        %v3452 = vrsqrt.pop %v3445
        %v3453 = vrsqrt.pop %v3446
        %v3454 = vrsqrt.pop %v3447
        %v3455 = vrsqrt.pop %v3448
        %v3456 = vmul.f32 %v3400, %v3449
        %v3457 = vmul.f32 %v3401, %v3450
        %v3458 = vmul.f32 %v3402, %v3451
        %v3459 = vmul.f32 %v3403, %v3452
        %v3460 = vmul.f32 %v3404, %v3453
        %v3461 = vmul.f32 %v3405, %v3454
        %v3462 = vmul.f32 %v3406, %v3455
        %v3464 = vlaneseq
        %v3465 = vshrl.u32 %v3464, 7
        %v3466 = vsub.s32 0, %v3465
        %v3467 = vrot.slane %v1365, %v3466
        %v3469 = vmul.f32 %v3456, %v3467
        %v3470 = vmul.f32 %v3457, %v3467
        %v3471 = vmul.f32 %v3458, %v3467
        %v3472 = vmul.f32 %v3459, %v3467
        %v3473 = vmul.f32 %v3460, %v3467
        %v3474 = vmul.f32 %v3461, %v3467
        %v3475 = vmul.f32 %v3462, %v3467
        %v3477 = vlaneseq
        %v3478 = vshrl.u32 %v3477, 7
        %v3479 = vsub.s32 0, %v3478
        %v3480 = vrot.slane %v1366, %v3479
        %v3482 = vadd.f32 %v3469, %v3480
        %v3483 = vadd.f32 %v3470, %v3480
        %v3484 = vadd.f32 %v3471, %v3480
        %v3485 = vadd.f32 %v3472, %v3480
        %v3486 = vadd.f32 %v3473, %v3480
        %v3487 = vadd.f32 %v3474, %v3480
        %v3488 = vadd.f32 %v3475, %v3480
        %v3490 = vlaneseq
        %v3491 = vshrl.u32 %v3490, 7
        %v3492 = vsub.s32 0, %v3491
        %v3493 = vrot.slane %v1371, %v3492
        %v3496 = vsel %vm1102, %v3482, 0
        %v3499 = vsel %vm1102, %v3483, 0
        %v3502 = vsel %vm1102, %v3484, 0
        %v3505 = vsel %vm1102, %v3485, 0
        %v3508 = vsel %vm1102, %v3486, 0
        %v3511 = vsel %vm1102, %v3487, 0
        %v3514 = vsel %vm1102, %v3488, 0
        %3516 = vmatprep.subr.mxu0 0.0
        %3517 = vmatpush1.msra.mxu0 %v1367
        %3518 = vmatprep.subr.mxu0 0.0
        %3519 = vmatpush1.msra.mxu0 %v1368
        %3520 = vmatprep.subr.mxu0 0.0
        %3521 = vmatpush1.msra.mxu0 %v1369
        %3522 = vmatprep.subr.mxu0 0.0
        %3523 = vmatpush1.msra.mxu0 %v1370
        %3524 = vmatprep.subr.mxu0 0.0
        %3525 = vmatpush1.msra.mxu0 0.0
        %3526 = vmatprep.subr.mxu0 0.0
        %3527 = vmatpush1.msra.mxu0 0.0
        %3528 = vmatprep.subr.mxu0 0.0
        %3529 = vmatpush1.msra.mxu0 0.0
        %3530 = vmatprep.subr.mxu0 0.0
        %3531 = vmatpush1.msra.mxu0 0.0
        %3532 = vmatprep.subr.mxu0 0.0
        %3533 = vmatpush1.msra.mxu0 0.0
        %3534 = vmatprep.subr.mxu0 0.0
        %3535 = vmatpush1.msra.mxu0 0.0
        %3536 = vmatprep.subr.mxu0 0.0
        %3537 = vmatpush1.msra.mxu0 0.0
        %3538 = vmatprep.subr.mxu0 0.0
        %3539 = vmatpush1.msra.mxu0 0.0
        %3540 = vmatprep.subr.mxu0 0.0
        %3541 = vmatpush1.msra.mxu0 0.0
        %3542 = vmatprep.subr.mxu0 0.0
        %3543 = vmatpush1.msra.mxu0 0.0
        %3544 = vmatprep.subr.mxu0 0.0
        %3545 = vmatpush1.msra.mxu0 0.0
        %3546 = vmatprep.subr.mxu0 0.0
        %3547 = vmatpush1.msra.mxu0 0.0
        %3548 = vmatprep.subr.mxu0 0.0
        %3549 = vmatpush1.msra.mxu0 0.0
        %3550 = vmatprep.subr.mxu0 0.0
        %3551 = vmatpush1.msra.mxu0 0.0
        %3552 = vmatprep.subr.mxu0 0.0
        %3553 = vmatpush1.msra.mxu0 0.0
        %3554 = vmatprep.subr.mxu0 0.0
        %3555 = vmatpush1.msra.mxu0 0.0
        %3556 = vmatprep.subr.mxu0 0.0
        %3557 = vmatpush1.msra.mxu0 0.0
        %3558 = vmatprep.subr.mxu0 0.0
        %3559 = vmatpush1.msra.mxu0 0.0
        %3560 = vmatprep.subr.mxu0 0.0
        %3561 = vmatpush1.msra.mxu0 0.0
        %3562 = vmatprep.subr.mxu0 0.0
        %3563 = vmatpush1.msra.mxu0 0.0
        %3564 = vmatprep.subr.mxu0 0.0
        %3565 = vmatpush1.msra.mxu0 0.0
        %3566 = vmatprep.subr.mxu0 0.0
        %3567 = vmatpush1.msra.mxu0 0.0
        %3568 = vmatprep.subr.mxu0 0.0
        %3569 = vmatpush1.msra.mxu0 0.0
        %3570 = vmatprep.subr.mxu0 0.0
        %3571 = vmatpush1.msra.mxu0 0.0
        %3572 = vmatprep.subr.mxu0 0.0
        %3573 = vmatpush1.msra.mxu0 0.0
        %3574 = vmatprep.subr.mxu0 0.0
        %3575 = vmatpush1.msra.mxu0 0.0
        %3576 = vmatprep.subr.mxu0 0.0
        %3577 = vmatpush1.msra.mxu0 0.0
        %3578 = vmatprep.subr.mxu0 0.0
        %3579 = vmatpush1.msra.mxu0 0.0
        %3580 = vmatprep.mubr.f32.mxu0 0.0
        %3581 = vmatmul.mubr.f32.gmra.mrb[0].mxu0 %v3496
        %v3582 = vpop.f32.mrb[0].mxu0
        %v3583 = vadd.f32 %v3493, %v3582
        %v3584 = vpop.f32.mrb[0].mxu0
        %3585 = vmatprep.mubr.f32.mxu0 0.0
        %3586 = vmatmul.mubr.f32.gmra.mrb[0].mxu0 %v3499
        %v3587 = vpop.f32.mrb[0].mxu0
        %v3588 = vadd.f32 %v3493, %v3587
        %v3589 = vpop.f32.mrb[0].mxu0
        %3590 = vmatprep.mubr.f32.mxu0 0.0
        %3591 = vmatmul.mubr.f32.gmra.mrb[0].mxu0 %v3502
        %v3592 = vpop.f32.mrb[0].mxu0
        %v3593 = vadd.f32 %v3493, %v3592
        %v3594 = vpop.f32.mrb[0].mxu0
        %3595 = vmatprep.mubr.f32.mxu0 0.0
        %3596 = vmatmul.mubr.f32.gmra.mrb[0].mxu0 %v3505
        %v3597 = vpop.f32.mrb[0].mxu0
        %v3598 = vadd.f32 %v3493, %v3597
        %v3599 = vpop.f32.mrb[0].mxu0
        %3600 = vmatprep.mubr.f32.mxu0 0.0
        %3601 = vmatmul.mubr.f32.gmra.mrb[0].mxu0 %v3508
        %v3602 = vpop.f32.mrb[0].mxu0
        %v3603 = vadd.f32 %v3493, %v3602
        %v3604 = vpop.f32.mrb[0].mxu0
        %3605 = vmatprep.mubr.f32.mxu0 0.0
        %3606 = vmatmul.mubr.f32.gmra.mrb[0].mxu0 %v3511
        %v3607 = vpop.f32.mrb[0].mxu0
        %v3608 = vadd.f32 %v3493, %v3607
        %v3609 = vpop.f32.mrb[0].mxu0
        %3610 = vmatprep.mubr.f32.mxu0 0.0
        %3611 = vmatmul.mubr.f32.gmra.mrb[0].mxu0 %v3514
        %v3612 = vpop.f32.mrb[0].mxu0
        %v3613 = vadd.f32 %v3493, %v3612
        %v3614 = vpop.f32.mrb[0].mxu0
        %3615 = vdwg.mxu0
        %v3616 = vmul.f32 %v3583, 0.5
        %v3617 = vmul.f32 %v3588, 0.5
        %v3618 = vmul.f32 %v3593, 0.5
        %v3619 = vmul.f32 %v3598, 0.5
        %v3620 = vmul.f32 %v3603, 0.5
        %v3621 = vmul.f32 %v3608, 0.5
        %v3622 = vmul.f32 %v3613, 0.5
        %v3623 = vmul.f32 %v3583, 0.70710677
        %v3624 = vmul.f32 %v3588, 0.70710677
        %v3625 = vmul.f32 %v3593, 0.70710677
        %v3626 = vmul.f32 %v3598, 0.70710677
        %v3627 = vmul.f32 %v3603, 0.70710677
        %v3628 = vmul.f32 %v3608, 0.70710677
        %v3629 = vmul.f32 %v3613, 0.70710677
        %vm3630 = vcmp.ge.f32.partialorder %v3623, 0.0
        %vm3631 = vcmp.ge.f32.partialorder %v3624, 0.0
        %vm3632 = vcmp.ge.f32.partialorder %v3625, 0.0
        %vm3633 = vcmp.ge.f32.partialorder %v3626, 0.0
        %vm3634 = vcmp.ge.f32.partialorder %v3627, 0.0
        %vm3635 = vcmp.ge.f32.partialorder %v3628, 0.0
        %vm3636 = vcmp.ge.f32.partialorder %v3629, 0.0
        %v3637 = vsel %vm3630, 1.0, -1.0
        %v3638 = vsel %vm3631, 1.0, -1.0
        %v3639 = vsel %vm3632, 1.0, -1.0
        %v3640 = vsel %vm3633, 1.0, -1.0
        %v3641 = vsel %vm3634, 1.0, -1.0
        %v3642 = vsel %vm3635, 1.0, -1.0
        %v3643 = vsel %vm3636, 1.0, -1.0
        %v3644 = vand.u32 2147483647, %v3623
        %v3645 = vand.u32 2147483647, %v3624
        %v3646 = vand.u32 2147483647, %v3625
        %v3647 = vand.u32 2147483647, %v3626
        %v3648 = vand.u32 2147483647, %v3627
        %v3649 = vand.u32 2147483647, %v3628
        %v3650 = vand.u32 2147483647, %v3629
        %v3651 = vmul.f32 %v3644, 0.3275911
        %v3652 = vmul.f32 %v3645, 0.3275911
        %v3653 = vmul.f32 %v3646, 0.3275911
        %v3654 = vmul.f32 %v3647, 0.3275911
        %v3655 = vmul.f32 %v3648, 0.3275911
        %v3656 = vmul.f32 %v3649, 0.3275911
        %v3657 = vmul.f32 %v3650, 0.3275911
        %v3658 = vadd.f32 %v3651, 1.0
        %v3659 = vadd.f32 %v3652, 1.0
        %v3660 = vadd.f32 %v3653, 1.0
        %v3661 = vadd.f32 %v3654, 1.0
        %v3662 = vadd.f32 %v3655, 1.0
        %v3663 = vadd.f32 %v3656, 1.0
        %v3664 = vadd.f32 %v3657, 1.0
        %v3665 = vrcp.pop %v3658
        %v3666 = vmul.f32 1.0, %v3665
        %v3667 = vrcp.pop %v3659
        %v3668 = vmul.f32 1.0, %v3667
        %v3669 = vrcp.pop %v3660
        %v3670 = vmul.f32 1.0, %v3669
        %v3671 = vrcp.pop %v3661
        %v3672 = vmul.f32 1.0, %v3671
        %v3673 = vrcp.pop %v3662
        %v3674 = vmul.f32 1.0, %v3673
        %v3675 = vrcp.pop %v3663
        %v3676 = vmul.f32 1.0, %v3675
        %v3677 = vrcp.pop %v3664
        %v3678 = vmul.f32 1.0, %v3677
        %v3679 = vmul.f32 %v3666, 1.0614054
        %v3680 = vmul.f32 %v3668, 1.0614054
        %v3681 = vmul.f32 %v3670, 1.0614054
        %v3682 = vmul.f32 %v3672, 1.0614054
        %v3683 = vmul.f32 %v3674, 1.0614054
        %v3684 = vmul.f32 %v3676, 1.0614054
        %v3685 = vmul.f32 %v3678, 1.0614054
        %v3686 = vadd.f32 %v3679, -1.4531521
        %v3687 = vadd.f32 %v3680, -1.4531521
        %v3688 = vadd.f32 %v3681, -1.4531521
        %v3689 = vadd.f32 %v3682, -1.4531521
        %v3690 = vadd.f32 %v3683, -1.4531521
        %v3691 = vadd.f32 %v3684, -1.4531521
        %v3692 = vadd.f32 %v3685, -1.4531521
        %v3693 = vmul.f32 %v3686, %v3666
        %v3694 = vmul.f32 %v3687, %v3668
        %v3695 = vmul.f32 %v3688, %v3670
        %v3696 = vmul.f32 %v3689, %v3672
        %v3697 = vmul.f32 %v3690, %v3674
        %v3698 = vmul.f32 %v3691, %v3676
        %v3699 = vmul.f32 %v3692, %v3678
        %v3700 = vadd.f32 %v3693, 1.4214138
        %v3701 = vadd.f32 %v3694, 1.4214138
        %v3702 = vadd.f32 %v3695, 1.4214138
        %v3703 = vadd.f32 %v3696, 1.4214138
        %v3704 = vadd.f32 %v3697, 1.4214138
        %v3705 = vadd.f32 %v3698, 1.4214138
        %v3706 = vadd.f32 %v3699, 1.4214138
        %v3707 = vmul.f32 %v3700, %v3666
        %v3708 = vmul.f32 %v3701, %v3668
        %v3709 = vmul.f32 %v3702, %v3670
        %v3710 = vmul.f32 %v3703, %v3672
        %v3711 = vmul.f32 %v3704, %v3674
        %v3712 = vmul.f32 %v3705, %v3676
        %v3713 = vmul.f32 %v3706, %v3678
        %v3714 = vadd.f32 %v3707, -0.28449672
        %v3715 = vadd.f32 %v3708, -0.28449672
        %v3716 = vadd.f32 %v3709, -0.28449672
        %v3717 = vadd.f32 %v3710, -0.28449672
        %v3718 = vadd.f32 %v3711, -0.28449672
        %v3719 = vadd.f32 %v3712, -0.28449672
        %v3720 = vadd.f32 %v3713, -0.28449672
        %v3721 = vmul.f32 %v3714, %v3666
        %v3722 = vmul.f32 %v3715, %v3668
        %v3723 = vmul.f32 %v3716, %v3670
        %v3724 = vmul.f32 %v3717, %v3672
        %v3725 = vmul.f32 %v3718, %v3674
        %v3726 = vmul.f32 %v3719, %v3676
        %v3727 = vmul.f32 %v3720, %v3678
        %v3728 = vadd.f32 %v3721, 0.2548296
        %v3729 = vadd.f32 %v3722, 0.2548296
        %v3730 = vadd.f32 %v3723, 0.2548296
        %v3731 = vadd.f32 %v3724, 0.2548296
        %v3732 = vadd.f32 %v3725, 0.2548296
        %v3733 = vadd.f32 %v3726, 0.2548296
        %v3734 = vadd.f32 %v3727, 0.2548296
        %v3735 = vmul.f32 %v3728, %v3666
        %v3736 = vmul.f32 %v3729, %v3668
        %v3737 = vmul.f32 %v3730, %v3670
        %v3738 = vmul.f32 %v3731, %v3672
        %v3739 = vmul.f32 %v3732, %v3674
        %v3740 = vmul.f32 %v3733, %v3676
        %v3741 = vmul.f32 %v3734, %v3678
        %v3742 = vsub.f32 0.0, %v3644
        %v3743 = vsub.f32 0.0, %v3645
        %v3744 = vsub.f32 0.0, %v3646
        %v3745 = vsub.f32 0.0, %v3647
        %v3746 = vsub.f32 0.0, %v3648
        %v3747 = vsub.f32 0.0, %v3649
        %v3748 = vsub.f32 0.0, %v3650
        %v3749 = vmul.f32 %v3742, %v3644
        %v3750 = vmul.f32 %v3743, %v3645
        %v3751 = vmul.f32 %v3744, %v3646
        %v3752 = vmul.f32 %v3745, %v3647
        %v3753 = vmul.f32 %v3746, %v3648
        %v3754 = vmul.f32 %v3747, %v3649
        %v3755 = vmul.f32 %v3748, %v3650
        %v3756 = vmul.f32 %v3749, 1.442695
        %v3757 = vpow.pop %v3756
        %v3758 = vmul.f32 %v3750, 1.442695
        %v3759 = vpow.pop %v3758
        %v3760 = vmul.f32 %v3751, 1.442695
        %v3761 = vpow.pop %v3760
        %v3762 = vmul.f32 %v3752, 1.442695
        %v3763 = vpow.pop %v3762
        %v3764 = vmul.f32 %v3753, 1.442695
        %v3765 = vpow.pop %v3764
        %v3766 = vmul.f32 %v3754, 1.442695
        %v3767 = vpow.pop %v3766
        %v3768 = vmul.f32 %v3755, 1.442695
        %v3769 = vpow.pop %v3768
        %v3770 = vmul.f32 %v3735, %v3757
        %v3771 = vmul.f32 %v3736, %v3759
        %v3772 = vmul.f32 %v3737, %v3761
        %v3773 = vmul.f32 %v3738, %v3763
        %v3774 = vmul.f32 %v3739, %v3765
        %v3775 = vmul.f32 %v3740, %v3767
        %v3776 = vmul.f32 %v3741, %v3769
        %v3777 = vsub.f32 1.0, %v3770
        %v3778 = vsub.f32 1.0, %v3771
        %v3779 = vsub.f32 1.0, %v3772
        %v3780 = vsub.f32 1.0, %v3773
        %v3781 = vsub.f32 1.0, %v3774
        %v3782 = vsub.f32 1.0, %v3775
        %v3783 = vsub.f32 1.0, %v3776
        %v3784 = vmul.f32 %v3637, %v3777
        %v3785 = vmul.f32 %v3638, %v3778
        %v3786 = vmul.f32 %v3639, %v3779
        %v3787 = vmul.f32 %v3640, %v3780
        %v3788 = vmul.f32 %v3641, %v3781
        %v3789 = vmul.f32 %v3642, %v3782
        %v3790 = vmul.f32 %v3643, %v3783
        %v3791 = vadd.f32 %v3784, 1.0
        %v3792 = vadd.f32 %v3785, 1.0
        %v3793 = vadd.f32 %v3786, 1.0
        %v3794 = vadd.f32 %v3787, 1.0
        %v3795 = vadd.f32 %v3788, 1.0
        %v3796 = vadd.f32 %v3789, 1.0
        %v3797 = vadd.f32 %v3790, 1.0
        %v3798 = vmul.f32 %v3616, %v3791
        %v3799 = vmul.f32 %v3617, %v3792
        %v3800 = vmul.f32 %v3618, %v3793
        %v3801 = vmul.f32 %v3619, %v3794
        %v3802 = vmul.f32 %v3620, %v3795
        %v3803 = vmul.f32 %v3621, %v3796
        %v3804 = vmul.f32 %v3622, %v3797
        %vm3805 = vcmask 523264
        %v3807 = vsel %vm3805, %v3798, 0
        %v3810 = vsel %vm3805, %v3799, 0
        %v3813 = vsel %vm3805, %v3800, 0
        %v3816 = vsel %vm3805, %v3801, 0
        %v3819 = vsel %vm3805, %v3802, 0
        %v3822 = vsel %vm3805, %v3803, 0
        %v3825 = vsel %vm3805, %v3804, 0
        %3827 = vmatprep.subr.mxu0 0.0
        %3828 = vmatpush1.msra.mxu0 %v1372
        %3829 = vmatprep.subr.mxu0 0.0
        %3830 = vmatpush1.msra.mxu0 %v1373
        %3831 = vmatprep.subr.mxu0 0.0
        %3832 = vmatpush1.msra.mxu0 %v1374
        %3833 = vmatprep.subr.mxu0 0.0
        %3834 = vmatpush1.msra.mxu0 %v1375
        %3835 = vmatprep.subr.mxu0 0.0
        %3836 = vmatpush1.msra.mxu0 %v1376
        %3837 = vmatprep.subr.mxu0 0.0
        %3838 = vmatpush1.msra.mxu0 %v1377
        %3839 = vmatprep.subr.mxu0 0.0
        %3840 = vmatpush1.msra.mxu0 %v1378
        %3841 = vmatprep.subr.mxu0 0.0
        %3842 = vmatpush1.msra.mxu0 %v1379
        %3843 = vmatprep.subr.mxu0 0.0
        %3844 = vmatpush1.msra.mxu0 0.0
        %3845 = vmatprep.subr.mxu0 0.0
        %3846 = vmatpush1.msra.mxu0 0.0
        %3847 = vmatprep.subr.mxu0 0.0
        %3848 = vmatpush1.msra.mxu0 0.0
        %3849 = vmatprep.subr.mxu0 0.0
        %3850 = vmatpush1.msra.mxu0 0.0
        %3851 = vmatprep.subr.mxu0 0.0
        %3852 = vmatpush1.msra.mxu0 0.0
        %3853 = vmatprep.subr.mxu0 0.0
        %3854 = vmatpush1.msra.mxu0 0.0
        %3855 = vmatprep.subr.mxu0 0.0
        %3856 = vmatpush1.msra.mxu0 0.0
        %3857 = vmatprep.subr.mxu0 0.0
        %3858 = vmatpush1.msra.mxu0 0.0
        %3859 = vmatprep.subr.mxu0 0.0
        %3860 = vmatpush1.msra.mxu0 0.0
        %3861 = vmatprep.subr.mxu0 0.0
        %3862 = vmatpush1.msra.mxu0 0.0
        %3863 = vmatprep.subr.mxu0 0.0
        %3864 = vmatpush1.msra.mxu0 0.0
        %3865 = vmatprep.subr.mxu0 0.0
        %3866 = vmatpush1.msra.mxu0 0.0
        %3867 = vmatprep.subr.mxu0 0.0
        %3868 = vmatpush1.msra.mxu0 0.0
        %3869 = vmatprep.subr.mxu0 0.0
        %3870 = vmatpush1.msra.mxu0 0.0
        %3871 = vmatprep.subr.mxu0 0.0
        %3872 = vmatpush1.msra.mxu0 0.0
        %3873 = vmatprep.subr.mxu0 0.0
        %3874 = vmatpush1.msra.mxu0 0.0
        %3875 = vmatprep.subr.mxu0 0.0
        %3876 = vmatpush1.msra.mxu0 0.0
        %3877 = vmatprep.subr.mxu0 0.0
        %3878 = vmatpush1.msra.mxu0 0.0
        %3879 = vmatprep.subr.mxu0 0.0
        %3880 = vmatpush1.msra.mxu0 0.0
        %3881 = vmatprep.subr.mxu0 0.0
        %3882 = vmatpush1.msra.mxu0 0.0
        %3883 = vmatprep.subr.mxu0 0.0
        %3884 = vmatpush1.msra.mxu0 0.0
        %3885 = vmatprep.subr.mxu0 0.0
        %3886 = vmatpush1.msra.mxu0 0.0
        %3887 = vmatprep.subr.mxu0 0.0
        %3888 = vmatpush1.msra.mxu0 0.0
        %3889 = vmatprep.subr.mxu0 0.0
        %3890 = vmatpush1.msra.mxu0 0.0
        %3891 = vmatprep.mubr.f32.mxu0 0.0
        %3892 = vmatmul.mubr.f32.gmra.mrb[0].mxu0 %v3807
        %v3893 = vpop.f32.mrb[0].mxu0
        %v3894 = vadd.f32 0.0, %v3893
        %v3895 = vpop.f32.mrb[0].mxu0
        %3896 = vmatprep.mubr.f32.mxu0 0.0
        %3897 = vmatmul.mubr.f32.gmra.mrb[0].mxu0 %v3810
        %v3898 = vpop.f32.mrb[0].mxu0
        %v3899 = vadd.f32 0.0, %v3898
        %v3900 = vpop.f32.mrb[0].mxu0
        %3901 = vmatprep.mubr.f32.mxu0 0.0
        %3902 = vmatmul.mubr.f32.gmra.mrb[0].mxu0 %v3813
        %v3903 = vpop.f32.mrb[0].mxu0
        %v3904 = vadd.f32 0.0, %v3903
        %v3905 = vpop.f32.mrb[0].mxu0
        %3906 = vmatprep.mubr.f32.mxu0 0.0
        %3907 = vmatmul.mubr.f32.gmra.mrb[0].mxu0 %v3816
        %v3908 = vpop.f32.mrb[0].mxu0
        %v3909 = vadd.f32 0.0, %v3908
        %v3910 = vpop.f32.mrb[0].mxu0
        %3911 = vmatprep.mubr.f32.mxu0 0.0
        %3912 = vmatmul.mubr.f32.gmra.mrb[0].mxu0 %v3819
        %v3913 = vpop.f32.mrb[0].mxu0
        %v3914 = vadd.f32 0.0, %v3913
        %v3915 = vpop.f32.mrb[0].mxu0
        %3916 = vmatprep.mubr.f32.mxu0 0.0
        %3917 = vmatmul.mubr.f32.gmra.mrb[0].mxu0 %v3822
        %v3918 = vpop.f32.mrb[0].mxu0
        %v3919 = vadd.f32 0.0, %v3918
        %v3920 = vpop.f32.mrb[0].mxu0
        %3921 = vmatprep.mubr.f32.mxu0 0.0
        %3922 = vmatmul.mubr.f32.gmra.mrb[0].mxu0 %v3825
        %v3923 = vpop.f32.mrb[0].mxu0
        %v3924 = vadd.f32 0.0, %v3923
        %v3925 = vpop.f32.mrb[0].mxu0
        %3926 = vdwg.mxu0
        %v3927 = vadd.f32 %v3365, %v3894
        %v3928 = vadd.f32 %v3366, %v3899
        %v3929 = vadd.f32 %v3367, %v3904
        %v3930 = vadd.f32 %v3368, %v3909
        %v3931 = vadd.f32 %v3369, %v3914
        %v3932 = vadd.f32 %v3370, %v3919
        %v3933 = vadd.f32 %v3371, %v3924
        %v3935 = vlaneseq
        %v3936 = vshrl.u32 %v3935, 7
        %v3937 = vsub.s32 0, %v3936
        %v3938 = vrot.slane %v1380, %v3937
        %v3940 = vadd.f32 %v3927, %v3938
        %v3941 = vadd.f32 %v3928, %v3938
        %v3942 = vadd.f32 %v3929, %v3938
        %v3943 = vadd.f32 %v3930, %v3938
        %v3944 = vadd.f32 %v3931, %v3938
        %v3945 = vadd.f32 %v3932, %v3938
        %v3946 = vadd.f32 %v3933, %v3938
        %3947 = vst.msk [vmem:[%s1042] sm:$0x1] %vm1399, %v3943
        %vm3948 = vcmask 260096
        %3949 = vst.msk [vmem:[#allocation3] sm:$0x7f] %vm3948, %v3940
        %s3950 = scalar_lea.vmem [#allocation3], 8
        %vm3951 = vcmask 261127
        %3952 = vst.msk [vmem:[%s3950 - $0x7] sm:$0x80] %vm3951, %v3940
        %vm3953 = vcmask 259072
        %3954 = vst.msk [vmem:[%s3950 + $0x1] sm:$0x3f] %vm3953, %v3941
        %s3955 = scalar_lea.vmem [#allocation3], 16
        %vm3956 = vcmask 261126
        %3957 = vst.msk [vmem:[%s3955 - $0x6] sm:$0xc0] %vm3956, %v3941
        %vm3958 = vcmask 258048
        %3959 = vst.msk [vmem:[%s3955 + $0x2] sm:$0x1f] %vm3958, %v3942
        %s3960 = scalar_lea.vmem [#allocation3], 24
        %vm3961 = vcmask 261125
        %3962 = vst.msk [vmem:[%s3960 - $0x5] sm:$0xe0] %vm3961, %v3942
        %vm3963 = vcmask 257024
        %3964 = vst.msk [vmem:[%s3960 + $0x3] sm:$0xf] %vm3963, %v3943
        %s3965 = scalar_lea.vmem [#allocation3], 32
        %vm3966 = vcmask 261124
        %3967 = vst.msk [vmem:[%s3965 - $0x4] sm:$0xf0] %vm3966, %v3943
        %vm3968 = vcmask 256000
        %3969 = vst.msk [vmem:[%s3965 + $0x4] sm:$0x7] %vm3968, %v3944
        %s3970 = scalar_lea.vmem [#allocation3], 40
        %vm3971 = vcmask 261123
        %3972 = vst.msk [vmem:[%s3970 - $0x3] sm:$0xf8] %vm3971, %v3944
        %vm3973 = vcmask 254976
        %3974 = vst.msk [vmem:[%s3970 + $0x5] sm:$0x3] %vm3973, %v3945
        %s3975 = scalar_lea.vmem [#allocation3], 48
        %vm3976 = vcmask 261122
        %3977 = vst.msk [vmem:[%s3975 - $0x2] sm:$0xfc] %vm3976, %v3945
        %3978 = vst.msk [vmem:[%s3975 + $0x6] sm:$0x1] %vm1399, %v3946
        %v3979 = vld [vmem:[#allocation3] ss:$2 sm:$0x7]
        %s3980 = scalar_lea.vmem [#allocation3], 16
        %v3981 = vld [vmem:[%s3980] ss:$2 sm:$0x7]
        %s3982 = scalar_lea.vmem [#allocation3], 32
        %v3983 = vld [vmem:[%s3982] ss:$2 sm:$0x7]
        %s3984 = scalar_lea.vmem [#allocation3], 1
        %v3985 = vld [vmem:[%s3984] ss:$2 sm:$0x7]
        %s3986 = scalar_lea.vmem [#allocation3], 17
        %v3987 = vld [vmem:[%s3986] ss:$2 sm:$0x7]
        %s3988 = scalar_lea.vmem [#allocation3], 33
        %v3989 = vld [vmem:[%s3988] ss:$2 sm:$0x7]
        %v3990 = vmax.f32 %v3979, %v3985
        %v3991 = vmax.f32 %v3981, %v3987
        %v3992 = vmax.f32 %v3983, %v3989
        %s3993 = scalar_lea.vmem [#allocation3], 2
        %v3994 = vld [vmem:[%s3993] ss:$2 sm:$0x7]
        %s3995 = scalar_lea.vmem [#allocation3], 18
        %v3996 = vld [vmem:[%s3995] ss:$2 sm:$0x7]
        %s3997 = scalar_lea.vmem [#allocation3], 34
        %v3998 = vld [vmem:[%s3997] ss:$2 sm:$0x7]
        %v3999 = vmax.f32 %v3990, %v3994
        %v4000 = vmax.f32 %v3991, %v3996
        %v4001 = vmax.f32 %v3992, %v3998
        %v4002 = vld [vmem:[%s3950] ss:$2 sm:$0x7]
        %s4003 = scalar_lea.vmem %s3950, 16 [#allocation3]
        %v4004 = vld [vmem:[%s4003] ss:$2 sm:$0x7]
        %s4005 = scalar_lea.vmem %s3950, 32 [#allocation3]
        %v4006 = vld [vmem:[%s4005] ss:$2 sm:$0x7]
        %v4007 = vmax.f32 %v3999, %v4002
        %v4008 = vmax.f32 %v4000, %v4004
        %v4009 = vmax.f32 %v4001, %v4006
        %s4010 = scalar_lea.vmem %s3950, 1 [#allocation3]
        %v4011 = vld [vmem:[%s4010] ss:$2 sm:$0x7]
        %s4012 = scalar_lea.vmem %s3950, 17 [#allocation3]
        %v4013 = vld [vmem:[%s4012] ss:$2 sm:$0x7]
        %s4014 = scalar_lea.vmem %s3950, 33 [#allocation3]
        %v4015 = vld [vmem:[%s4014] ss:$2 sm:$0x7]
        %v4016 = vmax.f32 %v4007, %v4011
        %v4017 = vmax.f32 %v4008, %v4013
        %v4018 = vmax.f32 %v4009, %v4015
        %s4019 = scalar_lea.vmem %s3950, 2 [#allocation3]
        %v4020 = vld [vmem:[%s4019] ss:$2 sm:$0x7]
        %s4021 = scalar_lea.vmem %s3950, 18 [#allocation3]
        %v4022 = vld [vmem:[%s4021] ss:$2 sm:$0x7]
        %s4023 = scalar_lea.vmem %s3950, 34 [#allocation3]
        %v4024 = vld [vmem:[%s4023] ss:$2 sm:$0x7]
        %v4025 = vmax.f32 %v4016, %v4020
        %v4026 = vmax.f32 %v4017, %v4022
        %v4027 = vmax.f32 %v4018, %v4024
        %v4028 = vld [vmem:[%s3955] ss:$2 sm:$0x7]
        %s4029 = scalar_lea.vmem %s3955, 16 [#allocation3]
        %v4030 = vld [vmem:[%s4029] ss:$2 sm:$0x7]
        %s4031 = scalar_lea.vmem %s3955, 32 [#allocation3]
        %v4032 = vld [vmem:[%s4031] ss:$2 sm:$0x7]
        %v4033 = vmax.f32 %v4025, %v4028
        %v4034 = vmax.f32 %v4026, %v4030
        %v4035 = vmax.f32 %v4027, %v4032
        %s4036 = scalar_lea.vmem %s3955, 1 [#allocation3]
        %v4037 = vld [vmem:[%s4036] ss:$2 sm:$0x7]
        %s4038 = scalar_lea.vmem %s3955, 17 [#allocation3]
        %v4039 = vld [vmem:[%s4038] ss:$2 sm:$0x7]
        %s4040 = scalar_lea.vmem %s3955, 33 [#allocation3]
        %v4041 = vld [vmem:[%s4040] ss:$2 sm:$0x7]
        %v4042 = vmax.f32 %v4033, %v4037
        %v4043 = vmax.f32 %v4034, %v4039
        %v4044 = vmax.f32 %v4035, %v4041
        %s4045 = scalar_lea.vmem %s3955, 2 [#allocation3]
        %v4046 = vld [vmem:[%s4045] ss:$2 sm:$0x7]
        %s4047 = scalar_lea.vmem %s3955, 18 [#allocation3]
        %v4048 = vld [vmem:[%s4047] ss:$2 sm:$0x7]
        %s4049 = scalar_lea.vmem %s3955, 34 [#allocation3]
        %v4050 = vld [vmem:[%s4049] ss:$2 sm:$0x7]
        %v4051 = vmax.f32 %v4042, %v4046
        %v4052 = vmax.f32 %v4043, %v4048
        %v4053 = vmax.f32 %v4044, %v4050
        %v4055 = vrot.slane %v4052, 5
        %v4058 = vrot.slane %v4053, 2
        %v4060 = vsel %vm1342, %v4051, %v4055
        %v4061 = vsel %vm1336, %v4060, %v4058
        %v4062 = vld [vmem:[#allocation18] sm:$0x1]
        %v4063 = vld [vmem:[#allocation19] sm:$0x1]
        %v4064 = vld [vmem:[#allocation21] sm:$0xff]
        %v4065 = vld [vmem:[#allocation21 + $0x8] sm:$0xff]
        %v4066 = vld [vmem:[#allocation21 + $0x10] sm:$0xff]
        %v4067 = vld [vmem:[#allocation21 + $0x18] sm:$0xff]
        %v4068 = vld [vmem:[%s17] sm:$0xff]
        %v4069 = vld [vmem:[%s17 + $0x8] sm:$0xff]
        %v4070 = vld [vmem:[%s17 + $0x10] sm:$0xff]
        %v4071 = vld [vmem:[%s17 + $0x18] sm:$0xff]
        %v4072 = vld [vmem:[#allocation22] sm:$0xff]
        %v4073 = vld [vmem:[#allocation22 + $0x8] sm:$0xff]
        %v4074 = vld [vmem:[#allocation22 + $0x10] sm:$0xff]
        %v4075 = vld [vmem:[#allocation22 + $0x18] sm:$0xff]
        %v4076 = vld [vmem:[#allocation24] sm:$0xff]
        %v4077 = vld [vmem:[#allocation24 + $0x8] sm:$0xff]
        %v4078 = vld [vmem:[#allocation24 + $0x10] sm:$0xff]
        %v4079 = vld [vmem:[#allocation24 + $0x18] sm:$0xff]
        %v4080 = vld [vmem:[%s20] sm:$0x1]
        %v4081 = vld [vmem:[%s21] sm:$0x1]
        %v4082 = vld [vmem:[%s22] sm:$0x1]
        %v4083 = vld [vmem:[#allocation25] sm:$0xff]
        %v4084 = vld [vmem:[#allocation25 + $0x8] sm:$0xff]
        %v4085 = vld [vmem:[#allocation25 + $0x10] sm:$0xff]
        %v4086 = vld [vmem:[#allocation25 + $0x18] sm:$0xff]
        %v4087 = vld [vmem:[%s24] sm:$0x1]
        %v4088 = vld [vmem:[%s25] sm:$0xff]
        %v4089 = vld [vmem:[%s25 + $0x8] sm:$0xff]
        %v4090 = vld [vmem:[%s25 + $0x10] sm:$0xff]
        %v4091 = vld [vmem:[%s25 + $0x18] sm:$0xff]
        %v4092 = vld [vmem:[%s25 + $0x20] sm:$0xff]
        %v4093 = vld [vmem:[%s25 + $0x28] sm:$0xff]
        %v4094 = vld [vmem:[%s25 + $0x30] sm:$0xff]
        %v4095 = vld [vmem:[%s25 + $0x38] sm:$0xff]
        %v4096 = vld [vmem:[%s26] sm:$0x1]
        %v4097 = vsel %vm1102, %v4061, 0.0
        %4098 = vadd.xlane.f32.xlu0 %v4097
        %v4099 = vpop.xlane.xlu0 %4098
        %v4100 = vsel %vm1399, %v4058, 0.0
        %4101 = vadd.xlane.f32.xlu0 %v4100
        %v4102 = vpop.xlane.xlu0 %4101
        %v4103 = vmul.f32 %v4099, %v1403
        %v4104 = vmul.f32 %v4102, %v1403
        %v4105 = vsub.f32 %v4061, %v4103
        %v4106 = vsub.f32 %v4058, %v4104
        %v4107 = vmul.f32 %v4105, %v4105
        %v4108 = vmul.f32 %v4106, %v4106
        %v4109 = vsel %vm1102, %v4107, 0.0
        %4110 = vadd.xlane.f32.xlu0 %v4109
        %v4111 = vpop.xlane.xlu0 %4110
        %v4112 = vsel %vm1399, %v4108, 0.0
        %4113 = vadd.xlane.f32.xlu0 %v4112
        %v4114 = vpop.xlane.xlu0 %4113
        %v4115 = vmul.f32 %v4111, %v1403
        %v4116 = vmul.f32 %v4114, %v1403
        %v4117 = vadd.f32 %v4115, 1e-05
        %v4118 = vadd.f32 %v4116, 1e-05
        %v4119 = vrsqrt.pop %v4117
        %v4120 = vrsqrt.pop %v4118
        %v4121 = vmul.f32 %v4105, %v4119
        %v4122 = vmul.f32 %v4106, %v4120
        %v4124 = vlaneseq
        %v4125 = vshrl.u32 %v4124, 7
        %v4126 = vsub.s32 0, %v4125
        %v4127 = vrot.slane %v4062, %v4126
        %v4129 = vmul.f32 %v4121, %v4127
        %v4130 = vmul.f32 %v4122, %v4127
        %v4132 = vlaneseq
        %v4133 = vshrl.u32 %v4132, 7
        %v4134 = vsub.s32 0, %v4133
        %v4135 = vrot.slane %v4063, %v4134
        %v4137 = vadd.f32 %v4129, %v4135
        %v4138 = vadd.f32 %v4130, %v4135
        %v4140 = vsel %vm1102, %v4137, 0
        %v4143 = vsel %vm1102, %v4138, 0
        %4145 = vmatprep.subr.mxu0 0.0
        %4146 = vmatpush1.msra.mxu0 %v4064
        %4147 = vmatprep.subr.mxu0 0.0
        %4148 = vmatpush1.msra.mxu0 %v4065
        %4149 = vmatprep.subr.mxu0 0.0
        %4150 = vmatpush1.msra.mxu0 %v4066
        %4151 = vmatprep.subr.mxu0 0.0
        %4152 = vmatpush1.msra.mxu0 %v4067
        %4153 = vmatprep.subr.mxu0 0.0
        %4154 = vmatpush1.msra.mxu0 0.0
        %4155 = vmatprep.subr.mxu0 0.0
        %4156 = vmatpush1.msra.mxu0 0.0
        %4157 = vmatprep.subr.mxu0 0.0
        %4158 = vmatpush1.msra.mxu0 0.0
        %4159 = vmatprep.subr.mxu0 0.0
        %4160 = vmatpush1.msra.mxu0 0.0
        %4161 = vmatprep.subr.mxu0 0.0
        %4162 = vmatpush1.msra.mxu0 0.0
        %4163 = vmatprep.subr.mxu0 0.0
        %4164 = vmatpush1.msra.mxu0 0.0
        %4165 = vmatprep.subr.mxu0 0.0
        %4166 = vmatpush1.msra.mxu0 0.0
        %4167 = vmatprep.subr.mxu0 0.0
        %4168 = vmatpush1.msra.mxu0 0.0
        %4169 = vmatprep.subr.mxu0 0.0
        %4170 = vmatpush1.msra.mxu0 0.0
        %4171 = vmatprep.subr.mxu0 0.0
        %4172 = vmatpush1.msra.mxu0 0.0
        %4173 = vmatprep.subr.mxu0 0.0
        %4174 = vmatpush1.msra.mxu0 0.0
        %4175 = vmatprep.subr.mxu0 0.0
        %4176 = vmatpush1.msra.mxu0 0.0
        %4177 = vmatprep.subr.mxu0 0.0
        %4178 = vmatpush1.msra.mxu0 0.0
        %4179 = vmatprep.subr.mxu0 0.0
        %4180 = vmatpush1.msra.mxu0 0.0
        %4181 = vmatprep.subr.mxu0 0.0
        %4182 = vmatpush1.msra.mxu0 0.0
        %4183 = vmatprep.subr.mxu0 0.0
        %4184 = vmatpush1.msra.mxu0 0.0
        %4185 = vmatprep.subr.mxu0 0.0
        %4186 = vmatpush1.msra.mxu0 0.0
        %4187 = vmatprep.subr.mxu0 0.0
        %4188 = vmatpush1.msra.mxu0 0.0
        %4189 = vmatprep.subr.mxu0 0.0
        %4190 = vmatpush1.msra.mxu0 0.0
        %4191 = vmatprep.subr.mxu0 0.0
        %4192 = vmatpush1.msra.mxu0 0.0
        %4193 = vmatprep.subr.mxu0 0.0
        %4194 = vmatpush1.msra.mxu0 0.0
        %4195 = vmatprep.subr.mxu0 0.0
        %4196 = vmatpush1.msra.mxu0 0.0
        %4197 = vmatprep.subr.mxu0 0.0
        %4198 = vmatpush1.msra.mxu0 0.0
        %4199 = vmatprep.subr.mxu0 0.0
        %4200 = vmatpush1.msra.mxu0 0.0
        %4201 = vmatprep.subr.mxu0 0.0
        %4202 = vmatpush1.msra.mxu0 0.0
        %4203 = vmatprep.subr.mxu0 0.0
        %4204 = vmatpush1.msra.mxu0 0.0
        %4205 = vmatprep.subr.mxu0 0.0
        %4206 = vmatpush1.msra.mxu0 0.0
        %4207 = vmatprep.subr.mxu0 0.0
        %4208 = vmatpush1.msra.mxu0 0.0
        %4209 = vmatprep.mubr.f32.mxu0 0.0
        %4210 = vmatmul.mubr.f32.gmra.mrb[0].mxu0 %v4140
        %v4211 = vpop.f32.mrb[0].mxu0
        %v4212 = vadd.f32 0.0, %v4211
        %v4213 = vpop.f32.mrb[0].mxu0
        %4214 = vmatprep.mubr.f32.mxu0 0.0
        %4215 = vmatmul.mubr.f32.gmra.mrb[0].mxu0 %v4143
        %v4216 = vpop.f32.mrb[0].mxu0
        %v4217 = vadd.f32 0.0, %v4216
        %v4218 = vpop.f32.mrb[0].mxu0
        %4219 = vdwg.mxu0
        %4220 = vmatprep.subr.mxu0 0.0
        %4221 = vmatpush1.msra.mxu0 %v4068
        %4222 = vmatprep.subr.mxu0 0.0
        %4223 = vmatpush1.msra.mxu0 %v4069
        %4224 = vmatprep.subr.mxu0 0.0
        %4225 = vmatpush1.msra.mxu0 %v4070
        %4226 = vmatprep.subr.mxu0 0.0
        %4227 = vmatpush1.msra.mxu0 %v4071
        %4228 = vmatprep.subr.mxu0 0.0
        %4229 = vmatpush1.msra.mxu0 0.0
        %4230 = vmatprep.subr.mxu0 0.0
        %4231 = vmatpush1.msra.mxu0 0.0
        %4232 = vmatprep.subr.mxu0 0.0
        %4233 = vmatpush1.msra.mxu0 0.0
        %4234 = vmatprep.subr.mxu0 0.0
        %4235 = vmatpush1.msra.mxu0 0.0
        %4236 = vmatprep.subr.mxu0 0.0
        %4237 = vmatpush1.msra.mxu0 0.0
        %4238 = vmatprep.subr.mxu0 0.0
        %4239 = vmatpush1.msra.mxu0 0.0
        %4240 = vmatprep.subr.mxu0 0.0
        %4241 = vmatpush1.msra.mxu0 0.0
        %4242 = vmatprep.subr.mxu0 0.0
        %4243 = vmatpush1.msra.mxu0 0.0
        %4244 = vmatprep.subr.mxu0 0.0
        %4245 = vmatpush1.msra.mxu0 0.0
        %4246 = vmatprep.subr.mxu0 0.0
        %4247 = vmatpush1.msra.mxu0 0.0
        %4248 = vmatprep.subr.mxu0 0.0
        %4249 = vmatpush1.msra.mxu0 0.0
        %4250 = vmatprep.subr.mxu0 0.0
        %4251 = vmatpush1.msra.mxu0 0.0
        %4252 = vmatprep.subr.mxu0 0.0
        %4253 = vmatpush1.msra.mxu0 0.0
        %4254 = vmatprep.subr.mxu0 0.0
        %4255 = vmatpush1.msra.mxu0 0.0
        %4256 = vmatprep.subr.mxu0 0.0
        %4257 = vmatpush1.msra.mxu0 0.0
        %4258 = vmatprep.subr.mxu0 0.0
        %4259 = vmatpush1.msra.mxu0 0.0
        %4260 = vmatprep.subr.mxu0 0.0
        %4261 = vmatpush1.msra.mxu0 0.0
        %4262 = vmatprep.subr.mxu0 0.0
        %4263 = vmatpush1.msra.mxu0 0.0
        %4264 = vmatprep.subr.mxu0 0.0
        %4265 = vmatpush1.msra.mxu0 0.0
        %4266 = vmatprep.subr.mxu0 0.0
        %4267 = vmatpush1.msra.mxu0 0.0
        %4268 = vmatprep.subr.mxu0 0.0
        %4269 = vmatpush1.msra.mxu0 0.0
        %4270 = vmatprep.subr.mxu0 0.0
        %4271 = vmatpush1.msra.mxu0 0.0
        %4272 = vmatprep.subr.mxu0 0.0
        %4273 = vmatpush1.msra.mxu0 0.0
        %4274 = vmatprep.subr.mxu0 0.0
        %4275 = vmatpush1.msra.mxu0 0.0
        %4276 = vmatprep.subr.mxu0 0.0
        %4277 = vmatpush1.msra.mxu0 0.0
        %4278 = vmatprep.subr.mxu0 0.0
        %4279 = vmatpush1.msra.mxu0 0.0
        %4280 = vmatprep.subr.mxu0 0.0
        %4281 = vmatpush1.msra.mxu0 0.0
        %4282 = vmatprep.subr.mxu0 0.0
        %4283 = vmatpush1.msra.mxu0 0.0
        %4284 = vmatprep.mubr.f32.mxu0 0.0
        %4285 = vmatmul.mubr.f32.gmra.mrb[0].mxu0 %v4140
        %v4286 = vpop.f32.mrb[0].mxu0
        %v4287 = vadd.f32 0.0, %v4286
        %v4288 = vpop.f32.mrb[0].mxu0
        %4289 = vmatprep.mubr.f32.mxu0 0.0
        %4290 = vmatmul.mubr.f32.gmra.mrb[0].mxu0 %v4143
        %v4291 = vpop.f32.mrb[0].mxu0
        %v4292 = vadd.f32 0.0, %v4291
        %v4293 = vpop.f32.mrb[0].mxu0
        %4294 = vdwg.mxu0
        %4295 = vmatprep.subr.mxu0 0.0
        %4296 = vmatpush1.msra.mxu0 %v4072
        %4297 = vmatprep.subr.mxu0 0.0
        %4298 = vmatpush1.msra.mxu0 %v4073
        %4299 = vmatprep.subr.mxu0 0.0
        %4300 = vmatpush1.msra.mxu0 %v4074
        %4301 = vmatprep.subr.mxu0 0.0
        %4302 = vmatpush1.msra.mxu0 %v4075
        %4303 = vmatprep.subr.mxu0 0.0
        %4304 = vmatpush1.msra.mxu0 0.0
        %4305 = vmatprep.subr.mxu0 0.0
        %4306 = vmatpush1.msra.mxu0 0.0
        %4307 = vmatprep.subr.mxu0 0.0
        %4308 = vmatpush1.msra.mxu0 0.0
        %4309 = vmatprep.subr.mxu0 0.0
        %4310 = vmatpush1.msra.mxu0 0.0
        %4311 = vmatprep.subr.mxu0 0.0
        %4312 = vmatpush1.msra.mxu0 0.0
        %4313 = vmatprep.subr.mxu0 0.0
        %4314 = vmatpush1.msra.mxu0 0.0
        %4315 = vmatprep.subr.mxu0 0.0
        %4316 = vmatpush1.msra.mxu0 0.0
        %4317 = vmatprep.subr.mxu0 0.0
        %4318 = vmatpush1.msra.mxu0 0.0
        %4319 = vmatprep.subr.mxu0 0.0
        %4320 = vmatpush1.msra.mxu0 0.0
        %4321 = vmatprep.subr.mxu0 0.0
        %4322 = vmatpush1.msra.mxu0 0.0
        %4323 = vmatprep.subr.mxu0 0.0
        %4324 = vmatpush1.msra.mxu0 0.0
        %4325 = vmatprep.subr.mxu0 0.0
        %4326 = vmatpush1.msra.mxu0 0.0
        %4327 = vmatprep.subr.mxu0 0.0
        %4328 = vmatpush1.msra.mxu0 0.0
        %4329 = vmatprep.subr.mxu0 0.0
        %4330 = vmatpush1.msra.mxu0 0.0
        %4331 = vmatprep.subr.mxu0 0.0
        %4332 = vmatpush1.msra.mxu0 0.0
        %4333 = vmatprep.subr.mxu0 0.0
        %4334 = vmatpush1.msra.mxu0 0.0
        %4335 = vmatprep.subr.mxu0 0.0
        %4336 = vmatpush1.msra.mxu0 0.0
        %4337 = vmatprep.subr.mxu0 0.0
        %4338 = vmatpush1.msra.mxu0 0.0
        %4339 = vmatprep.subr.mxu0 0.0
        %4340 = vmatpush1.msra.mxu0 0.0
        %4341 = vmatprep.subr.mxu0 0.0
        %4342 = vmatpush1.msra.mxu0 0.0
        %4343 = vmatprep.subr.mxu0 0.0
        %4344 = vmatpush1.msra.mxu0 0.0
        %4345 = vmatprep.subr.mxu0 0.0
        %4346 = vmatpush1.msra.mxu0 0.0
        %4347 = vmatprep.subr.mxu0 0.0
        %4348 = vmatpush1.msra.mxu0 0.0
        %4349 = vmatprep.subr.mxu0 0.0
        %4350 = vmatpush1.msra.mxu0 0.0
        %4351 = vmatprep.subr.mxu0 0.0
        %4352 = vmatpush1.msra.mxu0 0.0
        %4353 = vmatprep.subr.mxu0 0.0
        %4354 = vmatpush1.msra.mxu0 0.0
        %4355 = vmatprep.subr.mxu0 0.0
        %4356 = vmatpush1.msra.mxu0 0.0
        %4357 = vmatprep.subr.mxu0 0.0
        %4358 = vmatpush1.msra.mxu0 0.0
        %4359 = vmatprep.mubr.f32.mxu0 0.0
        %4360 = vmatmul.mubr.f32.gmra.mrb[0].mxu0 %v4140
        %v4361 = vpop.f32.mrb[0].mxu0
        %v4362 = vadd.f32 0.0, %v4361
        %v4363 = vpop.f32.mrb[0].mxu0
        %4364 = vmatprep.mubr.f32.mxu0 0.0
        %4365 = vmatmul.mubr.f32.gmra.mrb[0].mxu0 %v4143
        %v4366 = vpop.f32.mrb[0].mxu0
        %v4367 = vadd.f32 0.0, %v4366
        %v4368 = vpop.f32.mrb[0].mxu0
        %4369 = vdwg.mxu0
        %v4370 = vmul.f32 %v4212, %v1054
        %v4371 = vmul.f32 %v4217, %v1054
        %v4373 = vsel %vm1102, %v4370, 0
        %v4376 = vsel %vm1102, %v4371, 0
        %v4379 = vsel %vm1102, %v4287, 0
        %v4382 = vsel %vm1102, %v4292, 0
        %4384 = vmatprep.subr.mxu0 0.0
        %4385 = vmatpush1.xpose.msra.mxu0 %v4379
        %4386 = vmatprep.subr.mxu0 0.0
        %4387 = vmatpush1.xpose.msra.mxu0 %v4382
        %4388 = vmatprep.subr.mxu0 0.0
        %4389 = vmatpush1.xpose.msra.mxu0 0.0
        %4390 = vmatprep.subr.mxu0 0.0
        %4391 = vmatpush1.xpose.msra.mxu0 0.0
        %4392 = vmatprep.subr.mxu0 0.0
        %4393 = vmatpush1.xpose.msra.mxu0 0.0
        %4394 = vmatprep.subr.mxu0 0.0
        %4395 = vmatpush1.xpose.msra.mxu0 0.0
        %4396 = vmatprep.subr.mxu0 0.0
        %4397 = vmatpush1.xpose.msra.mxu0 0.0
        %4398 = vmatprep.subr.mxu0 0.0
        %4399 = vmatpush1.xpose.msra.mxu0 0.0
        %4400 = vmatprep.subr.mxu0 0.0
        %4401 = vmatpush1.xpose.msra.mxu0 0.0
        %4402 = vmatprep.subr.mxu0 0.0
        %4403 = vmatpush1.xpose.msra.mxu0 0.0
        %4404 = vmatprep.subr.mxu0 0.0
        %4405 = vmatpush1.xpose.msra.mxu0 0.0
        %4406 = vmatprep.subr.mxu0 0.0
        %4407 = vmatpush1.xpose.msra.mxu0 0.0
        %4408 = vmatprep.subr.mxu0 0.0
        %4409 = vmatpush1.xpose.msra.mxu0 0.0
        %4410 = vmatprep.subr.mxu0 0.0
        %4411 = vmatpush1.xpose.msra.mxu0 0.0
        %4412 = vmatprep.subr.mxu0 0.0
        %4413 = vmatpush1.xpose.msra.mxu0 0.0
        %4414 = vmatprep.subr.mxu0 0.0
        %4415 = vmatpush1.xpose.msra.mxu0 0.0
        %4416 = vmatprep.subr.mxu0 0.0
        %4417 = vmatpush1.xpose.msra.mxu0 0.0
        %4418 = vmatprep.subr.mxu0 0.0
        %4419 = vmatpush1.xpose.msra.mxu0 0.0
        %4420 = vmatprep.subr.mxu0 0.0
        %4421 = vmatpush1.xpose.msra.mxu0 0.0
        %4422 = vmatprep.subr.mxu0 0.0
        %4423 = vmatpush1.xpose.msra.mxu0 0.0
        %4424 = vmatprep.subr.mxu0 0.0
        %4425 = vmatpush1.xpose.msra.mxu0 0.0
        %4426 = vmatprep.subr.mxu0 0.0
        %4427 = vmatpush1.xpose.msra.mxu0 0.0
        %4428 = vmatprep.subr.mxu0 0.0
        %4429 = vmatpush1.xpose.msra.mxu0 0.0
        %4430 = vmatprep.subr.mxu0 0.0
        %4431 = vmatpush1.xpose.msra.mxu0 0.0
        %4432 = vmatprep.subr.mxu0 0.0
        %4433 = vmatpush1.xpose.msra.mxu0 0.0
        %4434 = vmatprep.subr.mxu0 0.0
        %4435 = vmatpush1.xpose.msra.mxu0 0.0
        %4436 = vmatprep.subr.mxu0 0.0
        %4437 = vmatpush1.xpose.msra.mxu0 0.0
        %4438 = vmatprep.subr.mxu0 0.0
        %4439 = vmatpush1.xpose.msra.mxu0 0.0
        %4440 = vmatprep.subr.mxu0 0.0
        %4441 = vmatpush1.xpose.msra.mxu0 0.0
        %4442 = vmatprep.subr.mxu0 0.0
        %4443 = vmatpush1.xpose.msra.mxu0 0.0
        %4444 = vmatprep.subr.mxu0 0.0
        %4445 = vmatpush1.xpose.msra.mxu0 0.0
        %4446 = vmatprep.subr.mxu0 0.0
        %4447 = vmatpush1.xpose.msra.mxu0 0.0
        %4448 = vmatprep.mubr.f32.mxu0 0.0
        %4449 = vmatmul.mubr.f32.gmra.mrb[0].mxu0 %v4373
        %v4450 = vpop.f32.mrb[0].mxu0
        %v4451 = vadd.f32 0.0, %v4450
        %v4452 = vpop.f32.mrb[0].mxu0
        %4453 = vmatprep.mubr.f32.mxu0 0.0
        %4454 = vmatmul.mubr.f32.gmra.mrb[0].mxu0 %v4376
        %v4455 = vpop.f32.mrb[0].mxu0
        %v4456 = vadd.f32 0.0, %v4455
        %v4457 = vpop.f32.mrb[0].mxu0
        %4458 = vdwg.mxu0
        %v4459 = vmul.f32 %v4451, 0.35355338
        %v4460 = vmul.f32 %v4456, 0.35355338
        %vm4461 = vcmask 72704
        %v4462 = vsel %vm4461, %v4459, -inf
        %4463 = vmax.xlane.f32.xlu0 %v4462
        %v4464 = vpop.xlane.xlu0 %4463
        %vm4465 = vcmask 65536
        %v4466 = vsel %vm4465, %v4460, -inf
        %4467 = vmax.xlane.f32.xlu0 %v4466
        %v4468 = vpop.xlane.xlu0 %4467
        %v4469 = vsub.f32 %v4459, %v4464
        %v4470 = vsub.f32 %v4460, %v4468
        %v4471 = vmul.f32 %v4469, 1.442695
        %v4472 = vpow.pop %v4471
        %v4473 = vmul.f32 %v4470, 1.442695
        %v4474 = vpow.pop %v4473
        %v4475 = vsel %vm4461, %v4472, 0.0
        %4476 = vadd.xlane.f32.xlu0 %v4475
        %v4477 = vpop.xlane.xlu0 %4476
        %v4478 = vsel %vm4465, %v4474, 0.0
        %4479 = vadd.xlane.f32.xlu0 %v4478
        %v4480 = vpop.xlane.xlu0 %4479
        %v4481 = vrcp.pop %v4477
        %v4482 = vrcp.pop %v4480
        %v4483 = vmul.f32 %v4472, %v4481
        %v4484 = vmul.f32 %v4474, %v4482
        %v4485 = vmul.f32 %v4362, %v1054
        %v4486 = vmul.f32 %v4367, %v1054
        %v4487 = vmul.f32 %v4212, %v1059
        %v4488 = vmul.f32 %v4217, %v1059
        %v4490 = vsel %vm1102, %v4487, 0
        %v4493 = vsel %vm1102, %v4488, 0
        %4495 = vmatprep.subr.mxu0 0.0
        %4496 = vmatpush1.xpose.msra.mxu0 %v4379
        %4497 = vmatprep.subr.mxu0 0.0
        %4498 = vmatpush1.xpose.msra.mxu0 %v4382
        %4499 = vmatprep.subr.mxu0 0.0
        %4500 = vmatpush1.xpose.msra.mxu0 0.0
        %4501 = vmatprep.subr.mxu0 0.0
        %4502 = vmatpush1.xpose.msra.mxu0 0.0
        %4503 = vmatprep.subr.mxu0 0.0
        %4504 = vmatpush1.xpose.msra.mxu0 0.0
        %4505 = vmatprep.subr.mxu0 0.0
        %4506 = vmatpush1.xpose.msra.mxu0 0.0
        %4507 = vmatprep.subr.mxu0 0.0
        %4508 = vmatpush1.xpose.msra.mxu0 0.0
        %4509 = vmatprep.subr.mxu0 0.0
        %4510 = vmatpush1.xpose.msra.mxu0 0.0
        %4511 = vmatprep.subr.mxu0 0.0
        %4512 = vmatpush1.xpose.msra.mxu0 0.0
        %4513 = vmatprep.subr.mxu0 0.0
        %4514 = vmatpush1.xpose.msra.mxu0 0.0
        %4515 = vmatprep.subr.mxu0 0.0
        %4516 = vmatpush1.xpose.msra.mxu0 0.0
        %4517 = vmatprep.subr.mxu0 0.0
        %4518 = vmatpush1.xpose.msra.mxu0 0.0
        %4519 = vmatprep.subr.mxu0 0.0
        %4520 = vmatpush1.xpose.msra.mxu0 0.0
        %4521 = vmatprep.subr.mxu0 0.0
        %4522 = vmatpush1.xpose.msra.mxu0 0.0
        %4523 = vmatprep.subr.mxu0 0.0
        %4524 = vmatpush1.xpose.msra.mxu0 0.0
        %4525 = vmatprep.subr.mxu0 0.0
        %4526 = vmatpush1.xpose.msra.mxu0 0.0
        %4527 = vmatprep.subr.mxu0 0.0
        %4528 = vmatpush1.xpose.msra.mxu0 0.0
        %4529 = vmatprep.subr.mxu0 0.0
        %4530 = vmatpush1.xpose.msra.mxu0 0.0
        %4531 = vmatprep.subr.mxu0 0.0
        %4532 = vmatpush1.xpose.msra.mxu0 0.0
        %4533 = vmatprep.subr.mxu0 0.0
        %4534 = vmatpush1.xpose.msra.mxu0 0.0
        %4535 = vmatprep.subr.mxu0 0.0
        %4536 = vmatpush1.xpose.msra.mxu0 0.0
        %4537 = vmatprep.subr.mxu0 0.0
        %4538 = vmatpush1.xpose.msra.mxu0 0.0
        %4539 = vmatprep.subr.mxu0 0.0
        %4540 = vmatpush1.xpose.msra.mxu0 0.0
        %4541 = vmatprep.subr.mxu0 0.0
        %4542 = vmatpush1.xpose.msra.mxu0 0.0
        %4543 = vmatprep.subr.mxu0 0.0
        %4544 = vmatpush1.xpose.msra.mxu0 0.0
        %4545 = vmatprep.subr.mxu0 0.0
        %4546 = vmatpush1.xpose.msra.mxu0 0.0
        %4547 = vmatprep.subr.mxu0 0.0
        %4548 = vmatpush1.xpose.msra.mxu0 0.0
        %4549 = vmatprep.subr.mxu0 0.0
        %4550 = vmatpush1.xpose.msra.mxu0 0.0
        %4551 = vmatprep.subr.mxu0 0.0
        %4552 = vmatpush1.xpose.msra.mxu0 0.0
        %4553 = vmatprep.subr.mxu0 0.0
        %4554 = vmatpush1.xpose.msra.mxu0 0.0
        %4555 = vmatprep.subr.mxu0 0.0
        %4556 = vmatpush1.xpose.msra.mxu0 0.0
        %4557 = vmatprep.subr.mxu0 0.0
        %4558 = vmatpush1.xpose.msra.mxu0 0.0
        %4559 = vmatprep.mubr.f32.mxu0 0.0
        %4560 = vmatmul.mubr.f32.gmra.mrb[0].mxu0 %v4490
        %v4561 = vpop.f32.mrb[0].mxu0
        %v4562 = vadd.f32 0.0, %v4561
        %v4563 = vpop.f32.mrb[0].mxu0
        %4564 = vmatprep.mubr.f32.mxu0 0.0
        %4565 = vmatmul.mubr.f32.gmra.mrb[0].mxu0 %v4493
        %v4566 = vpop.f32.mrb[0].mxu0
        %v4567 = vadd.f32 0.0, %v4566
        %v4568 = vpop.f32.mrb[0].mxu0
        %4569 = vdwg.mxu0
        %v4570 = vmul.f32 %v4562, 0.35355338
        %v4571 = vmul.f32 %v4567, 0.35355338
        %v4572 = vsel %vm4461, %v4570, -inf
        %4573 = vmax.xlane.f32.xlu0 %v4572
        %v4574 = vpop.xlane.xlu0 %4573
        %v4575 = vsel %vm4465, %v4571, -inf
        %4576 = vmax.xlane.f32.xlu0 %v4575
        %v4577 = vpop.xlane.xlu0 %4576
        %v4578 = vsub.f32 %v4570, %v4574
        %v4579 = vsub.f32 %v4571, %v4577
        %v4580 = vmul.f32 %v4578, 1.442695
        %v4581 = vpow.pop %v4580
        %v4582 = vmul.f32 %v4579, 1.442695
        %v4583 = vpow.pop %v4582
        %v4584 = vsel %vm4461, %v4581, 0.0
        %4585 = vadd.xlane.f32.xlu0 %v4584
        %v4586 = vpop.xlane.xlu0 %4585
        %v4587 = vsel %vm4465, %v4583, 0.0
        %4588 = vadd.xlane.f32.xlu0 %v4587
        %v4589 = vpop.xlane.xlu0 %4588
        %v4590 = vrcp.pop %v4586
        %v4591 = vrcp.pop %v4589
        %v4592 = vmul.f32 %v4581, %v4590
        %v4593 = vmul.f32 %v4583, %v4591
        %v4594 = vmul.f32 %v4362, %v1059
        %v4595 = vmul.f32 %v4367, %v1059
        %v4597 = vsel %vm4461, %v4592, 0
        %v4600 = vsel %vm4461, %v4593, 0
        %v4603 = vsel %vm2303, %v4595, 0
        %4605 = vmatprep.subr.mxu0 0.0
        %4606 = vmatpush1.msra.mxu0 %v4594
        %4607 = vmatprep.subr.mxu0 0.0
        %4608 = vmatpush1.msra.mxu0 %v4603
        %4609 = vmatprep.subr.mxu0 0.0
        %4610 = vmatpush1.msra.mxu0 0.0
        %4611 = vmatprep.subr.mxu0 0.0
        %4612 = vmatpush1.msra.mxu0 0.0
        %4613 = vmatprep.subr.mxu0 0.0
        %4614 = vmatpush1.msra.mxu0 0.0
        %4615 = vmatprep.subr.mxu0 0.0
        %4616 = vmatpush1.msra.mxu0 0.0
        %4617 = vmatprep.subr.mxu0 0.0
        %4618 = vmatpush1.msra.mxu0 0.0
        %4619 = vmatprep.subr.mxu0 0.0
        %4620 = vmatpush1.msra.mxu0 0.0
        %4621 = vmatprep.subr.mxu0 0.0
        %4622 = vmatpush1.msra.mxu0 0.0
        %4623 = vmatprep.subr.mxu0 0.0
        %4624 = vmatpush1.msra.mxu0 0.0
        %4625 = vmatprep.subr.mxu0 0.0
        %4626 = vmatpush1.msra.mxu0 0.0
        %4627 = vmatprep.subr.mxu0 0.0
        %4628 = vmatpush1.msra.mxu0 0.0
        %4629 = vmatprep.subr.mxu0 0.0
        %4630 = vmatpush1.msra.mxu0 0.0
        %4631 = vmatprep.subr.mxu0 0.0
        %4632 = vmatpush1.msra.mxu0 0.0
        %4633 = vmatprep.subr.mxu0 0.0
        %4634 = vmatpush1.msra.mxu0 0.0
        %4635 = vmatprep.subr.mxu0 0.0
        %4636 = vmatpush1.msra.mxu0 0.0
        %4637 = vmatprep.subr.mxu0 0.0
        %4638 = vmatpush1.msra.mxu0 0.0
        %4639 = vmatprep.subr.mxu0 0.0
        %4640 = vmatpush1.msra.mxu0 0.0
        %4641 = vmatprep.subr.mxu0 0.0
        %4642 = vmatpush1.msra.mxu0 0.0
        %4643 = vmatprep.subr.mxu0 0.0
        %4644 = vmatpush1.msra.mxu0 0.0
        %4645 = vmatprep.subr.mxu0 0.0
        %4646 = vmatpush1.msra.mxu0 0.0
        %4647 = vmatprep.subr.mxu0 0.0
        %4648 = vmatpush1.msra.mxu0 0.0
        %4649 = vmatprep.subr.mxu0 0.0
        %4650 = vmatpush1.msra.mxu0 0.0
        %4651 = vmatprep.subr.mxu0 0.0
        %4652 = vmatpush1.msra.mxu0 0.0
        %4653 = vmatprep.subr.mxu0 0.0
        %4654 = vmatpush1.msra.mxu0 0.0
        %4655 = vmatprep.subr.mxu0 0.0
        %4656 = vmatpush1.msra.mxu0 0.0
        %4657 = vmatprep.subr.mxu0 0.0
        %4658 = vmatpush1.msra.mxu0 0.0
        %4659 = vmatprep.subr.mxu0 0.0
        %4660 = vmatpush1.msra.mxu0 0.0
        %4661 = vmatprep.subr.mxu0 0.0
        %4662 = vmatpush1.msra.mxu0 0.0
        %4663 = vmatprep.subr.mxu0 0.0
        %4664 = vmatpush1.msra.mxu0 0.0
        %4665 = vmatprep.subr.mxu0 0.0
        %4666 = vmatpush1.msra.mxu0 0.0
        %4667 = vmatprep.subr.mxu0 0.0
        %4668 = vmatpush1.msra.mxu0 0.0
        %4669 = vmatprep.mubr.f32.mxu0 0.0
        %4670 = vmatmul.mubr.f32.gmra.mrb[0].mxu0 %v4597
        %v4671 = vpop.f32.mrb[0].mxu0
        %v4672 = vadd.f32 0.0, %v4671
        %v4673 = vpop.f32.mrb[0].mxu0
        %4674 = vmatprep.mubr.f32.mxu0 0.0
        %4675 = vmatmul.mubr.f32.gmra.mrb[0].mxu0 %v4600
        %v4676 = vpop.f32.mrb[0].mxu0
        %v4677 = vadd.f32 0.0, %v4676
        %v4678 = vpop.f32.mrb[0].mxu0
        %4679 = vdwg.mxu0
        %v4681 = vsel %vm4461, %v4483, 0
        %v4684 = vsel %vm4461, %v4484, 0
        %v4687 = vsel %vm2303, %v4486, 0
        %4689 = vmatprep.subr.mxu0 0.0
        %4690 = vmatpush1.msra.mxu0 %v4485
        %4691 = vmatprep.subr.mxu0 0.0
        %4692 = vmatpush1.msra.mxu0 %v4687
        %4693 = vmatprep.subr.mxu0 0.0
        %4694 = vmatpush1.msra.mxu0 0.0
        %4695 = vmatprep.subr.mxu0 0.0
        %4696 = vmatpush1.msra.mxu0 0.0
        %4697 = vmatprep.subr.mxu0 0.0
        %4698 = vmatpush1.msra.mxu0 0.0
        %4699 = vmatprep.subr.mxu0 0.0
        %4700 = vmatpush1.msra.mxu0 0.0
        %4701 = vmatprep.subr.mxu0 0.0
        %4702 = vmatpush1.msra.mxu0 0.0
        %4703 = vmatprep.subr.mxu0 0.0
        %4704 = vmatpush1.msra.mxu0 0.0
        %4705 = vmatprep.subr.mxu0 0.0
        %4706 = vmatpush1.msra.mxu0 0.0
        %4707 = vmatprep.subr.mxu0 0.0
        %4708 = vmatpush1.msra.mxu0 0.0
        %4709 = vmatprep.subr.mxu0 0.0
        %4710 = vmatpush1.msra.mxu0 0.0
        %4711 = vmatprep.subr.mxu0 0.0
        %4712 = vmatpush1.msra.mxu0 0.0
        %4713 = vmatprep.subr.mxu0 0.0
        %4714 = vmatpush1.msra.mxu0 0.0
        %4715 = vmatprep.subr.mxu0 0.0
        %4716 = vmatpush1.msra.mxu0 0.0
        %4717 = vmatprep.subr.mxu0 0.0
        %4718 = vmatpush1.msra.mxu0 0.0
        %4719 = vmatprep.subr.mxu0 0.0
        %4720 = vmatpush1.msra.mxu0 0.0
        %4721 = vmatprep.subr.mxu0 0.0
        %4722 = vmatpush1.msra.mxu0 0.0
        %4723 = vmatprep.subr.mxu0 0.0
        %4724 = vmatpush1.msra.mxu0 0.0
        %4725 = vmatprep.subr.mxu0 0.0
        %4726 = vmatpush1.msra.mxu0 0.0
        %4727 = vmatprep.subr.mxu0 0.0
        %4728 = vmatpush1.msra.mxu0 0.0
        %4729 = vmatprep.subr.mxu0 0.0
        %4730 = vmatpush1.msra.mxu0 0.0
        %4731 = vmatprep.subr.mxu0 0.0
        %4732 = vmatpush1.msra.mxu0 0.0
        %4733 = vmatprep.subr.mxu0 0.0
        %4734 = vmatpush1.msra.mxu0 0.0
        %4735 = vmatprep.subr.mxu0 0.0
        %4736 = vmatpush1.msra.mxu0 0.0
        %4737 = vmatprep.subr.mxu0 0.0
        %4738 = vmatpush1.msra.mxu0 0.0
        %4739 = vmatprep.subr.mxu0 0.0
        %4740 = vmatpush1.msra.mxu0 0.0
        %4741 = vmatprep.subr.mxu0 0.0
        %4742 = vmatpush1.msra.mxu0 0.0
        %4743 = vmatprep.subr.mxu0 0.0
        %4744 = vmatpush1.msra.mxu0 0.0
        %4745 = vmatprep.subr.mxu0 0.0
        %4746 = vmatpush1.msra.mxu0 0.0
        %4747 = vmatprep.subr.mxu0 0.0
        %4748 = vmatpush1.msra.mxu0 0.0
        %4749 = vmatprep.subr.mxu0 0.0
        %4750 = vmatpush1.msra.mxu0 0.0
        %4751 = vmatprep.subr.mxu0 0.0
        %4752 = vmatpush1.msra.mxu0 0.0
        %4753 = vmatprep.mubr.f32.mxu0 0.0
        %4754 = vmatmul.mubr.f32.gmra.mrb[0].mxu0 %v4681
        %v4755 = vpop.f32.mrb[0].mxu0
        %v4756 = vadd.f32 %v4672, %v4755
        %v4757 = vpop.f32.mrb[0].mxu0
        %4758 = vmatprep.mubr.f32.mxu0 0.0
        %4759 = vmatmul.mubr.f32.gmra.mrb[0].mxu0 %v4684
        %v4760 = vpop.f32.mrb[0].mxu0
        %v4761 = vadd.f32 %v4677, %v4760
        %v4762 = vpop.f32.mrb[0].mxu0
        %4763 = vdwg.mxu0
        %v4764 = vmul.f32 %v4212, %v1064
        %v4765 = vmul.f32 %v4217, %v1064
        %v4767 = vsel %vm1102, %v4764, 0
        %v4770 = vsel %vm1102, %v4765, 0
        %4772 = vmatprep.subr.mxu0 0.0
        %4773 = vmatpush1.xpose.msra.mxu0 %v4379
        %4774 = vmatprep.subr.mxu0 0.0
        %4775 = vmatpush1.xpose.msra.mxu0 %v4382
        %4776 = vmatprep.subr.mxu0 0.0
        %4777 = vmatpush1.xpose.msra.mxu0 0.0
        %4778 = vmatprep.subr.mxu0 0.0
        %4779 = vmatpush1.xpose.msra.mxu0 0.0
        %4780 = vmatprep.subr.mxu0 0.0
        %4781 = vmatpush1.xpose.msra.mxu0 0.0
        %4782 = vmatprep.subr.mxu0 0.0
        %4783 = vmatpush1.xpose.msra.mxu0 0.0
        %4784 = vmatprep.subr.mxu0 0.0
        %4785 = vmatpush1.xpose.msra.mxu0 0.0
        %4786 = vmatprep.subr.mxu0 0.0
        %4787 = vmatpush1.xpose.msra.mxu0 0.0
        %4788 = vmatprep.subr.mxu0 0.0
        %4789 = vmatpush1.xpose.msra.mxu0 0.0
        %4790 = vmatprep.subr.mxu0 0.0
        %4791 = vmatpush1.xpose.msra.mxu0 0.0
        %4792 = vmatprep.subr.mxu0 0.0
        %4793 = vmatpush1.xpose.msra.mxu0 0.0
        %4794 = vmatprep.subr.mxu0 0.0
        %4795 = vmatpush1.xpose.msra.mxu0 0.0
        %4796 = vmatprep.subr.mxu0 0.0
        %4797 = vmatpush1.xpose.msra.mxu0 0.0
        %4798 = vmatprep.subr.mxu0 0.0
        %4799 = vmatpush1.xpose.msra.mxu0 0.0
        %4800 = vmatprep.subr.mxu0 0.0
        %4801 = vmatpush1.xpose.msra.mxu0 0.0
        %4802 = vmatprep.subr.mxu0 0.0
        %4803 = vmatpush1.xpose.msra.mxu0 0.0
        %4804 = vmatprep.subr.mxu0 0.0
        %4805 = vmatpush1.xpose.msra.mxu0 0.0
        %4806 = vmatprep.subr.mxu0 0.0
        %4807 = vmatpush1.xpose.msra.mxu0 0.0
        %4808 = vmatprep.subr.mxu0 0.0
        %4809 = vmatpush1.xpose.msra.mxu0 0.0
        %4810 = vmatprep.subr.mxu0 0.0
        %4811 = vmatpush1.xpose.msra.mxu0 0.0
        %4812 = vmatprep.subr.mxu0 0.0
        %4813 = vmatpush1.xpose.msra.mxu0 0.0
        %4814 = vmatprep.subr.mxu0 0.0
        %4815 = vmatpush1.xpose.msra.mxu0 0.0
        %4816 = vmatprep.subr.mxu0 0.0
        %4817 = vmatpush1.xpose.msra.mxu0 0.0
        %4818 = vmatprep.subr.mxu0 0.0
        %4819 = vmatpush1.xpose.msra.mxu0 0.0
        %4820 = vmatprep.subr.mxu0 0.0
        %4821 = vmatpush1.xpose.msra.mxu0 0.0
        %4822 = vmatprep.subr.mxu0 0.0
        %4823 = vmatpush1.xpose.msra.mxu0 0.0
        %4824 = vmatprep.subr.mxu0 0.0
        %4825 = vmatpush1.xpose.msra.mxu0 0.0
        %4826 = vmatprep.subr.mxu0 0.0
        %4827 = vmatpush1.xpose.msra.mxu0 0.0
        %4828 = vmatprep.subr.mxu0 0.0
        %4829 = vmatpush1.xpose.msra.mxu0 0.0
        %4830 = vmatprep.subr.mxu0 0.0
        %4831 = vmatpush1.xpose.msra.mxu0 0.0
        %4832 = vmatprep.subr.mxu0 0.0
        %4833 = vmatpush1.xpose.msra.mxu0 0.0
        %4834 = vmatprep.subr.mxu0 0.0
        %4835 = vmatpush1.xpose.msra.mxu0 0.0
        %4836 = vmatprep.mubr.f32.mxu0 0.0
        %4837 = vmatmul.mubr.f32.gmra.mrb[0].mxu0 %v4767
        %v4838 = vpop.f32.mrb[0].mxu0
        %v4839 = vadd.f32 0.0, %v4838
        %v4840 = vpop.f32.mrb[0].mxu0
        %4841 = vmatprep.mubr.f32.mxu0 0.0
        %4842 = vmatmul.mubr.f32.gmra.mrb[0].mxu0 %v4770
        %v4843 = vpop.f32.mrb[0].mxu0
        %v4844 = vadd.f32 0.0, %v4843
        %v4845 = vpop.f32.mrb[0].mxu0
        %4846 = vdwg.mxu0
        %v4847 = vmul.f32 %v4839, 0.35355338
        %v4848 = vmul.f32 %v4844, 0.35355338
        %v4849 = vsel %vm4461, %v4847, -inf
        %4850 = vmax.xlane.f32.xlu0 %v4849
        %v4851 = vpop.xlane.xlu0 %4850
        %v4852 = vsel %vm4465, %v4848, -inf
        %4853 = vmax.xlane.f32.xlu0 %v4852
        %v4854 = vpop.xlane.xlu0 %4853
        %v4855 = vsub.f32 %v4847, %v4851
        %v4856 = vsub.f32 %v4848, %v4854
        %v4857 = vmul.f32 %v4855, 1.442695
        %v4858 = vpow.pop %v4857
        %v4859 = vmul.f32 %v4856, 1.442695
        %v4860 = vpow.pop %v4859
        %v4861 = vsel %vm4461, %v4858, 0.0
        %4862 = vadd.xlane.f32.xlu0 %v4861
        %v4863 = vpop.xlane.xlu0 %4862
        %v4864 = vsel %vm4465, %v4860, 0.0
        %4865 = vadd.xlane.f32.xlu0 %v4864
        %v4866 = vpop.xlane.xlu0 %4865
        %v4867 = vrcp.pop %v4863
        %v4868 = vrcp.pop %v4866
        %v4869 = vmul.f32 %v4858, %v4867
        %v4870 = vmul.f32 %v4860, %v4868
        %v4871 = vmul.f32 %v4362, %v1064
        %v4872 = vmul.f32 %v4367, %v1064
        %v4874 = vsel %vm4461, %v4869, 0
        %v4877 = vsel %vm4461, %v4870, 0
        %v4880 = vsel %vm2303, %v4872, 0
        %4882 = vmatprep.subr.mxu0 0.0
        %4883 = vmatpush1.msra.mxu0 %v4871
        %4884 = vmatprep.subr.mxu0 0.0
        %4885 = vmatpush1.msra.mxu0 %v4880
        %4886 = vmatprep.subr.mxu0 0.0
        %4887 = vmatpush1.msra.mxu0 0.0
        %4888 = vmatprep.subr.mxu0 0.0
        %4889 = vmatpush1.msra.mxu0 0.0
        %4890 = vmatprep.subr.mxu0 0.0
        %4891 = vmatpush1.msra.mxu0 0.0
        %4892 = vmatprep.subr.mxu0 0.0
        %4893 = vmatpush1.msra.mxu0 0.0
        %4894 = vmatprep.subr.mxu0 0.0
        %4895 = vmatpush1.msra.mxu0 0.0
        %4896 = vmatprep.subr.mxu0 0.0
        %4897 = vmatpush1.msra.mxu0 0.0
        %4898 = vmatprep.subr.mxu0 0.0
        %4899 = vmatpush1.msra.mxu0 0.0
        %4900 = vmatprep.subr.mxu0 0.0
        %4901 = vmatpush1.msra.mxu0 0.0
        %4902 = vmatprep.subr.mxu0 0.0
        %4903 = vmatpush1.msra.mxu0 0.0
        %4904 = vmatprep.subr.mxu0 0.0
        %4905 = vmatpush1.msra.mxu0 0.0
        %4906 = vmatprep.subr.mxu0 0.0
        %4907 = vmatpush1.msra.mxu0 0.0
        %4908 = vmatprep.subr.mxu0 0.0
        %4909 = vmatpush1.msra.mxu0 0.0
        %4910 = vmatprep.subr.mxu0 0.0
        %4911 = vmatpush1.msra.mxu0 0.0
        %4912 = vmatprep.subr.mxu0 0.0
        %4913 = vmatpush1.msra.mxu0 0.0
        %4914 = vmatprep.subr.mxu0 0.0
        %4915 = vmatpush1.msra.mxu0 0.0
        %4916 = vmatprep.subr.mxu0 0.0
        %4917 = vmatpush1.msra.mxu0 0.0
        %4918 = vmatprep.subr.mxu0 0.0
        %4919 = vmatpush1.msra.mxu0 0.0
        %4920 = vmatprep.subr.mxu0 0.0
        %4921 = vmatpush1.msra.mxu0 0.0
        %4922 = vmatprep.subr.mxu0 0.0
        %4923 = vmatpush1.msra.mxu0 0.0
        %4924 = vmatprep.subr.mxu0 0.0
        %4925 = vmatpush1.msra.mxu0 0.0
        %4926 = vmatprep.subr.mxu0 0.0
        %4927 = vmatpush1.msra.mxu0 0.0
        %4928 = vmatprep.subr.mxu0 0.0
        %4929 = vmatpush1.msra.mxu0 0.0
        %4930 = vmatprep.subr.mxu0 0.0
        %4931 = vmatpush1.msra.mxu0 0.0
        %4932 = vmatprep.subr.mxu0 0.0
        %4933 = vmatpush1.msra.mxu0 0.0
        %4934 = vmatprep.subr.mxu0 0.0
        %4935 = vmatpush1.msra.mxu0 0.0
        %4936 = vmatprep.subr.mxu0 0.0
        %4937 = vmatpush1.msra.mxu0 0.0
        %4938 = vmatprep.subr.mxu0 0.0
        %4939 = vmatpush1.msra.mxu0 0.0
        %4940 = vmatprep.subr.mxu0 0.0
        %4941 = vmatpush1.msra.mxu0 0.0
        %4942 = vmatprep.subr.mxu0 0.0
        %4943 = vmatpush1.msra.mxu0 0.0
        %4944 = vmatprep.subr.mxu0 0.0
        %4945 = vmatpush1.msra.mxu0 0.0
        %4946 = vmatprep.mubr.f32.mxu0 0.0
        %4947 = vmatmul.mubr.f32.gmra.mrb[0].mxu0 %v4874
        %v4948 = vpop.f32.mrb[0].mxu0
        %v4949 = vadd.f32 0.0, %v4948
        %v4950 = vpop.f32.mrb[0].mxu0
        %4951 = vmatprep.mubr.f32.mxu0 0.0
        %4952 = vmatmul.mubr.f32.gmra.mrb[0].mxu0 %v4877
        %v4953 = vpop.f32.mrb[0].mxu0
        %v4954 = vadd.f32 0.0, %v4953
        %v4955 = vpop.f32.mrb[0].mxu0
        %4956 = vdwg.mxu0
        %v4957 = vadd.f32 %v4756, %v4949
        %v4958 = vadd.f32 %v4761, %v4954
        %v4959 = vmul.f32 %v4212, %v1069
        %v4960 = vmul.f32 %v4217, %v1069
        %v4962 = vsel %vm1102, %v4959, 0
        %v4965 = vsel %vm1102, %v4960, 0
        %4967 = vmatprep.subr.mxu0 0.0
        %4968 = vmatpush1.xpose.msra.mxu0 %v4379
        %4969 = vmatprep.subr.mxu0 0.0
        %4970 = vmatpush1.xpose.msra.mxu0 %v4382
        %4971 = vmatprep.subr.mxu0 0.0
        %4972 = vmatpush1.xpose.msra.mxu0 0.0
        %4973 = vmatprep.subr.mxu0 0.0
        %4974 = vmatpush1.xpose.msra.mxu0 0.0
        %4975 = vmatprep.subr.mxu0 0.0
        %4976 = vmatpush1.xpose.msra.mxu0 0.0
        %4977 = vmatprep.subr.mxu0 0.0
        %4978 = vmatpush1.xpose.msra.mxu0 0.0
        %4979 = vmatprep.subr.mxu0 0.0
        %4980 = vmatpush1.xpose.msra.mxu0 0.0
        %4981 = vmatprep.subr.mxu0 0.0
        %4982 = vmatpush1.xpose.msra.mxu0 0.0
        %4983 = vmatprep.subr.mxu0 0.0
        %4984 = vmatpush1.xpose.msra.mxu0 0.0
        %4985 = vmatprep.subr.mxu0 0.0
        %4986 = vmatpush1.xpose.msra.mxu0 0.0
        %4987 = vmatprep.subr.mxu0 0.0
        %4988 = vmatpush1.xpose.msra.mxu0 0.0
        %4989 = vmatprep.subr.mxu0 0.0
        %4990 = vmatpush1.xpose.msra.mxu0 0.0
        %4991 = vmatprep.subr.mxu0 0.0
        %4992 = vmatpush1.xpose.msra.mxu0 0.0
        %4993 = vmatprep.subr.mxu0 0.0
        %4994 = vmatpush1.xpose.msra.mxu0 0.0
        %4995 = vmatprep.subr.mxu0 0.0
        %4996 = vmatpush1.xpose.msra.mxu0 0.0
        %4997 = vmatprep.subr.mxu0 0.0
        %4998 = vmatpush1.xpose.msra.mxu0 0.0
        %4999 = vmatprep.subr.mxu0 0.0
        %5000 = vmatpush1.xpose.msra.mxu0 0.0
        %5001 = vmatprep.subr.mxu0 0.0
        %5002 = vmatpush1.xpose.msra.mxu0 0.0
        %5003 = vmatprep.subr.mxu0 0.0
        %5004 = vmatpush1.xpose.msra.mxu0 0.0
        %5005 = vmatprep.subr.mxu0 0.0
        %5006 = vmatpush1.xpose.msra.mxu0 0.0
        %5007 = vmatprep.subr.mxu0 0.0
        %5008 = vmatpush1.xpose.msra.mxu0 0.0
        %5009 = vmatprep.subr.mxu0 0.0
        %5010 = vmatpush1.xpose.msra.mxu0 0.0
        %5011 = vmatprep.subr.mxu0 0.0
        %5012 = vmatpush1.xpose.msra.mxu0 0.0
        %5013 = vmatprep.subr.mxu0 0.0
        %5014 = vmatpush1.xpose.msra.mxu0 0.0
        %5015 = vmatprep.subr.mxu0 0.0
        %5016 = vmatpush1.xpose.msra.mxu0 0.0
        %5017 = vmatprep.subr.mxu0 0.0
        %5018 = vmatpush1.xpose.msra.mxu0 0.0
        %5019 = vmatprep.subr.mxu0 0.0
        %5020 = vmatpush1.xpose.msra.mxu0 0.0
        %5021 = vmatprep.subr.mxu0 0.0
        %5022 = vmatpush1.xpose.msra.mxu0 0.0
        %5023 = vmatprep.subr.mxu0 0.0
        %5024 = vmatpush1.xpose.msra.mxu0 0.0
        %5025 = vmatprep.subr.mxu0 0.0
        %5026 = vmatpush1.xpose.msra.mxu0 0.0
        %5027 = vmatprep.subr.mxu0 0.0
        %5028 = vmatpush1.xpose.msra.mxu0 0.0
        %5029 = vmatprep.subr.mxu0 0.0
        %5030 = vmatpush1.xpose.msra.mxu0 0.0
        %5031 = vmatprep.mubr.f32.mxu0 0.0
        %5032 = vmatmul.mubr.f32.gmra.mrb[0].mxu0 %v4962
        %v5033 = vpop.f32.mrb[0].mxu0
        %v5034 = vadd.f32 0.0, %v5033
        %v5035 = vpop.f32.mrb[0].mxu0
        %5036 = vmatprep.mubr.f32.mxu0 0.0
        %5037 = vmatmul.mubr.f32.gmra.mrb[0].mxu0 %v4965
        %v5038 = vpop.f32.mrb[0].mxu0
        %v5039 = vadd.f32 0.0, %v5038
        %v5040 = vpop.f32.mrb[0].mxu0
        %5041 = vdwg.mxu0
        %v5042 = vmul.f32 %v5034, 0.35355338
        %v5043 = vmul.f32 %v5039, 0.35355338
        %v5044 = vsel %vm4461, %v5042, -inf
        %5045 = vmax.xlane.f32.xlu0 %v5044
        %v5046 = vpop.xlane.xlu0 %5045
        %v5047 = vsel %vm4465, %v5043, -inf
        %5048 = vmax.xlane.f32.xlu0 %v5047
        %v5049 = vpop.xlane.xlu0 %5048
        %v5050 = vsub.f32 %v5042, %v5046
        %v5051 = vsub.f32 %v5043, %v5049
        %v5052 = vmul.f32 %v5050, 1.442695
        %v5053 = vpow.pop %v5052
        %v5054 = vmul.f32 %v5051, 1.442695
        %v5055 = vpow.pop %v5054
        %v5056 = vsel %vm4461, %v5053, 0.0
        %5057 = vadd.xlane.f32.xlu0 %v5056
        %v5058 = vpop.xlane.xlu0 %5057
        %v5059 = vsel %vm4465, %v5055, 0.0
        %5060 = vadd.xlane.f32.xlu0 %v5059
        %v5061 = vpop.xlane.xlu0 %5060
        %v5062 = vrcp.pop %v5058
        %v5063 = vrcp.pop %v5061
        %v5064 = vmul.f32 %v5053, %v5062
        %v5065 = vmul.f32 %v5055, %v5063
        %v5066 = vmul.f32 %v4362, %v1069
        %v5067 = vmul.f32 %v4367, %v1069
        %v5069 = vsel %vm4461, %v5064, 0
        %v5072 = vsel %vm4461, %v5065, 0
        %v5075 = vsel %vm2303, %v5067, 0
        %5077 = vmatprep.subr.mxu0 0.0
        %5078 = vmatpush1.msra.mxu0 %v5066
        %5079 = vmatprep.subr.mxu0 0.0
        %5080 = vmatpush1.msra.mxu0 %v5075
        %5081 = vmatprep.subr.mxu0 0.0
        %5082 = vmatpush1.msra.mxu0 0.0
        %5083 = vmatprep.subr.mxu0 0.0
        %5084 = vmatpush1.msra.mxu0 0.0
        %5085 = vmatprep.subr.mxu0 0.0
        %5086 = vmatpush1.msra.mxu0 0.0
        %5087 = vmatprep.subr.mxu0 0.0
        %5088 = vmatpush1.msra.mxu0 0.0
        %5089 = vmatprep.subr.mxu0 0.0
        %5090 = vmatpush1.msra.mxu0 0.0
        %5091 = vmatprep.subr.mxu0 0.0
        %5092 = vmatpush1.msra.mxu0 0.0
        %5093 = vmatprep.subr.mxu0 0.0
        %5094 = vmatpush1.msra.mxu0 0.0
        %5095 = vmatprep.subr.mxu0 0.0
        %5096 = vmatpush1.msra.mxu0 0.0
        %5097 = vmatprep.subr.mxu0 0.0
        %5098 = vmatpush1.msra.mxu0 0.0
        %5099 = vmatprep.subr.mxu0 0.0
        %5100 = vmatpush1.msra.mxu0 0.0
        %5101 = vmatprep.subr.mxu0 0.0
        %5102 = vmatpush1.msra.mxu0 0.0
        %5103 = vmatprep.subr.mxu0 0.0
        %5104 = vmatpush1.msra.mxu0 0.0
        %5105 = vmatprep.subr.mxu0 0.0
        %5106 = vmatpush1.msra.mxu0 0.0
        %5107 = vmatprep.subr.mxu0 0.0
        %5108 = vmatpush1.msra.mxu0 0.0
        %5109 = vmatprep.subr.mxu0 0.0
        %5110 = vmatpush1.msra.mxu0 0.0
        %5111 = vmatprep.subr.mxu0 0.0
        %5112 = vmatpush1.msra.mxu0 0.0
        %5113 = vmatprep.subr.mxu0 0.0
        %5114 = vmatpush1.msra.mxu0 0.0
        %5115 = vmatprep.subr.mxu0 0.0
        %5116 = vmatpush1.msra.mxu0 0.0
        %5117 = vmatprep.subr.mxu0 0.0
        %5118 = vmatpush1.msra.mxu0 0.0
        %5119 = vmatprep.subr.mxu0 0.0
        %5120 = vmatpush1.msra.mxu0 0.0
        %5121 = vmatprep.subr.mxu0 0.0
        %5122 = vmatpush1.msra.mxu0 0.0
        %5123 = vmatprep.subr.mxu0 0.0
        %5124 = vmatpush1.msra.mxu0 0.0
        %5125 = vmatprep.subr.mxu0 0.0
        %5126 = vmatpush1.msra.mxu0 0.0
        %5127 = vmatprep.subr.mxu0 0.0
        %5128 = vmatpush1.msra.mxu0 0.0
        %5129 = vmatprep.subr.mxu0 0.0
        %5130 = vmatpush1.msra.mxu0 0.0
        %5131 = vmatprep.subr.mxu0 0.0
        %5132 = vmatpush1.msra.mxu0 0.0
        %5133 = vmatprep.subr.mxu0 0.0
        %5134 = vmatpush1.msra.mxu0 0.0
        %5135 = vmatprep.subr.mxu0 0.0
        %5136 = vmatpush1.msra.mxu0 0.0
        %5137 = vmatprep.subr.mxu0 0.0
        %5138 = vmatpush1.msra.mxu0 0.0
        %5139 = vmatprep.subr.mxu0 0.0
        %5140 = vmatpush1.msra.mxu0 0.0
        %5141 = vmatprep.mubr.f32.mxu0 0.0
        %5142 = vmatmul.mubr.f32.gmra.mrb[0].mxu0 %v5069
        %v5143 = vpop.f32.mrb[0].mxu0
        %v5144 = vadd.f32 0.0, %v5143
        %v5145 = vpop.f32.mrb[0].mxu0
        %5146 = vmatprep.mubr.f32.mxu0 0.0
        %5147 = vmatmul.mubr.f32.gmra.mrb[0].mxu0 %v5072
        %v5148 = vpop.f32.mrb[0].mxu0
        %v5149 = vadd.f32 0.0, %v5148
        %v5150 = vpop.f32.mrb[0].mxu0
        %5151 = vdwg.mxu0
        %v5152 = vadd.f32 %v4957, %v5144
        %v5153 = vadd.f32 %v4958, %v5149
        %v5155 = vsel %vm1102, %v5152, 0
        %v5158 = vsel %vm1102, %v5153, 0
        %5160 = vmatprep.subr.mxu0 0.0
        %5161 = vmatpush1.msra.mxu0 %v4076
        %5162 = vmatprep.subr.mxu0 0.0
        %5163 = vmatpush1.msra.mxu0 %v4077
        %5164 = vmatprep.subr.mxu0 0.0
        %5165 = vmatpush1.msra.mxu0 %v4078
        %5166 = vmatprep.subr.mxu0 0.0
        %5167 = vmatpush1.msra.mxu0 %v4079
        %5168 = vmatprep.subr.mxu0 0.0
        %5169 = vmatpush1.msra.mxu0 0.0
        %5170 = vmatprep.subr.mxu0 0.0
        %5171 = vmatpush1.msra.mxu0 0.0
        %5172 = vmatprep.subr.mxu0 0.0
        %5173 = vmatpush1.msra.mxu0 0.0
        %5174 = vmatprep.subr.mxu0 0.0
        %5175 = vmatpush1.msra.mxu0 0.0
        %5176 = vmatprep.subr.mxu0 0.0
        %5177 = vmatpush1.msra.mxu0 0.0
        %5178 = vmatprep.subr.mxu0 0.0
        %5179 = vmatpush1.msra.mxu0 0.0
        %5180 = vmatprep.subr.mxu0 0.0
        %5181 = vmatpush1.msra.mxu0 0.0
        %5182 = vmatprep.subr.mxu0 0.0
        %5183 = vmatpush1.msra.mxu0 0.0
        %5184 = vmatprep.subr.mxu0 0.0
        %5185 = vmatpush1.msra.mxu0 0.0
        %5186 = vmatprep.subr.mxu0 0.0
        %5187 = vmatpush1.msra.mxu0 0.0
        %5188 = vmatprep.subr.mxu0 0.0
        %5189 = vmatpush1.msra.mxu0 0.0
        %5190 = vmatprep.subr.mxu0 0.0
        %5191 = vmatpush1.msra.mxu0 0.0
        %5192 = vmatprep.subr.mxu0 0.0
        %5193 = vmatpush1.msra.mxu0 0.0
        %5194 = vmatprep.subr.mxu0 0.0
        %5195 = vmatpush1.msra.mxu0 0.0
        %5196 = vmatprep.subr.mxu0 0.0
        %5197 = vmatpush1.msra.mxu0 0.0
        %5198 = vmatprep.subr.mxu0 0.0
        %5199 = vmatpush1.msra.mxu0 0.0
        %5200 = vmatprep.subr.mxu0 0.0
        %5201 = vmatpush1.msra.mxu0 0.0
        %5202 = vmatprep.subr.mxu0 0.0
        %5203 = vmatpush1.msra.mxu0 0.0
        %5204 = vmatprep.subr.mxu0 0.0
        %5205 = vmatpush1.msra.mxu0 0.0
        %5206 = vmatprep.subr.mxu0 0.0
        %5207 = vmatpush1.msra.mxu0 0.0
        %5208 = vmatprep.subr.mxu0 0.0
        %5209 = vmatpush1.msra.mxu0 0.0
        %5210 = vmatprep.subr.mxu0 0.0
        %5211 = vmatpush1.msra.mxu0 0.0
        %5212 = vmatprep.subr.mxu0 0.0
        %5213 = vmatpush1.msra.mxu0 0.0
        %5214 = vmatprep.subr.mxu0 0.0
        %5215 = vmatpush1.msra.mxu0 0.0
        %5216 = vmatprep.subr.mxu0 0.0
        %5217 = vmatpush1.msra.mxu0 0.0
        %5218 = vmatprep.subr.mxu0 0.0
        %5219 = vmatpush1.msra.mxu0 0.0
        %5220 = vmatprep.subr.mxu0 0.0
        %5221 = vmatpush1.msra.mxu0 0.0
        %5222 = vmatprep.subr.mxu0 0.0
        %5223 = vmatpush1.msra.mxu0 0.0
        %5224 = vmatprep.mubr.f32.mxu0 0.0
        %5225 = vmatmul.mubr.f32.gmra.mrb[0].mxu0 %v5155
        %v5226 = vpop.f32.mrb[0].mxu0
        %v5227 = vadd.f32 0.0, %v5226
        %v5228 = vpop.f32.mrb[0].mxu0
        %5229 = vmatprep.mubr.f32.mxu0 0.0
        %5230 = vmatmul.mubr.f32.gmra.mrb[0].mxu0 %v5158
        %v5231 = vpop.f32.mrb[0].mxu0
        %v5232 = vadd.f32 0.0, %v5231
        %v5233 = vpop.f32.mrb[0].mxu0
        %5234 = vdwg.mxu0
        %v5235 = vadd.f32 %v4061, %v5227
        %v5236 = vadd.f32 %v4058, %v5232
        %v5238 = vlaneseq
        %v5239 = vshrl.u32 %v5238, 7
        %v5240 = vsub.s32 0, %v5239
        %v5241 = vrot.slane %v4080, %v5240
        %v5243 = vadd.f32 %v5235, %v5241
        %v5244 = vadd.f32 %v5236, %v5241
        %v5245 = vsel %vm1102, %v5243, 0.0
        %5246 = vadd.xlane.f32.xlu0 %v5245
        %v5247 = vpop.xlane.xlu0 %5246
        %v5248 = vsel %vm1399, %v5244, 0.0
        %5249 = vadd.xlane.f32.xlu0 %v5248
        %v5250 = vpop.xlane.xlu0 %5249
        %v5251 = vmul.f32 %v5247, %v1403
        %v5252 = vmul.f32 %v5250, %v1403
        %v5253 = vsub.f32 %v5243, %v5251
        %v5254 = vsub.f32 %v5244, %v5252
        %v5255 = vmul.f32 %v5253, %v5253
        %v5256 = vmul.f32 %v5254, %v5254
        %v5257 = vsel %vm1102, %v5255, 0.0
        %5258 = vadd.xlane.f32.xlu0 %v5257
        %v5259 = vpop.xlane.xlu0 %5258
        %v5260 = vsel %vm1399, %v5256, 0.0
        %5261 = vadd.xlane.f32.xlu0 %v5260
        %v5262 = vpop.xlane.xlu0 %5261
        %v5263 = vmul.f32 %v5259, %v1403
        %v5264 = vmul.f32 %v5262, %v1403
        %v5265 = vadd.f32 %v5263, 1e-05
        %v5266 = vadd.f32 %v5264, 1e-05
        %v5267 = vrsqrt.pop %v5265
        %v5268 = vrsqrt.pop %v5266
        %v5269 = vmul.f32 %v5253, %v5267
        %v5270 = vmul.f32 %v5254, %v5268
        %v5272 = vlaneseq
        %v5273 = vshrl.u32 %v5272, 7
        %v5274 = vsub.s32 0, %v5273
        %v5275 = vrot.slane %v4081, %v5274
        %v5277 = vmul.f32 %v5269, %v5275
        %v5278 = vmul.f32 %v5270, %v5275
        %v5280 = vlaneseq
        %v5281 = vshrl.u32 %v5280, 7
        %v5282 = vsub.s32 0, %v5281
        %v5283 = vrot.slane %v4082, %v5282
        %v5285 = vadd.f32 %v5277, %v5283
        %v5286 = vadd.f32 %v5278, %v5283
        %v5288 = vlaneseq
        %v5289 = vshrl.u32 %v5288, 7
        %v5290 = vsub.s32 0, %v5289
        %v5291 = vrot.slane %v4087, %v5290
        %v5294 = vsel %vm1102, %v5285, 0
        %v5297 = vsel %vm1102, %v5286, 0
        %5299 = vmatprep.subr.mxu0 0.0
        %5300 = vmatpush1.msra.mxu0 %v4083
        %5301 = vmatprep.subr.mxu0 0.0
        %5302 = vmatpush1.msra.mxu0 %v4084
        %5303 = vmatprep.subr.mxu0 0.0
        %5304 = vmatpush1.msra.mxu0 %v4085
        %5305 = vmatprep.subr.mxu0 0.0
        %5306 = vmatpush1.msra.mxu0 %v4086
        %5307 = vmatprep.subr.mxu0 0.0
        %5308 = vmatpush1.msra.mxu0 0.0
        %5309 = vmatprep.subr.mxu0 0.0
        %5310 = vmatpush1.msra.mxu0 0.0
        %5311 = vmatprep.subr.mxu0 0.0
        %5312 = vmatpush1.msra.mxu0 0.0
        %5313 = vmatprep.subr.mxu0 0.0
        %5314 = vmatpush1.msra.mxu0 0.0
        %5315 = vmatprep.subr.mxu0 0.0
        %5316 = vmatpush1.msra.mxu0 0.0
        %5317 = vmatprep.subr.mxu0 0.0
        %5318 = vmatpush1.msra.mxu0 0.0
        %5319 = vmatprep.subr.mxu0 0.0
        %5320 = vmatpush1.msra.mxu0 0.0
        %5321 = vmatprep.subr.mxu0 0.0
        %5322 = vmatpush1.msra.mxu0 0.0
        %5323 = vmatprep.subr.mxu0 0.0
        %5324 = vmatpush1.msra.mxu0 0.0
        %5325 = vmatprep.subr.mxu0 0.0
        %5326 = vmatpush1.msra.mxu0 0.0
        %5327 = vmatprep.subr.mxu0 0.0
        %5328 = vmatpush1.msra.mxu0 0.0
        %5329 = vmatprep.subr.mxu0 0.0
        %5330 = vmatpush1.msra.mxu0 0.0
        %5331 = vmatprep.subr.mxu0 0.0
        %5332 = vmatpush1.msra.mxu0 0.0
        %5333 = vmatprep.subr.mxu0 0.0
        %5334 = vmatpush1.msra.mxu0 0.0
        %5335 = vmatprep.subr.mxu0 0.0
        %5336 = vmatpush1.msra.mxu0 0.0
        %5337 = vmatprep.subr.mxu0 0.0
        %5338 = vmatpush1.msra.mxu0 0.0
        %5339 = vmatprep.subr.mxu0 0.0
        %5340 = vmatpush1.msra.mxu0 0.0
        %5341 = vmatprep.subr.mxu0 0.0
        %5342 = vmatpush1.msra.mxu0 0.0
        %5343 = vmatprep.subr.mxu0 0.0
        %5344 = vmatpush1.msra.mxu0 0.0
        %5345 = vmatprep.subr.mxu0 0.0
        %5346 = vmatpush1.msra.mxu0 0.0
        %5347 = vmatprep.subr.mxu0 0.0
        %5348 = vmatpush1.msra.mxu0 0.0
        %5349 = vmatprep.subr.mxu0 0.0
        %5350 = vmatpush1.msra.mxu0 0.0
        %5351 = vmatprep.subr.mxu0 0.0
        %5352 = vmatpush1.msra.mxu0 0.0
        %5353 = vmatprep.subr.mxu0 0.0
        %5354 = vmatpush1.msra.mxu0 0.0
        %5355 = vmatprep.subr.mxu0 0.0
        %5356 = vmatpush1.msra.mxu0 0.0
        %5357 = vmatprep.subr.mxu0 0.0
        %5358 = vmatpush1.msra.mxu0 0.0
        %5359 = vmatprep.subr.mxu0 0.0
        %5360 = vmatpush1.msra.mxu0 0.0
        %5361 = vmatprep.subr.mxu0 0.0
        %5362 = vmatpush1.msra.mxu0 0.0
        %5363 = vmatprep.mubr.f32.mxu0 0.0
        %5364 = vmatmul.mubr.f32.gmra.mrb[0].mxu0 %v5294
        %v5365 = vpop.f32.mrb[0].mxu0
        %v5366 = vadd.f32 %v5291, %v5365
        %v5367 = vpop.f32.mrb[0].mxu0
        %5368 = vmatprep.mubr.f32.mxu0 0.0
        %5369 = vmatmul.mubr.f32.gmra.mrb[0].mxu0 %v5297
        %v5370 = vpop.f32.mrb[0].mxu0
        %v5371 = vadd.f32 %v5291, %v5370
        %v5372 = vpop.f32.mrb[0].mxu0
        %5373 = vdwg.mxu0
        %v5374 = vmul.f32 %v5366, 0.5
        %v5375 = vmul.f32 %v5371, 0.5
        %v5376 = vmul.f32 %v5366, 0.70710677
        %v5377 = vmul.f32 %v5371, 0.70710677
        %vm5378 = vcmp.ge.f32.partialorder %v5376, 0.0
        %vm5379 = vcmp.ge.f32.partialorder %v5377, 0.0
        %v5380 = vsel %vm5378, 1.0, -1.0
        %v5381 = vsel %vm5379, 1.0, -1.0
        %v5382 = vand.u32 2147483647, %v5376
        %v5383 = vand.u32 2147483647, %v5377
        %v5384 = vmul.f32 %v5382, 0.3275911
        %v5385 = vmul.f32 %v5383, 0.3275911
        %v5386 = vadd.f32 %v5384, 1.0
        %v5387 = vadd.f32 %v5385, 1.0
        %v5388 = vrcp.pop %v5386
        %v5389 = vmul.f32 1.0, %v5388
        %v5390 = vrcp.pop %v5387
        %v5391 = vmul.f32 1.0, %v5390
        %v5392 = vmul.f32 %v5389, 1.0614054
        %v5393 = vmul.f32 %v5391, 1.0614054
        %v5394 = vadd.f32 %v5392, -1.4531521
        %v5395 = vadd.f32 %v5393, -1.4531521
        %v5396 = vmul.f32 %v5394, %v5389
        %v5397 = vmul.f32 %v5395, %v5391
        %v5398 = vadd.f32 %v5396, 1.4214138
        %v5399 = vadd.f32 %v5397, 1.4214138
        %v5400 = vmul.f32 %v5398, %v5389
        %v5401 = vmul.f32 %v5399, %v5391
        %v5402 = vadd.f32 %v5400, -0.28449672
        %v5403 = vadd.f32 %v5401, -0.28449672
        %v5404 = vmul.f32 %v5402, %v5389
        %v5405 = vmul.f32 %v5403, %v5391
        %v5406 = vadd.f32 %v5404, 0.2548296
        %v5407 = vadd.f32 %v5405, 0.2548296
        %v5408 = vmul.f32 %v5406, %v5389
        %v5409 = vmul.f32 %v5407, %v5391
        %v5410 = vsub.f32 0.0, %v5382
        %v5411 = vsub.f32 0.0, %v5383
        %v5412 = vmul.f32 %v5410, %v5382
        %v5413 = vmul.f32 %v5411, %v5383
        %v5414 = vmul.f32 %v5412, 1.442695
        %v5415 = vpow.pop %v5414
        %v5416 = vmul.f32 %v5413, 1.442695
        %v5417 = vpow.pop %v5416
        %v5418 = vmul.f32 %v5408, %v5415
        %v5419 = vmul.f32 %v5409, %v5417
        %v5420 = vsub.f32 1.0, %v5418
        %v5421 = vsub.f32 1.0, %v5419
        %v5422 = vmul.f32 %v5380, %v5420
        %v5423 = vmul.f32 %v5381, %v5421
        %v5424 = vadd.f32 %v5422, 1.0
        %v5425 = vadd.f32 %v5423, 1.0
        %v5426 = vmul.f32 %v5374, %v5424
        %v5427 = vmul.f32 %v5375, %v5425
        %v5429 = vsel %vm3805, %v5426, 0
        %v5432 = vsel %vm3805, %v5427, 0
        %5434 = vmatprep.subr.mxu0 0.0
        %5435 = vmatpush1.msra.mxu0 %v4088
        %5436 = vmatprep.subr.mxu0 0.0
        %5437 = vmatpush1.msra.mxu0 %v4089
        %5438 = vmatprep.subr.mxu0 0.0
        %5439 = vmatpush1.msra.mxu0 %v4090
        %5440 = vmatprep.subr.mxu0 0.0
        %5441 = vmatpush1.msra.mxu0 %v4091
        %5442 = vmatprep.subr.mxu0 0.0
        %5443 = vmatpush1.msra.mxu0 %v4092
        %5444 = vmatprep.subr.mxu0 0.0
        %5445 = vmatpush1.msra.mxu0 %v4093
        %5446 = vmatprep.subr.mxu0 0.0
        %5447 = vmatpush1.msra.mxu0 %v4094
        %5448 = vmatprep.subr.mxu0 0.0
        %5449 = vmatpush1.msra.mxu0 %v4095
        %5450 = vmatprep.subr.mxu0 0.0
        %5451 = vmatpush1.msra.mxu0 0.0
        %5452 = vmatprep.subr.mxu0 0.0
        %5453 = vmatpush1.msra.mxu0 0.0
        %5454 = vmatprep.subr.mxu0 0.0
        %5455 = vmatpush1.msra.mxu0 0.0
        %5456 = vmatprep.subr.mxu0 0.0
        %5457 = vmatpush1.msra.mxu0 0.0
        %5458 = vmatprep.subr.mxu0 0.0
        %5459 = vmatpush1.msra.mxu0 0.0
        %5460 = vmatprep.subr.mxu0 0.0
        %5461 = vmatpush1.msra.mxu0 0.0
        %5462 = vmatprep.subr.mxu0 0.0
        %5463 = vmatpush1.msra.mxu0 0.0
        %5464 = vmatprep.subr.mxu0 0.0
        %5465 = vmatpush1.msra.mxu0 0.0
        %5466 = vmatprep.subr.mxu0 0.0
        %5467 = vmatpush1.msra.mxu0 0.0
        %5468 = vmatprep.subr.mxu0 0.0
        %5469 = vmatpush1.msra.mxu0 0.0
        %5470 = vmatprep.subr.mxu0 0.0
        %5471 = vmatpush1.msra.mxu0 0.0
        %5472 = vmatprep.subr.mxu0 0.0
        %5473 = vmatpush1.msra.mxu0 0.0
        %5474 = vmatprep.subr.mxu0 0.0
        %5475 = vmatpush1.msra.mxu0 0.0
        %5476 = vmatprep.subr.mxu0 0.0
        %5477 = vmatpush1.msra.mxu0 0.0
        %5478 = vmatprep.subr.mxu0 0.0
        %5479 = vmatpush1.msra.mxu0 0.0
        %5480 = vmatprep.subr.mxu0 0.0
        %5481 = vmatpush1.msra.mxu0 0.0
        %5482 = vmatprep.subr.mxu0 0.0
        %5483 = vmatpush1.msra.mxu0 0.0
        %5484 = vmatprep.subr.mxu0 0.0
        %5485 = vmatpush1.msra.mxu0 0.0
        %5486 = vmatprep.subr.mxu0 0.0
        %5487 = vmatpush1.msra.mxu0 0.0
        %5488 = vmatprep.subr.mxu0 0.0
        %5489 = vmatpush1.msra.mxu0 0.0
        %5490 = vmatprep.subr.mxu0 0.0
        %5491 = vmatpush1.msra.mxu0 0.0
        %5492 = vmatprep.subr.mxu0 0.0
        %5493 = vmatpush1.msra.mxu0 0.0
        %5494 = vmatprep.subr.mxu0 0.0
        %5495 = vmatpush1.msra.mxu0 0.0
        %5496 = vmatprep.subr.mxu0 0.0
        %5497 = vmatpush1.msra.mxu0 0.0
        %5498 = vmatprep.mubr.f32.mxu0 0.0
        %5499 = vmatmul.mubr.f32.gmra.mrb[0].mxu0 %v5429
        %v5500 = vpop.f32.mrb[0].mxu0
        %v5501 = vadd.f32 0.0, %v5500
        %v5502 = vpop.f32.mrb[0].mxu0
        %5503 = vmatprep.mubr.f32.mxu0 0.0
        %5504 = vmatmul.mubr.f32.gmra.mrb[0].mxu0 %v5432
        %v5505 = vpop.f32.mrb[0].mxu0
        %v5506 = vadd.f32 0.0, %v5505
        %v5507 = vpop.f32.mrb[0].mxu0
        %5508 = vdwg.mxu0
        %v5509 = vadd.f32 %v5243, %v5501
        %v5510 = vadd.f32 %v5244, %v5506
        %v5512 = vlaneseq
        %v5513 = vshrl.u32 %v5512, 7
        %v5514 = vsub.s32 0, %v5513
        %v5515 = vrot.slane %v4096, %v5514
        %v5517 = vadd.f32 %v5509, %v5515
        %v5518 = vadd.f32 %v5510, %v5515
        %vm5519 = vcmask 258052
        %5520 = vst.msk [vmem:[%s1042 - $0x3] sm:$0x10] %vm5519, %v5517
        %5521 = vst.msk [vmem:[%s1047] sm:$0xff] %vm1102, %v5517
        %5522 = vst.msk [vmem:[%s1047 + $0x8] sm:$0x1] %vm1399, %v5518
        %p5523 = scmp.lt.s32.totalorder %s53, 1
        %s5524 = scalar_select %p5523, %s53, 1
        %s5525 = smul.addr %s5524, 2
        %s5526 = smul.addr %s5525, 8
        %s5527 = scalar_lea.vmem %s27, %s5526
        %s5528 = sand.u32 %s659, 1
        %s5529 = scalar_lea.sflag [#allocation6], %s5528
        %s5530 = sand.u32 %s659, 1
        %s5531 = smul.addr %s5530, 2
        %s5532 = scalar_lea.vmem [#allocation27], %s5531
        // Predicated region
        $region185: #{tpu_custom_call.1} parent=127 // pred_check
          %p5533 = pneg %p643
        $region186: #{tpu_custom_call.1} parent=127 // pred_check_branch
          %5535 = sbr.rel (%p5533) target = $region188
        $region187: #{tpu_custom_call.1} parent=127 // pred_region
          _
        $region188: #{tpu_custom_call.1} parent=127 // pred_fallthru
          _
        // Predicated region
        $region189: #{tpu_custom_call.1} parent=127 // pred_check
          %p5536 = pneg %p669
        $region190: #{tpu_custom_call.1} parent=127 // pred_check_branch
          %5538 = sbr.rel (%p5536) target = $region192
        $region191: #{tpu_custom_call.1} parent=127 // pred_region
          %s5540 = ssub.s32 32, 32
          %5541 = vsyncadd %s5529, %s5540
          %s5542 = smul.addr %s53, 32
          %s5543 = scalar_lea.hbm %s28, %s5542
          %s5545 = sshll.u32 %s5532, 4
          %s5546 = int_to_ptr.vmem [resolvable:$true] %s5545
          %5548 = dma.vmem_to_hbm [thread:$0]  %s5546, 32, %s5543, %s5529
        $region192: #{tpu_custom_call.1} parent=127 // pred_fallthru
          _
      $region128: #{tpu_custom_call.1} parent=5 // pred_fallthru
        _
      %p5549 = scmp.le.s32.totalorder 2, %s48
      // Predicated region
      $region193: #{tpu_custom_call.1} parent=5 // pred_check
        %p5550 = pneg %p5549
      $region194: #{tpu_custom_call.1} parent=5 // pred_check_branch
        %5552 = sbr.rel (%p5550) target = $region196
      $region195: #{tpu_custom_call.1} parent=5 // pred_region
        %s5553 = ssub.s32 %s48, 2
        // Predicated region
        $region197: #{tpu_custom_call.1} parent=195 // pred_check
          %p5554 = pneg %p649
        $region198: #{tpu_custom_call.1} parent=195 // pred_check_branch
          %5556 = sbr.rel (%p5554) target = $region200
        $region199: #{tpu_custom_call.1} parent=195 // pred_region
          %p5557 = scmp.lt.s32.totalorder %s54, 1
          %s5558 = scalar_select %p5557, %s54, 1
          %s5559 = smul.addr %s5558, 2
          %s5560 = smul.addr %s5559, 8
          %s5561 = scalar_lea.vmem %s27, %s5560
        $region200: #{tpu_custom_call.1} parent=195 // pred_fallthru
          _
        // Predicated region
        $region201: #{tpu_custom_call.1} parent=195 // pred_check
          %p5562 = pneg %p675
        $region202: #{tpu_custom_call.1} parent=195 // pred_check_branch
          %5564 = sbr.rel (%p5562) target = $region204
        $region203: #{tpu_custom_call.1} parent=195 // pred_region
          %s5565 = sand.u32 %s660, 1
          %s5566 = scalar_lea.sflag [#allocation6], %s5565
          %s5567 = sand.u32 %s660, 1
          %s5568 = smul.addr %s5567, 2
          %s5569 = scalar_lea.vmem [#allocation27], %s5568
          %5570 = dma.done %s5566, 32
        $region204: #{tpu_custom_call.1} parent=195 // pred_fallthru
          _
      $region196: #{tpu_custom_call.1} parent=5 // pred_fallthru
        _
    $region6: #{tpu_custom_call.1} parent=1 // loop_footer
      %s52 = sadd.s32 1, %s48
    $region7: #{tpu_custom_call.1} parent=1 // loop_footer_branch
      %47 = sbr.rel target = $region3
    $region8: #{tpu_custom_call.1} parent=1 // loop_exit
      _
    %5571 = vsyncpa [#allocation5], 1
    %s5572 = scalar_lea.sflag [#allocation5], 1
    %5573 = vsyncpa %s5572, 1
    %5574 = vsyncpa [#allocation8], 1
    %5575 = vsyncpa [#allocation11], 1
    %5576 = vsyncpa [#allocation14], 1
    %5577 = vsyncpa [#allocation17], 1
    %5578 = vsyncpa [#allocation20], 1
    %5579 = vsyncpa [#allocation23], 1
    %5580 = vsyncpa [#allocation26], 1
    %5581 = vsyncpa [#allocation6], 1
    %s5582 = scalar_lea.sflag [#allocation6], 1
    %5583 = vsyncpa %s5582, 1

</llo_original>
